<compile_context>
chip_gen: v6e
topology: v6e:2x2x1
jax: 0.10.0
libtpu: 0.0.40
codegen_flags: <defaults>
</compile_context>

<pallas_src>
import functools
import math

import jax
import jax.numpy as jnp
from jax.experimental import pallas as pl
from jax.experimental.pallas import tpu as pltpu

# ---- model hyperparameters (small, consistent with the module's constructor) ----
VOCAB = 64
D_MODEL = 32
NUM_HEADS = 4
HEAD_DIM = D_MODEL // NUM_HEADS
DIM_FF = 64
ENC_LAYERS = 2
DEC_LAYERS = 2
PAD_ID = 0
LN_EPS = 1e-5
MAX_LEN = 512
NEG = -1e30
ATTN_SCALE = 1.0 / math.sqrt(HEAD_DIM)


# ====================== in-kernel building blocks (on values) ======================

def _split(idx, S):
    """(batch, position) of a flattened index; shift/and for power-of-two S."""
    if (S & (S - 1)) == 0:
        sh = S.bit_length() - 1
        return idx >> sh, idx & (S - 1)
    return idx // S, idx % S


def _col_to_row(col):
    """(N,1) f32 -> (1,N) f32 without jnp.transpose (iota + matmul, always lowers)."""
    n = col.shape[0]
    eye = (jax.lax.broadcasted_iota(jnp.int32, (n, n), 0) ==
           jax.lax.broadcasted_iota(jnp.int32, (n, n), 1)).astype(jnp.float32)
    return jnp.dot(jnp.ones((1, n), jnp.float32), eye * col,
                   preferred_element_type=jnp.float32)


def _build_bias(pad_row, B, Sq, Sk, causal):
    """Additive bias (H*B*Sq, B*Sk): cross-batch block-diag + key padding (+ causal)."""
    Nq, Nk = B * Sq, B * Sk
    q_idx = jax.lax.broadcasted_iota(jnp.int32, (Nq, Nk), 0)
    k_idx = jax.lax.broadcasted_iota(jnp.int32, (Nq, Nk), 1)
    qb, qp = _split(q_idx, Sq)
    kb, kp = _split(k_idx, Sk)
    masked = (qb != kb) | (pad_row > 0.5)              # pad_row: (1, Nk) broadcast
    if causal:
        masked = masked | (kp > qp)
    bias = jnp.where(masked, NEG, 0.0).astype(jnp.float32)
    # tile over heads once (hoisted out of the per-layer MHA calls)
    return jnp.broadcast_to(bias[None], (NUM_HEADS, Nq, Nk)).reshape(NUM_HEADS * Nq, Nk)


def _layer_norm(x, g, b):
    # x: (M, D), g/b: (1, D); biased variance matches PyTorch LayerNorm.
    mean = jnp.mean(x, axis=-1, keepdims=True)
    var = jnp.mean((x - mean) ** 2, axis=-1, keepdims=True)
    return (x - mean) * jax.lax.rsqrt(var + LN_EPS) * g + b


def _linear(x, w, b, relu=False):
    y = jnp.dot(x, w, preferred_element_type=jnp.float32) + b
    if relu:
        y = jnp.maximum(y, 0.0)
    return y


def _mha_flat(q2, k2, v2, w_o, b_o, bias_t, head_mask):
    """Multi-head attention with all heads folded into the row dim.

    q2: (Nq, D), k2/v2: (Nk, D), bias_t: (H*Nq, Nk) additive,
    head_mask: (H, 1, D) with ones on each head's column block.
    """
    Nq = q2.shape[0]
    # Head-masked queries: row block h holds Q with only head-h columns non-zero,
    # so one K=32 matmul against full K produces all per-head scores at once.
    qm = (q2[None, :, :] * head_mask).reshape(NUM_HEADS * Nq, D_MODEL)
    s = jnp.einsum("qd,kd->qk", qm, k2,
                   preferred_element_type=jnp.float32) * ATTN_SCALE + bias_t
    m = jnp.max(s, axis=-1, keepdims=True)
    e = jnp.exp(s - m)
    l = jnp.sum(e, axis=-1, keepdims=True)
    p = e * pl.reciprocal(l, approx=False)             # exact, still on the EUP
    ctx = jnp.dot(p, v2, preferred_element_type=jnp.float32)   # (H*Nq, D) full-V ctx
    ctx = ctx.reshape(NUM_HEADS, Nq, D_MODEL) * head_mask      # keep own head's cols
    acc = ctx[0]
    for h in range(1, NUM_HEADS):                      # tiny VPU adds (not matmuls)
        acc = acc + ctx[h]
    return jnp.dot(acc, w_o, preferred_element_type=jnp.float32) + b_o


def _encoder_layer(x, g, bias_t, head_mask):
    qkv = _linear(x, g("w_qkv"), g("b_qkv"))           # fused QKV: (N, 96)
    q = qkv[:, 0:D_MODEL]
    k = qkv[:, D_MODEL:2 * D_MODEL]
    v = qkv[:, 2 * D_MODEL:3 * D_MODEL]
    a = _mha_flat(q, k, v, g("w_o"), g("b_o"), bias_t, head_mask)
    x = _layer_norm(x + a, g("ln1_g"), g("ln1_b"))
    f = _linear(_linear(x, g("w1"), g("b1"), relu=True), g("w2"), g("b2"))
    return _layer_norm(x + f, g("ln2_g"), g("ln2_b"))


def _decoder_layer(x, mem, g, self_bias, cross_bias, head_mask):
    qkv = _linear(x, g("sa_w_qkv"), g("sa_b_qkv"))
    q = qkv[:, 0:D_MODEL]
    k = qkv[:, D_MODEL:2 * D_MODEL]
    v = qkv[:, 2 * D_MODEL:3 * D_MODEL]
    a = _mha_flat(q, k, v, g("sa_w_o"), g("sa_b_o"), self_bias, head_mask)
    x = _layer_norm(x + a, g("ln1_g"), g("ln1_b"))

    q = _linear(x, g("ca_w_q"), g("ca_b_q"))
    kv = _linear(mem, g("ca_w_kv"), g("ca_b_kv"))      # fused KV: (N, 64)
    k = kv[:, 0:D_MODEL]
    v = kv[:, D_MODEL:2 * D_MODEL]
    a = _mha_flat(q, k, v, g("ca_w_o"), g("ca_b_o"), cross_bias, head_mask)
    x = _layer_norm(x + a, g("ln2_g"), g("ln2_b"))

    f = _linear(_linear(x, g("w1"), g("b1"), relu=True), g("w2"), g("b2"))
    return _layer_norm(x + f, g("ln3_g"), g("ln3_b"))


# ============================== the fused Pallas kernel ==============================

def _fused_kernel(tok_ref, pe_ref, slab_ref, o_ref, *, layout, B, Ss, St):
    def getp(name):
        off, r, c = layout[name]                        # static python ints
        return slab_ref[off:off + r, 0:c]               # direct VMEM window load

    # ---- constants (hoisted, built once) ----
    d_idx = jax.lax.broadcasted_iota(jnp.int32, (NUM_HEADS, D_MODEL), 1)
    h_idx = jax.lax.broadcasted_iota(jnp.int32, (NUM_HEADS, D_MODEL), 0)
    lo = h_idx * HEAD_DIM
    head_mask = ((d_idx >= lo) & (d_idx < lo + HEAD_DIM)
                 ).astype(jnp.float32)[:, None, :]      # (H, 1, D)

    # ---- tokens (merged src|tgt column) and key-padding rows ----
    tok = tok_ref[...]                                  # (B*(Ss+St), 1) int32
    src_tok = tok[0:B * Ss, :]
    tgt_tok = tok[B * Ss:B * (Ss + St), :]
    src_pad_row = _col_to_row((src_tok == PAD_ID).astype(jnp.float32))   # (1, B*Ss)
    tgt_pad_row = _col_to_row((tgt_tok == PAD_ID).astype(jnp.float32))   # (1, B*St)

    # ---- attention biases, built in-kernel ----
    enc_bias = _build_bias(src_pad_row, B, Ss, Ss, causal=False)
    self_bias = _build_bias(tgt_pad_row, B, St, St, causal=True)
    cross_bias = _build_bias(src_pad_row, B, St, Ss, causal=False)

    # ---- embedding (one-hot matmul) + positional encoding (pe indexed by batch) ----
    emb = getp("embedding")                             # (VOCAB, D)
    pe_b = pe_ref[...]                                  # (B, D) = pe[:B] (module quirk)

    def embed(tok_col, S):
        N = B * S
        lane = jax.lax.broadcasted_iota(jnp.int32, (N, VOCAB), 1)
        oh = (lane == tok_col).astype(jnp.float32)      # (N, VOCAB)
        x = jnp.dot(oh, emb, preferred_element_type=jnp.float32)
        pe_rows = jnp.broadcast_to(pe_b[:, None, :], (B, S, D_MODEL)).reshape(N, D_MODEL)
        return x + pe_rows

    src_x = embed(src_tok, Ss)
    tgt_x = embed(tgt_tok, St)

    # ---------------- encoder stack + final norm ----------------
    mem = src_x
    for i in range(ENC_LAYERS):
        g = lambda name, i=i: getp(f"enc{i}/{name}")
        mem = _encoder_layer(mem, g, enc_bias, head_mask)
    mem = _layer_norm(mem, getp("enc_ln_g"), getp("enc_ln_b"))

    # ---------------- decoder stack + final norm ----------------
    out = tgt_x
    for i in range(DEC_LAYERS):
        g = lambda name, i=i: getp(f"dec{i}/{name}")
        out = _decoder_layer(out, mem, g, self_bias, cross_bias, head_mask)
    out = _layer_norm(out, getp("dec_ln_g"), getp("dec_ln_b"))

    # ---------------- vocab projection (padded to 128 lanes -> unmasked stores) ----
    logits = jnp.dot(out, getp("w_out"), preferred_element_type=jnp.float32) + getp("b_out")
    o_ref[...] = logits                                  # (B*St, 128), lane-dense


# ============================== wrapper ==============================

def transformer_forward(params, src, tgt, *, layout):
    B, Ss = src.shape
    St = tgt.shape[1]

    # Tiny wrapper-side prep: merged token column + pe[:B] slice (fused under jit).
    tok = jnp.concatenate(
        [src.astype(jnp.int32).reshape(B * Ss), tgt.astype(jnp.int32).reshape(B * St)],
        axis=0).reshape(B * (Ss + St), 1)
    pe_b = params["pe"][:B]                              # (B, D_MODEL)
    slab = params["slab"]                                # (R, 128) packed weights

    kernel = functools.partial(_fused_kernel, layout=layout, B=B, Ss=Ss, St=St)

    logits_p = pl.pallas_call(
        kernel,
        out_shape=jax.ShapeDtypeStruct((B * St, 128), jnp.float32),
        grid=(1,),
        in_specs=[pl.BlockSpec(tok.shape, lambda i: (0, 0)),
                  pl.BlockSpec(pe_b.shape, lambda i: (0, 0)),
                  pl.BlockSpec(slab.shape, lambda i: (0, 0))],
        out_specs=pl.BlockSpec((B * St, 128), lambda i: (0, 0)),
        compiler_params=pltpu.CompilerParams(
            dimension_semantics=("arbitrary",),
            vmem_limit_bytes=32 * 1024 * 1024,
        ),
    )(tok, pe_b, slab)
    return logits_p[:, :VOCAB].reshape(B, St, VOCAB)


# ============================== parameter packing / init ==============================

def make_pe_table(max_len, d_model):
    pos = jnp.arange(max_len, dtype=jnp.float32)[:, None]
    div = jnp.exp(jnp.arange(0, d_model, 2, dtype=jnp.float32)
                  * (-math.log(10000.0) / d_model))
    pe = jnp.zeros((max_len, d_model), dtype=jnp.float32)
    pe = pe.at[:, 0::2].set(jnp.sin(pos * div))
    pe = pe.at[:, 1::2].set(jnp.cos(pos * div))
    return pe


def _pack(entries):
    """Pack (name, array) entries into one (R, 128) f32 slab + static layout dict."""
    rows, layout, off = [], {}, 0
    for name, arr in entries:
        arr = jnp.asarray(arr, jnp.float32)
        if arr.ndim == 1:
            arr = arr[None, :]
        r, c = arr.shape
        rows.append(jnp.zeros((r, 128), jnp.float32).at[:, :c].set(arr))
        layout[name] = (off, r, c)
        off += r
    pad = (-off) % 8
    if pad:
        rows.append(jnp.zeros((pad, 128), jnp.float32))
    return jnp.concatenate(rows, axis=0), layout


def init_params(key):
    kit = iter(jax.random.split(key, 64))

    def nrm(shape, scale=0.05):
        return (scale * jax.random.normal(next(kit), shape)).astype(jnp.float32)

    entries = []
    add = lambda name, arr: entries.append((name, arr))

    emb = nrm((VOCAB, D_MODEL))
    emb = emb.at[PAD_ID].set(0.0)                        # padding_idx row is zero
    add("embedding", emb)

    def add_ffn_ln(prefix, n_ln):
        add(prefix + "w1", nrm((D_MODEL, DIM_FF)))
        add(prefix + "b1", jnp.zeros((DIM_FF,), jnp.float32))
        add(prefix + "w2", nrm((DIM_FF, D_MODEL)))
        add(prefix + "b2", jnp.zeros((D_MODEL,), jnp.float32))
        for j in range(1, n_ln + 1):
            add(prefix + f"ln{j}_g", jnp.ones((D_MODEL,), jnp.float32))
            add(prefix + f"ln{j}_b", jnp.zeros((D_MODEL,), jnp.float32))

    for i in range(ENC_LAYERS):
        p = f"enc{i}/"
        add(p + "w_qkv", nrm((D_MODEL, 3 * D_MODEL)))
        add(p + "b_qkv", jnp.zeros((3 * D_MODEL,), jnp.float32))
        add(p + "w_o", nrm((D_MODEL, D_MODEL)))
        add(p + "b_o", jnp.zeros((D_MODEL,), jnp.float32))
        add_ffn_ln(p, 2)

    for i in range(DEC_LAYERS):
        p = f"dec{i}/"
        add(p + "sa_w_qkv", nrm((D_MODEL, 3 * D_MODEL)))
        add(p + "sa_b_qkv", jnp.zeros((3 * D_MODEL,), jnp.float32))
        add(p + "sa_w_o", nrm((D_MODEL, D_MODEL)))
        add(p + "sa_b_o", jnp.zeros((D_MODEL,), jnp.float32))
        add(p + "ca_w_q", nrm((D_MODEL, D_MODEL)))
        add(p + "ca_b_q", jnp.zeros((D_MODEL,), jnp.float32))
        add(p + "ca_w_kv", nrm((D_MODEL, 2 * D_MODEL)))
        add(p + "ca_b_kv", jnp.zeros((2 * D_MODEL,), jnp.float32))
        add(p + "ca_w_o", nrm((D_MODEL, D_MODEL)))
        add(p + "ca_b_o", jnp.zeros((D_MODEL,), jnp.float32))
        add_ffn_ln(p, 3)

    add("enc_ln_g", jnp.ones((D_MODEL,), jnp.float32))
    add("enc_ln_b", jnp.zeros((D_MODEL,), jnp.float32))
    add("dec_ln_g", jnp.ones((D_MODEL,), jnp.float32))
    add("dec_ln_b", jnp.zeros((D_MODEL,), jnp.float32))

    # Final projection padded to 128 output lanes (lane-dense store; wrapper slices).
    w_out = jnp.zeros((D_MODEL, 128), jnp.float32).at[:, :VOCAB].set(nrm((D_MODEL, VOCAB)))
    add("w_out", w_out)
    add("b_out", jnp.zeros((128,), jnp.float32))

    slab, layout = _pack(entries)
    params = dict(slab=slab, pe=make_pe_table(MAX_LEN, D_MODEL))
    return params, layout


# ============================== main ==============================

if __name__ == "__main__":
    key = jax.random.PRNGKey(0)
    pkey, skey, tkey = jax.random.split(key, 3)

    params, layout = init_params(pkey)

    B, S_SRC, S_TGT = 2, 8, 8
    # tokens drawn from [1, VOCAB) so no pad tokens
    src = jax.random.randint(skey, (B, S_SRC), 1, VOCAB, dtype=jnp.int32)
    tgt = jax.random.randint(tkey, (B, S_TGT), 1, VOCAB, dtype=jnp.int32)

    fwd = jax.jit(functools.partial(transformer_forward, layout=layout))
    logits = jax.block_until_ready(fwd(params, src, tgt))

    assert logits.shape == (B, S_TGT, VOCAB), logits.shape
    assert bool(jnp.all(jnp.isfinite(logits)))
    print("KERNEL_OK")
</pallas_src>

<mosaic_0001>
module attributes {stable_mosaic.version = 11 : i64} {
  func.func @_fused_kernel(%arg0: i32, %arg1: memref<32x1xi32, #tpu.memory_space<vmem>>, %arg2: memref<2x32xf32, #tpu.memory_space<vmem>>, %arg3: memref<976x128xf32, #tpu.memory_space<vmem>>, %arg4: memref<16x128xf32, #tpu.memory_space<vmem>>) attributes {dimension_semantics = [#tpu.dimension_semantics<arbitrary>], iteration_bounds = array<i64: 1>, scalar_prefetch = 0 : i64, scratch_operands = 0 : i64, tpu.core_type = #tpu.core_type<tc>, window_params = [{pipeline_mode = #tpu.pipeline_mode<synchronous>, transform_indices = @transform_0, window_bounds = array<i64: 32, 1>}, {pipeline_mode = #tpu.pipeline_mode<synchronous>, transform_indices = @transform_1, window_bounds = array<i64: 2, 32>}, {pipeline_mode = #tpu.pipeline_mode<synchronous>, transform_indices = @transform_2, window_bounds = array<i64: 976, 128>}, {pipeline_mode = #tpu.pipeline_mode<synchronous>, transform_indices = @transform_3, window_bounds = array<i64: 16, 128>}]} {
    %0 = tpu.iota {dimensions = array<i32: 1>} : vector<4x32xi32>
    %1 = tpu.iota {dimensions = array<i32: 0>} : vector<4x32xi32>
    %c8_i32 = arith.constant 8 : i32
    %2 = vector.broadcast %c8_i32 : i32 to vector<4x32xi32>
    %3 = arith.muli %1, %2 : vector<4x32xi32>
    %4 = arith.cmpi sge, %0, %3 : vector<4x32xi32>
    %c8_i32_0 = arith.constant 8 : i32
    %5 = vector.broadcast %c8_i32_0 : i32 to vector<4x32xi32>
    %6 = arith.addi %3, %5 : vector<4x32xi32>
    %7 = arith.cmpi slt, %0, %6 : vector<4x32xi32>
    %8 = arith.andi %4, %7 : vector<4x32xi1>
    %9 = arith.extui %8 : vector<4x32xi1> to vector<4x32xi32>
    %10 = arith.sitofp %9 : vector<4x32xi32> to vector<4x32xf32>
    %11 = vector.shape_cast %10 : vector<4x32xf32> to vector<4x1x32xf32>
    %c0 = arith.constant 0 : index
    %c0_1 = arith.constant 0 : index
    %12 = vector.load %arg1[%c0, %c0_1] : memref<32x1xi32, #tpu.memory_space<vmem>>, vector<32x1xi32>
    %13 = vector.extract_strided_slice %12 {offsets = [0, 0], sizes = [16, 1], strides = [1, 1]} : vector<32x1xi32> to vector<16x1xi32>
    %14 = vector.extract_strided_slice %12 {offsets = [16, 0], sizes = [16, 1], strides = [1, 1]} : vector<32x1xi32> to vector<16x1xi32>
    %c0_i32 = arith.constant 0 : i32
    %15 = vector.broadcast %c0_i32 : i32 to vector<16x1xi32>
    %16 = arith.cmpi eq, %13, %15 : vector<16x1xi32>
    %17 = arith.extui %16 : vector<16x1xi1> to vector<16x1xi32>
    %18 = arith.sitofp %17 : vector<16x1xi32> to vector<16x1xf32>
    %19 = tpu.iota {dimensions = array<i32: 0>} : vector<16x16xi32>
    %20 = tpu.iota {dimensions = array<i32: 1>} : vector<16x16xi32>
    %21 = arith.cmpi eq, %19, %20 : vector<16x16xi32>
    %22 = arith.extui %21 : vector<16x16xi1> to vector<16x16xi32>
    %23 = arith.sitofp %22 : vector<16x16xi32> to vector<16x16xf32>
    %cst = arith.constant 1.000000e+00 : f32
    %24 = vector.broadcast %cst : f32 to vector<1x16xf32>
    %25 = vector.broadcast %18 : vector<16x1xf32> to vector<16x16xf32>
    %26 = arith.mulf %23, %25 : vector<16x16xf32>
    %cst_2 = arith.constant dense<0.000000e+00> : vector<1x16xf32>
    %27 = tpu.matmul %24, %26, %cst_2 {dimension_numbers = #tpu.dot_dimension_numbers<[1], [0], [0], [1], [0, 0, 1, 1], [], []>} : vector<1x16xf32>, vector<16x16xf32>, vector<1x16xf32> -> vector<1x16xf32>
    %c0_i32_3 = arith.constant 0 : i32
    %28 = vector.broadcast %c0_i32_3 : i32 to vector<16x1xi32>
    %29 = arith.cmpi eq, %14, %28 : vector<16x1xi32>
    %30 = arith.extui %29 : vector<16x1xi1> to vector<16x1xi32>
    %31 = arith.sitofp %30 : vector<16x1xi32> to vector<16x1xf32>
    %32 = tpu.iota {dimensions = array<i32: 0>} : vector<16x16xi32>
    %33 = tpu.iota {dimensions = array<i32: 1>} : vector<16x16xi32>
    %34 = arith.cmpi eq, %32, %33 : vector<16x16xi32>
    %35 = arith.extui %34 : vector<16x16xi1> to vector<16x16xi32>
    %36 = arith.sitofp %35 : vector<16x16xi32> to vector<16x16xf32>
    %cst_4 = arith.constant 1.000000e+00 : f32
    %37 = vector.broadcast %cst_4 : f32 to vector<1x16xf32>
    %38 = vector.broadcast %31 : vector<16x1xf32> to vector<16x16xf32>
    %39 = arith.mulf %36, %38 : vector<16x16xf32>
    %cst_5 = arith.constant dense<0.000000e+00> : vector<1x16xf32>
    %40 = tpu.matmul %37, %39, %cst_5 {dimension_numbers = #tpu.dot_dimension_numbers<[1], [0], [0], [1], [0, 0, 1, 1], [], []>} : vector<1x16xf32>, vector<16x16xf32>, vector<1x16xf32> -> vector<1x16xf32>
    %41 = tpu.iota {dimensions = array<i32: 0>} : vector<16x16xi32>
    %42 = tpu.iota {dimensions = array<i32: 1>} : vector<16x16xi32>
    %c3_i32 = arith.constant 3 : i32
    %43 = vector.broadcast %c3_i32 : i32 to vector<16x16xi32>
    %44 = arith.shrsi %41, %43 : vector<16x16xi32>
    %c3_i32_6 = arith.constant 3 : i32
    %45 = vector.broadcast %c3_i32_6 : i32 to vector<16x16xi32>
    %46 = arith.shrsi %42, %45 : vector<16x16xi32>
    %47 = arith.cmpi ne, %44, %46 : vector<16x16xi32>
    %cst_7 = arith.constant 5.000000e-01 : f32
    %48 = vector.broadcast %cst_7 : f32 to vector<1x16xf32>
    %49 = arith.cmpf ogt, %27, %48 : vector<1x16xf32>
    %50 = vector.broadcast %49 : vector<1x16xi1> to vector<16x16xi1>
    %51 = arith.ori %47, %50 : vector<16x16xi1>
    %cst_8 = arith.constant -1.000000e+30 : f32
    %cst_9 = arith.constant 0.000000e+00 : f32
    %52 = vector.broadcast %cst_8 : f32 to vector<16x16xf32>
    %53 = vector.broadcast %cst_9 : f32 to vector<16x16xf32>
    %54 = arith.select %51, %52, %53 : vector<16x16xi1>, vector<16x16xf32>
    %55 = vector.shape_cast %54 : vector<16x16xf32> to vector<1x16x16xf32>
    %56 = vector.shape_cast %55 : vector<1x16x16xf32> to vector<1x16x16xf32>
    %57 = vector.broadcast %56 : vector<1x16x16xf32> to vector<4x16x16xf32>
    %58 = vector.shape_cast %57 : vector<4x16x16xf32> to vector<64x16xf32>
    %59 = tpu.iota {dimensions = array<i32: 0>} : vector<16x16xi32>
    %60 = tpu.iota {dimensions = array<i32: 1>} : vector<16x16xi32>
    %c3_i32_10 = arith.constant 3 : i32
    %61 = vector.broadcast %c3_i32_10 : i32 to vector<16x16xi32>
    %62 = arith.shrsi %59, %61 : vector<16x16xi32>
    %c7_i32 = arith.constant 7 : i32
    %63 = vector.broadcast %c7_i32 : i32 to vector<16x16xi32>
    %64 = arith.andi %59, %63 : vector<16x16xi32>
    %c3_i32_11 = arith.constant 3 : i32
    %65 = vector.broadcast %c3_i32_11 : i32 to vector<16x16xi32>
    %66 = arith.shrsi %60, %65 : vector<16x16xi32>
    %c7_i32_12 = arith.constant 7 : i32
    %67 = vector.broadcast %c7_i32_12 : i32 to vector<16x16xi32>
    %68 = arith.andi %60, %67 : vector<16x16xi32>
    %69 = arith.cmpi ne, %62, %66 : vector<16x16xi32>
    %cst_13 = arith.constant 5.000000e-01 : f32
    %70 = vector.broadcast %cst_13 : f32 to vector<1x16xf32>
    %71 = arith.cmpf ogt, %40, %70 : vector<1x16xf32>
    %72 = vector.broadcast %71 : vector<1x16xi1> to vector<16x16xi1>
    %73 = arith.ori %69, %72 : vector<16x16xi1>
    %74 = arith.cmpi sgt, %68, %64 : vector<16x16xi32>
    %75 = arith.ori %73, %74 : vector<16x16xi1>
    %cst_14 = arith.constant -1.000000e+30 : f32
    %cst_15 = arith.constant 0.000000e+00 : f32
    %76 = vector.broadcast %cst_14 : f32 to vector<16x16xf32>
    %77 = vector.broadcast %cst_15 : f32 to vector<16x16xf32>
    %78 = arith.select %75, %76, %77 : vector<16x16xi1>, vector<16x16xf32>
    %79 = vector.shape_cast %78 : vector<16x16xf32> to vector<1x16x16xf32>
    %80 = vector.shape_cast %79 : vector<1x16x16xf32> to vector<1x16x16xf32>
    %81 = vector.broadcast %80 : vector<1x16x16xf32> to vector<4x16x16xf32>
    %82 = vector.shape_cast %81 : vector<4x16x16xf32> to vector<64x16xf32>
    %83 = tpu.iota {dimensions = array<i32: 0>} : vector<16x16xi32>
    %84 = tpu.iota {dimensions = array<i32: 1>} : vector<16x16xi32>
    %c3_i32_16 = arith.constant 3 : i32
    %85 = vector.broadcast %c3_i32_16 : i32 to vector<16x16xi32>
    %86 = arith.shrsi %83, %85 : vector<16x16xi32>
    %c3_i32_17 = arith.constant 3 : i32
    %87 = vector.broadcast %c3_i32_17 : i32 to vector<16x16xi32>
    %88 = arith.shrsi %84, %87 : vector<16x16xi32>
    %89 = arith.cmpi ne, %86, %88 : vector<16x16xi32>
    %cst_18 = arith.constant 5.000000e-01 : f32
    %90 = vector.broadcast %cst_18 : f32 to vector<1x16xf32>
    %91 = arith.cmpf ogt, %27, %90 : vector<1x16xf32>
    %92 = vector.broadcast %91 : vector<1x16xi1> to vector<16x16xi1>
    %93 = arith.ori %89, %92 : vector<16x16xi1>
    %cst_19 = arith.constant -1.000000e+30 : f32
    %cst_20 = arith.constant 0.000000e+00 : f32
    %94 = vector.broadcast %cst_19 : f32 to vector<16x16xf32>
    %95 = vector.broadcast %cst_20 : f32 to vector<16x16xf32>
    %96 = arith.select %93, %94, %95 : vector<16x16xi1>, vector<16x16xf32>
    %97 = vector.shape_cast %96 : vector<16x16xf32> to vector<1x16x16xf32>
    %98 = vector.shape_cast %97 : vector<1x16x16xf32> to vector<1x16x16xf32>
    %99 = vector.broadcast %98 : vector<1x16x16xf32> to vector<4x16x16xf32>
    %100 = vector.shape_cast %99 : vector<4x16x16xf32> to vector<64x16xf32>
    %c0_21 = arith.constant 0 : index
    %c0_22 = arith.constant 0 : index
    %101 = vector.load %arg3[%c0_21, %c0_22] : memref<976x128xf32, #tpu.memory_space<vmem>>, vector<64x32xf32>
    %c0_23 = arith.constant 0 : index
    %c0_24 = arith.constant 0 : index
    %102 = vector.load %arg2[%c0_23, %c0_24] : memref<2x32xf32, #tpu.memory_space<vmem>>, vector<2x32xf32>
    %103 = tpu.iota {dimensions = array<i32: 1>} : vector<16x64xi32>
    %104 = vector.broadcast %13 : vector<16x1xi32> to vector<16x64xi32>
    %105 = arith.cmpi eq, %103, %104 : vector<16x64xi32>
    %106 = arith.extui %105 : vector<16x64xi1> to vector<16x64xi32>
    %107 = arith.sitofp %106 : vector<16x64xi32> to vector<16x64xf32>
    %cst_25 = arith.constant dense<0.000000e+00> : vector<16x32xf32>
    %108 = tpu.matmul %107, %101, %cst_25 {dimension_numbers = #tpu.dot_dimension_numbers<[1], [0], [0], [1], [0, 0, 1, 1], [], []>} : vector<16x64xf32>, vector<64x32xf32>, vector<16x32xf32> -> vector<16x32xf32>
    %109 = vector.shape_cast %102 : vector<2x32xf32> to vector<2x1x32xf32>
    %110 = vector.shape_cast %109 : vector<2x1x32xf32> to vector<2x1x32xf32>
    %111 = vector.broadcast %110 : vector<2x1x32xf32> to vector<2x8x32xf32>
    %112 = vector.shape_cast %111 : vector<2x8x32xf32> to vector<16x32xf32>
    %113 = arith.addf %108, %112 : vector<16x32xf32>
    %114 = tpu.iota {dimensions = array<i32: 1>} : vector<16x64xi32>
    %115 = vector.broadcast %14 : vector<16x1xi32> to vector<16x64xi32>
    %116 = arith.cmpi eq, %114, %115 : vector<16x64xi32>
    %117 = arith.extui %116 : vector<16x64xi1> to vector<16x64xi32>
    %118 = arith.sitofp %117 : vector<16x64xi32> to vector<16x64xf32>
    %cst_26 = arith.constant dense<0.000000e+00> : vector<16x32xf32>
    %119 = tpu.matmul %118, %101, %cst_26 {dimension_numbers = #tpu.dot_dimension_numbers<[1], [0], [0], [1], [0, 0, 1, 1], [], []>} : vector<16x64xf32>, vector<64x32xf32>, vector<16x32xf32> -> vector<16x32xf32>
    %120 = vector.shape_cast %102 : vector<2x32xf32> to vector<2x1x32xf32>
    %121 = vector.shape_cast %120 : vector<2x1x32xf32> to vector<2x1x32xf32>
    %122 = vector.broadcast %121 : vector<2x1x32xf32> to vector<2x8x32xf32>
    %123 = vector.shape_cast %122 : vector<2x8x32xf32> to vector<16x32xf32>
    %124 = arith.addf %119, %123 : vector<16x32xf32>
    %c64 = arith.constant 64 : index
    %c0_27 = arith.constant 0 : index
    %125 = vector.load %arg3[%c64, %c0_27] : memref<976x128xf32, #tpu.memory_space<vmem>>, vector<32x96xf32>
    %c96 = arith.constant 96 : index
    %c0_28 = arith.constant 0 : index
    %126 = vector.load %arg3[%c96, %c0_28] : memref<976x128xf32, #tpu.memory_space<vmem>>, vector<1x96xf32>
    %cst_29 = arith.constant dense<0.000000e+00> : vector<16x96xf32>
    %127 = tpu.matmul %113, %125, %cst_29 {dimension_numbers = #tpu.dot_dimension_numbers<[1], [0], [0], [1], [0, 0, 1, 1], [], []>} : vector<16x32xf32>, vector<32x96xf32>, vector<16x96xf32> -> vector<16x96xf32>
    %128 = vector.broadcast %126 : vector<1x96xf32> to vector<16x96xf32>
    %129 = arith.addf %127, %128 : vector<16x96xf32>
    %130 = vector.extract_strided_slice %129 {offsets = [0, 0], sizes = [16, 32], strides = [1, 1]} : vector<16x96xf32> to vector<16x32xf32>
    %131 = vector.extract_strided_slice %129 {offsets = [0, 32], sizes = [16, 32], strides = [1, 1]} : vector<16x96xf32> to vector<16x32xf32>
    %132 = vector.extract_strided_slice %129 {offsets = [0, 64], sizes = [16, 32], strides = [1, 1]} : vector<16x96xf32> to vector<16x32xf32>
    %c97 = arith.constant 97 : index
    %c0_30 = arith.constant 0 : index
    %133 = vector.load %arg3[%c97, %c0_30] : memref<976x128xf32, #tpu.memory_space<vmem>>, vector<32x32xf32>
    %c129 = arith.constant 129 : index
    %c0_31 = arith.constant 0 : index
    %134 = vector.load %arg3[%c129, %c0_31] : memref<976x128xf32, #tpu.memory_space<vmem>>, vector<1x32xf32>
    %135 = vector.shape_cast %130 : vector<16x32xf32> to vector<1x16x32xf32>
    %136 = vector.broadcast %135 : vector<1x16x32xf32> to vector<4x16x32xf32>
    %137 = vector.broadcast %11 : vector<4x1x32xf32> to vector<4x16x32xf32>
    %138 = arith.mulf %136, %137 : vector<4x16x32xf32>
    %139 = vector.shape_cast %138 : vector<4x16x32xf32> to vector<64x32xf32>
    "tpu.trace_start"() <{level = 10 : i32, message = "qd,kd->qk"}> : () -> ()
    %cst_32 = arith.constant dense<0.000000e+00> : vector<64x16xf32>
    %140 = tpu.matmul %139, %131, %cst_32 {dimension_numbers = #tpu.dot_dimension_numbers<[1], [1], [0], [0], [0, 0, 1, 0], [], []>} : vector<64x32xf32>, vector<16x32xf32>, vector<64x16xf32> -> vector<64x16xf32>
    "tpu.trace_stop"() : () -> ()
    %cst_33 = arith.constant 0.353553385 : f32
    %141 = vector.broadcast %cst_33 : f32 to vector<64x16xf32>
    %142 = arith.mulf %140, %141 : vector<64x16xf32>
    %143 = arith.addf %142, %58 : vector<64x16xf32>
    %cst_34 = arith.constant dense<0xFF800000> : vector<64xf32>
    %144 = vector.multi_reduction <maximumf>, %143, %cst_34 [1] : vector<64x16xf32> to vector<64xf32>
    %145 = vector.shape_cast %144 : vector<64xf32> to vector<64x1xf32>
    %146 = vector.broadcast %145 : vector<64x1xf32> to vector<64x16xf32>
    %147 = arith.subf %143, %146 : vector<64x16xf32>
    %148 = math.exp %147 : vector<64x16xf32>
    %cst_35 = arith.constant dense<0.000000e+00> : vector<64xf32>
    %149 = vector.multi_reduction <add>, %148, %cst_35 [1] : vector<64x16xf32> to vector<64xf32>
    %150 = vector.shape_cast %149 : vector<64xf32> to vector<64x1xf32>
    %151 = tpu.reciprocal %150 : vector<64x1xf32> -> vector<64x1xf32>
    %152 = vector.broadcast %151 : vector<64x1xf32> to vector<64x16xf32>
    %153 = arith.mulf %148, %152 : vector<64x16xf32>
    %cst_36 = arith.constant dense<0.000000e+00> : vector<64x32xf32>
    %154 = tpu.matmul %153, %132, %cst_36 {dimension_numbers = #tpu.dot_dimension_numbers<[1], [0], [0], [1], [0, 0, 1, 1], [], []>} : vector<64x16xf32>, vector<16x32xf32>, vector<64x32xf32> -> vector<64x32xf32>
    %155 = vector.shape_cast %154 : vector<64x32xf32> to vector<4x16x32xf32>
    %156 = vector.broadcast %11 : vector<4x1x32xf32> to vector<4x16x32xf32>
    %157 = arith.mulf %155, %156 : vector<4x16x32xf32>
    %158 = vector.extract_strided_slice %157 {offsets = [0, 0, 0], sizes = [1, 16, 32], strides = [1, 1, 1]} : vector<4x16x32xf32> to vector<1x16x32xf32>
    %159 = vector.shape_cast %158 : vector<1x16x32xf32> to vector<16x32xf32>
    %160 = vector.extract_strided_slice %157 {offsets = [1, 0, 0], sizes = [1, 16, 32], strides = [1, 1, 1]} : vector<4x16x32xf32> to vector<1x16x32xf32>
    %161 = vector.shape_cast %160 : vector<1x16x32xf32> to vector<16x32xf32>
    %162 = arith.addf %159, %161 : vector<16x32xf32>
    %163 = vector.extract_strided_slice %157 {offsets = [2, 0, 0], sizes = [1, 16, 32], strides = [1, 1, 1]} : vector<4x16x32xf32> to vector<1x16x32xf32>
    %164 = vector.shape_cast %163 : vector<1x16x32xf32> to vector<16x32xf32>
    %165 = arith.addf %162, %164 : vector<16x32xf32>
    %166 = vector.extract_strided_slice %157 {offsets = [3, 0, 0], sizes = [1, 16, 32], strides = [1, 1, 1]} : vector<4x16x32xf32> to vector<1x16x32xf32>
    %167 = vector.shape_cast %166 : vector<1x16x32xf32> to vector<16x32xf32>
    %168 = arith.addf %165, %167 : vector<16x32xf32>
    %cst_37 = arith.constant dense<0.000000e+00> : vector<16x32xf32>
    %169 = tpu.matmul %168, %133, %cst_37 {dimension_numbers = #tpu.dot_dimension_numbers<[1], [0], [0], [1], [0, 0, 1, 1], [], []>} : vector<16x32xf32>, vector<32x32xf32>, vector<16x32xf32> -> vector<16x32xf32>
    %170 = vector.broadcast %134 : vector<1x32xf32> to vector<16x32xf32>
    %171 = arith.addf %169, %170 : vector<16x32xf32>
    %172 = arith.addf %113, %171 : vector<16x32xf32>
    %c228 = arith.constant 228 : index
    %c0_38 = arith.constant 0 : index
    %173 = vector.load %arg3[%c228, %c0_38] : memref<976x128xf32, #tpu.memory_space<vmem>>, vector<1x32xf32>
    %c229 = arith.constant 229 : index
    %c0_39 = arith.constant 0 : index
    %174 = vector.load %arg3[%c229, %c0_39] : memref<976x128xf32, #tpu.memory_space<vmem>>, vector<1x32xf32>
    %cst_40 = arith.constant dense<0.000000e+00> : vector<16xf32>
    %175 = vector.multi_reduction <add>, %172, %cst_40 [1] : vector<16x32xf32> to vector<16xf32>
    %176 = vector.shape_cast %175 : vector<16xf32> to vector<16x1xf32>
    %cst_41 = arith.constant 3.200000e+01 : f32
    %177 = vector.broadcast %cst_41 : f32 to vector<16x1xf32>
    %178 = arith.divf %176, %177 : vector<16x1xf32>
    %179 = vector.broadcast %178 : vector<16x1xf32> to vector<16x32xf32>
    %180 = arith.subf %172, %179 : vector<16x32xf32>
    %181 = arith.mulf %180, %180 : vector<16x32xf32>
    %cst_42 = arith.constant dense<0.000000e+00> : vector<16xf32>
    %182 = vector.multi_reduction <add>, %181, %cst_42 [1] : vector<16x32xf32> to vector<16xf32>
    %183 = vector.shape_cast %182 : vector<16xf32> to vector<16x1xf32>
    %cst_43 = arith.constant 3.200000e+01 : f32
    %184 = vector.broadcast %cst_43 : f32 to vector<16x1xf32>
    %185 = arith.divf %183, %184 : vector<16x1xf32>
    %186 = vector.broadcast %178 : vector<16x1xf32> to vector<16x32xf32>
    %187 = arith.subf %172, %186 : vector<16x32xf32>
    %cst_44 = arith.constant 9.99999974E-6 : f32
    %188 = vector.broadcast %cst_44 : f32 to vector<16x1xf32>
    %189 = arith.addf %185, %188 : vector<16x1xf32>
    %190 = math.rsqrt %189 : vector<16x1xf32>
    %191 = vector.broadcast %190 : vector<16x1xf32> to vector<16x32xf32>
    %192 = arith.mulf %187, %191 : vector<16x32xf32>
    %193 = vector.broadcast %173 : vector<1x32xf32> to vector<16x32xf32>
    %194 = arith.mulf %192, %193 : vector<16x32xf32>
    %195 = vector.broadcast %174 : vector<1x32xf32> to vector<16x32xf32>
    %196 = arith.addf %194, %195 : vector<16x32xf32>
    %c130 = arith.constant 130 : index
    %c0_45 = arith.constant 0 : index
    %197 = vector.load %arg3[%c130, %c0_45] : memref<976x128xf32, #tpu.memory_space<vmem>>, vector<32x64xf32>
    %c162 = arith.constant 162 : index
    %c0_46 = arith.constant 0 : index
    %198 = vector.load %arg3[%c162, %c0_46] : memref<976x128xf32, #tpu.memory_space<vmem>>, vector<1x64xf32>
    %cst_47 = arith.constant dense<0.000000e+00> : vector<16x64xf32>
    %199 = tpu.matmul %196, %197, %cst_47 {dimension_numbers = #tpu.dot_dimension_numbers<[1], [0], [0], [1], [0, 0, 1, 1], [], []>} : vector<16x32xf32>, vector<32x64xf32>, vector<16x64xf32> -> vector<16x64xf32>
    %200 = vector.broadcast %198 : vector<1x64xf32> to vector<16x64xf32>
    %201 = arith.addf %199, %200 : vector<16x64xf32>
    %cst_48 = arith.constant 0.000000e+00 : f32
    %202 = vector.broadcast %cst_48 : f32 to vector<16x64xf32>
    %203 = arith.maximumf %201, %202 : vector<16x64xf32>
    %c163 = arith.constant 163 : index
    %c0_49 = arith.constant 0 : index
    %204 = vector.load %arg3[%c163, %c0_49] : memref<976x128xf32, #tpu.memory_space<vmem>>, vector<64x32xf32>
    %c227 = arith.constant 227 : index
    %c0_50 = arith.constant 0 : index
    %205 = vector.load %arg3[%c227, %c0_50] : memref<976x128xf32, #tpu.memory_space<vmem>>, vector<1x32xf32>
    %cst_51 = arith.constant dense<0.000000e+00> : vector<16x32xf32>
    %206 = tpu.matmul %203, %204, %cst_51 {dimension_numbers = #tpu.dot_dimension_numbers<[1], [0], [0], [1], [0, 0, 1, 1], [], []>} : vector<16x64xf32>, vector<64x32xf32>, vector<16x32xf32> -> vector<16x32xf32>
    %207 = vector.broadcast %205 : vector<1x32xf32> to vector<16x32xf32>
    %208 = arith.addf %206, %207 : vector<16x32xf32>
    %209 = arith.addf %196, %208 : vector<16x32xf32>
    %c230 = arith.constant 230 : index
    %c0_52 = arith.constant 0 : index
    %210 = vector.load %arg3[%c230, %c0_52] : memref<976x128xf32, #tpu.memory_space<vmem>>, vector<1x32xf32>
    %c231 = arith.constant 231 : index
    %c0_53 = arith.constant 0 : index
    %211 = vector.load %arg3[%c231, %c0_53] : memref<976x128xf32, #tpu.memory_space<vmem>>, vector<1x32xf32>
    %cst_54 = arith.constant dense<0.000000e+00> : vector<16xf32>
    %212 = vector.multi_reduction <add>, %209, %cst_54 [1] : vector<16x32xf32> to vector<16xf32>
    %213 = vector.shape_cast %212 : vector<16xf32> to vector<16x1xf32>
    %cst_55 = arith.constant 3.200000e+01 : f32
    %214 = vector.broadcast %cst_55 : f32 to vector<16x1xf32>
    %215 = arith.divf %213, %214 : vector<16x1xf32>
    %216 = vector.broadcast %215 : vector<16x1xf32> to vector<16x32xf32>
    %217 = arith.subf %209, %216 : vector<16x32xf32>
    %218 = arith.mulf %217, %217 : vector<16x32xf32>
    %cst_56 = arith.constant dense<0.000000e+00> : vector<16xf32>
    %219 = vector.multi_reduction <add>, %218, %cst_56 [1] : vector<16x32xf32> to vector<16xf32>
    %220 = vector.shape_cast %219 : vector<16xf32> to vector<16x1xf32>
    %cst_57 = arith.constant 3.200000e+01 : f32
    %221 = vector.broadcast %cst_57 : f32 to vector<16x1xf32>
    %222 = arith.divf %220, %221 : vector<16x1xf32>
    %223 = vector.broadcast %215 : vector<16x1xf32> to vector<16x32xf32>
    %224 = arith.subf %209, %223 : vector<16x32xf32>
    %cst_58 = arith.constant 9.99999974E-6 : f32
    %225 = vector.broadcast %cst_58 : f32 to vector<16x1xf32>
    %226 = arith.addf %222, %225 : vector<16x1xf32>
    %227 = math.rsqrt %226 : vector<16x1xf32>
    %228 = vector.broadcast %227 : vector<16x1xf32> to vector<16x32xf32>
    %229 = arith.mulf %224, %228 : vector<16x32xf32>
    %230 = vector.broadcast %210 : vector<1x32xf32> to vector<16x32xf32>
    %231 = arith.mulf %229, %230 : vector<16x32xf32>
    %232 = vector.broadcast %211 : vector<1x32xf32> to vector<16x32xf32>
    %233 = arith.addf %231, %232 : vector<16x32xf32>
    %c232 = arith.constant 232 : index
    %c0_59 = arith.constant 0 : index
    %234 = vector.load %arg3[%c232, %c0_59] : memref<976x128xf32, #tpu.memory_space<vmem>>, vector<32x96xf32>
    %c264 = arith.constant 264 : index
    %c0_60 = arith.constant 0 : index
    %235 = vector.load %arg3[%c264, %c0_60] : memref<976x128xf32, #tpu.memory_space<vmem>>, vector<1x96xf32>
    %cst_61 = arith.constant dense<0.000000e+00> : vector<16x96xf32>
    %236 = tpu.matmul %233, %234, %cst_61 {dimension_numbers = #tpu.dot_dimension_numbers<[1], [0], [0], [1], [0, 0, 1, 1], [], []>} : vector<16x32xf32>, vector<32x96xf32>, vector<16x96xf32> -> vector<16x96xf32>
    %237 = vector.broadcast %235 : vector<1x96xf32> to vector<16x96xf32>
    %238 = arith.addf %236, %237 : vector<16x96xf32>
    %239 = vector.extract_strided_slice %238 {offsets = [0, 0], sizes = [16, 32], strides = [1, 1]} : vector<16x96xf32> to vector<16x32xf32>
    %240 = vector.extract_strided_slice %238 {offsets = [0, 32], sizes = [16, 32], strides = [1, 1]} : vector<16x96xf32> to vector<16x32xf32>
    %241 = vector.extract_strided_slice %238 {offsets = [0, 64], sizes = [16, 32], strides = [1, 1]} : vector<16x96xf32> to vector<16x32xf32>
    %c265 = arith.constant 265 : index
    %c0_62 = arith.constant 0 : index
    %242 = vector.load %arg3[%c265, %c0_62] : memref<976x128xf32, #tpu.memory_space<vmem>>, vector<32x32xf32>
    %c297 = arith.constant 297 : index
    %c0_63 = arith.constant 0 : index
    %243 = vector.load %arg3[%c297, %c0_63] : memref<976x128xf32, #tpu.memory_space<vmem>>, vector<1x32xf32>
    %244 = vector.shape_cast %239 : vector<16x32xf32> to vector<1x16x32xf32>
    %245 = vector.broadcast %244 : vector<1x16x32xf32> to vector<4x16x32xf32>
    %246 = vector.broadcast %11 : vector<4x1x32xf32> to vector<4x16x32xf32>
    %247 = arith.mulf %245, %246 : vector<4x16x32xf32>
    %248 = vector.shape_cast %247 : vector<4x16x32xf32> to vector<64x32xf32>
    "tpu.trace_start"() <{level = 10 : i32, message = "qd,kd->qk"}> : () -> ()
    %cst_64 = arith.constant dense<0.000000e+00> : vector<64x16xf32>
    %249 = tpu.matmul %248, %240, %cst_64 {dimension_numbers = #tpu.dot_dimension_numbers<[1], [1], [0], [0], [0, 0, 1, 0], [], []>} : vector<64x32xf32>, vector<16x32xf32>, vector<64x16xf32> -> vector<64x16xf32>
    "tpu.trace_stop"() : () -> ()
    %cst_65 = arith.constant 0.353553385 : f32
    %250 = vector.broadcast %cst_65 : f32 to vector<64x16xf32>
    %251 = arith.mulf %249, %250 : vector<64x16xf32>
    %252 = arith.addf %251, %58 : vector<64x16xf32>
    %cst_66 = arith.constant dense<0xFF800000> : vector<64xf32>
    %253 = vector.multi_reduction <maximumf>, %252, %cst_66 [1] : vector<64x16xf32> to vector<64xf32>
    %254 = vector.shape_cast %253 : vector<64xf32> to vector<64x1xf32>
    %255 = vector.broadcast %254 : vector<64x1xf32> to vector<64x16xf32>
    %256 = arith.subf %252, %255 : vector<64x16xf32>
    %257 = math.exp %256 : vector<64x16xf32>
    %cst_67 = arith.constant dense<0.000000e+00> : vector<64xf32>
    %258 = vector.multi_reduction <add>, %257, %cst_67 [1] : vector<64x16xf32> to vector<64xf32>
    %259 = vector.shape_cast %258 : vector<64xf32> to vector<64x1xf32>
    %260 = tpu.reciprocal %259 : vector<64x1xf32> -> vector<64x1xf32>
    %261 = vector.broadcast %260 : vector<64x1xf32> to vector<64x16xf32>
    %262 = arith.mulf %257, %261 : vector<64x16xf32>
    %cst_68 = arith.constant dense<0.000000e+00> : vector<64x32xf32>
    %263 = tpu.matmul %262, %241, %cst_68 {dimension_numbers = #tpu.dot_dimension_numbers<[1], [0], [0], [1], [0, 0, 1, 1], [], []>} : vector<64x16xf32>, vector<16x32xf32>, vector<64x32xf32> -> vector<64x32xf32>
    %264 = vector.shape_cast %263 : vector<64x32xf32> to vector<4x16x32xf32>
    %265 = vector.broadcast %11 : vector<4x1x32xf32> to vector<4x16x32xf32>
    %266 = arith.mulf %264, %265 : vector<4x16x32xf32>
    %267 = vector.extract_strided_slice %266 {offsets = [0, 0, 0], sizes = [1, 16, 32], strides = [1, 1, 1]} : vector<4x16x32xf32> to vector<1x16x32xf32>
    %268 = vector.shape_cast %267 : vector<1x16x32xf32> to vector<16x32xf32>
    %269 = vector.extract_strided_slice %266 {offsets = [1, 0, 0], sizes = [1, 16, 32], strides = [1, 1, 1]} : vector<4x16x32xf32> to vector<1x16x32xf32>
    %270 = vector.shape_cast %269 : vector<1x16x32xf32> to vector<16x32xf32>
    %271 = arith.addf %268, %270 : vector<16x32xf32>
    %272 = vector.extract_strided_slice %266 {offsets = [2, 0, 0], sizes = [1, 16, 32], strides = [1, 1, 1]} : vector<4x16x32xf32> to vector<1x16x32xf32>
    %273 = vector.shape_cast %272 : vector<1x16x32xf32> to vector<16x32xf32>
    %274 = arith.addf %271, %273 : vector<16x32xf32>
    %275 = vector.extract_strided_slice %266 {offsets = [3, 0, 0], sizes = [1, 16, 32], strides = [1, 1, 1]} : vector<4x16x32xf32> to vector<1x16x32xf32>
    %276 = vector.shape_cast %275 : vector<1x16x32xf32> to vector<16x32xf32>
    %277 = arith.addf %274, %276 : vector<16x32xf32>
    %cst_69 = arith.constant dense<0.000000e+00> : vector<16x32xf32>
    %278 = tpu.matmul %277, %242, %cst_69 {dimension_numbers = #tpu.dot_dimension_numbers<[1], [0], [0], [1], [0, 0, 1, 1], [], []>} : vector<16x32xf32>, vector<32x32xf32>, vector<16x32xf32> -> vector<16x32xf32>
    %279 = vector.broadcast %243 : vector<1x32xf32> to vector<16x32xf32>
    %280 = arith.addf %278, %279 : vector<16x32xf32>
    %281 = arith.addf %233, %280 : vector<16x32xf32>
    %c396 = arith.constant 396 : index
    %c0_70 = arith.constant 0 : index
    %282 = vector.load %arg3[%c396, %c0_70] : memref<976x128xf32, #tpu.memory_space<vmem>>, vector<1x32xf32>
    %c397 = arith.constant 397 : index
    %c0_71 = arith.constant 0 : index
    %283 = vector.load %arg3[%c397, %c0_71] : memref<976x128xf32, #tpu.memory_space<vmem>>, vector<1x32xf32>
    %cst_72 = arith.constant dense<0.000000e+00> : vector<16xf32>
    %284 = vector.multi_reduction <add>, %281, %cst_72 [1] : vector<16x32xf32> to vector<16xf32>
    %285 = vector.shape_cast %284 : vector<16xf32> to vector<16x1xf32>
    %cst_73 = arith.constant 3.200000e+01 : f32
    %286 = vector.broadcast %cst_73 : f32 to vector<16x1xf32>
    %287 = arith.divf %285, %286 : vector<16x1xf32>
    %288 = vector.broadcast %287 : vector<16x1xf32> to vector<16x32xf32>
    %289 = arith.subf %281, %288 : vector<16x32xf32>
    %290 = arith.mulf %289, %289 : vector<16x32xf32>
    %cst_74 = arith.constant dense<0.000000e+00> : vector<16xf32>
    %291 = vector.multi_reduction <add>, %290, %cst_74 [1] : vector<16x32xf32> to vector<16xf32>
    %292 = vector.shape_cast %291 : vector<16xf32> to vector<16x1xf32>
    %cst_75 = arith.constant 3.200000e+01 : f32
    %293 = vector.broadcast %cst_75 : f32 to vector<16x1xf32>
    %294 = arith.divf %292, %293 : vector<16x1xf32>
    %295 = vector.broadcast %287 : vector<16x1xf32> to vector<16x32xf32>
    %296 = arith.subf %281, %295 : vector<16x32xf32>
    %cst_76 = arith.constant 9.99999974E-6 : f32
    %297 = vector.broadcast %cst_76 : f32 to vector<16x1xf32>
    %298 = arith.addf %294, %297 : vector<16x1xf32>
    %299 = math.rsqrt %298 : vector<16x1xf32>
    %300 = vector.broadcast %299 : vector<16x1xf32> to vector<16x32xf32>
    %301 = arith.mulf %296, %300 : vector<16x32xf32>
    %302 = vector.broadcast %282 : vector<1x32xf32> to vector<16x32xf32>
    %303 = arith.mulf %301, %302 : vector<16x32xf32>
    %304 = vector.broadcast %283 : vector<1x32xf32> to vector<16x32xf32>
    %305 = arith.addf %303, %304 : vector<16x32xf32>
    %c298 = arith.constant 298 : index
    %c0_77 = arith.constant 0 : index
    %306 = vector.load %arg3[%c298, %c0_77] : memref<976x128xf32, #tpu.memory_space<vmem>>, vector<32x64xf32>
    %c330 = arith.constant 330 : index
    %c0_78 = arith.constant 0 : index
    %307 = vector.load %arg3[%c330, %c0_78] : memref<976x128xf32, #tpu.memory_space<vmem>>, vector<1x64xf32>
    %cst_79 = arith.constant dense<0.000000e+00> : vector<16x64xf32>
    %308 = tpu.matmul %305, %306, %cst_79 {dimension_numbers = #tpu.dot_dimension_numbers<[1], [0], [0], [1], [0, 0, 1, 1], [], []>} : vector<16x32xf32>, vector<32x64xf32>, vector<16x64xf32> -> vector<16x64xf32>
    %309 = vector.broadcast %307 : vector<1x64xf32> to vector<16x64xf32>
    %310 = arith.addf %308, %309 : vector<16x64xf32>
    %cst_80 = arith.constant 0.000000e+00 : f32
    %311 = vector.broadcast %cst_80 : f32 to vector<16x64xf32>
    %312 = arith.maximumf %310, %311 : vector<16x64xf32>
    %c331 = arith.constant 331 : index
    %c0_81 = arith.constant 0 : index
    %313 = vector.load %arg3[%c331, %c0_81] : memref<976x128xf32, #tpu.memory_space<vmem>>, vector<64x32xf32>
    %c395 = arith.constant 395 : index
    %c0_82 = arith.constant 0 : index
    %314 = vector.load %arg3[%c395, %c0_82] : memref<976x128xf32, #tpu.memory_space<vmem>>, vector<1x32xf32>
    %cst_83 = arith.constant dense<0.000000e+00> : vector<16x32xf32>
    %315 = tpu.matmul %312, %313, %cst_83 {dimension_numbers = #tpu.dot_dimension_numbers<[1], [0], [0], [1], [0, 0, 1, 1], [], []>} : vector<16x64xf32>, vector<64x32xf32>, vector<16x32xf32> -> vector<16x32xf32>
    %316 = vector.broadcast %314 : vector<1x32xf32> to vector<16x32xf32>
    %317 = arith.addf %315, %316 : vector<16x32xf32>
    %318 = arith.addf %305, %317 : vector<16x32xf32>
    %c398 = arith.constant 398 : index
    %c0_84 = arith.constant 0 : index
    %319 = vector.load %arg3[%c398, %c0_84] : memref<976x128xf32, #tpu.memory_space<vmem>>, vector<1x32xf32>
    %c399 = arith.constant 399 : index
    %c0_85 = arith.constant 0 : index
    %320 = vector.load %arg3[%c399, %c0_85] : memref<976x128xf32, #tpu.memory_space<vmem>>, vector<1x32xf32>
    %cst_86 = arith.constant dense<0.000000e+00> : vector<16xf32>
    %321 = vector.multi_reduction <add>, %318, %cst_86 [1] : vector<16x32xf32> to vector<16xf32>
    %322 = vector.shape_cast %321 : vector<16xf32> to vector<16x1xf32>
    %cst_87 = arith.constant 3.200000e+01 : f32
    %323 = vector.broadcast %cst_87 : f32 to vector<16x1xf32>
    %324 = arith.divf %322, %323 : vector<16x1xf32>
    %325 = vector.broadcast %324 : vector<16x1xf32> to vector<16x32xf32>
    %326 = arith.subf %318, %325 : vector<16x32xf32>
    %327 = arith.mulf %326, %326 : vector<16x32xf32>
    %cst_88 = arith.constant dense<0.000000e+00> : vector<16xf32>
    %328 = vector.multi_reduction <add>, %327, %cst_88 [1] : vector<16x32xf32> to vector<16xf32>
    %329 = vector.shape_cast %328 : vector<16xf32> to vector<16x1xf32>
    %cst_89 = arith.constant 3.200000e+01 : f32
    %330 = vector.broadcast %cst_89 : f32 to vector<16x1xf32>
    %331 = arith.divf %329, %330 : vector<16x1xf32>
    %332 = vector.broadcast %324 : vector<16x1xf32> to vector<16x32xf32>
    %333 = arith.subf %318, %332 : vector<16x32xf32>
    %cst_90 = arith.constant 9.99999974E-6 : f32
    %334 = vector.broadcast %cst_90 : f32 to vector<16x1xf32>
    %335 = arith.addf %331, %334 : vector<16x1xf32>
    %336 = math.rsqrt %335 : vector<16x1xf32>
    %337 = vector.broadcast %336 : vector<16x1xf32> to vector<16x32xf32>
    %338 = arith.mulf %333, %337 : vector<16x32xf32>
    %339 = vector.broadcast %319 : vector<1x32xf32> to vector<16x32xf32>
    %340 = arith.mulf %338, %339 : vector<16x32xf32>
    %341 = vector.broadcast %320 : vector<1x32xf32> to vector<16x32xf32>
    %342 = arith.addf %340, %341 : vector<16x32xf32>
    %c938 = arith.constant 938 : index
    %c0_91 = arith.constant 0 : index
    %343 = vector.load %arg3[%c938, %c0_91] : memref<976x128xf32, #tpu.memory_space<vmem>>, vector<1x32xf32>
    %c939 = arith.constant 939 : index
    %c0_92 = arith.constant 0 : index
    %344 = vector.load %arg3[%c939, %c0_92] : memref<976x128xf32, #tpu.memory_space<vmem>>, vector<1x32xf32>
    %cst_93 = arith.constant dense<0.000000e+00> : vector<16xf32>
    %345 = vector.multi_reduction <add>, %342, %cst_93 [1] : vector<16x32xf32> to vector<16xf32>
    %346 = vector.shape_cast %345 : vector<16xf32> to vector<16x1xf32>
    %cst_94 = arith.constant 3.200000e+01 : f32
    %347 = vector.broadcast %cst_94 : f32 to vector<16x1xf32>
    %348 = arith.divf %346, %347 : vector<16x1xf32>
    %349 = vector.broadcast %348 : vector<16x1xf32> to vector<16x32xf32>
    %350 = arith.subf %342, %349 : vector<16x32xf32>
    %351 = arith.mulf %350, %350 : vector<16x32xf32>
    %cst_95 = arith.constant dense<0.000000e+00> : vector<16xf32>
    %352 = vector.multi_reduction <add>, %351, %cst_95 [1] : vector<16x32xf32> to vector<16xf32>
    %353 = vector.shape_cast %352 : vector<16xf32> to vector<16x1xf32>
    %cst_96 = arith.constant 3.200000e+01 : f32
    %354 = vector.broadcast %cst_96 : f32 to vector<16x1xf32>
    %355 = arith.divf %353, %354 : vector<16x1xf32>
    %356 = vector.broadcast %348 : vector<16x1xf32> to vector<16x32xf32>
    %357 = arith.subf %342, %356 : vector<16x32xf32>
    %cst_97 = arith.constant 9.99999974E-6 : f32
    %358 = vector.broadcast %cst_97 : f32 to vector<16x1xf32>
    %359 = arith.addf %355, %358 : vector<16x1xf32>
    %360 = math.rsqrt %359 : vector<16x1xf32>
    %361 = vector.broadcast %360 : vector<16x1xf32> to vector<16x32xf32>
    %362 = arith.mulf %357, %361 : vector<16x32xf32>
    %363 = vector.broadcast %343 : vector<1x32xf32> to vector<16x32xf32>
    %364 = arith.mulf %362, %363 : vector<16x32xf32>
    %365 = vector.broadcast %344 : vector<1x32xf32> to vector<16x32xf32>
    %366 = arith.addf %364, %365 : vector<16x32xf32>
    %c400 = arith.constant 400 : index
    %c0_98 = arith.constant 0 : index
    %367 = vector.load %arg3[%c400, %c0_98] : memref<976x128xf32, #tpu.memory_space<vmem>>, vector<32x96xf32>
    %c432 = arith.constant 432 : index
    %c0_99 = arith.constant 0 : index
    %368 = vector.load %arg3[%c432, %c0_99] : memref<976x128xf32, #tpu.memory_space<vmem>>, vector<1x96xf32>
    %cst_100 = arith.constant dense<0.000000e+00> : vector<16x96xf32>
    %369 = tpu.matmul %124, %367, %cst_100 {dimension_numbers = #tpu.dot_dimension_numbers<[1], [0], [0], [1], [0, 0, 1, 1], [], []>} : vector<16x32xf32>, vector<32x96xf32>, vector<16x96xf32> -> vector<16x96xf32>
    %370 = vector.broadcast %368 : vector<1x96xf32> to vector<16x96xf32>
    %371 = arith.addf %369, %370 : vector<16x96xf32>
    %372 = vector.extract_strided_slice %371 {offsets = [0, 0], sizes = [16, 32], strides = [1, 1]} : vector<16x96xf32> to vector<16x32xf32>
    %373 = vector.extract_strided_slice %371 {offsets = [0, 32], sizes = [16, 32], strides = [1, 1]} : vector<16x96xf32> to vector<16x32xf32>
    %374 = vector.extract_strided_slice %371 {offsets = [0, 64], sizes = [16, 32], strides = [1, 1]} : vector<16x96xf32> to vector<16x32xf32>
    %c433 = arith.constant 433 : index
    %c0_101 = arith.constant 0 : index
    %375 = vector.load %arg3[%c433, %c0_101] : memref<976x128xf32, #tpu.memory_space<vmem>>, vector<32x32xf32>
    %c465 = arith.constant 465 : index
    %c0_102 = arith.constant 0 : index
    %376 = vector.load %arg3[%c465, %c0_102] : memref<976x128xf32, #tpu.memory_space<vmem>>, vector<1x32xf32>
    %377 = vector.shape_cast %372 : vector<16x32xf32> to vector<1x16x32xf32>
    %378 = vector.broadcast %377 : vector<1x16x32xf32> to vector<4x16x32xf32>
    %379 = vector.broadcast %11 : vector<4x1x32xf32> to vector<4x16x32xf32>
    %380 = arith.mulf %378, %379 : vector<4x16x32xf32>
    %381 = vector.shape_cast %380 : vector<4x16x32xf32> to vector<64x32xf32>
    "tpu.trace_start"() <{level = 10 : i32, message = "qd,kd->qk"}> : () -> ()
    %cst_103 = arith.constant dense<0.000000e+00> : vector<64x16xf32>
    %382 = tpu.matmul %381, %373, %cst_103 {dimension_numbers = #tpu.dot_dimension_numbers<[1], [1], [0], [0], [0, 0, 1, 0], [], []>} : vector<64x32xf32>, vector<16x32xf32>, vector<64x16xf32> -> vector<64x16xf32>
    "tpu.trace_stop"() : () -> ()
    %cst_104 = arith.constant 0.353553385 : f32
    %383 = vector.broadcast %cst_104 : f32 to vector<64x16xf32>
    %384 = arith.mulf %382, %383 : vector<64x16xf32>
    %385 = arith.addf %384, %82 : vector<64x16xf32>
    %cst_105 = arith.constant dense<0xFF800000> : vector<64xf32>
    %386 = vector.multi_reduction <maximumf>, %385, %cst_105 [1] : vector<64x16xf32> to vector<64xf32>
    %387 = vector.shape_cast %386 : vector<64xf32> to vector<64x1xf32>
    %388 = vector.broadcast %387 : vector<64x1xf32> to vector<64x16xf32>
    %389 = arith.subf %385, %388 : vector<64x16xf32>
    %390 = math.exp %389 : vector<64x16xf32>
    %cst_106 = arith.constant dense<0.000000e+00> : vector<64xf32>
    %391 = vector.multi_reduction <add>, %390, %cst_106 [1] : vector<64x16xf32> to vector<64xf32>
    %392 = vector.shape_cast %391 : vector<64xf32> to vector<64x1xf32>
    %393 = tpu.reciprocal %392 : vector<64x1xf32> -> vector<64x1xf32>
    %394 = vector.broadcast %393 : vector<64x1xf32> to vector<64x16xf32>
    %395 = arith.mulf %390, %394 : vector<64x16xf32>
    %cst_107 = arith.constant dense<0.000000e+00> : vector<64x32xf32>
    %396 = tpu.matmul %395, %374, %cst_107 {dimension_numbers = #tpu.dot_dimension_numbers<[1], [0], [0], [1], [0, 0, 1, 1], [], []>} : vector<64x16xf32>, vector<16x32xf32>, vector<64x32xf32> -> vector<64x32xf32>
    %397 = vector.shape_cast %396 : vector<64x32xf32> to vector<4x16x32xf32>
    %398 = vector.broadcast %11 : vector<4x1x32xf32> to vector<4x16x32xf32>
    %399 = arith.mulf %397, %398 : vector<4x16x32xf32>
    %400 = vector.extract_strided_slice %399 {offsets = [0, 0, 0], sizes = [1, 16, 32], strides = [1, 1, 1]} : vector<4x16x32xf32> to vector<1x16x32xf32>
    %401 = vector.shape_cast %400 : vector<1x16x32xf32> to vector<16x32xf32>
    %402 = vector.extract_strided_slice %399 {offsets = [1, 0, 0], sizes = [1, 16, 32], strides = [1, 1, 1]} : vector<4x16x32xf32> to vector<1x16x32xf32>
    %403 = vector.shape_cast %402 : vector<1x16x32xf32> to vector<16x32xf32>
    %404 = arith.addf %401, %403 : vector<16x32xf32>
    %405 = vector.extract_strided_slice %399 {offsets = [2, 0, 0], sizes = [1, 16, 32], strides = [1, 1, 1]} : vector<4x16x32xf32> to vector<1x16x32xf32>
    %406 = vector.shape_cast %405 : vector<1x16x32xf32> to vector<16x32xf32>
    %407 = arith.addf %404, %406 : vector<16x32xf32>
    %408 = vector.extract_strided_slice %399 {offsets = [3, 0, 0], sizes = [1, 16, 32], strides = [1, 1, 1]} : vector<4x16x32xf32> to vector<1x16x32xf32>
    %409 = vector.shape_cast %408 : vector<1x16x32xf32> to vector<16x32xf32>
    %410 = arith.addf %407, %409 : vector<16x32xf32>
    %cst_108 = arith.constant dense<0.000000e+00> : vector<16x32xf32>
    %411 = tpu.matmul %410, %375, %cst_108 {dimension_numbers = #tpu.dot_dimension_numbers<[1], [0], [0], [1], [0, 0, 1, 1], [], []>} : vector<16x32xf32>, vector<32x32xf32>, vector<16x32xf32> -> vector<16x32xf32>
    %412 = vector.broadcast %376 : vector<1x32xf32> to vector<16x32xf32>
    %413 = arith.addf %411, %412 : vector<16x32xf32>
    %414 = arith.addf %124, %413 : vector<16x32xf32>
    %c663 = arith.constant 663 : index
    %c0_109 = arith.constant 0 : index
    %415 = vector.load %arg3[%c663, %c0_109] : memref<976x128xf32, #tpu.memory_space<vmem>>, vector<1x32xf32>
    %c664 = arith.constant 664 : index
    %c0_110 = arith.constant 0 : index
    %416 = vector.load %arg3[%c664, %c0_110] : memref<976x128xf32, #tpu.memory_space<vmem>>, vector<1x32xf32>
    %cst_111 = arith.constant dense<0.000000e+00> : vector<16xf32>
    %417 = vector.multi_reduction <add>, %414, %cst_111 [1] : vector<16x32xf32> to vector<16xf32>
    %418 = vector.shape_cast %417 : vector<16xf32> to vector<16x1xf32>
    %cst_112 = arith.constant 3.200000e+01 : f32
    %419 = vector.broadcast %cst_112 : f32 to vector<16x1xf32>
    %420 = arith.divf %418, %419 : vector<16x1xf32>
    %421 = vector.broadcast %420 : vector<16x1xf32> to vector<16x32xf32>
    %422 = arith.subf %414, %421 : vector<16x32xf32>
    %423 = arith.mulf %422, %422 : vector<16x32xf32>
    %cst_113 = arith.constant dense<0.000000e+00> : vector<16xf32>
    %424 = vector.multi_reduction <add>, %423, %cst_113 [1] : vector<16x32xf32> to vector<16xf32>
    %425 = vector.shape_cast %424 : vector<16xf32> to vector<16x1xf32>
    %cst_114 = arith.constant 3.200000e+01 : f32
    %426 = vector.broadcast %cst_114 : f32 to vector<16x1xf32>
    %427 = arith.divf %425, %426 : vector<16x1xf32>
    %428 = vector.broadcast %420 : vector<16x1xf32> to vector<16x32xf32>
    %429 = arith.subf %414, %428 : vector<16x32xf32>
    %cst_115 = arith.constant 9.99999974E-6 : f32
    %430 = vector.broadcast %cst_115 : f32 to vector<16x1xf32>
    %431 = arith.addf %427, %430 : vector<16x1xf32>
    %432 = math.rsqrt %431 : vector<16x1xf32>
    %433 = vector.broadcast %432 : vector<16x1xf32> to vector<16x32xf32>
    %434 = arith.mulf %429, %433 : vector<16x32xf32>
    %435 = vector.broadcast %415 : vector<1x32xf32> to vector<16x32xf32>
    %436 = arith.mulf %434, %435 : vector<16x32xf32>
    %437 = vector.broadcast %416 : vector<1x32xf32> to vector<16x32xf32>
    %438 = arith.addf %436, %437 : vector<16x32xf32>
    %c466 = arith.constant 466 : index
    %c0_116 = arith.constant 0 : index
    %439 = vector.load %arg3[%c466, %c0_116] : memref<976x128xf32, #tpu.memory_space<vmem>>, vector<32x32xf32>
    %c498 = arith.constant 498 : index
    %c0_117 = arith.constant 0 : index
    %440 = vector.load %arg3[%c498, %c0_117] : memref<976x128xf32, #tpu.memory_space<vmem>>, vector<1x32xf32>
    %cst_118 = arith.constant dense<0.000000e+00> : vector<16x32xf32>
    %441 = tpu.matmul %438, %439, %cst_118 {dimension_numbers = #tpu.dot_dimension_numbers<[1], [0], [0], [1], [0, 0, 1, 1], [], []>} : vector<16x32xf32>, vector<32x32xf32>, vector<16x32xf32> -> vector<16x32xf32>
    %442 = vector.broadcast %440 : vector<1x32xf32> to vector<16x32xf32>
    %443 = arith.addf %441, %442 : vector<16x32xf32>
    %c499 = arith.constant 499 : index
    %c0_119 = arith.constant 0 : index
    %444 = vector.load %arg3[%c499, %c0_119] : memref<976x128xf32, #tpu.memory_space<vmem>>, vector<32x64xf32>
    %c531 = arith.constant 531 : index
    %c0_120 = arith.constant 0 : index
    %445 = vector.load %arg3[%c531, %c0_120] : memref<976x128xf32, #tpu.memory_space<vmem>>, vector<1x64xf32>
    %cst_121 = arith.constant dense<0.000000e+00> : vector<16x64xf32>
    %446 = tpu.matmul %366, %444, %cst_121 {dimension_numbers = #tpu.dot_dimension_numbers<[1], [0], [0], [1], [0, 0, 1, 1], [], []>} : vector<16x32xf32>, vector<32x64xf32>, vector<16x64xf32> -> vector<16x64xf32>
    %447 = vector.broadcast %445 : vector<1x64xf32> to vector<16x64xf32>
    %448 = arith.addf %446, %447 : vector<16x64xf32>
    %449 = vector.extract_strided_slice %448 {offsets = [0, 0], sizes = [16, 32], strides = [1, 1]} : vector<16x64xf32> to vector<16x32xf32>
    %450 = vector.extract_strided_slice %448 {offsets = [0, 32], sizes = [16, 32], strides = [1, 1]} : vector<16x64xf32> to vector<16x32xf32>
    %c532 = arith.constant 532 : index
    %c0_122 = arith.constant 0 : index
    %451 = vector.load %arg3[%c532, %c0_122] : memref<976x128xf32, #tpu.memory_space<vmem>>, vector<32x32xf32>
    %c564 = arith.constant 564 : index
    %c0_123 = arith.constant 0 : index
    %452 = vector.load %arg3[%c564, %c0_123] : memref<976x128xf32, #tpu.memory_space<vmem>>, vector<1x32xf32>
    %453 = vector.shape_cast %443 : vector<16x32xf32> to vector<1x16x32xf32>
    %454 = vector.broadcast %453 : vector<1x16x32xf32> to vector<4x16x32xf32>
    %455 = vector.broadcast %11 : vector<4x1x32xf32> to vector<4x16x32xf32>
    %456 = arith.mulf %454, %455 : vector<4x16x32xf32>
    %457 = vector.shape_cast %456 : vector<4x16x32xf32> to vector<64x32xf32>
    "tpu.trace_start"() <{level = 10 : i32, message = "qd,kd->qk"}> : () -> ()
    %cst_124 = arith.constant dense<0.000000e+00> : vector<64x16xf32>
    %458 = tpu.matmul %457, %449, %cst_124 {dimension_numbers = #tpu.dot_dimension_numbers<[1], [1], [0], [0], [0, 0, 1, 0], [], []>} : vector<64x32xf32>, vector<16x32xf32>, vector<64x16xf32> -> vector<64x16xf32>
    "tpu.trace_stop"() : () -> ()
    %cst_125 = arith.constant 0.353553385 : f32
    %459 = vector.broadcast %cst_125 : f32 to vector<64x16xf32>
    %460 = arith.mulf %458, %459 : vector<64x16xf32>
    %461 = arith.addf %460, %100 : vector<64x16xf32>
    %cst_126 = arith.constant dense<0xFF800000> : vector<64xf32>
    %462 = vector.multi_reduction <maximumf>, %461, %cst_126 [1] : vector<64x16xf32> to vector<64xf32>
    %463 = vector.shape_cast %462 : vector<64xf32> to vector<64x1xf32>
    %464 = vector.broadcast %463 : vector<64x1xf32> to vector<64x16xf32>
    %465 = arith.subf %461, %464 : vector<64x16xf32>
    %466 = math.exp %465 : vector<64x16xf32>
    %cst_127 = arith.constant dense<0.000000e+00> : vector<64xf32>
    %467 = vector.multi_reduction <add>, %466, %cst_127 [1] : vector<64x16xf32> to vector<64xf32>
    %468 = vector.shape_cast %467 : vector<64xf32> to vector<64x1xf32>
    %469 = tpu.reciprocal %468 : vector<64x1xf32> -> vector<64x1xf32>
    %470 = vector.broadcast %469 : vector<64x1xf32> to vector<64x16xf32>
    %471 = arith.mulf %466, %470 : vector<64x16xf32>
    %cst_128 = arith.constant dense<0.000000e+00> : vector<64x32xf32>
    %472 = tpu.matmul %471, %450, %cst_128 {dimension_numbers = #tpu.dot_dimension_numbers<[1], [0], [0], [1], [0, 0, 1, 1], [], []>} : vector<64x16xf32>, vector<16x32xf32>, vector<64x32xf32> -> vector<64x32xf32>
    %473 = vector.shape_cast %472 : vector<64x32xf32> to vector<4x16x32xf32>
    %474 = vector.broadcast %11 : vector<4x1x32xf32> to vector<4x16x32xf32>
    %475 = arith.mulf %473, %474 : vector<4x16x32xf32>
    %476 = vector.extract_strided_slice %475 {offsets = [0, 0, 0], sizes = [1, 16, 32], strides = [1, 1, 1]} : vector<4x16x32xf32> to vector<1x16x32xf32>
    %477 = vector.shape_cast %476 : vector<1x16x32xf32> to vector<16x32xf32>
    %478 = vector.extract_strided_slice %475 {offsets = [1, 0, 0], sizes = [1, 16, 32], strides = [1, 1, 1]} : vector<4x16x32xf32> to vector<1x16x32xf32>
    %479 = vector.shape_cast %478 : vector<1x16x32xf32> to vector<16x32xf32>
    %480 = arith.addf %477, %479 : vector<16x32xf32>
    %481 = vector.extract_strided_slice %475 {offsets = [2, 0, 0], sizes = [1, 16, 32], strides = [1, 1, 1]} : vector<4x16x32xf32> to vector<1x16x32xf32>
    %482 = vector.shape_cast %481 : vector<1x16x32xf32> to vector<16x32xf32>
    %483 = arith.addf %480, %482 : vector<16x32xf32>
    %484 = vector.extract_strided_slice %475 {offsets = [3, 0, 0], sizes = [1, 16, 32], strides = [1, 1, 1]} : vector<4x16x32xf32> to vector<1x16x32xf32>
    %485 = vector.shape_cast %484 : vector<1x16x32xf32> to vector<16x32xf32>
    %486 = arith.addf %483, %485 : vector<16x32xf32>
    %cst_129 = arith.constant dense<0.000000e+00> : vector<16x32xf32>
    %487 = tpu.matmul %486, %451, %cst_129 {dimension_numbers = #tpu.dot_dimension_numbers<[1], [0], [0], [1], [0, 0, 1, 1], [], []>} : vector<16x32xf32>, vector<32x32xf32>, vector<16x32xf32> -> vector<16x32xf32>
    %488 = vector.broadcast %452 : vector<1x32xf32> to vector<16x32xf32>
    %489 = arith.addf %487, %488 : vector<16x32xf32>
    %490 = arith.addf %438, %489 : vector<16x32xf32>
    %c665 = arith.constant 665 : index
    %c0_130 = arith.constant 0 : index
    %491 = vector.load %arg3[%c665, %c0_130] : memref<976x128xf32, #tpu.memory_space<vmem>>, vector<1x32xf32>
    %c666 = arith.constant 666 : index
    %c0_131 = arith.constant 0 : index
    %492 = vector.load %arg3[%c666, %c0_131] : memref<976x128xf32, #tpu.memory_space<vmem>>, vector<1x32xf32>
    %cst_132 = arith.constant dense<0.000000e+00> : vector<16xf32>
    %493 = vector.multi_reduction <add>, %490, %cst_132 [1] : vector<16x32xf32> to vector<16xf32>
    %494 = vector.shape_cast %493 : vector<16xf32> to vector<16x1xf32>
    %cst_133 = arith.constant 3.200000e+01 : f32
    %495 = vector.broadcast %cst_133 : f32 to vector<16x1xf32>
    %496 = arith.divf %494, %495 : vector<16x1xf32>
    %497 = vector.broadcast %496 : vector<16x1xf32> to vector<16x32xf32>
    %498 = arith.subf %490, %497 : vector<16x32xf32>
    %499 = arith.mulf %498, %498 : vector<16x32xf32>
    %cst_134 = arith.constant dense<0.000000e+00> : vector<16xf32>
    %500 = vector.multi_reduction <add>, %499, %cst_134 [1] : vector<16x32xf32> to vector<16xf32>
    %501 = vector.shape_cast %500 : vector<16xf32> to vector<16x1xf32>
    %cst_135 = arith.constant 3.200000e+01 : f32
    %502 = vector.broadcast %cst_135 : f32 to vector<16x1xf32>
    %503 = arith.divf %501, %502 : vector<16x1xf32>
    %504 = vector.broadcast %496 : vector<16x1xf32> to vector<16x32xf32>
    %505 = arith.subf %490, %504 : vector<16x32xf32>
    %cst_136 = arith.constant 9.99999974E-6 : f32
    %506 = vector.broadcast %cst_136 : f32 to vector<16x1xf32>
    %507 = arith.addf %503, %506 : vector<16x1xf32>
    %508 = math.rsqrt %507 : vector<16x1xf32>
    %509 = vector.broadcast %508 : vector<16x1xf32> to vector<16x32xf32>
    %510 = arith.mulf %505, %509 : vector<16x32xf32>
    %511 = vector.broadcast %491 : vector<1x32xf32> to vector<16x32xf32>
    %512 = arith.mulf %510, %511 : vector<16x32xf32>
    %513 = vector.broadcast %492 : vector<1x32xf32> to vector<16x32xf32>
    %514 = arith.addf %512, %513 : vector<16x32xf32>
    %c565 = arith.constant 565 : index
    %c0_137 = arith.constant 0 : index
    %515 = vector.load %arg3[%c565, %c0_137] : memref<976x128xf32, #tpu.memory_space<vmem>>, vector<32x64xf32>
    %c597 = arith.constant 597 : index
    %c0_138 = arith.constant 0 : index
    %516 = vector.load %arg3[%c597, %c0_138] : memref<976x128xf32, #tpu.memory_space<vmem>>, vector<1x64xf32>
    %cst_139 = arith.constant dense<0.000000e+00> : vector<16x64xf32>
    %517 = tpu.matmul %514, %515, %cst_139 {dimension_numbers = #tpu.dot_dimension_numbers<[1], [0], [0], [1], [0, 0, 1, 1], [], []>} : vector<16x32xf32>, vector<32x64xf32>, vector<16x64xf32> -> vector<16x64xf32>
    %518 = vector.broadcast %516 : vector<1x64xf32> to vector<16x64xf32>
    %519 = arith.addf %517, %518 : vector<16x64xf32>
    %cst_140 = arith.constant 0.000000e+00 : f32
    %520 = vector.broadcast %cst_140 : f32 to vector<16x64xf32>
    %521 = arith.maximumf %519, %520 : vector<16x64xf32>
    %c598 = arith.constant 598 : index
    %c0_141 = arith.constant 0 : index
    %522 = vector.load %arg3[%c598, %c0_141] : memref<976x128xf32, #tpu.memory_space<vmem>>, vector<64x32xf32>
    %c662 = arith.constant 662 : index
    %c0_142 = arith.constant 0 : index
    %523 = vector.load %arg3[%c662, %c0_142] : memref<976x128xf32, #tpu.memory_space<vmem>>, vector<1x32xf32>
    %cst_143 = arith.constant dense<0.000000e+00> : vector<16x32xf32>
    %524 = tpu.matmul %521, %522, %cst_143 {dimension_numbers = #tpu.dot_dimension_numbers<[1], [0], [0], [1], [0, 0, 1, 1], [], []>} : vector<16x64xf32>, vector<64x32xf32>, vector<16x32xf32> -> vector<16x32xf32>
    %525 = vector.broadcast %523 : vector<1x32xf32> to vector<16x32xf32>
    %526 = arith.addf %524, %525 : vector<16x32xf32>
    %527 = arith.addf %514, %526 : vector<16x32xf32>
    %c667 = arith.constant 667 : index
    %c0_144 = arith.constant 0 : index
    %528 = vector.load %arg3[%c667, %c0_144] : memref<976x128xf32, #tpu.memory_space<vmem>>, vector<1x32xf32>
    %c668 = arith.constant 668 : index
    %c0_145 = arith.constant 0 : index
    %529 = vector.load %arg3[%c668, %c0_145] : memref<976x128xf32, #tpu.memory_space<vmem>>, vector<1x32xf32>
    %cst_146 = arith.constant dense<0.000000e+00> : vector<16xf32>
    %530 = vector.multi_reduction <add>, %527, %cst_146 [1] : vector<16x32xf32> to vector<16xf32>
    %531 = vector.shape_cast %530 : vector<16xf32> to vector<16x1xf32>
    %cst_147 = arith.constant 3.200000e+01 : f32
    %532 = vector.broadcast %cst_147 : f32 to vector<16x1xf32>
    %533 = arith.divf %531, %532 : vector<16x1xf32>
    %534 = vector.broadcast %533 : vector<16x1xf32> to vector<16x32xf32>
    %535 = arith.subf %527, %534 : vector<16x32xf32>
    %536 = arith.mulf %535, %535 : vector<16x32xf32>
    %cst_148 = arith.constant dense<0.000000e+00> : vector<16xf32>
    %537 = vector.multi_reduction <add>, %536, %cst_148 [1] : vector<16x32xf32> to vector<16xf32>
    %538 = vector.shape_cast %537 : vector<16xf32> to vector<16x1xf32>
    %cst_149 = arith.constant 3.200000e+01 : f32
    %539 = vector.broadcast %cst_149 : f32 to vector<16x1xf32>
    %540 = arith.divf %538, %539 : vector<16x1xf32>
    %541 = vector.broadcast %533 : vector<16x1xf32> to vector<16x32xf32>
    %542 = arith.subf %527, %541 : vector<16x32xf32>
    %cst_150 = arith.constant 9.99999974E-6 : f32
    %543 = vector.broadcast %cst_150 : f32 to vector<16x1xf32>
    %544 = arith.addf %540, %543 : vector<16x1xf32>
    %545 = math.rsqrt %544 : vector<16x1xf32>
    %546 = vector.broadcast %545 : vector<16x1xf32> to vector<16x32xf32>
    %547 = arith.mulf %542, %546 : vector<16x32xf32>
    %548 = vector.broadcast %528 : vector<1x32xf32> to vector<16x32xf32>
    %549 = arith.mulf %547, %548 : vector<16x32xf32>
    %550 = vector.broadcast %529 : vector<1x32xf32> to vector<16x32xf32>
    %551 = arith.addf %549, %550 : vector<16x32xf32>
    %c669 = arith.constant 669 : index
    %c0_151 = arith.constant 0 : index
    %552 = vector.load %arg3[%c669, %c0_151] : memref<976x128xf32, #tpu.memory_space<vmem>>, vector<32x96xf32>
    %c701 = arith.constant 701 : index
    %c0_152 = arith.constant 0 : index
    %553 = vector.load %arg3[%c701, %c0_152] : memref<976x128xf32, #tpu.memory_space<vmem>>, vector<1x96xf32>
    %cst_153 = arith.constant dense<0.000000e+00> : vector<16x96xf32>
    %554 = tpu.matmul %551, %552, %cst_153 {dimension_numbers = #tpu.dot_dimension_numbers<[1], [0], [0], [1], [0, 0, 1, 1], [], []>} : vector<16x32xf32>, vector<32x96xf32>, vector<16x96xf32> -> vector<16x96xf32>
    %555 = vector.broadcast %553 : vector<1x96xf32> to vector<16x96xf32>
    %556 = arith.addf %554, %555 : vector<16x96xf32>
    %557 = vector.extract_strided_slice %556 {offsets = [0, 0], sizes = [16, 32], strides = [1, 1]} : vector<16x96xf32> to vector<16x32xf32>
    %558 = vector.extract_strided_slice %556 {offsets = [0, 32], sizes = [16, 32], strides = [1, 1]} : vector<16x96xf32> to vector<16x32xf32>
    %559 = vector.extract_strided_slice %556 {offsets = [0, 64], sizes = [16, 32], strides = [1, 1]} : vector<16x96xf32> to vector<16x32xf32>
    %c702 = arith.constant 702 : index
    %c0_154 = arith.constant 0 : index
    %560 = vector.load %arg3[%c702, %c0_154] : memref<976x128xf32, #tpu.memory_space<vmem>>, vector<32x32xf32>
    %c734 = arith.constant 734 : index
    %c0_155 = arith.constant 0 : index
    %561 = vector.load %arg3[%c734, %c0_155] : memref<976x128xf32, #tpu.memory_space<vmem>>, vector<1x32xf32>
    %562 = vector.shape_cast %557 : vector<16x32xf32> to vector<1x16x32xf32>
    %563 = vector.broadcast %562 : vector<1x16x32xf32> to vector<4x16x32xf32>
    %564 = vector.broadcast %11 : vector<4x1x32xf32> to vector<4x16x32xf32>
    %565 = arith.mulf %563, %564 : vector<4x16x32xf32>
    %566 = vector.shape_cast %565 : vector<4x16x32xf32> to vector<64x32xf32>
    "tpu.trace_start"() <{level = 10 : i32, message = "qd,kd->qk"}> : () -> ()
    %cst_156 = arith.constant dense<0.000000e+00> : vector<64x16xf32>
    %567 = tpu.matmul %566, %558, %cst_156 {dimension_numbers = #tpu.dot_dimension_numbers<[1], [1], [0], [0], [0, 0, 1, 0], [], []>} : vector<64x32xf32>, vector<16x32xf32>, vector<64x16xf32> -> vector<64x16xf32>
    "tpu.trace_stop"() : () -> ()
    %cst_157 = arith.constant 0.353553385 : f32
    %568 = vector.broadcast %cst_157 : f32 to vector<64x16xf32>
    %569 = arith.mulf %567, %568 : vector<64x16xf32>
    %570 = arith.addf %569, %82 : vector<64x16xf32>
    %cst_158 = arith.constant dense<0xFF800000> : vector<64xf32>
    %571 = vector.multi_reduction <maximumf>, %570, %cst_158 [1] : vector<64x16xf32> to vector<64xf32>
    %572 = vector.shape_cast %571 : vector<64xf32> to vector<64x1xf32>
    %573 = vector.broadcast %572 : vector<64x1xf32> to vector<64x16xf32>
    %574 = arith.subf %570, %573 : vector<64x16xf32>
    %575 = math.exp %574 : vector<64x16xf32>
    %cst_159 = arith.constant dense<0.000000e+00> : vector<64xf32>
    %576 = vector.multi_reduction <add>, %575, %cst_159 [1] : vector<64x16xf32> to vector<64xf32>
    %577 = vector.shape_cast %576 : vector<64xf32> to vector<64x1xf32>
    %578 = tpu.reciprocal %577 : vector<64x1xf32> -> vector<64x1xf32>
    %579 = vector.broadcast %578 : vector<64x1xf32> to vector<64x16xf32>
    %580 = arith.mulf %575, %579 : vector<64x16xf32>
    %cst_160 = arith.constant dense<0.000000e+00> : vector<64x32xf32>
    %581 = tpu.matmul %580, %559, %cst_160 {dimension_numbers = #tpu.dot_dimension_numbers<[1], [0], [0], [1], [0, 0, 1, 1], [], []>} : vector<64x16xf32>, vector<16x32xf32>, vector<64x32xf32> -> vector<64x32xf32>
    %582 = vector.shape_cast %581 : vector<64x32xf32> to vector<4x16x32xf32>
    %583 = vector.broadcast %11 : vector<4x1x32xf32> to vector<4x16x32xf32>
    %584 = arith.mulf %582, %583 : vector<4x16x32xf32>
    %585 = vector.extract_strided_slice %584 {offsets = [0, 0, 0], sizes = [1, 16, 32], strides = [1, 1, 1]} : vector<4x16x32xf32> to vector<1x16x32xf32>
    %586 = vector.shape_cast %585 : vector<1x16x32xf32> to vector<16x32xf32>
    %587 = vector.extract_strided_slice %584 {offsets = [1, 0, 0], sizes = [1, 16, 32], strides = [1, 1, 1]} : vector<4x16x32xf32> to vector<1x16x32xf32>
    %588 = vector.shape_cast %587 : vector<1x16x32xf32> to vector<16x32xf32>
    %589 = arith.addf %586, %588 : vector<16x32xf32>
    %590 = vector.extract_strided_slice %584 {offsets = [2, 0, 0], sizes = [1, 16, 32], strides = [1, 1, 1]} : vector<4x16x32xf32> to vector<1x16x32xf32>
    %591 = vector.shape_cast %590 : vector<1x16x32xf32> to vector<16x32xf32>
    %592 = arith.addf %589, %591 : vector<16x32xf32>
    %593 = vector.extract_strided_slice %584 {offsets = [3, 0, 0], sizes = [1, 16, 32], strides = [1, 1, 1]} : vector<4x16x32xf32> to vector<1x16x32xf32>
    %594 = vector.shape_cast %593 : vector<1x16x32xf32> to vector<16x32xf32>
    %595 = arith.addf %592, %594 : vector<16x32xf32>
    %cst_161 = arith.constant dense<0.000000e+00> : vector<16x32xf32>
    %596 = tpu.matmul %595, %560, %cst_161 {dimension_numbers = #tpu.dot_dimension_numbers<[1], [0], [0], [1], [0, 0, 1, 1], [], []>} : vector<16x32xf32>, vector<32x32xf32>, vector<16x32xf32> -> vector<16x32xf32>
    %597 = vector.broadcast %561 : vector<1x32xf32> to vector<16x32xf32>
    %598 = arith.addf %596, %597 : vector<16x32xf32>
    %599 = arith.addf %551, %598 : vector<16x32xf32>
    %c932 = arith.constant 932 : index
    %c0_162 = arith.constant 0 : index
    %600 = vector.load %arg3[%c932, %c0_162] : memref<976x128xf32, #tpu.memory_space<vmem>>, vector<1x32xf32>
    %c933 = arith.constant 933 : index
    %c0_163 = arith.constant 0 : index
    %601 = vector.load %arg3[%c933, %c0_163] : memref<976x128xf32, #tpu.memory_space<vmem>>, vector<1x32xf32>
    %cst_164 = arith.constant dense<0.000000e+00> : vector<16xf32>
    %602 = vector.multi_reduction <add>, %599, %cst_164 [1] : vector<16x32xf32> to vector<16xf32>
    %603 = vector.shape_cast %602 : vector<16xf32> to vector<16x1xf32>
    %cst_165 = arith.constant 3.200000e+01 : f32
    %604 = vector.broadcast %cst_165 : f32 to vector<16x1xf32>
    %605 = arith.divf %603, %604 : vector<16x1xf32>
    %606 = vector.broadcast %605 : vector<16x1xf32> to vector<16x32xf32>
    %607 = arith.subf %599, %606 : vector<16x32xf32>
    %608 = arith.mulf %607, %607 : vector<16x32xf32>
    %cst_166 = arith.constant dense<0.000000e+00> : vector<16xf32>
    %609 = vector.multi_reduction <add>, %608, %cst_166 [1] : vector<16x32xf32> to vector<16xf32>
    %610 = vector.shape_cast %609 : vector<16xf32> to vector<16x1xf32>
    %cst_167 = arith.constant 3.200000e+01 : f32
    %611 = vector.broadcast %cst_167 : f32 to vector<16x1xf32>
    %612 = arith.divf %610, %611 : vector<16x1xf32>
    %613 = vector.broadcast %605 : vector<16x1xf32> to vector<16x32xf32>
    %614 = arith.subf %599, %613 : vector<16x32xf32>
    %cst_168 = arith.constant 9.99999974E-6 : f32
    %615 = vector.broadcast %cst_168 : f32 to vector<16x1xf32>
    %616 = arith.addf %612, %615 : vector<16x1xf32>
    %617 = math.rsqrt %616 : vector<16x1xf32>
    %618 = vector.broadcast %617 : vector<16x1xf32> to vector<16x32xf32>
    %619 = arith.mulf %614, %618 : vector<16x32xf32>
    %620 = vector.broadcast %600 : vector<1x32xf32> to vector<16x32xf32>
    %621 = arith.mulf %619, %620 : vector<16x32xf32>
    %622 = vector.broadcast %601 : vector<1x32xf32> to vector<16x32xf32>
    %623 = arith.addf %621, %622 : vector<16x32xf32>
    %c735 = arith.constant 735 : index
    %c0_169 = arith.constant 0 : index
    %624 = vector.load %arg3[%c735, %c0_169] : memref<976x128xf32, #tpu.memory_space<vmem>>, vector<32x32xf32>
    %c767 = arith.constant 767 : index
    %c0_170 = arith.constant 0 : index
    %625 = vector.load %arg3[%c767, %c0_170] : memref<976x128xf32, #tpu.memory_space<vmem>>, vector<1x32xf32>
    %cst_171 = arith.constant dense<0.000000e+00> : vector<16x32xf32>
    %626 = tpu.matmul %623, %624, %cst_171 {dimension_numbers = #tpu.dot_dimension_numbers<[1], [0], [0], [1], [0, 0, 1, 1], [], []>} : vector<16x32xf32>, vector<32x32xf32>, vector<16x32xf32> -> vector<16x32xf32>
    %627 = vector.broadcast %625 : vector<1x32xf32> to vector<16x32xf32>
    %628 = arith.addf %626, %627 : vector<16x32xf32>
    %c768 = arith.constant 768 : index
    %c0_172 = arith.constant 0 : index
    %629 = vector.load %arg3[%c768, %c0_172] : memref<976x128xf32, #tpu.memory_space<vmem>>, vector<32x64xf32>
    %c800 = arith.constant 800 : index
    %c0_173 = arith.constant 0 : index
    %630 = vector.load %arg3[%c800, %c0_173] : memref<976x128xf32, #tpu.memory_space<vmem>>, vector<1x64xf32>
    %cst_174 = arith.constant dense<0.000000e+00> : vector<16x64xf32>
    %631 = tpu.matmul %366, %629, %cst_174 {dimension_numbers = #tpu.dot_dimension_numbers<[1], [0], [0], [1], [0, 0, 1, 1], [], []>} : vector<16x32xf32>, vector<32x64xf32>, vector<16x64xf32> -> vector<16x64xf32>
    %632 = vector.broadcast %630 : vector<1x64xf32> to vector<16x64xf32>
    %633 = arith.addf %631, %632 : vector<16x64xf32>
    %634 = vector.extract_strided_slice %633 {offsets = [0, 0], sizes = [16, 32], strides = [1, 1]} : vector<16x64xf32> to vector<16x32xf32>
    %635 = vector.extract_strided_slice %633 {offsets = [0, 32], sizes = [16, 32], strides = [1, 1]} : vector<16x64xf32> to vector<16x32xf32>
    %c801 = arith.constant 801 : index
    %c0_175 = arith.constant 0 : index
    %636 = vector.load %arg3[%c801, %c0_175] : memref<976x128xf32, #tpu.memory_space<vmem>>, vector<32x32xf32>
    %c833 = arith.constant 833 : index
    %c0_176 = arith.constant 0 : index
    %637 = vector.load %arg3[%c833, %c0_176] : memref<976x128xf32, #tpu.memory_space<vmem>>, vector<1x32xf32>
    %638 = vector.shape_cast %628 : vector<16x32xf32> to vector<1x16x32xf32>
    %639 = vector.broadcast %638 : vector<1x16x32xf32> to vector<4x16x32xf32>
    %640 = vector.broadcast %11 : vector<4x1x32xf32> to vector<4x16x32xf32>
    %641 = arith.mulf %639, %640 : vector<4x16x32xf32>
    %642 = vector.shape_cast %641 : vector<4x16x32xf32> to vector<64x32xf32>
    "tpu.trace_start"() <{level = 10 : i32, message = "qd,kd->qk"}> : () -> ()
    %cst_177 = arith.constant dense<0.000000e+00> : vector<64x16xf32>
    %643 = tpu.matmul %642, %634, %cst_177 {dimension_numbers = #tpu.dot_dimension_numbers<[1], [1], [0], [0], [0, 0, 1, 0], [], []>} : vector<64x32xf32>, vector<16x32xf32>, vector<64x16xf32> -> vector<64x16xf32>
    "tpu.trace_stop"() : () -> ()
    %cst_178 = arith.constant 0.353553385 : f32
    %644 = vector.broadcast %cst_178 : f32 to vector<64x16xf32>
    %645 = arith.mulf %643, %644 : vector<64x16xf32>
    %646 = arith.addf %645, %100 : vector<64x16xf32>
    %cst_179 = arith.constant dense<0xFF800000> : vector<64xf32>
    %647 = vector.multi_reduction <maximumf>, %646, %cst_179 [1] : vector<64x16xf32> to vector<64xf32>
    %648 = vector.shape_cast %647 : vector<64xf32> to vector<64x1xf32>
    %649 = vector.broadcast %648 : vector<64x1xf32> to vector<64x16xf32>
    %650 = arith.subf %646, %649 : vector<64x16xf32>
    %651 = math.exp %650 : vector<64x16xf32>
    %cst_180 = arith.constant dense<0.000000e+00> : vector<64xf32>
    %652 = vector.multi_reduction <add>, %651, %cst_180 [1] : vector<64x16xf32> to vector<64xf32>
    %653 = vector.shape_cast %652 : vector<64xf32> to vector<64x1xf32>
    %654 = tpu.reciprocal %653 : vector<64x1xf32> -> vector<64x1xf32>
    %655 = vector.broadcast %654 : vector<64x1xf32> to vector<64x16xf32>
    %656 = arith.mulf %651, %655 : vector<64x16xf32>
    %cst_181 = arith.constant dense<0.000000e+00> : vector<64x32xf32>
    %657 = tpu.matmul %656, %635, %cst_181 {dimension_numbers = #tpu.dot_dimension_numbers<[1], [0], [0], [1], [0, 0, 1, 1], [], []>} : vector<64x16xf32>, vector<16x32xf32>, vector<64x32xf32> -> vector<64x32xf32>
    %658 = vector.shape_cast %657 : vector<64x32xf32> to vector<4x16x32xf32>
    %659 = vector.broadcast %11 : vector<4x1x32xf32> to vector<4x16x32xf32>
    %660 = arith.mulf %658, %659 : vector<4x16x32xf32>
    %661 = vector.extract_strided_slice %660 {offsets = [0, 0, 0], sizes = [1, 16, 32], strides = [1, 1, 1]} : vector<4x16x32xf32> to vector<1x16x32xf32>
    %662 = vector.shape_cast %661 : vector<1x16x32xf32> to vector<16x32xf32>
    %663 = vector.extract_strided_slice %660 {offsets = [1, 0, 0], sizes = [1, 16, 32], strides = [1, 1, 1]} : vector<4x16x32xf32> to vector<1x16x32xf32>
    %664 = vector.shape_cast %663 : vector<1x16x32xf32> to vector<16x32xf32>
    %665 = arith.addf %662, %664 : vector<16x32xf32>
    %666 = vector.extract_strided_slice %660 {offsets = [2, 0, 0], sizes = [1, 16, 32], strides = [1, 1, 1]} : vector<4x16x32xf32> to vector<1x16x32xf32>
    %667 = vector.shape_cast %666 : vector<1x16x32xf32> to vector<16x32xf32>
    %668 = arith.addf %665, %667 : vector<16x32xf32>
    %669 = vector.extract_strided_slice %660 {offsets = [3, 0, 0], sizes = [1, 16, 32], strides = [1, 1, 1]} : vector<4x16x32xf32> to vector<1x16x32xf32>
    %670 = vector.shape_cast %669 : vector<1x16x32xf32> to vector<16x32xf32>
    %671 = arith.addf %668, %670 : vector<16x32xf32>
    %cst_182 = arith.constant dense<0.000000e+00> : vector<16x32xf32>
    %672 = tpu.matmul %671, %636, %cst_182 {dimension_numbers = #tpu.dot_dimension_numbers<[1], [0], [0], [1], [0, 0, 1, 1], [], []>} : vector<16x32xf32>, vector<32x32xf32>, vector<16x32xf32> -> vector<16x32xf32>
    %673 = vector.broadcast %637 : vector<1x32xf32> to vector<16x32xf32>
    %674 = arith.addf %672, %673 : vector<16x32xf32>
    %675 = arith.addf %623, %674 : vector<16x32xf32>
    %c934 = arith.constant 934 : index
    %c0_183 = arith.constant 0 : index
    %676 = vector.load %arg3[%c934, %c0_183] : memref<976x128xf32, #tpu.memory_space<vmem>>, vector<1x32xf32>
    %c935 = arith.constant 935 : index
    %c0_184 = arith.constant 0 : index
    %677 = vector.load %arg3[%c935, %c0_184] : memref<976x128xf32, #tpu.memory_space<vmem>>, vector<1x32xf32>
    %cst_185 = arith.constant dense<0.000000e+00> : vector<16xf32>
    %678 = vector.multi_reduction <add>, %675, %cst_185 [1] : vector<16x32xf32> to vector<16xf32>
    %679 = vector.shape_cast %678 : vector<16xf32> to vector<16x1xf32>
    %cst_186 = arith.constant 3.200000e+01 : f32
    %680 = vector.broadcast %cst_186 : f32 to vector<16x1xf32>
    %681 = arith.divf %679, %680 : vector<16x1xf32>
    %682 = vector.broadcast %681 : vector<16x1xf32> to vector<16x32xf32>
    %683 = arith.subf %675, %682 : vector<16x32xf32>
    %684 = arith.mulf %683, %683 : vector<16x32xf32>
    %cst_187 = arith.constant dense<0.000000e+00> : vector<16xf32>
    %685 = vector.multi_reduction <add>, %684, %cst_187 [1] : vector<16x32xf32> to vector<16xf32>
    %686 = vector.shape_cast %685 : vector<16xf32> to vector<16x1xf32>
    %cst_188 = arith.constant 3.200000e+01 : f32
    %687 = vector.broadcast %cst_188 : f32 to vector<16x1xf32>
    %688 = arith.divf %686, %687 : vector<16x1xf32>
    %689 = vector.broadcast %681 : vector<16x1xf32> to vector<16x32xf32>
    %690 = arith.subf %675, %689 : vector<16x32xf32>
    %cst_189 = arith.constant 9.99999974E-6 : f32
    %691 = vector.broadcast %cst_189 : f32 to vector<16x1xf32>
    %692 = arith.addf %688, %691 : vector<16x1xf32>
    %693 = math.rsqrt %692 : vector<16x1xf32>
    %694 = vector.broadcast %693 : vector<16x1xf32> to vector<16x32xf32>
    %695 = arith.mulf %690, %694 : vector<16x32xf32>
    %696 = vector.broadcast %676 : vector<1x32xf32> to vector<16x32xf32>
    %697 = arith.mulf %695, %696 : vector<16x32xf32>
    %698 = vector.broadcast %677 : vector<1x32xf32> to vector<16x32xf32>
    %699 = arith.addf %697, %698 : vector<16x32xf32>
    %c834 = arith.constant 834 : index
    %c0_190 = arith.constant 0 : index
    %700 = vector.load %arg3[%c834, %c0_190] : memref<976x128xf32, #tpu.memory_space<vmem>>, vector<32x64xf32>
    %c866 = arith.constant 866 : index
    %c0_191 = arith.constant 0 : index
    %701 = vector.load %arg3[%c866, %c0_191] : memref<976x128xf32, #tpu.memory_space<vmem>>, vector<1x64xf32>
    %cst_192 = arith.constant dense<0.000000e+00> : vector<16x64xf32>
    %702 = tpu.matmul %699, %700, %cst_192 {dimension_numbers = #tpu.dot_dimension_numbers<[1], [0], [0], [1], [0, 0, 1, 1], [], []>} : vector<16x32xf32>, vector<32x64xf32>, vector<16x64xf32> -> vector<16x64xf32>
    %703 = vector.broadcast %701 : vector<1x64xf32> to vector<16x64xf32>
    %704 = arith.addf %702, %703 : vector<16x64xf32>
    %cst_193 = arith.constant 0.000000e+00 : f32
    %705 = vector.broadcast %cst_193 : f32 to vector<16x64xf32>
    %706 = arith.maximumf %704, %705 : vector<16x64xf32>
    %c867 = arith.constant 867 : index
    %c0_194 = arith.constant 0 : index
    %707 = vector.load %arg3[%c867, %c0_194] : memref<976x128xf32, #tpu.memory_space<vmem>>, vector<64x32xf32>
    %c931 = arith.constant 931 : index
    %c0_195 = arith.constant 0 : index
    %708 = vector.load %arg3[%c931, %c0_195] : memref<976x128xf32, #tpu.memory_space<vmem>>, vector<1x32xf32>
    %cst_196 = arith.constant dense<0.000000e+00> : vector<16x32xf32>
    %709 = tpu.matmul %706, %707, %cst_196 {dimension_numbers = #tpu.dot_dimension_numbers<[1], [0], [0], [1], [0, 0, 1, 1], [], []>} : vector<16x64xf32>, vector<64x32xf32>, vector<16x32xf32> -> vector<16x32xf32>
    %710 = vector.broadcast %708 : vector<1x32xf32> to vector<16x32xf32>
    %711 = arith.addf %709, %710 : vector<16x32xf32>
    %712 = arith.addf %699, %711 : vector<16x32xf32>
    %c936 = arith.constant 936 : index
    %c0_197 = arith.constant 0 : index
    %713 = vector.load %arg3[%c936, %c0_197] : memref<976x128xf32, #tpu.memory_space<vmem>>, vector<1x32xf32>
    %c937 = arith.constant 937 : index
    %c0_198 = arith.constant 0 : index
    %714 = vector.load %arg3[%c937, %c0_198] : memref<976x128xf32, #tpu.memory_space<vmem>>, vector<1x32xf32>
    %cst_199 = arith.constant dense<0.000000e+00> : vector<16xf32>
    %715 = vector.multi_reduction <add>, %712, %cst_199 [1] : vector<16x32xf32> to vector<16xf32>
    %716 = vector.shape_cast %715 : vector<16xf32> to vector<16x1xf32>
    %cst_200 = arith.constant 3.200000e+01 : f32
    %717 = vector.broadcast %cst_200 : f32 to vector<16x1xf32>
    %718 = arith.divf %716, %717 : vector<16x1xf32>
    %719 = vector.broadcast %718 : vector<16x1xf32> to vector<16x32xf32>
    %720 = arith.subf %712, %719 : vector<16x32xf32>
    %721 = arith.mulf %720, %720 : vector<16x32xf32>
    %cst_201 = arith.constant dense<0.000000e+00> : vector<16xf32>
    %722 = vector.multi_reduction <add>, %721, %cst_201 [1] : vector<16x32xf32> to vector<16xf32>
    %723 = vector.shape_cast %722 : vector<16xf32> to vector<16x1xf32>
    %cst_202 = arith.constant 3.200000e+01 : f32
    %724 = vector.broadcast %cst_202 : f32 to vector<16x1xf32>
    %725 = arith.divf %723, %724 : vector<16x1xf32>
    %726 = vector.broadcast %718 : vector<16x1xf32> to vector<16x32xf32>
    %727 = arith.subf %712, %726 : vector<16x32xf32>
    %cst_203 = arith.constant 9.99999974E-6 : f32
    %728 = vector.broadcast %cst_203 : f32 to vector<16x1xf32>
    %729 = arith.addf %725, %728 : vector<16x1xf32>
    %730 = math.rsqrt %729 : vector<16x1xf32>
    %731 = vector.broadcast %730 : vector<16x1xf32> to vector<16x32xf32>
    %732 = arith.mulf %727, %731 : vector<16x32xf32>
    %733 = vector.broadcast %713 : vector<1x32xf32> to vector<16x32xf32>
    %734 = arith.mulf %732, %733 : vector<16x32xf32>
    %735 = vector.broadcast %714 : vector<1x32xf32> to vector<16x32xf32>
    %736 = arith.addf %734, %735 : vector<16x32xf32>
    %c940 = arith.constant 940 : index
    %c0_204 = arith.constant 0 : index
    %737 = vector.load %arg3[%c940, %c0_204] : memref<976x128xf32, #tpu.memory_space<vmem>>, vector<1x32xf32>
    %c941 = arith.constant 941 : index
    %c0_205 = arith.constant 0 : index
    %738 = vector.load %arg3[%c941, %c0_205] : memref<976x128xf32, #tpu.memory_space<vmem>>, vector<1x32xf32>
    %cst_206 = arith.constant dense<0.000000e+00> : vector<16xf32>
    %739 = vector.multi_reduction <add>, %736, %cst_206 [1] : vector<16x32xf32> to vector<16xf32>
    %740 = vector.shape_cast %739 : vector<16xf32> to vector<16x1xf32>
    %cst_207 = arith.constant 3.200000e+01 : f32
    %741 = vector.broadcast %cst_207 : f32 to vector<16x1xf32>
    %742 = arith.divf %740, %741 : vector<16x1xf32>
    %743 = vector.broadcast %742 : vector<16x1xf32> to vector<16x32xf32>
    %744 = arith.subf %736, %743 : vector<16x32xf32>
    %745 = arith.mulf %744, %744 : vector<16x32xf32>
    %cst_208 = arith.constant dense<0.000000e+00> : vector<16xf32>
    %746 = vector.multi_reduction <add>, %745, %cst_208 [1] : vector<16x32xf32> to vector<16xf32>
    %747 = vector.shape_cast %746 : vector<16xf32> to vector<16x1xf32>
    %cst_209 = arith.constant 3.200000e+01 : f32
    %748 = vector.broadcast %cst_209 : f32 to vector<16x1xf32>
    %749 = arith.divf %747, %748 : vector<16x1xf32>
    %750 = vector.broadcast %742 : vector<16x1xf32> to vector<16x32xf32>
    %751 = arith.subf %736, %750 : vector<16x32xf32>
    %cst_210 = arith.constant 9.99999974E-6 : f32
    %752 = vector.broadcast %cst_210 : f32 to vector<16x1xf32>
    %753 = arith.addf %749, %752 : vector<16x1xf32>
    %754 = math.rsqrt %753 : vector<16x1xf32>
    %755 = vector.broadcast %754 : vector<16x1xf32> to vector<16x32xf32>
    %756 = arith.mulf %751, %755 : vector<16x32xf32>
    %757 = vector.broadcast %737 : vector<1x32xf32> to vector<16x32xf32>
    %758 = arith.mulf %756, %757 : vector<16x32xf32>
    %759 = vector.broadcast %738 : vector<1x32xf32> to vector<16x32xf32>
    %760 = arith.addf %758, %759 : vector<16x32xf32>
    %c942 = arith.constant 942 : index
    %c0_211 = arith.constant 0 : index
    %761 = vector.load %arg3[%c942, %c0_211] : memref<976x128xf32, #tpu.memory_space<vmem>>, vector<32x128xf32>
    %cst_212 = arith.constant dense<0.000000e+00> : vector<16x128xf32>
    %762 = tpu.matmul %760, %761, %cst_212 {dimension_numbers = #tpu.dot_dimension_numbers<[1], [0], [0], [1], [0, 0, 1, 1], [], []>} : vector<16x32xf32>, vector<32x128xf32>, vector<16x128xf32> -> vector<16x128xf32>
    %c974 = arith.constant 974 : index
    %c0_213 = arith.constant 0 : index
    %763 = vector.load %arg3[%c974, %c0_213] : memref<976x128xf32, #tpu.memory_space<vmem>>, vector<1x128xf32>
    %764 = vector.broadcast %763 : vector<1x128xf32> to vector<16x128xf32>
    %765 = arith.addf %762, %764 : vector<16x128xf32>
    %c0_214 = arith.constant 0 : index
    %c0_215 = arith.constant 0 : index
    %766 = vector.load %arg4[%c0_214, %c0_215] : memref<16x128xf32, #tpu.memory_space<vmem>>, vector<16x128xf32>
    tpu.vector_store %arg4[%c0_214, %c0_215], %765 {strides = array<i32>} : memref<16x128xf32, #tpu.memory_space<vmem>>, vector<16x128xf32>,
    return
  }
  func.func @transform_0(%arg0: i32) -> (i32, i32) {
    %c0_i32 = arith.constant 0 : i32
    %c0_i32_0 = arith.constant 0 : i32
    %c0_i32_1 = arith.constant 0 : i32
    return %c0_i32, %c0_i32_0 : i32, i32
  }
  func.func @transform_1(%arg0: i32) -> (i32, i32) {
    %c0_i32 = arith.constant 0 : i32
    %c0_i32_0 = arith.constant 0 : i32
    %c0_i32_1 = arith.constant 0 : i32
    return %c0_i32, %c0_i32_0 : i32, i32
  }
  func.func @transform_2(%arg0: i32) -> (i32, i32) {
    %c0_i32 = arith.constant 0 : i32
    %c0_i32_0 = arith.constant 0 : i32
    %c0_i32_1 = arith.constant 0 : i32
    return %c0_i32, %c0_i32_0 : i32, i32
  }
  func.func @transform_3(%arg0: i32) -> (i32, i32) {
    %c0_i32 = arith.constant 0 : i32
    %c0_i32_0 = arith.constant 0 : i32
    %c0_i32_1 = arith.constant 0 : i32
    return %c0_i32, %c0_i32_0 : i32, i32
  }
}

</mosaic_0001>

<llo_original>
// kernel: transformer_forward.1
$region0: #{transformer_forward.1}
  #allocation0 [shape = 'u32[]', space=smem, size = 0x4, offset = 0x4, fixed_abs, tag = 'smem constant byte address 0x4 - core index']
  #allocation1 [shape = 'u32[144,128]{1,0:T(1,128)}', space=vmem, size = 0x12000, scoped, tag = 'internal scratch']
  %s0 = inlined_call_operand.vmem [shape: s32[32,1], index: 0, kind: input, shape index: {}]
  %s1 = inlined_call_operand.vmem [shape: f32[2,32], index: 1, kind: input, shape index: {}]
  %s2 = inlined_call_operand.hbm [shape: f32[976,128], index: 2, kind: input, shape index: {}]
  %s3 = inlined_call_operand.vmem [shape: f32[16,128], index: 3, kind: output, shape index: {}]
  %s4 = sld [smem:[#allocation0]]
  $region26: #{transformer_forward.1} parent=0
    _
  %s6 = ssub.s32 1, %s4
  %s7 = scalar_select 0, %s6, %s4
  $region1: #{transformer_forward.1} parent=0
    #allocation2 [shape = 'u8[499712]{0}', space=vmem, size = 0x7a000, scoped, tag = 'input window, operand 2, single buffered']
    #allocation3 [shape = 's32[1]{0}', space=sflag, size = 0x4, scoped, tag = 'scoped memory for transformer_forward.1']
    %8 = vsyncpa [#allocation3], 0
    // Predicated region
    $region2: #{transformer_forward.1} parent=1 // pred_check
      _
    $region3: #{transformer_forward.1} parent=1 // pred_check_branch
      %10 = sbr.rel (0) target = $region5
    $region4: #{transformer_forward.1} parent=1 // pred_region
      _
    $region5: #{transformer_forward.1} parent=1 // pred_fallthru
      _
    // Predicated region
    $region6: #{transformer_forward.1} parent=1 // pred_check
      _
    $region7: #{transformer_forward.1} parent=1 // pred_check_branch
      %12 = sbr.rel (0) target = $region9
    $region8: #{transformer_forward.1} parent=1 // pred_region
      _
    $region9: #{transformer_forward.1} parent=1 // pred_fallthru
      _
    // Predicated region
    $region10: #{transformer_forward.1} parent=1 // pred_check
      _
    $region11: #{transformer_forward.1} parent=1 // pred_check_branch
      %14 = sbr.rel (0) target = $region13
    $region12: #{transformer_forward.1} parent=1 // pred_region
      %s16 = ssub.s32 15616, 15616
      %17 = vsyncadd [#allocation3], %s16
      %s18 = sshll.u32 [#allocation2], 4
      %s19 = int_to_ptr.vmem [resolvable:$true] %s18
      %24 = dma.hbm_to_vmem [thread:$0]  %s2, 15616, %s19, [#allocation3], 128, 128, 8
    $region13: #{transformer_forward.1} parent=1 // pred_fallthru
      _
    // Predicated region
    $region14: #{transformer_forward.1} parent=1 // pred_check
      _
    $region15: #{transformer_forward.1} parent=1 // pred_check_branch
      %26 = sbr.rel (0) target = $region17
    $region16: #{transformer_forward.1} parent=1 // pred_region
      %27 = dma.done [#allocation3], 15616
    $region17: #{transformer_forward.1} parent=1 // pred_fallthru
      _
    %v28 = vlaneseq
    %v29 = vand.u32 %v28, 127
    %v30 = vlaneseq
    %v31 = vshrl.u32 %v30, 7
    %v32 = vmul.u32 %v31, 8
    %vm33 = vcmp.ge.s32.totalorder %v29, %v32
    %v34 = vadd.s32 %v32, 8
    %vm35 = vcmp.lt.s32.totalorder %v29, %v34
    %vm36 = vmand %vm33, %vm35
    %v37 = vsel %vm36, 1, 0
    %v38 = vcvt.s32.f32 %v37
    %v41 = vunpack.c.l.s4 1966171168
    %v42 = vunpack.c.0.s8 %v41
    %v43 = vlaneseq
    %v44 = vshrl.u32 %v43, 7
    %v45 = vsub.s32 %v42, %v44
    %v46 = vrot.slane %v38, %v45
    %v47 = vcombine.high %v46, %v46
    %v49 = vunpack.c.l.s4 1966171168
    %v50 = vunpack.c.0.s8 %v49
    %v51 = vlaneseq
    %v52 = vshrl.u32 %v51, 7
    %v53 = vsub.s32 %v50, %v52
    %v54 = vrot.slane %v46, %v53
    %v56 = vunpack.c.l.s4 1966171168
    %v57 = vunpack.c.0.s8 %v56
    %v58 = vlaneseq
    %v59 = vshrl.u32 %v58, 7
    %v60 = vsub.s32 %v57, %v59
    %v61 = vrot.slane %v47, %v60
    %v62 = vcombine.high %v54, %v54
    %v63 = vcombine.high %v61, %v61
    %v64 = vld [vmem:[%s0] sm:$0xff]
    %v65 = vld [vmem:[%s0 + $0x8] sm:$0xff]
    %v66 = vld [vmem:[%s0 + $0x10] sm:$0xff]
    %v67 = vld [vmem:[%s0 + $0x18] sm:$0xff]
    %vm68 = vcmp.eq.s32.totalorder %v64, 0
    %vm69 = vcmp.eq.s32.totalorder %v65, 0
    %v70 = vsel %vm68, 1, 0
    %v71 = vsel %vm69, 1, 0
    %v72 = vcvt.s32.f32 %v70
    %v73 = vcvt.s32.f32 %v71
    %v74 = vadd.s32 %v31, 8
    %vm75 = vcmp.eq.s32.totalorder %v31, %v29
    %vm76 = vcmp.eq.s32.totalorder %v74, %v29
    %v77 = vsel %vm75, 1, 0
    %v78 = vsel %vm76, 1, 0
    %v79 = vcvt.s32.f32 %v77
    %v80 = vcvt.s32.f32 %v78
    %82 = vset.pattern.permute.xlu0 0
    %83 = vperm.xlu0 %82, %v72
    %v84 = vpop.permute.xlu0 %83
    %87 = vset.pattern.permute.xlu0 0
    %88 = vperm.xlu0 %87, %v73
    %v89 = vpop.permute.xlu0 %88
    %v91 = vmul.f32 %v79, %v84
    %v92 = vmul.f32 %v80, %v89
    %vm93 = vcmask 130048
    %v95 = vsel %vm93, 1.0, 0
    %97 = vmatprep.subr.mxu0 0.0
    %98 = vmatpush1.msra.mxu0 0.0
    %99 = vmatprep.subr.mxu0 0.0
    %100 = vmatpush1.msra.mxu0 0.0
    %101 = vmatprep.subr.mxu0 0.0
    %102 = vmatpush1.msra.mxu0 0.0
    %103 = vmatprep.subr.mxu0 0.0
    %104 = vmatpush1.msra.mxu0 0.0
    %105 = vmatprep.subr.mxu0 0.0
    %106 = vmatpush1.msra.mxu0 0.0
    %107 = vmatprep.subr.mxu0 0.0
    %108 = vmatpush1.msra.mxu0 0.0
    %109 = vmatprep.subr.mxu0 0.0
    %110 = vmatpush1.msra.mxu0 0.0
    %111 = vmatprep.subr.mxu0 0.0
    %112 = vmatpush1.msra.mxu0 0.0
    %113 = vmatprep.subr.mxu0 0.0
    %114 = vmatpush1.msra.mxu0 0.0
    %115 = vmatprep.subr.mxu0 0.0
    %116 = vmatpush1.msra.mxu0 0.0
    %117 = vmatprep.subr.mxu0 0.0
    %118 = vmatpush1.msra.mxu0 0.0
    %119 = vmatprep.subr.mxu0 0.0
    %120 = vmatpush1.msra.mxu0 0.0
    %121 = vmatprep.subr.mxu0 0.0
    %122 = vmatpush1.msra.mxu0 0.0
    %123 = vmatprep.subr.mxu0 0.0
    %124 = vmatpush1.msra.mxu0 0.0
    %125 = vmatprep.subr.mxu0 0.0
    %126 = vmatpush1.msra.mxu0 %v92
    %127 = vmatprep.subr.mxu0 0.0
    %128 = vmatpush1.msra.mxu0 %v91
    %129 = vmatprep.subr.mxu0 0.0
    %130 = vmatpush2.msra.mxu0 0.0
    %131 = vmatprep.subr.mxu0 0.0
    %132 = vmatpush2.msra.mxu0 0.0
    %133 = vmatprep.subr.mxu0 0.0
    %134 = vmatpush2.msra.mxu0 0.0
    %135 = vmatprep.subr.mxu0 0.0
    %136 = vmatpush2.msra.mxu0 0.0
    %137 = vmatprep.subr.mxu0 0.0
    %138 = vmatpush2.msra.mxu0 0.0
    %139 = vmatprep.subr.mxu0 0.0
    %140 = vmatpush2.msra.mxu0 0.0
    %141 = vmatprep.subr.mxu0 0.0
    %142 = vmatpush2.msra.mxu0 0.0
    %143 = vmatprep.subr.mxu0 0.0
    %144 = vmatpush2.msra.mxu0 0.0
    %145 = vmatprep.subr.mxu0 0.0
    %146 = vmatpush2.msra.mxu0 0.0
    %147 = vmatprep.subr.mxu0 0.0
    %148 = vmatpush2.msra.mxu0 0.0
    %149 = vmatprep.subr.mxu0 0.0
    %150 = vmatpush2.msra.mxu0 0.0
    %151 = vmatprep.subr.mxu0 0.0
    %152 = vmatpush2.msra.mxu0 0.0
    %153 = vmatprep.subr.mxu0 0.0
    %154 = vmatpush2.msra.mxu0 0.0
    %155 = vmatprep.subr.mxu0 0.0
    %156 = vmatpush2.msra.mxu0 0.0
    %157 = vmatprep.subr.mxu0 0.0
    %158 = vmatpush2.msra.mxu0 0.0
    %159 = vmatprep.subr.mxu0 0.0
    %160 = vmatpush2.msra.mxu0 0.0
    %161 = vmatprep.mubr.f32.mxu0 0.0
    %162 = vmatmul.mubr.f32.gmra.mxu0 %v95
    %v163 = vpop.f32.mrf.mxu0
    %v164 = vadd.f32 0.0, %v163
    %v165 = vpop.f32.mrf.mxu0
    %166 = vdwg.mxu0
    %vm167 = vcmp.eq.s32.totalorder %v66, 0
    %vm168 = vcmp.eq.s32.totalorder %v67, 0
    %v169 = vsel %vm167, 1, 0
    %v170 = vsel %vm168, 1, 0
    %v171 = vcvt.s32.f32 %v169
    %v172 = vcvt.s32.f32 %v170
    %174 = vset.pattern.permute.xlu0 0
    %175 = vperm.xlu0 %174, %v171
    %v176 = vpop.permute.xlu0 %175
    %179 = vset.pattern.permute.xlu0 0
    %180 = vperm.xlu0 %179, %v172
    %v181 = vpop.permute.xlu0 %180
    %v183 = vmul.f32 %v79, %v176
    %v184 = vmul.f32 %v80, %v181
    %185 = vmatprep.subr.mxu0 0.0
    %186 = vmatpush1.msra.mxu0 0.0
    %187 = vmatprep.subr.mxu0 0.0
    %188 = vmatpush1.msra.mxu0 0.0
    %189 = vmatprep.subr.mxu0 0.0
    %190 = vmatpush1.msra.mxu0 0.0
    %191 = vmatprep.subr.mxu0 0.0
    %192 = vmatpush1.msra.mxu0 0.0
    %193 = vmatprep.subr.mxu0 0.0
    %194 = vmatpush1.msra.mxu0 0.0
    %195 = vmatprep.subr.mxu0 0.0
    %196 = vmatpush1.msra.mxu0 0.0
    %197 = vmatprep.subr.mxu0 0.0
    %198 = vmatpush1.msra.mxu0 0.0
    %199 = vmatprep.subr.mxu0 0.0
    %200 = vmatpush1.msra.mxu0 0.0
    %201 = vmatprep.subr.mxu0 0.0
    %202 = vmatpush1.msra.mxu0 0.0
    %203 = vmatprep.subr.mxu0 0.0
    %204 = vmatpush1.msra.mxu0 0.0
    %205 = vmatprep.subr.mxu0 0.0
    %206 = vmatpush1.msra.mxu0 0.0
    %207 = vmatprep.subr.mxu0 0.0
    %208 = vmatpush1.msra.mxu0 0.0
    %209 = vmatprep.subr.mxu0 0.0
    %210 = vmatpush1.msra.mxu0 0.0
    %211 = vmatprep.subr.mxu0 0.0
    %212 = vmatpush1.msra.mxu0 0.0
    %213 = vmatprep.subr.mxu0 0.0
    %214 = vmatpush1.msra.mxu0 %v184
    %215 = vmatprep.subr.mxu0 0.0
    %216 = vmatpush1.msra.mxu0 %v183
    %217 = vmatprep.subr.mxu0 0.0
    %218 = vmatpush2.msra.mxu0 0.0
    %219 = vmatprep.subr.mxu0 0.0
    %220 = vmatpush2.msra.mxu0 0.0
    %221 = vmatprep.subr.mxu0 0.0
    %222 = vmatpush2.msra.mxu0 0.0
    %223 = vmatprep.subr.mxu0 0.0
    %224 = vmatpush2.msra.mxu0 0.0
    %225 = vmatprep.subr.mxu0 0.0
    %226 = vmatpush2.msra.mxu0 0.0
    %227 = vmatprep.subr.mxu0 0.0
    %228 = vmatpush2.msra.mxu0 0.0
    %229 = vmatprep.subr.mxu0 0.0
    %230 = vmatpush2.msra.mxu0 0.0
    %231 = vmatprep.subr.mxu0 0.0
    %232 = vmatpush2.msra.mxu0 0.0
    %233 = vmatprep.subr.mxu0 0.0
    %234 = vmatpush2.msra.mxu0 0.0
    %235 = vmatprep.subr.mxu0 0.0
    %236 = vmatpush2.msra.mxu0 0.0
    %237 = vmatprep.subr.mxu0 0.0
    %238 = vmatpush2.msra.mxu0 0.0
    %239 = vmatprep.subr.mxu0 0.0
    %240 = vmatpush2.msra.mxu0 0.0
    %241 = vmatprep.subr.mxu0 0.0
    %242 = vmatpush2.msra.mxu0 0.0
    %243 = vmatprep.subr.mxu0 0.0
    %244 = vmatpush2.msra.mxu0 0.0
    %245 = vmatprep.subr.mxu0 0.0
    %246 = vmatpush2.msra.mxu0 0.0
    %247 = vmatprep.subr.mxu0 0.0
    %248 = vmatpush2.msra.mxu0 0.0
    %249 = vmatprep.mubr.f32.mxu0 0.0
    %250 = vmatmul.mubr.f32.gmra.mxu0 %v95
    %v251 = vpop.f32.mrf.mxu0
    %v252 = vadd.f32 0.0, %v251
    %v253 = vpop.f32.mrf.mxu0
    %254 = vdwg.mxu0
    %v255 = vshra.s32 %v31, 3
    %v256 = vshra.s32 %v74, 3
    %v257 = vshra.s32 %v29, 3
    %vm258 = vcmp.ne.s32.totalorder %v255, %v257
    %vm259 = vcmp.ne.s32.totalorder %v256, %v257
    %vm260 = vcmp.gt.f32.partialorder %v164, 0.5
    %v261 = vsel %vm260, 1, 0
    %v262 = vlaneseq
    %v263 = vshrl.u32 %v262, 7
    %v264 = vsub.s32 0, %v263
    %v265 = vrot.slane %v261, %v264
    %vm266 = vcmp.eq.s32.totalorder %v265, 1
    %vm267 = vmor %vm258, %vm266
    %vm268 = vmor %vm259, %vm266
    %v269 = vsel %vm267, -1e+30, 0.0
    %v270 = vsel %vm268, -1e+30, 0.0
    %v271 = vand.u32 %v31, 7
    %v272 = vand.u32 %v74, 7
    %v273 = vand.u32 %v29, 7
    %vm274 = vcmp.gt.f32.partialorder %v252, 0.5
    %v275 = vsel %vm274, 1, 0
    %v276 = vlaneseq
    %v277 = vshrl.u32 %v276, 7
    %v278 = vsub.s32 0, %v277
    %v279 = vrot.slane %v275, %v278
    %vm280 = vcmp.eq.s32.totalorder %v279, 1
    %vm281 = vmor %vm258, %vm280
    %vm282 = vmor %vm259, %vm280
    %vm283 = vcmp.gt.s32.totalorder %v273, %v271
    %vm284 = vcmp.gt.s32.totalorder %v273, %v272
    %vm285 = vmor %vm281, %vm283
    %vm286 = vmor %vm282, %vm284
    %v287 = vsel %vm285, -1e+30, 0.0
    %v288 = vsel %vm286, -1e+30, 0.0
    %v289 = vld [vmem:[#allocation2] sm:$0xff]
    %v290 = vld [vmem:[#allocation2 + $0x8] sm:$0xff]
    %v291 = vld [vmem:[#allocation2 + $0x10] sm:$0xff]
    %v292 = vld [vmem:[#allocation2 + $0x18] sm:$0xff]
    %v293 = vld [vmem:[#allocation2 + $0x20] sm:$0xff]
    %v294 = vld [vmem:[#allocation2 + $0x28] sm:$0xff]
    %v295 = vld [vmem:[#allocation2 + $0x30] sm:$0xff]
    %v296 = vld [vmem:[#allocation2 + $0x38] sm:$0xff]
    %v297 = vld [vmem:[%s1] sm:$0x3]
    %298 = vset.pattern.permute.xlu0 0
    %299 = vperm.xlu0 %298, %v64
    %v300 = vpop.permute.xlu0 %299
    %301 = vset.pattern.permute.xlu0 0
    %302 = vperm.xlu0 %301, %v65
    %v303 = vpop.permute.xlu0 %302
    %vm304 = vcmp.eq.s32.totalorder %v29, %v300
    %vm305 = vcmp.eq.s32.totalorder %v29, %v303
    %v306 = vsel %vm304, 1, 0
    %v307 = vsel %vm305, 1, 0
    %v308 = vcvt.s32.f32 %v306
    %v309 = vcvt.s32.f32 %v307
    %v312 = vunpack.c.l.s4 1966171168
    %v313 = vunpack.c.0.s8 %v312
    %v314 = vlaneseq
    %v315 = vshrl.u32 %v314, 7
    %v316 = vsub.s32 %v313, %v315
    %v317 = vrot.slane %v297, %v316
    %v318 = vcombine.high %v317, %v317
    %v320 = vunpack.c.l.s4 1966171168
    %v321 = vunpack.c.0.s8 %v320
    %v322 = vlaneseq
    %v323 = vshrl.u32 %v322, 7
    %v324 = vsub.s32 %v321, %v323
    %v325 = vrot.slane %v317, %v324
    %v327 = vunpack.c.l.s4 1966171168
    %v328 = vunpack.c.0.s8 %v327
    %v329 = vlaneseq
    %v330 = vshrl.u32 %v329, 7
    %v331 = vsub.s32 %v328, %v330
    %v332 = vrot.slane %v318, %v331
    %v333 = vlaneseq
    %v334 = vshrl.u32 %v333, 7
    %v335 = vsub.s32 0, %v334
    %v336 = vrot.slane %v325, %v335
    %v337 = vlaneseq
    %v338 = vshrl.u32 %v337, 7
    %v339 = vsub.s32 0, %v338
    %v340 = vrot.slane %v332, %v339
    %vm343 = vcmask 523264
    %v345 = vsel %vm343, %v308, 0
    %v348 = vsel %vm343, %v309, 0
    %350 = vmatprep.subr.mxu0 0.0
    %351 = vmatpush1.msra.mxu0 0.0
    %352 = vmatprep.subr.mxu0 0.0
    %353 = vmatpush1.msra.mxu0 0.0
    %354 = vmatprep.subr.mxu0 0.0
    %355 = vmatpush1.msra.mxu0 0.0
    %356 = vmatprep.subr.mxu0 0.0
    %357 = vmatpush1.msra.mxu0 0.0
    %358 = vmatprep.subr.mxu0 0.0
    %359 = vmatpush1.msra.mxu0 0.0
    %360 = vmatprep.subr.mxu0 0.0
    %361 = vmatpush1.msra.mxu0 0.0
    %362 = vmatprep.subr.mxu0 0.0
    %363 = vmatpush1.msra.mxu0 0.0
    %364 = vmatprep.subr.mxu0 0.0
    %365 = vmatpush1.msra.mxu0 0.0
    %366 = vmatprep.subr.mxu0 0.0
    %367 = vmatpush1.msra.mxu0 %v296
    %368 = vmatprep.subr.mxu0 0.0
    %369 = vmatpush1.msra.mxu0 %v295
    %370 = vmatprep.subr.mxu0 0.0
    %371 = vmatpush1.msra.mxu0 %v294
    %372 = vmatprep.subr.mxu0 0.0
    %373 = vmatpush1.msra.mxu0 %v293
    %374 = vmatprep.subr.mxu0 0.0
    %375 = vmatpush1.msra.mxu0 %v292
    %376 = vmatprep.subr.mxu0 0.0
    %377 = vmatpush1.msra.mxu0 %v291
    %378 = vmatprep.subr.mxu0 0.0
    %379 = vmatpush1.msra.mxu0 %v290
    %380 = vmatprep.subr.mxu0 0.0
    %381 = vmatpush1.msra.mxu0 %v289
    %382 = vmatprep.subr.mxu0 0.0
    %383 = vmatpush2.msra.mxu0 0.0
    %384 = vmatprep.subr.mxu0 0.0
    %385 = vmatpush2.msra.mxu0 0.0
    %386 = vmatprep.subr.mxu0 0.0
    %387 = vmatpush2.msra.mxu0 0.0
    %388 = vmatprep.subr.mxu0 0.0
    %389 = vmatpush2.msra.mxu0 0.0
    %390 = vmatprep.subr.mxu0 0.0
    %391 = vmatpush2.msra.mxu0 0.0
    %392 = vmatprep.subr.mxu0 0.0
    %393 = vmatpush2.msra.mxu0 0.0
    %394 = vmatprep.subr.mxu0 0.0
    %395 = vmatpush2.msra.mxu0 0.0
    %396 = vmatprep.subr.mxu0 0.0
    %397 = vmatpush2.msra.mxu0 0.0
    %398 = vmatprep.subr.mxu0 0.0
    %399 = vmatpush2.msra.mxu0 0.0
    %400 = vmatprep.subr.mxu0 0.0
    %401 = vmatpush2.msra.mxu0 0.0
    %402 = vmatprep.subr.mxu0 0.0
    %403 = vmatpush2.msra.mxu0 0.0
    %404 = vmatprep.subr.mxu0 0.0
    %405 = vmatpush2.msra.mxu0 0.0
    %406 = vmatprep.subr.mxu0 0.0
    %407 = vmatpush2.msra.mxu0 0.0
    %408 = vmatprep.subr.mxu0 0.0
    %409 = vmatpush2.msra.mxu0 0.0
    %410 = vmatprep.subr.mxu0 0.0
    %411 = vmatpush2.msra.mxu0 0.0
    %412 = vmatprep.subr.mxu0 0.0
    %413 = vmatpush2.msra.mxu0 0.0
    %414 = vmatprep.mubr.f32.mxu0 0.0
    %415 = vmatmul.mubr.f32.gmra.mxu0 %v345
    %v416 = vpop.f32.mrf.mxu0
    %v417 = vadd.f32 %v336, %v416
    %v418 = vpop.f32.mrf.mxu0
    %419 = vmatprep.mubr.f32.mxu0 0.0
    %420 = vmatmul.mubr.f32.gmra.mxu0 %v348
    %v421 = vpop.f32.mrf.mxu0
    %v422 = vadd.f32 %v340, %v421
    %v423 = vpop.f32.mrf.mxu0
    %424 = vdwg.mxu0
    %425 = vset.pattern.permute.xlu0 0
    %426 = vperm.xlu0 %425, %v66
    %v427 = vpop.permute.xlu0 %426
    %428 = vset.pattern.permute.xlu0 0
    %429 = vperm.xlu0 %428, %v67
    %v430 = vpop.permute.xlu0 %429
    %vm431 = vcmp.eq.s32.totalorder %v29, %v427
    %vm432 = vcmp.eq.s32.totalorder %v29, %v430
    %v433 = vsel %vm431, 1, 0
    %v434 = vsel %vm432, 1, 0
    %v435 = vcvt.s32.f32 %v433
    %v436 = vcvt.s32.f32 %v434
    %v438 = vsel %vm343, %v435, 0
    %v441 = vsel %vm343, %v436, 0
    %443 = vmatprep.subr.mxu0 0.0
    %444 = vmatpush1.msra.mxu0 0.0
    %445 = vmatprep.subr.mxu0 0.0
    %446 = vmatpush1.msra.mxu0 0.0
    %447 = vmatprep.subr.mxu0 0.0
    %448 = vmatpush1.msra.mxu0 0.0
    %449 = vmatprep.subr.mxu0 0.0
    %450 = vmatpush1.msra.mxu0 0.0
    %451 = vmatprep.subr.mxu0 0.0
    %452 = vmatpush1.msra.mxu0 0.0
    %453 = vmatprep.subr.mxu0 0.0
    %454 = vmatpush1.msra.mxu0 0.0
    %455 = vmatprep.subr.mxu0 0.0
    %456 = vmatpush1.msra.mxu0 0.0
    %457 = vmatprep.subr.mxu0 0.0
    %458 = vmatpush1.msra.mxu0 0.0
    %459 = vmatprep.subr.mxu0 0.0
    %460 = vmatpush1.msra.mxu0 %v296
    %461 = vmatprep.subr.mxu0 0.0
    %462 = vmatpush1.msra.mxu0 %v295
    %463 = vmatprep.subr.mxu0 0.0
    %464 = vmatpush1.msra.mxu0 %v294
    %465 = vmatprep.subr.mxu0 0.0
    %466 = vmatpush1.msra.mxu0 %v293
    %467 = vmatprep.subr.mxu0 0.0
    %468 = vmatpush1.msra.mxu0 %v292
    %469 = vmatprep.subr.mxu0 0.0
    %470 = vmatpush1.msra.mxu0 %v291
    %471 = vmatprep.subr.mxu0 0.0
    %472 = vmatpush1.msra.mxu0 %v290
    %473 = vmatprep.subr.mxu0 0.0
    %474 = vmatpush1.msra.mxu0 %v289
    %475 = vmatprep.subr.mxu0 0.0
    %476 = vmatpush2.msra.mxu0 0.0
    %477 = vmatprep.subr.mxu0 0.0
    %478 = vmatpush2.msra.mxu0 0.0
    %479 = vmatprep.subr.mxu0 0.0
    %480 = vmatpush2.msra.mxu0 0.0
    %481 = vmatprep.subr.mxu0 0.0
    %482 = vmatpush2.msra.mxu0 0.0
    %483 = vmatprep.subr.mxu0 0.0
    %484 = vmatpush2.msra.mxu0 0.0
    %485 = vmatprep.subr.mxu0 0.0
    %486 = vmatpush2.msra.mxu0 0.0
    %487 = vmatprep.subr.mxu0 0.0
    %488 = vmatpush2.msra.mxu0 0.0
    %489 = vmatprep.subr.mxu0 0.0
    %490 = vmatpush2.msra.mxu0 0.0
    %491 = vmatprep.subr.mxu0 0.0
    %492 = vmatpush2.msra.mxu0 0.0
    %493 = vmatprep.subr.mxu0 0.0
    %494 = vmatpush2.msra.mxu0 0.0
    %495 = vmatprep.subr.mxu0 0.0
    %496 = vmatpush2.msra.mxu0 0.0
    %497 = vmatprep.subr.mxu0 0.0
    %498 = vmatpush2.msra.mxu0 0.0
    %499 = vmatprep.subr.mxu0 0.0
    %500 = vmatpush2.msra.mxu0 0.0
    %501 = vmatprep.subr.mxu0 0.0
    %502 = vmatpush2.msra.mxu0 0.0
    %503 = vmatprep.subr.mxu0 0.0
    %504 = vmatpush2.msra.mxu0 0.0
    %505 = vmatprep.subr.mxu0 0.0
    %506 = vmatpush2.msra.mxu0 0.0
    %507 = vmatprep.mubr.f32.mxu0 0.0
    %508 = vmatmul.mubr.f32.gmra.mxu0 %v438
    %v509 = vpop.f32.mrf.mxu0
    %v510 = vadd.f32 %v336, %v509
    %v511 = vpop.f32.mrf.mxu0
    %512 = vmatprep.mubr.f32.mxu0 0.0
    %513 = vmatmul.mubr.f32.gmra.mxu0 %v441
    %v514 = vpop.f32.mrf.mxu0
    %v515 = vadd.f32 %v340, %v514
    %v516 = vpop.f32.mrf.mxu0
    %517 = vdwg.mxu0
    %v518 = vld [vmem:[#allocation2 + $0x40] sm:$0xff]
    %v519 = vld [vmem:[#allocation2 + $0x48] sm:$0xff]
    %v520 = vld [vmem:[#allocation2 + $0x50] sm:$0xff]
    %v521 = vld [vmem:[#allocation2 + $0x58] sm:$0xff]
    %v522 = vld [vmem:[#allocation2 + $0x60] sm:$0x1]
    %v523 = vlaneseq
    %v524 = vshrl.u32 %v523, 7
    %v525 = vsub.s32 0, %v524
    %v526 = vrot.slane %v522, %v525
    %vm527 = vcmask 261120
    %v529 = vsel %vm527, %v417, 0
    %v532 = vsel %vm527, %v422, 0
    %534 = vmatprep.subr.mxu0 0.0
    %535 = vmatpush1.msra.mxu0 0.0
    %536 = vmatprep.subr.mxu0 0.0
    %537 = vmatpush1.msra.mxu0 0.0
    %538 = vmatprep.subr.mxu0 0.0
    %539 = vmatpush1.msra.mxu0 0.0
    %540 = vmatprep.subr.mxu0 0.0
    %541 = vmatpush1.msra.mxu0 0.0
    %542 = vmatprep.subr.mxu0 0.0
    %543 = vmatpush1.msra.mxu0 0.0
    %544 = vmatprep.subr.mxu0 0.0
    %545 = vmatpush1.msra.mxu0 0.0
    %546 = vmatprep.subr.mxu0 0.0
    %547 = vmatpush1.msra.mxu0 0.0
    %548 = vmatprep.subr.mxu0 0.0
    %549 = vmatpush1.msra.mxu0 0.0
    %550 = vmatprep.subr.mxu0 0.0
    %551 = vmatpush1.msra.mxu0 0.0
    %552 = vmatprep.subr.mxu0 0.0
    %553 = vmatpush1.msra.mxu0 0.0
    %554 = vmatprep.subr.mxu0 0.0
    %555 = vmatpush1.msra.mxu0 0.0
    %556 = vmatprep.subr.mxu0 0.0
    %557 = vmatpush1.msra.mxu0 0.0
    %558 = vmatprep.subr.mxu0 0.0
    %559 = vmatpush1.msra.mxu0 %v521
    %560 = vmatprep.subr.mxu0 0.0
    %561 = vmatpush1.msra.mxu0 %v520
    %562 = vmatprep.subr.mxu0 0.0
    %563 = vmatpush1.msra.mxu0 %v519
    %564 = vmatprep.subr.mxu0 0.0
    %565 = vmatpush1.msra.mxu0 %v518
    %566 = vmatprep.subr.mxu0 0.0
    %567 = vmatpush2.msra.mxu0 0.0
    %568 = vmatprep.subr.mxu0 0.0
    %569 = vmatpush2.msra.mxu0 0.0
    %570 = vmatprep.subr.mxu0 0.0
    %571 = vmatpush2.msra.mxu0 0.0
    %572 = vmatprep.subr.mxu0 0.0
    %573 = vmatpush2.msra.mxu0 0.0
    %574 = vmatprep.subr.mxu0 0.0
    %575 = vmatpush2.msra.mxu0 0.0
    %576 = vmatprep.subr.mxu0 0.0
    %577 = vmatpush2.msra.mxu0 0.0
    %578 = vmatprep.subr.mxu0 0.0
    %579 = vmatpush2.msra.mxu0 0.0
    %580 = vmatprep.subr.mxu0 0.0
    %581 = vmatpush2.msra.mxu0 0.0
    %582 = vmatprep.subr.mxu0 0.0
    %583 = vmatpush2.msra.mxu0 0.0
    %584 = vmatprep.subr.mxu0 0.0
    %585 = vmatpush2.msra.mxu0 0.0
    %586 = vmatprep.subr.mxu0 0.0
    %587 = vmatpush2.msra.mxu0 0.0
    %588 = vmatprep.subr.mxu0 0.0
    %589 = vmatpush2.msra.mxu0 0.0
    %590 = vmatprep.subr.mxu0 0.0
    %591 = vmatpush2.msra.mxu0 0.0
    %592 = vmatprep.subr.mxu0 0.0
    %593 = vmatpush2.msra.mxu0 0.0
    %594 = vmatprep.subr.mxu0 0.0
    %595 = vmatpush2.msra.mxu0 0.0
    %596 = vmatprep.subr.mxu0 0.0
    %597 = vmatpush2.msra.mxu0 0.0
    %598 = vmatprep.mubr.f32.mxu0 0.0
    %599 = vmatmul.mubr.f32.gmra.mxu0 %v529
    %v600 = vpop.f32.mrf.mxu0
    %v601 = vadd.f32 %v526, %v600
    %v602 = vpop.f32.mrf.mxu0
    %603 = vmatprep.mubr.f32.mxu0 0.0
    %604 = vmatmul.mubr.f32.gmra.mxu0 %v532
    %v605 = vpop.f32.mrf.mxu0
    %v606 = vadd.f32 %v526, %v605
    %v607 = vpop.f32.mrf.mxu0
    %608 = vdwg.mxu0
    %v609 = vld [vmem:[#allocation2 + $0x61] sm:$0xff]
    %v610 = vld [vmem:[#allocation2 + $0x69] sm:$0xff]
    %v611 = vld [vmem:[#allocation2 + $0x71] sm:$0xff]
    %v612 = vld [vmem:[#allocation2 + $0x79] sm:$0xff]
    %v613 = vld [vmem:[#allocation2 + $0x81] sm:$0x1]
    %v614 = vlaneseq
    %v615 = vshrl.u32 %v614, 7
    %v616 = vsub.s32 0, %v615
    %v617 = vrot.slane %v54, %v616
    %v618 = vlaneseq
    %v619 = vshrl.u32 %v618, 7
    %v620 = vsub.s32 0, %v619
    %v621 = vrot.slane %v61, %v620
    %v622 = vlaneseq
    %v623 = vshrl.u32 %v622, 7
    %v624 = vsub.s32 0, %v623
    %v625 = vrot.slane %v62, %v624
    %v626 = vlaneseq
    %v627 = vshrl.u32 %v626, 7
    %v628 = vsub.s32 0, %v627
    %v629 = vrot.slane %v63, %v628
    %v634 = vmul.f32 %v601, %v617
    %v635 = vmul.f32 %v606, %v617
    %v636 = vmul.f32 %v601, %v621
    %v637 = vmul.f32 %v606, %v621
    %v638 = vmul.f32 %v601, %v625
    %v639 = vmul.f32 %v606, %v625
    %v640 = vmul.f32 %v601, %v629
    %v641 = vmul.f32 %v606, %v629
    %644 = vrot.lane.b32.xlu0 %v601, 96
    %v645 = vpop.permute.xlu0 %644
    %646 = vrot.lane.b32.xlu0 %v606, 96
    %v647 = vpop.permute.xlu0 %646
    %v649 = vsel %vm527, %v634, 0
    %v652 = vsel %vm527, %v635, 0
    %v655 = vsel %vm527, %v636, 0
    %v658 = vsel %vm527, %v637, 0
    %v661 = vsel %vm527, %v638, 0
    %v664 = vsel %vm527, %v639, 0
    %v667 = vsel %vm527, %v640, 0
    %v670 = vsel %vm527, %v641, 0
    %v672 = vsel %vm527, %v645, 0
    %v674 = vsel %vm527, %v647, 0
    %676 = vmatprep.subr.mxu0 0.0
    %677 = vmatpush1.xpose.msra.mxu0 0.0
    %678 = vmatprep.subr.mxu0 0.0
    %679 = vmatpush1.xpose.msra.mxu0 0.0
    %680 = vmatprep.subr.mxu0 0.0
    %681 = vmatpush1.xpose.msra.mxu0 0.0
    %682 = vmatprep.subr.mxu0 0.0
    %683 = vmatpush1.xpose.msra.mxu0 0.0
    %684 = vmatprep.subr.mxu0 0.0
    %685 = vmatpush1.xpose.msra.mxu0 0.0
    %686 = vmatprep.subr.mxu0 0.0
    %687 = vmatpush1.xpose.msra.mxu0 0.0
    %688 = vmatprep.subr.mxu0 0.0
    %689 = vmatpush1.xpose.msra.mxu0 0.0
    %690 = vmatprep.subr.mxu0 0.0
    %691 = vmatpush1.xpose.msra.mxu0 0.0
    %692 = vmatprep.subr.mxu0 0.0
    %693 = vmatpush1.xpose.msra.mxu0 0.0
    %694 = vmatprep.subr.mxu0 0.0
    %695 = vmatpush1.xpose.msra.mxu0 0.0
    %696 = vmatprep.subr.mxu0 0.0
    %697 = vmatpush1.xpose.msra.mxu0 0.0
    %698 = vmatprep.subr.mxu0 0.0
    %699 = vmatpush1.xpose.msra.mxu0 0.0
    %700 = vmatprep.subr.mxu0 0.0
    %701 = vmatpush1.xpose.msra.mxu0 0.0
    %702 = vmatprep.subr.mxu0 0.0
    %703 = vmatpush1.xpose.msra.mxu0 0.0
    %704 = vmatprep.subr.mxu0 0.0
    %705 = vmatpush1.xpose.msra.mxu0 %v674
    %706 = vmatprep.subr.mxu0 0.0
    %707 = vmatpush1.xpose.msra.mxu0 %v672
    %708 = vmatprep.subr.mxu0 0.0
    %709 = vmatpush2.xpose.msra.mxu0 0.0
    %710 = vmatprep.subr.mxu0 0.0
    %711 = vmatpush2.xpose.msra.mxu0 0.0
    %712 = vmatprep.subr.mxu0 0.0
    %713 = vmatpush2.xpose.msra.mxu0 0.0
    %714 = vmatprep.subr.mxu0 0.0
    %715 = vmatpush2.xpose.msra.mxu0 0.0
    %716 = vmatprep.subr.mxu0 0.0
    %717 = vmatpush2.xpose.msra.mxu0 0.0
    %718 = vmatprep.subr.mxu0 0.0
    %719 = vmatpush2.xpose.msra.mxu0 0.0
    %720 = vmatprep.subr.mxu0 0.0
    %721 = vmatpush2.xpose.msra.mxu0 0.0
    %722 = vmatprep.subr.mxu0 0.0
    %723 = vmatpush2.xpose.msra.mxu0 0.0
    %724 = vmatprep.subr.mxu0 0.0
    %725 = vmatpush2.xpose.msra.mxu0 0.0
    %726 = vmatprep.subr.mxu0 0.0
    %727 = vmatpush2.xpose.msra.mxu0 0.0
    %728 = vmatprep.subr.mxu0 0.0
    %729 = vmatpush2.xpose.msra.mxu0 0.0
    %730 = vmatprep.subr.mxu0 0.0
    %731 = vmatpush2.xpose.msra.mxu0 0.0
    %732 = vmatprep.subr.mxu0 0.0
    %733 = vmatpush2.xpose.msra.mxu0 0.0
    %734 = vmatprep.subr.mxu0 0.0
    %735 = vmatpush2.xpose.msra.mxu0 0.0
    %736 = vmatprep.subr.mxu0 0.0
    %737 = vmatpush2.xpose.msra.mxu0 0.0
    %738 = vmatprep.subr.mxu0 0.0
    %739 = vmatpush2.xpose.msra.mxu0 0.0
    %740 = vmatprep.mubr.f32.mxu0 0.0
    %741 = vmatmul.mubr.f32.gmra.mxu0 %v649
    %v742 = vpop.f32.mrf.mxu0
    %v743 = vadd.f32 0.0, %v742
    %v744 = vpop.f32.mrf.mxu0
    %745 = vmatprep.mubr.f32.mxu0 0.0
    %746 = vmatmul.mubr.f32.gmra.mxu0 %v652
    %v747 = vpop.f32.mrf.mxu0
    %v748 = vadd.f32 0.0, %v747
    %v749 = vpop.f32.mrf.mxu0
    %750 = vmatprep.mubr.f32.mxu0 0.0
    %751 = vmatmul.mubr.f32.gmra.mxu0 %v655
    %v752 = vpop.f32.mrf.mxu0
    %v753 = vadd.f32 0.0, %v752
    %v754 = vpop.f32.mrf.mxu0
    %755 = vmatprep.mubr.f32.mxu0 0.0
    %756 = vmatmul.mubr.f32.gmra.mxu0 %v658
    %v757 = vpop.f32.mrf.mxu0
    %v758 = vadd.f32 0.0, %v757
    %v759 = vpop.f32.mrf.mxu0
    %760 = vmatprep.mubr.f32.mxu0 0.0
    %761 = vmatmul.mubr.f32.gmra.mxu0 %v661
    %v762 = vpop.f32.mrf.mxu0
    %v763 = vadd.f32 0.0, %v762
    %v764 = vpop.f32.mrf.mxu0
    %765 = vmatprep.mubr.f32.mxu0 0.0
    %766 = vmatmul.mubr.f32.gmra.mxu0 %v664
    %v767 = vpop.f32.mrf.mxu0
    %v768 = vadd.f32 0.0, %v767
    %v769 = vpop.f32.mrf.mxu0
    %770 = vmatprep.mubr.f32.mxu0 0.0
    %771 = vmatmul.mubr.f32.gmra.mxu0 %v667
    %v772 = vpop.f32.mrf.mxu0
    %v773 = vadd.f32 0.0, %v772
    %v774 = vpop.f32.mrf.mxu0
    %775 = vmatprep.mubr.f32.mxu0 0.0
    %776 = vmatmul.mubr.f32.gmra.mxu0 %v670
    %v777 = vpop.f32.mrf.mxu0
    %v778 = vadd.f32 0.0, %v777
    %v779 = vpop.f32.mrf.mxu0
    %780 = vdwg.mxu0
    %v781 = vmul.f32 %v743, 0.35355338
    %v782 = vmul.f32 %v748, 0.35355338
    %v783 = vmul.f32 %v753, 0.35355338
    %v784 = vmul.f32 %v758, 0.35355338
    %v785 = vmul.f32 %v763, 0.35355338
    %v786 = vmul.f32 %v768, 0.35355338
    %v787 = vmul.f32 %v773, 0.35355338
    %v788 = vmul.f32 %v778, 0.35355338
    %v789 = vadd.f32 %v781, %v269
    %v790 = vadd.f32 %v782, %v270
    %v791 = vadd.f32 %v783, %v269
    %v792 = vadd.f32 %v784, %v270
    %v793 = vadd.f32 %v785, %v269
    %v794 = vadd.f32 %v786, %v270
    %v795 = vadd.f32 %v787, %v269
    %v796 = vadd.f32 %v788, %v270
    %v797 = vsel %vm93, %v789, -inf
    %798 = vmax.xlane.f32.xlu0 %v797
    %v799 = vpop.xlane.xlu0 %798
    %v800 = vsel %vm93, %v790, -inf
    %801 = vmax.xlane.f32.xlu0 %v800
    %v802 = vpop.xlane.xlu0 %801
    %v803 = vsel %vm93, %v791, -inf
    %804 = vmax.xlane.f32.xlu0 %v803
    %v805 = vpop.xlane.xlu0 %804
    %v806 = vsel %vm93, %v792, -inf
    %807 = vmax.xlane.f32.xlu0 %v806
    %v808 = vpop.xlane.xlu0 %807
    %v809 = vsel %vm93, %v793, -inf
    %810 = vmax.xlane.f32.xlu0 %v809
    %v811 = vpop.xlane.xlu0 %810
    %v812 = vsel %vm93, %v794, -inf
    %813 = vmax.xlane.f32.xlu0 %v812
    %v814 = vpop.xlane.xlu0 %813
    %v815 = vsel %vm93, %v795, -inf
    %816 = vmax.xlane.f32.xlu0 %v815
    %v817 = vpop.xlane.xlu0 %816
    %v818 = vsel %vm93, %v796, -inf
    %819 = vmax.xlane.f32.xlu0 %v818
    %v820 = vpop.xlane.xlu0 %819
    %v821 = vsub.f32 %v789, %v799
    %v822 = vsub.f32 %v790, %v802
    %v823 = vsub.f32 %v791, %v805
    %v824 = vsub.f32 %v792, %v808
    %v825 = vsub.f32 %v793, %v811
    %v826 = vsub.f32 %v794, %v814
    %v827 = vsub.f32 %v795, %v817
    %v828 = vsub.f32 %v796, %v820
    %v829 = vmul.f32 %v821, 1.442695
    %v830 = vpow.pop %v829
    %v831 = vmul.f32 %v822, 1.442695
    %v832 = vpow.pop %v831
    %v833 = vmul.f32 %v823, 1.442695
    %v834 = vpow.pop %v833
    %v835 = vmul.f32 %v824, 1.442695
    %v836 = vpow.pop %v835
    %v837 = vmul.f32 %v825, 1.442695
    %v838 = vpow.pop %v837
    %v839 = vmul.f32 %v826, 1.442695
    %v840 = vpow.pop %v839
    %v841 = vmul.f32 %v827, 1.442695
    %v842 = vpow.pop %v841
    %v843 = vmul.f32 %v828, 1.442695
    %v844 = vpow.pop %v843
    %v845 = vsel %vm93, %v830, 0.0
    %846 = vadd.xlane.f32.xlu0 %v845
    %v847 = vpop.xlane.xlu0 %846
    %v848 = vsel %vm93, %v832, 0.0
    %849 = vadd.xlane.f32.xlu0 %v848
    %v850 = vpop.xlane.xlu0 %849
    %v851 = vsel %vm93, %v834, 0.0
    %852 = vadd.xlane.f32.xlu0 %v851
    %v853 = vpop.xlane.xlu0 %852
    %v854 = vsel %vm93, %v836, 0.0
    %855 = vadd.xlane.f32.xlu0 %v854
    %v856 = vpop.xlane.xlu0 %855
    %v857 = vsel %vm93, %v838, 0.0
    %858 = vadd.xlane.f32.xlu0 %v857
    %v859 = vpop.xlane.xlu0 %858
    %v860 = vsel %vm93, %v840, 0.0
    %861 = vadd.xlane.f32.xlu0 %v860
    %v862 = vpop.xlane.xlu0 %861
    %v863 = vsel %vm93, %v842, 0.0
    %864 = vadd.xlane.f32.xlu0 %v863
    %v865 = vpop.xlane.xlu0 %864
    %v866 = vsel %vm93, %v844, 0.0
    %867 = vadd.xlane.f32.xlu0 %v866
    %v868 = vpop.xlane.xlu0 %867
    %v869 = vrcp.pop %v847
    %v870 = vrcp.pop %v850
    %v871 = vrcp.pop %v853
    %v872 = vrcp.pop %v856
    %v873 = vrcp.pop %v859
    %v874 = vrcp.pop %v862
    %v875 = vrcp.pop %v865
    %v876 = vrcp.pop %v868
    %v877 = vmul.f32 %v830, %v869
    %v878 = vmul.f32 %v832, %v870
    %v879 = vmul.f32 %v834, %v871
    %v880 = vmul.f32 %v836, %v872
    %v881 = vmul.f32 %v838, %v873
    %v882 = vmul.f32 %v840, %v874
    %v883 = vmul.f32 %v842, %v875
    %v884 = vmul.f32 %v844, %v876
    %885 = vrot.lane.b32.xlu0 %v601, 64
    %v886 = vpop.permute.xlu0 %885
    %887 = vrot.lane.b32.xlu0 %v606, 64
    %v888 = vpop.permute.xlu0 %887
    %v892 = vsel %vm93, %v877, 0
    %v895 = vsel %vm93, %v878, 0
    %v898 = vsel %vm93, %v879, 0
    %v901 = vsel %vm93, %v880, 0
    %v904 = vsel %vm93, %v881, 0
    %v907 = vsel %vm93, %v882, 0
    %v910 = vsel %vm93, %v883, 0
    %v913 = vsel %vm93, %v884, 0
    %915 = vmatprep.subr.mxu0 0.0
    %916 = vmatpush1.msra.mxu0 0.0
    %917 = vmatprep.subr.mxu0 0.0
    %918 = vmatpush1.msra.mxu0 0.0
    %919 = vmatprep.subr.mxu0 0.0
    %920 = vmatpush1.msra.mxu0 0.0
    %921 = vmatprep.subr.mxu0 0.0
    %922 = vmatpush1.msra.mxu0 0.0
    %923 = vmatprep.subr.mxu0 0.0
    %924 = vmatpush1.msra.mxu0 0.0
    %925 = vmatprep.subr.mxu0 0.0
    %926 = vmatpush1.msra.mxu0 0.0
    %927 = vmatprep.subr.mxu0 0.0
    %928 = vmatpush1.msra.mxu0 0.0
    %929 = vmatprep.subr.mxu0 0.0
    %930 = vmatpush1.msra.mxu0 0.0
    %931 = vmatprep.subr.mxu0 0.0
    %932 = vmatpush1.msra.mxu0 0.0
    %933 = vmatprep.subr.mxu0 0.0
    %934 = vmatpush1.msra.mxu0 0.0
    %935 = vmatprep.subr.mxu0 0.0
    %936 = vmatpush1.msra.mxu0 0.0
    %937 = vmatprep.subr.mxu0 0.0
    %938 = vmatpush1.msra.mxu0 0.0
    %939 = vmatprep.subr.mxu0 0.0
    %940 = vmatpush1.msra.mxu0 0.0
    %941 = vmatprep.subr.mxu0 0.0
    %942 = vmatpush1.msra.mxu0 0.0
    %943 = vmatprep.subr.mxu0 0.0
    %944 = vmatpush1.msra.mxu0 %v888
    %945 = vmatprep.subr.mxu0 0.0
    %946 = vmatpush1.msra.mxu0 %v886
    %947 = vmatprep.subr.mxu0 0.0
    %948 = vmatpush2.msra.mxu0 0.0
    %949 = vmatprep.subr.mxu0 0.0
    %950 = vmatpush2.msra.mxu0 0.0
    %951 = vmatprep.subr.mxu0 0.0
    %952 = vmatpush2.msra.mxu0 0.0
    %953 = vmatprep.subr.mxu0 0.0
    %954 = vmatpush2.msra.mxu0 0.0
    %955 = vmatprep.subr.mxu0 0.0
    %956 = vmatpush2.msra.mxu0 0.0
    %957 = vmatprep.subr.mxu0 0.0
    %958 = vmatpush2.msra.mxu0 0.0
    %959 = vmatprep.subr.mxu0 0.0
    %960 = vmatpush2.msra.mxu0 0.0
    %961 = vmatprep.subr.mxu0 0.0
    %962 = vmatpush2.msra.mxu0 0.0
    %963 = vmatprep.subr.mxu0 0.0
    %964 = vmatpush2.msra.mxu0 0.0
    %965 = vmatprep.subr.mxu0 0.0
    %966 = vmatpush2.msra.mxu0 0.0
    %967 = vmatprep.subr.mxu0 0.0
    %968 = vmatpush2.msra.mxu0 0.0
    %969 = vmatprep.subr.mxu0 0.0
    %970 = vmatpush2.msra.mxu0 0.0
    %971 = vmatprep.subr.mxu0 0.0
    %972 = vmatpush2.msra.mxu0 0.0
    %973 = vmatprep.subr.mxu0 0.0
    %974 = vmatpush2.msra.mxu0 0.0
    %975 = vmatprep.subr.mxu0 0.0
    %976 = vmatpush2.msra.mxu0 0.0
    %977 = vmatprep.subr.mxu0 0.0
    %978 = vmatpush2.msra.mxu0 0.0
    %979 = vmatprep.mubr.f32.mxu0 0.0
    %980 = vmatmul.mubr.f32.gmra.mxu0 %v892
    %v981 = vpop.f32.mrf.mxu0
    %v982 = vadd.f32 0.0, %v981
    %v983 = vpop.f32.mrf.mxu0
    %984 = vmatprep.mubr.f32.mxu0 0.0
    %985 = vmatmul.mubr.f32.gmra.mxu0 %v895
    %v986 = vpop.f32.mrf.mxu0
    %v987 = vadd.f32 0.0, %v986
    %v988 = vpop.f32.mrf.mxu0
    %989 = vmatprep.mubr.f32.mxu0 0.0
    %990 = vmatmul.mubr.f32.gmra.mxu0 %v898
    %v991 = vpop.f32.mrf.mxu0
    %v992 = vadd.f32 0.0, %v991
    %v993 = vpop.f32.mrf.mxu0
    %994 = vmatprep.mubr.f32.mxu0 0.0
    %995 = vmatmul.mubr.f32.gmra.mxu0 %v901
    %v996 = vpop.f32.mrf.mxu0
    %v997 = vadd.f32 0.0, %v996
    %v998 = vpop.f32.mrf.mxu0
    %999 = vmatprep.mubr.f32.mxu0 0.0
    %1000 = vmatmul.mubr.f32.gmra.mxu0 %v904
    %v1001 = vpop.f32.mrf.mxu0
    %v1002 = vadd.f32 0.0, %v1001
    %v1003 = vpop.f32.mrf.mxu0
    %1004 = vmatprep.mubr.f32.mxu0 0.0
    %1005 = vmatmul.mubr.f32.gmra.mxu0 %v907
    %v1006 = vpop.f32.mrf.mxu0
    %v1007 = vadd.f32 0.0, %v1006
    %v1008 = vpop.f32.mrf.mxu0
    %1009 = vmatprep.mubr.f32.mxu0 0.0
    %1010 = vmatmul.mubr.f32.gmra.mxu0 %v910
    %v1011 = vpop.f32.mrf.mxu0
    %v1012 = vadd.f32 0.0, %v1011
    %v1013 = vpop.f32.mrf.mxu0
    %1014 = vmatprep.mubr.f32.mxu0 0.0
    %1015 = vmatmul.mubr.f32.gmra.mxu0 %v913
    %v1016 = vpop.f32.mrf.mxu0
    %v1017 = vadd.f32 0.0, %v1016
    %v1018 = vpop.f32.mrf.mxu0
    %1019 = vdwg.mxu0
    %v1020 = vmul.f32 %v982, %v617
    %v1021 = vmul.f32 %v987, %v617
    %v1022 = vmul.f32 %v992, %v621
    %v1023 = vmul.f32 %v997, %v621
    %v1024 = vmul.f32 %v1002, %v625
    %v1025 = vmul.f32 %v1007, %v625
    %v1026 = vmul.f32 %v1012, %v629
    %v1027 = vmul.f32 %v1017, %v629
    %v1028 = vadd.f32 %v1020, %v1022
    %v1029 = vadd.f32 %v1021, %v1023
    %v1030 = vadd.f32 %v1028, %v1024
    %v1031 = vadd.f32 %v1029, %v1025
    %v1032 = vadd.f32 %v1030, %v1026
    %v1033 = vadd.f32 %v1031, %v1027
    %v1034 = vlaneseq
    %v1035 = vshrl.u32 %v1034, 7
    %v1036 = vsub.s32 0, %v1035
    %v1037 = vrot.slane %v613, %v1036
    %v1039 = vsel %vm527, %v1032, 0
    %v1042 = vsel %vm527, %v1033, 0
    %1044 = vmatprep.subr.mxu0 0.0
    %1045 = vmatpush1.msra.mxu0 0.0
    %1046 = vmatprep.subr.mxu0 0.0
    %1047 = vmatpush1.msra.mxu0 0.0
    %1048 = vmatprep.subr.mxu0 0.0
    %1049 = vmatpush1.msra.mxu0 0.0
    %1050 = vmatprep.subr.mxu0 0.0
    %1051 = vmatpush1.msra.mxu0 0.0
    %1052 = vmatprep.subr.mxu0 0.0
    %1053 = vmatpush1.msra.mxu0 0.0
    %1054 = vmatprep.subr.mxu0 0.0
    %1055 = vmatpush1.msra.mxu0 0.0
    %1056 = vmatprep.subr.mxu0 0.0
    %1057 = vmatpush1.msra.mxu0 0.0
    %1058 = vmatprep.subr.mxu0 0.0
    %1059 = vmatpush1.msra.mxu0 0.0
    %1060 = vmatprep.subr.mxu0 0.0
    %1061 = vmatpush1.msra.mxu0 0.0
    %1062 = vmatprep.subr.mxu0 0.0
    %1063 = vmatpush1.msra.mxu0 0.0
    %1064 = vmatprep.subr.mxu0 0.0
    %1065 = vmatpush1.msra.mxu0 0.0
    %1066 = vmatprep.subr.mxu0 0.0
    %1067 = vmatpush1.msra.mxu0 0.0
    %1068 = vmatprep.subr.mxu0 0.0
    %1069 = vmatpush1.msra.mxu0 %v612
    %1070 = vmatprep.subr.mxu0 0.0
    %1071 = vmatpush1.msra.mxu0 %v611
    %1072 = vmatprep.subr.mxu0 0.0
    %1073 = vmatpush1.msra.mxu0 %v610
    %1074 = vmatprep.subr.mxu0 0.0
    %1075 = vmatpush1.msra.mxu0 %v609
    %1076 = vmatprep.subr.mxu0 0.0
    %1077 = vmatpush2.msra.mxu0 0.0
    %1078 = vmatprep.subr.mxu0 0.0
    %1079 = vmatpush2.msra.mxu0 0.0
    %1080 = vmatprep.subr.mxu0 0.0
    %1081 = vmatpush2.msra.mxu0 0.0
    %1082 = vmatprep.subr.mxu0 0.0
    %1083 = vmatpush2.msra.mxu0 0.0
    %1084 = vmatprep.subr.mxu0 0.0
    %1085 = vmatpush2.msra.mxu0 0.0
    %1086 = vmatprep.subr.mxu0 0.0
    %1087 = vmatpush2.msra.mxu0 0.0
    %1088 = vmatprep.subr.mxu0 0.0
    %1089 = vmatpush2.msra.mxu0 0.0
    %1090 = vmatprep.subr.mxu0 0.0
    %1091 = vmatpush2.msra.mxu0 0.0
    %1092 = vmatprep.subr.mxu0 0.0
    %1093 = vmatpush2.msra.mxu0 0.0
    %1094 = vmatprep.subr.mxu0 0.0
    %1095 = vmatpush2.msra.mxu0 0.0
    %1096 = vmatprep.subr.mxu0 0.0
    %1097 = vmatpush2.msra.mxu0 0.0
    %1098 = vmatprep.subr.mxu0 0.0
    %1099 = vmatpush2.msra.mxu0 0.0
    %1100 = vmatprep.subr.mxu0 0.0
    %1101 = vmatpush2.msra.mxu0 0.0
    %1102 = vmatprep.subr.mxu0 0.0
    %1103 = vmatpush2.msra.mxu0 0.0
    %1104 = vmatprep.subr.mxu0 0.0
    %1105 = vmatpush2.msra.mxu0 0.0
    %1106 = vmatprep.subr.mxu0 0.0
    %1107 = vmatpush2.msra.mxu0 0.0
    %1108 = vmatprep.mubr.f32.mxu0 0.0
    %1109 = vmatmul.mubr.f32.gmra.mxu0 %v1039
    %v1110 = vpop.f32.mrf.mxu0
    %v1111 = vadd.f32 %v1037, %v1110
    %v1112 = vpop.f32.mrf.mxu0
    %1113 = vmatprep.mubr.f32.mxu0 0.0
    %1114 = vmatmul.mubr.f32.gmra.mxu0 %v1042
    %v1115 = vpop.f32.mrf.mxu0
    %v1116 = vadd.f32 %v1037, %v1115
    %v1117 = vpop.f32.mrf.mxu0
    %1118 = vdwg.mxu0
    %v1119 = vadd.f32 %v417, %v1111
    %v1120 = vadd.f32 %v422, %v1116
    %v1121 = vld [vmem:[#allocation2 + $0xe4] sm:$0x1]
    %v1122 = vld [vmem:[#allocation2 + $0xe5] sm:$0x1]
    %v1123 = vsel %vm527, %v1119, 0.0
    %1124 = vadd.xlane.f32.xlu0 %v1123
    %v1125 = vpop.xlane.xlu0 %1124
    %v1126 = vsel %vm527, %v1120, 0.0
    %1127 = vadd.xlane.f32.xlu0 %v1126
    %v1128 = vpop.xlane.xlu0 %1127
    %v1129 = vrcp.pop 32.0
    %v1130 = vmul.f32 %v1125, %v1129
    %v1131 = vmul.f32 %v1128, %v1129
    %v1132 = vsub.f32 %v1119, %v1130
    %v1133 = vsub.f32 %v1120, %v1131
    %v1134 = vmul.f32 %v1132, %v1132
    %v1135 = vmul.f32 %v1133, %v1133
    %v1136 = vsel %vm527, %v1134, 0.0
    %1137 = vadd.xlane.f32.xlu0 %v1136
    %v1138 = vpop.xlane.xlu0 %1137
    %v1139 = vsel %vm527, %v1135, 0.0
    %1140 = vadd.xlane.f32.xlu0 %v1139
    %v1141 = vpop.xlane.xlu0 %1140
    %v1142 = vmul.f32 %v1138, %v1129
    %v1143 = vmul.f32 %v1141, %v1129
    %v1144 = vadd.f32 %v1142, 1e-05
    %v1145 = vadd.f32 %v1143, 1e-05
    %v1146 = vrsqrt.pop %v1144
    %v1147 = vrsqrt.pop %v1145
    %v1148 = vmul.f32 %v1132, %v1146
    %v1149 = vmul.f32 %v1133, %v1147
    %v1150 = vlaneseq
    %v1151 = vshrl.u32 %v1150, 7
    %v1152 = vsub.s32 0, %v1151
    %v1153 = vrot.slane %v1121, %v1152
    %v1154 = vmul.f32 %v1148, %v1153
    %v1155 = vmul.f32 %v1149, %v1153
    %v1156 = vlaneseq
    %v1157 = vshrl.u32 %v1156, 7
    %v1158 = vsub.s32 0, %v1157
    %v1159 = vrot.slane %v1122, %v1158
    %v1160 = vadd.f32 %v1154, %v1159
    %v1161 = vadd.f32 %v1155, %v1159
    %v1162 = vld [vmem:[#allocation2 + $0x82] sm:$0xff]
    %v1163 = vld [vmem:[#allocation2 + $0x8a] sm:$0xff]
    %v1164 = vld [vmem:[#allocation2 + $0x92] sm:$0xff]
    %v1165 = vld [vmem:[#allocation2 + $0x9a] sm:$0xff]
    %v1166 = vld [vmem:[#allocation2 + $0xa2] sm:$0x1]
    %v1167 = vlaneseq
    %v1168 = vshrl.u32 %v1167, 7
    %v1169 = vsub.s32 0, %v1168
    %v1170 = vrot.slane %v1166, %v1169
    %v1172 = vsel %vm527, %v1160, 0
    %v1175 = vsel %vm527, %v1161, 0
    %1177 = vmatprep.subr.mxu0 0.0
    %1178 = vmatpush1.msra.mxu0 0.0
    %1179 = vmatprep.subr.mxu0 0.0
    %1180 = vmatpush1.msra.mxu0 0.0
    %1181 = vmatprep.subr.mxu0 0.0
    %1182 = vmatpush1.msra.mxu0 0.0
    %1183 = vmatprep.subr.mxu0 0.0
    %1184 = vmatpush1.msra.mxu0 0.0
    %1185 = vmatprep.subr.mxu0 0.0
    %1186 = vmatpush1.msra.mxu0 0.0
    %1187 = vmatprep.subr.mxu0 0.0
    %1188 = vmatpush1.msra.mxu0 0.0
    %1189 = vmatprep.subr.mxu0 0.0
    %1190 = vmatpush1.msra.mxu0 0.0
    %1191 = vmatprep.subr.mxu0 0.0
    %1192 = vmatpush1.msra.mxu0 0.0
    %1193 = vmatprep.subr.mxu0 0.0
    %1194 = vmatpush1.msra.mxu0 0.0
    %1195 = vmatprep.subr.mxu0 0.0
    %1196 = vmatpush1.msra.mxu0 0.0
    %1197 = vmatprep.subr.mxu0 0.0
    %1198 = vmatpush1.msra.mxu0 0.0
    %1199 = vmatprep.subr.mxu0 0.0
    %1200 = vmatpush1.msra.mxu0 0.0
    %1201 = vmatprep.subr.mxu0 0.0
    %1202 = vmatpush1.msra.mxu0 %v1165
    %1203 = vmatprep.subr.mxu0 0.0
    %1204 = vmatpush1.msra.mxu0 %v1164
    %1205 = vmatprep.subr.mxu0 0.0
    %1206 = vmatpush1.msra.mxu0 %v1163
    %1207 = vmatprep.subr.mxu0 0.0
    %1208 = vmatpush1.msra.mxu0 %v1162
    %1209 = vmatprep.subr.mxu0 0.0
    %1210 = vmatpush2.msra.mxu0 0.0
    %1211 = vmatprep.subr.mxu0 0.0
    %1212 = vmatpush2.msra.mxu0 0.0
    %1213 = vmatprep.subr.mxu0 0.0
    %1214 = vmatpush2.msra.mxu0 0.0
    %1215 = vmatprep.subr.mxu0 0.0
    %1216 = vmatpush2.msra.mxu0 0.0
    %1217 = vmatprep.subr.mxu0 0.0
    %1218 = vmatpush2.msra.mxu0 0.0
    %1219 = vmatprep.subr.mxu0 0.0
    %1220 = vmatpush2.msra.mxu0 0.0
    %1221 = vmatprep.subr.mxu0 0.0
    %1222 = vmatpush2.msra.mxu0 0.0
    %1223 = vmatprep.subr.mxu0 0.0
    %1224 = vmatpush2.msra.mxu0 0.0
    %1225 = vmatprep.subr.mxu0 0.0
    %1226 = vmatpush2.msra.mxu0 0.0
    %1227 = vmatprep.subr.mxu0 0.0
    %1228 = vmatpush2.msra.mxu0 0.0
    %1229 = vmatprep.subr.mxu0 0.0
    %1230 = vmatpush2.msra.mxu0 0.0
    %1231 = vmatprep.subr.mxu0 0.0
    %1232 = vmatpush2.msra.mxu0 0.0
    %1233 = vmatprep.subr.mxu0 0.0
    %1234 = vmatpush2.msra.mxu0 0.0
    %1235 = vmatprep.subr.mxu0 0.0
    %1236 = vmatpush2.msra.mxu0 0.0
    %1237 = vmatprep.subr.mxu0 0.0
    %1238 = vmatpush2.msra.mxu0 0.0
    %1239 = vmatprep.subr.mxu0 0.0
    %1240 = vmatpush2.msra.mxu0 0.0
    %1241 = vmatprep.mubr.f32.mxu0 0.0
    %1242 = vmatmul.mubr.f32.gmra.mxu0 %v1172
    %v1243 = vpop.f32.mrf.mxu0
    %v1244 = vadd.f32 %v1170, %v1243
    %v1245 = vpop.f32.mrf.mxu0
    %1246 = vmatprep.mubr.f32.mxu0 0.0
    %1247 = vmatmul.mubr.f32.gmra.mxu0 %v1175
    %v1248 = vpop.f32.mrf.mxu0
    %v1249 = vadd.f32 %v1170, %v1248
    %v1250 = vpop.f32.mrf.mxu0
    %1251 = vdwg.mxu0
    %v1252 = vmax.f32 %v1244, 0.0
    %v1253 = vmax.f32 %v1249, 0.0
    %v1254 = vld [vmem:[#allocation2 + $0xa3] sm:$0xff]
    %v1255 = vld [vmem:[#allocation2 + $0xab] sm:$0xff]
    %v1256 = vld [vmem:[#allocation2 + $0xb3] sm:$0xff]
    %v1257 = vld [vmem:[#allocation2 + $0xbb] sm:$0xff]
    %v1258 = vld [vmem:[#allocation2 + $0xc3] sm:$0xff]
    %v1259 = vld [vmem:[#allocation2 + $0xcb] sm:$0xff]
    %v1260 = vld [vmem:[#allocation2 + $0xd3] sm:$0xff]
    %v1261 = vld [vmem:[#allocation2 + $0xdb] sm:$0xff]
    %v1262 = vld [vmem:[#allocation2 + $0xe3] sm:$0x1]
    %v1263 = vlaneseq
    %v1264 = vshrl.u32 %v1263, 7
    %v1265 = vsub.s32 0, %v1264
    %v1266 = vrot.slane %v1262, %v1265
    %v1268 = vsel %vm343, %v1252, 0
    %v1271 = vsel %vm343, %v1253, 0
    %1273 = vmatprep.subr.mxu0 0.0
    %1274 = vmatpush1.msra.mxu0 0.0
    %1275 = vmatprep.subr.mxu0 0.0
    %1276 = vmatpush1.msra.mxu0 0.0
    %1277 = vmatprep.subr.mxu0 0.0
    %1278 = vmatpush1.msra.mxu0 0.0
    %1279 = vmatprep.subr.mxu0 0.0
    %1280 = vmatpush1.msra.mxu0 0.0
    %1281 = vmatprep.subr.mxu0 0.0
    %1282 = vmatpush1.msra.mxu0 0.0
    %1283 = vmatprep.subr.mxu0 0.0
    %1284 = vmatpush1.msra.mxu0 0.0
    %1285 = vmatprep.subr.mxu0 0.0
    %1286 = vmatpush1.msra.mxu0 0.0
    %1287 = vmatprep.subr.mxu0 0.0
    %1288 = vmatpush1.msra.mxu0 0.0
    %1289 = vmatprep.subr.mxu0 0.0
    %1290 = vmatpush1.msra.mxu0 %v1261
    %1291 = vmatprep.subr.mxu0 0.0
    %1292 = vmatpush1.msra.mxu0 %v1260
    %1293 = vmatprep.subr.mxu0 0.0
    %1294 = vmatpush1.msra.mxu0 %v1259
    %1295 = vmatprep.subr.mxu0 0.0
    %1296 = vmatpush1.msra.mxu0 %v1258
    %1297 = vmatprep.subr.mxu0 0.0
    %1298 = vmatpush1.msra.mxu0 %v1257
    %1299 = vmatprep.subr.mxu0 0.0
    %1300 = vmatpush1.msra.mxu0 %v1256
    %1301 = vmatprep.subr.mxu0 0.0
    %1302 = vmatpush1.msra.mxu0 %v1255
    %1303 = vmatprep.subr.mxu0 0.0
    %1304 = vmatpush1.msra.mxu0 %v1254
    %1305 = vmatprep.subr.mxu0 0.0
    %1306 = vmatpush2.msra.mxu0 0.0
    %1307 = vmatprep.subr.mxu0 0.0
    %1308 = vmatpush2.msra.mxu0 0.0
    %1309 = vmatprep.subr.mxu0 0.0
    %1310 = vmatpush2.msra.mxu0 0.0
    %1311 = vmatprep.subr.mxu0 0.0
    %1312 = vmatpush2.msra.mxu0 0.0
    %1313 = vmatprep.subr.mxu0 0.0
    %1314 = vmatpush2.msra.mxu0 0.0
    %1315 = vmatprep.subr.mxu0 0.0
    %1316 = vmatpush2.msra.mxu0 0.0
    %1317 = vmatprep.subr.mxu0 0.0
    %1318 = vmatpush2.msra.mxu0 0.0
    %1319 = vmatprep.subr.mxu0 0.0
    %1320 = vmatpush2.msra.mxu0 0.0
    %1321 = vmatprep.subr.mxu0 0.0
    %1322 = vmatpush2.msra.mxu0 0.0
    %1323 = vmatprep.subr.mxu0 0.0
    %1324 = vmatpush2.msra.mxu0 0.0
    %1325 = vmatprep.subr.mxu0 0.0
    %1326 = vmatpush2.msra.mxu0 0.0
    %1327 = vmatprep.subr.mxu0 0.0
    %1328 = vmatpush2.msra.mxu0 0.0
    %1329 = vmatprep.subr.mxu0 0.0
    %1330 = vmatpush2.msra.mxu0 0.0
    %1331 = vmatprep.subr.mxu0 0.0
    %1332 = vmatpush2.msra.mxu0 0.0
    %1333 = vmatprep.subr.mxu0 0.0
    %1334 = vmatpush2.msra.mxu0 0.0
    %1335 = vmatprep.subr.mxu0 0.0
    %1336 = vmatpush2.msra.mxu0 0.0
    %1337 = vmatprep.mubr.f32.mxu0 0.0
    %1338 = vmatmul.mubr.f32.gmra.mxu0 %v1268
    %v1339 = vpop.f32.mrf.mxu0
    %v1340 = vadd.f32 %v1266, %v1339
    %v1341 = vpop.f32.mrf.mxu0
    %1342 = vmatprep.mubr.f32.mxu0 0.0
    %1343 = vmatmul.mubr.f32.gmra.mxu0 %v1271
    %v1344 = vpop.f32.mrf.mxu0
    %v1345 = vadd.f32 %v1266, %v1344
    %v1346 = vpop.f32.mrf.mxu0
    %1347 = vdwg.mxu0
    %v1348 = vadd.f32 %v1160, %v1340
    %v1349 = vadd.f32 %v1161, %v1345
    %v1350 = vld [vmem:[#allocation2 + $0xe6] sm:$0x1]
    %v1351 = vld [vmem:[#allocation2 + $0xe7] sm:$0x1]
    %v1352 = vsel %vm527, %v1348, 0.0
    %1353 = vadd.xlane.f32.xlu0 %v1352
    %v1354 = vpop.xlane.xlu0 %1353
    %v1355 = vsel %vm527, %v1349, 0.0
    %1356 = vadd.xlane.f32.xlu0 %v1355
    %v1357 = vpop.xlane.xlu0 %1356
    %v1358 = vmul.f32 %v1354, %v1129
    %v1359 = vmul.f32 %v1357, %v1129
    %v1360 = vsub.f32 %v1348, %v1358
    %v1361 = vsub.f32 %v1349, %v1359
    %v1362 = vmul.f32 %v1360, %v1360
    %v1363 = vmul.f32 %v1361, %v1361
    %v1364 = vsel %vm527, %v1362, 0.0
    %1365 = vadd.xlane.f32.xlu0 %v1364
    %v1366 = vpop.xlane.xlu0 %1365
    %v1367 = vsel %vm527, %v1363, 0.0
    %1368 = vadd.xlane.f32.xlu0 %v1367
    %v1369 = vpop.xlane.xlu0 %1368
    %v1370 = vmul.f32 %v1366, %v1129
    %v1371 = vmul.f32 %v1369, %v1129
    %v1372 = vadd.f32 %v1370, 1e-05
    %v1373 = vadd.f32 %v1371, 1e-05
    %v1374 = vrsqrt.pop %v1372
    %v1375 = vrsqrt.pop %v1373
    %v1376 = vmul.f32 %v1360, %v1374
    %v1377 = vmul.f32 %v1361, %v1375
    %v1378 = vlaneseq
    %v1379 = vshrl.u32 %v1378, 7
    %v1380 = vsub.s32 0, %v1379
    %v1381 = vrot.slane %v1350, %v1380
    %v1382 = vmul.f32 %v1376, %v1381
    %v1383 = vmul.f32 %v1377, %v1381
    %v1384 = vlaneseq
    %v1385 = vshrl.u32 %v1384, 7
    %v1386 = vsub.s32 0, %v1385
    %v1387 = vrot.slane %v1351, %v1386
    %v1388 = vadd.f32 %v1382, %v1387
    %v1389 = vadd.f32 %v1383, %v1387
    %v1390 = vld [vmem:[#allocation2 + $0xe8] sm:$0xff]
    %v1391 = vld [vmem:[#allocation2 + $0xf0] sm:$0xff]
    %v1392 = vld [vmem:[#allocation2 + $0xf8] sm:$0xff]
    %v1393 = vld [vmem:[#allocation2 + $0x100] sm:$0xff]
    %v1394 = vld [vmem:[#allocation2 + $0x108] sm:$0x1]
    %v1395 = vlaneseq
    %v1396 = vshrl.u32 %v1395, 7
    %v1397 = vsub.s32 0, %v1396
    %v1398 = vrot.slane %v1394, %v1397
    %v1400 = vsel %vm527, %v1388, 0
    %v1403 = vsel %vm527, %v1389, 0
    %1405 = vmatprep.subr.mxu0 0.0
    %1406 = vmatpush1.msra.mxu0 0.0
    %1407 = vmatprep.subr.mxu0 0.0
    %1408 = vmatpush1.msra.mxu0 0.0
    %1409 = vmatprep.subr.mxu0 0.0
    %1410 = vmatpush1.msra.mxu0 0.0
    %1411 = vmatprep.subr.mxu0 0.0
    %1412 = vmatpush1.msra.mxu0 0.0
    %1413 = vmatprep.subr.mxu0 0.0
    %1414 = vmatpush1.msra.mxu0 0.0
    %1415 = vmatprep.subr.mxu0 0.0
    %1416 = vmatpush1.msra.mxu0 0.0
    %1417 = vmatprep.subr.mxu0 0.0
    %1418 = vmatpush1.msra.mxu0 0.0
    %1419 = vmatprep.subr.mxu0 0.0
    %1420 = vmatpush1.msra.mxu0 0.0
    %1421 = vmatprep.subr.mxu0 0.0
    %1422 = vmatpush1.msra.mxu0 0.0
    %1423 = vmatprep.subr.mxu0 0.0
    %1424 = vmatpush1.msra.mxu0 0.0
    %1425 = vmatprep.subr.mxu0 0.0
    %1426 = vmatpush1.msra.mxu0 0.0
    %1427 = vmatprep.subr.mxu0 0.0
    %1428 = vmatpush1.msra.mxu0 0.0
    %1429 = vmatprep.subr.mxu0 0.0
    %1430 = vmatpush1.msra.mxu0 %v1393
    %1431 = vmatprep.subr.mxu0 0.0
    %1432 = vmatpush1.msra.mxu0 %v1392
    %1433 = vmatprep.subr.mxu0 0.0
    %1434 = vmatpush1.msra.mxu0 %v1391
    %1435 = vmatprep.subr.mxu0 0.0
    %1436 = vmatpush1.msra.mxu0 %v1390
    %1437 = vmatprep.subr.mxu0 0.0
    %1438 = vmatpush2.msra.mxu0 0.0
    %1439 = vmatprep.subr.mxu0 0.0
    %1440 = vmatpush2.msra.mxu0 0.0
    %1441 = vmatprep.subr.mxu0 0.0
    %1442 = vmatpush2.msra.mxu0 0.0
    %1443 = vmatprep.subr.mxu0 0.0
    %1444 = vmatpush2.msra.mxu0 0.0
    %1445 = vmatprep.subr.mxu0 0.0
    %1446 = vmatpush2.msra.mxu0 0.0
    %1447 = vmatprep.subr.mxu0 0.0
    %1448 = vmatpush2.msra.mxu0 0.0
    %1449 = vmatprep.subr.mxu0 0.0
    %1450 = vmatpush2.msra.mxu0 0.0
    %1451 = vmatprep.subr.mxu0 0.0
    %1452 = vmatpush2.msra.mxu0 0.0
    %1453 = vmatprep.subr.mxu0 0.0
    %1454 = vmatpush2.msra.mxu0 0.0
    %1455 = vmatprep.subr.mxu0 0.0
    %1456 = vmatpush2.msra.mxu0 0.0
    %1457 = vmatprep.subr.mxu0 0.0
    %1458 = vmatpush2.msra.mxu0 0.0
    %1459 = vmatprep.subr.mxu0 0.0
    %1460 = vmatpush2.msra.mxu0 0.0
    %1461 = vmatprep.subr.mxu0 0.0
    %1462 = vmatpush2.msra.mxu0 0.0
    %1463 = vmatprep.subr.mxu0 0.0
    %1464 = vmatpush2.msra.mxu0 0.0
    %1465 = vmatprep.subr.mxu0 0.0
    %1466 = vmatpush2.msra.mxu0 0.0
    %1467 = vmatprep.subr.mxu0 0.0
    %1468 = vmatpush2.msra.mxu0 0.0
    %1469 = vmatprep.mubr.f32.mxu0 0.0
    %1470 = vmatmul.mubr.f32.gmra.mxu0 %v1400
    %v1471 = vpop.f32.mrf.mxu0
    %v1472 = vadd.f32 %v1398, %v1471
    %v1473 = vpop.f32.mrf.mxu0
    %1474 = vmatprep.mubr.f32.mxu0 0.0
    %1475 = vmatmul.mubr.f32.gmra.mxu0 %v1403
    %v1476 = vpop.f32.mrf.mxu0
    %v1477 = vadd.f32 %v1398, %v1476
    %v1478 = vpop.f32.mrf.mxu0
    %1479 = vdwg.mxu0
    %v1480 = vld [vmem:[#allocation2 + $0x109] sm:$0xff]
    %v1481 = vld [vmem:[#allocation2 + $0x111] sm:$0xff]
    %v1482 = vld [vmem:[#allocation2 + $0x119] sm:$0xff]
    %v1483 = vld [vmem:[#allocation2 + $0x121] sm:$0xff]
    %v1484 = vld [vmem:[#allocation2 + $0x129] sm:$0x1]
    %v1485 = vmul.f32 %v1472, %v617
    %v1486 = vmul.f32 %v1477, %v617
    %v1487 = vmul.f32 %v1472, %v621
    %v1488 = vmul.f32 %v1477, %v621
    %v1489 = vmul.f32 %v1472, %v625
    %v1490 = vmul.f32 %v1477, %v625
    %v1491 = vmul.f32 %v1472, %v629
    %v1492 = vmul.f32 %v1477, %v629
    %1495 = vrot.lane.b32.xlu0 %v1472, 96
    %v1496 = vpop.permute.xlu0 %1495
    %1497 = vrot.lane.b32.xlu0 %v1477, 96
    %v1498 = vpop.permute.xlu0 %1497
    %v1500 = vsel %vm527, %v1485, 0
    %v1503 = vsel %vm527, %v1486, 0
    %v1506 = vsel %vm527, %v1487, 0
    %v1509 = vsel %vm527, %v1488, 0
    %v1512 = vsel %vm527, %v1489, 0
    %v1515 = vsel %vm527, %v1490, 0
    %v1518 = vsel %vm527, %v1491, 0
    %v1521 = vsel %vm527, %v1492, 0
    %v1523 = vsel %vm527, %v1496, 0
    %v1525 = vsel %vm527, %v1498, 0
    %1527 = vmatprep.subr.mxu0 0.0
    %1528 = vmatpush1.xpose.msra.mxu0 0.0
    %1529 = vmatprep.subr.mxu0 0.0
    %1530 = vmatpush1.xpose.msra.mxu0 0.0
    %1531 = vmatprep.subr.mxu0 0.0
    %1532 = vmatpush1.xpose.msra.mxu0 0.0
    %1533 = vmatprep.subr.mxu0 0.0
    %1534 = vmatpush1.xpose.msra.mxu0 0.0
    %1535 = vmatprep.subr.mxu0 0.0
    %1536 = vmatpush1.xpose.msra.mxu0 0.0
    %1537 = vmatprep.subr.mxu0 0.0
    %1538 = vmatpush1.xpose.msra.mxu0 0.0
    %1539 = vmatprep.subr.mxu0 0.0
    %1540 = vmatpush1.xpose.msra.mxu0 0.0
    %1541 = vmatprep.subr.mxu0 0.0
    %1542 = vmatpush1.xpose.msra.mxu0 0.0
    %1543 = vmatprep.subr.mxu0 0.0
    %1544 = vmatpush1.xpose.msra.mxu0 0.0
    %1545 = vmatprep.subr.mxu0 0.0
    %1546 = vmatpush1.xpose.msra.mxu0 0.0
    %1547 = vmatprep.subr.mxu0 0.0
    %1548 = vmatpush1.xpose.msra.mxu0 0.0
    %1549 = vmatprep.subr.mxu0 0.0
    %1550 = vmatpush1.xpose.msra.mxu0 0.0
    %1551 = vmatprep.subr.mxu0 0.0
    %1552 = vmatpush1.xpose.msra.mxu0 0.0
    %1553 = vmatprep.subr.mxu0 0.0
    %1554 = vmatpush1.xpose.msra.mxu0 0.0
    %1555 = vmatprep.subr.mxu0 0.0
    %1556 = vmatpush1.xpose.msra.mxu0 %v1525
    %1557 = vmatprep.subr.mxu0 0.0
    %1558 = vmatpush1.xpose.msra.mxu0 %v1523
    %1559 = vmatprep.subr.mxu0 0.0
    %1560 = vmatpush2.xpose.msra.mxu0 0.0
    %1561 = vmatprep.subr.mxu0 0.0
    %1562 = vmatpush2.xpose.msra.mxu0 0.0
    %1563 = vmatprep.subr.mxu0 0.0
    %1564 = vmatpush2.xpose.msra.mxu0 0.0
    %1565 = vmatprep.subr.mxu0 0.0
    %1566 = vmatpush2.xpose.msra.mxu0 0.0
    %1567 = vmatprep.subr.mxu0 0.0
    %1568 = vmatpush2.xpose.msra.mxu0 0.0
    %1569 = vmatprep.subr.mxu0 0.0
    %1570 = vmatpush2.xpose.msra.mxu0 0.0
    %1571 = vmatprep.subr.mxu0 0.0
    %1572 = vmatpush2.xpose.msra.mxu0 0.0
    %1573 = vmatprep.subr.mxu0 0.0
    %1574 = vmatpush2.xpose.msra.mxu0 0.0
    %1575 = vmatprep.subr.mxu0 0.0
    %1576 = vmatpush2.xpose.msra.mxu0 0.0
    %1577 = vmatprep.subr.mxu0 0.0
    %1578 = vmatpush2.xpose.msra.mxu0 0.0
    %1579 = vmatprep.subr.mxu0 0.0
    %1580 = vmatpush2.xpose.msra.mxu0 0.0
    %1581 = vmatprep.subr.mxu0 0.0
    %1582 = vmatpush2.xpose.msra.mxu0 0.0
    %1583 = vmatprep.subr.mxu0 0.0
    %1584 = vmatpush2.xpose.msra.mxu0 0.0
    %1585 = vmatprep.subr.mxu0 0.0
    %1586 = vmatpush2.xpose.msra.mxu0 0.0
    %1587 = vmatprep.subr.mxu0 0.0
    %1588 = vmatpush2.xpose.msra.mxu0 0.0
    %1589 = vmatprep.subr.mxu0 0.0
    %1590 = vmatpush2.xpose.msra.mxu0 0.0
    %1591 = vmatprep.mubr.f32.mxu0 0.0
    %1592 = vmatmul.mubr.f32.gmra.mxu0 %v1500
    %v1593 = vpop.f32.mrf.mxu0
    %v1594 = vadd.f32 0.0, %v1593
    %v1595 = vpop.f32.mrf.mxu0
    %1596 = vmatprep.mubr.f32.mxu0 0.0
    %1597 = vmatmul.mubr.f32.gmra.mxu0 %v1503
    %v1598 = vpop.f32.mrf.mxu0
    %v1599 = vadd.f32 0.0, %v1598
    %v1600 = vpop.f32.mrf.mxu0
    %1601 = vmatprep.mubr.f32.mxu0 0.0
    %1602 = vmatmul.mubr.f32.gmra.mxu0 %v1506
    %v1603 = vpop.f32.mrf.mxu0
    %v1604 = vadd.f32 0.0, %v1603
    %v1605 = vpop.f32.mrf.mxu0
    %1606 = vmatprep.mubr.f32.mxu0 0.0
    %1607 = vmatmul.mubr.f32.gmra.mxu0 %v1509
    %v1608 = vpop.f32.mrf.mxu0
    %v1609 = vadd.f32 0.0, %v1608
    %v1610 = vpop.f32.mrf.mxu0
    %1611 = vmatprep.mubr.f32.mxu0 0.0
    %1612 = vmatmul.mubr.f32.gmra.mxu0 %v1512
    %v1613 = vpop.f32.mrf.mxu0
    %v1614 = vadd.f32 0.0, %v1613
    %v1615 = vpop.f32.mrf.mxu0
    %1616 = vmatprep.mubr.f32.mxu0 0.0
    %1617 = vmatmul.mubr.f32.gmra.mxu0 %v1515
    %v1618 = vpop.f32.mrf.mxu0
    %v1619 = vadd.f32 0.0, %v1618
    %v1620 = vpop.f32.mrf.mxu0
    %1621 = vmatprep.mubr.f32.mxu0 0.0
    %1622 = vmatmul.mubr.f32.gmra.mxu0 %v1518
    %v1623 = vpop.f32.mrf.mxu0
    %v1624 = vadd.f32 0.0, %v1623
    %v1625 = vpop.f32.mrf.mxu0
    %1626 = vmatprep.mubr.f32.mxu0 0.0
    %1627 = vmatmul.mubr.f32.gmra.mxu0 %v1521
    %v1628 = vpop.f32.mrf.mxu0
    %v1629 = vadd.f32 0.0, %v1628
    %v1630 = vpop.f32.mrf.mxu0
    %1631 = vdwg.mxu0
    %v1632 = vmul.f32 %v1594, 0.35355338
    %v1633 = vmul.f32 %v1599, 0.35355338
    %v1634 = vmul.f32 %v1604, 0.35355338
    %v1635 = vmul.f32 %v1609, 0.35355338
    %v1636 = vmul.f32 %v1614, 0.35355338
    %v1637 = vmul.f32 %v1619, 0.35355338
    %v1638 = vmul.f32 %v1624, 0.35355338
    %v1639 = vmul.f32 %v1629, 0.35355338
    %v1640 = vadd.f32 %v1632, %v269
    %v1641 = vadd.f32 %v1633, %v270
    %v1642 = vadd.f32 %v1634, %v269
    %v1643 = vadd.f32 %v1635, %v270
    %v1644 = vadd.f32 %v1636, %v269
    %v1645 = vadd.f32 %v1637, %v270
    %v1646 = vadd.f32 %v1638, %v269
    %v1647 = vadd.f32 %v1639, %v270
    %v1648 = vsel %vm93, %v1640, -inf
    %1649 = vmax.xlane.f32.xlu0 %v1648
    %v1650 = vpop.xlane.xlu0 %1649
    %v1651 = vsel %vm93, %v1641, -inf
    %1652 = vmax.xlane.f32.xlu0 %v1651
    %v1653 = vpop.xlane.xlu0 %1652
    %v1654 = vsel %vm93, %v1642, -inf
    %1655 = vmax.xlane.f32.xlu0 %v1654
    %v1656 = vpop.xlane.xlu0 %1655
    %v1657 = vsel %vm93, %v1643, -inf
    %1658 = vmax.xlane.f32.xlu0 %v1657
    %v1659 = vpop.xlane.xlu0 %1658
    %v1660 = vsel %vm93, %v1644, -inf
    %1661 = vmax.xlane.f32.xlu0 %v1660
    %v1662 = vpop.xlane.xlu0 %1661
    %v1663 = vsel %vm93, %v1645, -inf
    %1664 = vmax.xlane.f32.xlu0 %v1663
    %v1665 = vpop.xlane.xlu0 %1664
    %v1666 = vsel %vm93, %v1646, -inf
    %1667 = vmax.xlane.f32.xlu0 %v1666
    %v1668 = vpop.xlane.xlu0 %1667
    %v1669 = vsel %vm93, %v1647, -inf
    %1670 = vmax.xlane.f32.xlu0 %v1669
    %v1671 = vpop.xlane.xlu0 %1670
    %v1672 = vsub.f32 %v1640, %v1650
    %v1673 = vsub.f32 %v1641, %v1653
    %v1674 = vsub.f32 %v1642, %v1656
    %v1675 = vsub.f32 %v1643, %v1659
    %v1676 = vsub.f32 %v1644, %v1662
    %v1677 = vsub.f32 %v1645, %v1665
    %v1678 = vsub.f32 %v1646, %v1668
    %v1679 = vsub.f32 %v1647, %v1671
    %v1680 = vmul.f32 %v1672, 1.442695
    %v1681 = vpow.pop %v1680
    %v1682 = vmul.f32 %v1673, 1.442695
    %v1683 = vpow.pop %v1682
    %v1684 = vmul.f32 %v1674, 1.442695
    %v1685 = vpow.pop %v1684
    %v1686 = vmul.f32 %v1675, 1.442695
    %v1687 = vpow.pop %v1686
    %v1688 = vmul.f32 %v1676, 1.442695
    %v1689 = vpow.pop %v1688
    %v1690 = vmul.f32 %v1677, 1.442695
    %v1691 = vpow.pop %v1690
    %v1692 = vmul.f32 %v1678, 1.442695
    %v1693 = vpow.pop %v1692
    %v1694 = vmul.f32 %v1679, 1.442695
    %v1695 = vpow.pop %v1694
    %v1696 = vsel %vm93, %v1681, 0.0
    %1697 = vadd.xlane.f32.xlu0 %v1696
    %v1698 = vpop.xlane.xlu0 %1697
    %v1699 = vsel %vm93, %v1683, 0.0
    %1700 = vadd.xlane.f32.xlu0 %v1699
    %v1701 = vpop.xlane.xlu0 %1700
    %v1702 = vsel %vm93, %v1685, 0.0
    %1703 = vadd.xlane.f32.xlu0 %v1702
    %v1704 = vpop.xlane.xlu0 %1703
    %v1705 = vsel %vm93, %v1687, 0.0
    %1706 = vadd.xlane.f32.xlu0 %v1705
    %v1707 = vpop.xlane.xlu0 %1706
    %v1708 = vsel %vm93, %v1689, 0.0
    %1709 = vadd.xlane.f32.xlu0 %v1708
    %v1710 = vpop.xlane.xlu0 %1709
    %v1711 = vsel %vm93, %v1691, 0.0
    %1712 = vadd.xlane.f32.xlu0 %v1711
    %v1713 = vpop.xlane.xlu0 %1712
    %v1714 = vsel %vm93, %v1693, 0.0
    %1715 = vadd.xlane.f32.xlu0 %v1714
    %v1716 = vpop.xlane.xlu0 %1715
    %v1717 = vsel %vm93, %v1695, 0.0
    %1718 = vadd.xlane.f32.xlu0 %v1717
    %v1719 = vpop.xlane.xlu0 %1718
    %v1720 = vrcp.pop %v1698
    %v1721 = vrcp.pop %v1701
    %v1722 = vrcp.pop %v1704
    %v1723 = vrcp.pop %v1707
    %v1724 = vrcp.pop %v1710
    %v1725 = vrcp.pop %v1713
    %v1726 = vrcp.pop %v1716
    %v1727 = vrcp.pop %v1719
    %v1728 = vmul.f32 %v1681, %v1720
    %v1729 = vmul.f32 %v1683, %v1721
    %v1730 = vmul.f32 %v1685, %v1722
    %v1731 = vmul.f32 %v1687, %v1723
    %v1732 = vmul.f32 %v1689, %v1724
    %v1733 = vmul.f32 %v1691, %v1725
    %v1734 = vmul.f32 %v1693, %v1726
    %v1735 = vmul.f32 %v1695, %v1727
    %1736 = vrot.lane.b32.xlu0 %v1472, 64
    %v1737 = vpop.permute.xlu0 %1736
    %1738 = vrot.lane.b32.xlu0 %v1477, 64
    %v1739 = vpop.permute.xlu0 %1738
    %v1743 = vsel %vm93, %v1728, 0
    %v1746 = vsel %vm93, %v1729, 0
    %v1749 = vsel %vm93, %v1730, 0
    %v1752 = vsel %vm93, %v1731, 0
    %v1755 = vsel %vm93, %v1732, 0
    %v1758 = vsel %vm93, %v1733, 0
    %v1761 = vsel %vm93, %v1734, 0
    %v1764 = vsel %vm93, %v1735, 0
    %1766 = vmatprep.subr.mxu0 0.0
    %1767 = vmatpush1.msra.mxu0 0.0
    %1768 = vmatprep.subr.mxu0 0.0
    %1769 = vmatpush1.msra.mxu0 0.0
    %1770 = vmatprep.subr.mxu0 0.0
    %1771 = vmatpush1.msra.mxu0 0.0
    %1772 = vmatprep.subr.mxu0 0.0
    %1773 = vmatpush1.msra.mxu0 0.0
    %1774 = vmatprep.subr.mxu0 0.0
    %1775 = vmatpush1.msra.mxu0 0.0
    %1776 = vmatprep.subr.mxu0 0.0
    %1777 = vmatpush1.msra.mxu0 0.0
    %1778 = vmatprep.subr.mxu0 0.0
    %1779 = vmatpush1.msra.mxu0 0.0
    %1780 = vmatprep.subr.mxu0 0.0
    %1781 = vmatpush1.msra.mxu0 0.0
    %1782 = vmatprep.subr.mxu0 0.0
    %1783 = vmatpush1.msra.mxu0 0.0
    %1784 = vmatprep.subr.mxu0 0.0
    %1785 = vmatpush1.msra.mxu0 0.0
    %1786 = vmatprep.subr.mxu0 0.0
    %1787 = vmatpush1.msra.mxu0 0.0
    %1788 = vmatprep.subr.mxu0 0.0
    %1789 = vmatpush1.msra.mxu0 0.0
    %1790 = vmatprep.subr.mxu0 0.0
    %1791 = vmatpush1.msra.mxu0 0.0
    %1792 = vmatprep.subr.mxu0 0.0
    %1793 = vmatpush1.msra.mxu0 0.0
    %1794 = vmatprep.subr.mxu0 0.0
    %1795 = vmatpush1.msra.mxu0 %v1739
    %1796 = vmatprep.subr.mxu0 0.0
    %1797 = vmatpush1.msra.mxu0 %v1737
    %1798 = vmatprep.subr.mxu0 0.0
    %1799 = vmatpush2.msra.mxu0 0.0
    %1800 = vmatprep.subr.mxu0 0.0
    %1801 = vmatpush2.msra.mxu0 0.0
    %1802 = vmatprep.subr.mxu0 0.0
    %1803 = vmatpush2.msra.mxu0 0.0
    %1804 = vmatprep.subr.mxu0 0.0
    %1805 = vmatpush2.msra.mxu0 0.0
    %1806 = vmatprep.subr.mxu0 0.0
    %1807 = vmatpush2.msra.mxu0 0.0
    %1808 = vmatprep.subr.mxu0 0.0
    %1809 = vmatpush2.msra.mxu0 0.0
    %1810 = vmatprep.subr.mxu0 0.0
    %1811 = vmatpush2.msra.mxu0 0.0
    %1812 = vmatprep.subr.mxu0 0.0
    %1813 = vmatpush2.msra.mxu0 0.0
    %1814 = vmatprep.subr.mxu0 0.0
    %1815 = vmatpush2.msra.mxu0 0.0
    %1816 = vmatprep.subr.mxu0 0.0
    %1817 = vmatpush2.msra.mxu0 0.0
    %1818 = vmatprep.subr.mxu0 0.0
    %1819 = vmatpush2.msra.mxu0 0.0
    %1820 = vmatprep.subr.mxu0 0.0
    %1821 = vmatpush2.msra.mxu0 0.0
    %1822 = vmatprep.subr.mxu0 0.0
    %1823 = vmatpush2.msra.mxu0 0.0
    %1824 = vmatprep.subr.mxu0 0.0
    %1825 = vmatpush2.msra.mxu0 0.0
    %1826 = vmatprep.subr.mxu0 0.0
    %1827 = vmatpush2.msra.mxu0 0.0
    %1828 = vmatprep.subr.mxu0 0.0
    %1829 = vmatpush2.msra.mxu0 0.0
    %1830 = vmatprep.mubr.f32.mxu0 0.0
    %1831 = vmatmul.mubr.f32.gmra.mxu0 %v1743
    %v1832 = vpop.f32.mrf.mxu0
    %v1833 = vadd.f32 0.0, %v1832
    %v1834 = vpop.f32.mrf.mxu0
    %1835 = vmatprep.mubr.f32.mxu0 0.0
    %1836 = vmatmul.mubr.f32.gmra.mxu0 %v1746
    %v1837 = vpop.f32.mrf.mxu0
    %v1838 = vadd.f32 0.0, %v1837
    %v1839 = vpop.f32.mrf.mxu0
    %1840 = vmatprep.mubr.f32.mxu0 0.0
    %1841 = vmatmul.mubr.f32.gmra.mxu0 %v1749
    %v1842 = vpop.f32.mrf.mxu0
    %v1843 = vadd.f32 0.0, %v1842
    %v1844 = vpop.f32.mrf.mxu0
    %1845 = vmatprep.mubr.f32.mxu0 0.0
    %1846 = vmatmul.mubr.f32.gmra.mxu0 %v1752
    %v1847 = vpop.f32.mrf.mxu0
    %v1848 = vadd.f32 0.0, %v1847
    %v1849 = vpop.f32.mrf.mxu0
    %1850 = vmatprep.mubr.f32.mxu0 0.0
    %1851 = vmatmul.mubr.f32.gmra.mxu0 %v1755
    %v1852 = vpop.f32.mrf.mxu0
    %v1853 = vadd.f32 0.0, %v1852
    %v1854 = vpop.f32.mrf.mxu0
    %1855 = vmatprep.mubr.f32.mxu0 0.0
    %1856 = vmatmul.mubr.f32.gmra.mxu0 %v1758
    %v1857 = vpop.f32.mrf.mxu0
    %v1858 = vadd.f32 0.0, %v1857
    %v1859 = vpop.f32.mrf.mxu0
    %1860 = vmatprep.mubr.f32.mxu0 0.0
    %1861 = vmatmul.mubr.f32.gmra.mxu0 %v1761
    %v1862 = vpop.f32.mrf.mxu0
    %v1863 = vadd.f32 0.0, %v1862
    %v1864 = vpop.f32.mrf.mxu0
    %1865 = vmatprep.mubr.f32.mxu0 0.0
    %1866 = vmatmul.mubr.f32.gmra.mxu0 %v1764
    %v1867 = vpop.f32.mrf.mxu0
    %v1868 = vadd.f32 0.0, %v1867
    %v1869 = vpop.f32.mrf.mxu0
    %1870 = vdwg.mxu0
    %v1871 = vmul.f32 %v1833, %v617
    %v1872 = vmul.f32 %v1838, %v617
    %v1873 = vmul.f32 %v1843, %v621
    %v1874 = vmul.f32 %v1848, %v621
    %v1875 = vmul.f32 %v1853, %v625
    %v1876 = vmul.f32 %v1858, %v625
    %v1877 = vmul.f32 %v1863, %v629
    %v1878 = vmul.f32 %v1868, %v629
    %v1879 = vadd.f32 %v1871, %v1873
    %v1880 = vadd.f32 %v1872, %v1874
    %v1881 = vadd.f32 %v1879, %v1875
    %v1882 = vadd.f32 %v1880, %v1876
    %v1883 = vadd.f32 %v1881, %v1877
    %v1884 = vadd.f32 %v1882, %v1878
    %v1885 = vlaneseq
    %v1886 = vshrl.u32 %v1885, 7
    %v1887 = vsub.s32 0, %v1886
    %v1888 = vrot.slane %v1484, %v1887
    %v1890 = vsel %vm527, %v1883, 0
    %v1893 = vsel %vm527, %v1884, 0
    %1895 = vmatprep.subr.mxu0 0.0
    %1896 = vmatpush1.msra.mxu0 0.0
    %1897 = vmatprep.subr.mxu0 0.0
    %1898 = vmatpush1.msra.mxu0 0.0
    %1899 = vmatprep.subr.mxu0 0.0
    %1900 = vmatpush1.msra.mxu0 0.0
    %1901 = vmatprep.subr.mxu0 0.0
    %1902 = vmatpush1.msra.mxu0 0.0
    %1903 = vmatprep.subr.mxu0 0.0
    %1904 = vmatpush1.msra.mxu0 0.0
    %1905 = vmatprep.subr.mxu0 0.0
    %1906 = vmatpush1.msra.mxu0 0.0
    %1907 = vmatprep.subr.mxu0 0.0
    %1908 = vmatpush1.msra.mxu0 0.0
    %1909 = vmatprep.subr.mxu0 0.0
    %1910 = vmatpush1.msra.mxu0 0.0
    %1911 = vmatprep.subr.mxu0 0.0
    %1912 = vmatpush1.msra.mxu0 0.0
    %1913 = vmatprep.subr.mxu0 0.0
    %1914 = vmatpush1.msra.mxu0 0.0
    %1915 = vmatprep.subr.mxu0 0.0
    %1916 = vmatpush1.msra.mxu0 0.0
    %1917 = vmatprep.subr.mxu0 0.0
    %1918 = vmatpush1.msra.mxu0 0.0
    %1919 = vmatprep.subr.mxu0 0.0
    %1920 = vmatpush1.msra.mxu0 %v1483
    %1921 = vmatprep.subr.mxu0 0.0
    %1922 = vmatpush1.msra.mxu0 %v1482
    %1923 = vmatprep.subr.mxu0 0.0
    %1924 = vmatpush1.msra.mxu0 %v1481
    %1925 = vmatprep.subr.mxu0 0.0
    %1926 = vmatpush1.msra.mxu0 %v1480
    %1927 = vmatprep.subr.mxu0 0.0
    %1928 = vmatpush2.msra.mxu0 0.0
    %1929 = vmatprep.subr.mxu0 0.0
    %1930 = vmatpush2.msra.mxu0 0.0
    %1931 = vmatprep.subr.mxu0 0.0
    %1932 = vmatpush2.msra.mxu0 0.0
    %1933 = vmatprep.subr.mxu0 0.0
    %1934 = vmatpush2.msra.mxu0 0.0
    %1935 = vmatprep.subr.mxu0 0.0
    %1936 = vmatpush2.msra.mxu0 0.0
    %1937 = vmatprep.subr.mxu0 0.0
    %1938 = vmatpush2.msra.mxu0 0.0
    %1939 = vmatprep.subr.mxu0 0.0
    %1940 = vmatpush2.msra.mxu0 0.0
    %1941 = vmatprep.subr.mxu0 0.0
    %1942 = vmatpush2.msra.mxu0 0.0
    %1943 = vmatprep.subr.mxu0 0.0
    %1944 = vmatpush2.msra.mxu0 0.0
    %1945 = vmatprep.subr.mxu0 0.0
    %1946 = vmatpush2.msra.mxu0 0.0
    %1947 = vmatprep.subr.mxu0 0.0
    %1948 = vmatpush2.msra.mxu0 0.0
    %1949 = vmatprep.subr.mxu0 0.0
    %1950 = vmatpush2.msra.mxu0 0.0
    %1951 = vmatprep.subr.mxu0 0.0
    %1952 = vmatpush2.msra.mxu0 0.0
    %1953 = vmatprep.subr.mxu0 0.0
    %1954 = vmatpush2.msra.mxu0 0.0
    %1955 = vmatprep.subr.mxu0 0.0
    %1956 = vmatpush2.msra.mxu0 0.0
    %1957 = vmatprep.subr.mxu0 0.0
    %1958 = vmatpush2.msra.mxu0 0.0
    %1959 = vmatprep.mubr.f32.mxu0 0.0
    %1960 = vmatmul.mubr.f32.gmra.mxu0 %v1890
    %v1961 = vpop.f32.mrf.mxu0
    %v1962 = vadd.f32 %v1888, %v1961
    %v1963 = vpop.f32.mrf.mxu0
    %1964 = vmatprep.mubr.f32.mxu0 0.0
    %1965 = vmatmul.mubr.f32.gmra.mxu0 %v1893
    %v1966 = vpop.f32.mrf.mxu0
    %v1967 = vadd.f32 %v1888, %v1966
    %v1968 = vpop.f32.mrf.mxu0
    %1969 = vdwg.mxu0
    %v1970 = vadd.f32 %v1388, %v1962
    %v1971 = vadd.f32 %v1389, %v1967
    %v1972 = vld [vmem:[#allocation2 + $0x18c] sm:$0x1]
    %v1973 = vld [vmem:[#allocation2 + $0x18d] sm:$0x1]
    %v1974 = vsel %vm527, %v1970, 0.0
    %1975 = vadd.xlane.f32.xlu0 %v1974
    %v1976 = vpop.xlane.xlu0 %1975
    %v1977 = vsel %vm527, %v1971, 0.0
    %1978 = vadd.xlane.f32.xlu0 %v1977
    %v1979 = vpop.xlane.xlu0 %1978
    %v1980 = vmul.f32 %v1976, %v1129
    %v1981 = vmul.f32 %v1979, %v1129
    %v1982 = vsub.f32 %v1970, %v1980
    %v1983 = vsub.f32 %v1971, %v1981
    %v1984 = vmul.f32 %v1982, %v1982
    %v1985 = vmul.f32 %v1983, %v1983
    %v1986 = vsel %vm527, %v1984, 0.0
    %1987 = vadd.xlane.f32.xlu0 %v1986
    %v1988 = vpop.xlane.xlu0 %1987
    %v1989 = vsel %vm527, %v1985, 0.0
    %1990 = vadd.xlane.f32.xlu0 %v1989
    %v1991 = vpop.xlane.xlu0 %1990
    %v1992 = vmul.f32 %v1988, %v1129
    %v1993 = vmul.f32 %v1991, %v1129
    %v1994 = vadd.f32 %v1992, 1e-05
    %v1995 = vadd.f32 %v1993, 1e-05
    %v1996 = vrsqrt.pop %v1994
    %v1997 = vrsqrt.pop %v1995
    %v1998 = vmul.f32 %v1982, %v1996
    %v1999 = vmul.f32 %v1983, %v1997
    %v2000 = vlaneseq
    %v2001 = vshrl.u32 %v2000, 7
    %v2002 = vsub.s32 0, %v2001
    %v2003 = vrot.slane %v1972, %v2002
    %v2004 = vmul.f32 %v1998, %v2003
    %v2005 = vmul.f32 %v1999, %v2003
    %v2006 = vlaneseq
    %v2007 = vshrl.u32 %v2006, 7
    %v2008 = vsub.s32 0, %v2007
    %v2009 = vrot.slane %v1973, %v2008
    %v2010 = vadd.f32 %v2004, %v2009
    %v2011 = vadd.f32 %v2005, %v2009
    %v2012 = vld [vmem:[#allocation2 + $0x12a] sm:$0xff]
    %v2013 = vld [vmem:[#allocation2 + $0x132] sm:$0xff]
    %v2014 = vld [vmem:[#allocation2 + $0x13a] sm:$0xff]
    %v2015 = vld [vmem:[#allocation2 + $0x142] sm:$0xff]
    %v2016 = vld [vmem:[#allocation2 + $0x14a] sm:$0x1]
    %v2017 = vlaneseq
    %v2018 = vshrl.u32 %v2017, 7
    %v2019 = vsub.s32 0, %v2018
    %v2020 = vrot.slane %v2016, %v2019
    %v2022 = vsel %vm527, %v2010, 0
    %v2025 = vsel %vm527, %v2011, 0
    %2027 = vmatprep.subr.mxu0 0.0
    %2028 = vmatpush1.msra.mxu0 0.0
    %2029 = vmatprep.subr.mxu0 0.0
    %2030 = vmatpush1.msra.mxu0 0.0
    %2031 = vmatprep.subr.mxu0 0.0
    %2032 = vmatpush1.msra.mxu0 0.0
    %2033 = vmatprep.subr.mxu0 0.0
    %2034 = vmatpush1.msra.mxu0 0.0
    %2035 = vmatprep.subr.mxu0 0.0
    %2036 = vmatpush1.msra.mxu0 0.0
    %2037 = vmatprep.subr.mxu0 0.0
    %2038 = vmatpush1.msra.mxu0 0.0
    %2039 = vmatprep.subr.mxu0 0.0
    %2040 = vmatpush1.msra.mxu0 0.0
    %2041 = vmatprep.subr.mxu0 0.0
    %2042 = vmatpush1.msra.mxu0 0.0
    %2043 = vmatprep.subr.mxu0 0.0
    %2044 = vmatpush1.msra.mxu0 0.0
    %2045 = vmatprep.subr.mxu0 0.0
    %2046 = vmatpush1.msra.mxu0 0.0
    %2047 = vmatprep.subr.mxu0 0.0
    %2048 = vmatpush1.msra.mxu0 0.0
    %2049 = vmatprep.subr.mxu0 0.0
    %2050 = vmatpush1.msra.mxu0 0.0
    %2051 = vmatprep.subr.mxu0 0.0
    %2052 = vmatpush1.msra.mxu0 %v2015
    %2053 = vmatprep.subr.mxu0 0.0
    %2054 = vmatpush1.msra.mxu0 %v2014
    %2055 = vmatprep.subr.mxu0 0.0
    %2056 = vmatpush1.msra.mxu0 %v2013
    %2057 = vmatprep.subr.mxu0 0.0
    %2058 = vmatpush1.msra.mxu0 %v2012
    %2059 = vmatprep.subr.mxu0 0.0
    %2060 = vmatpush2.msra.mxu0 0.0
    %2061 = vmatprep.subr.mxu0 0.0
    %2062 = vmatpush2.msra.mxu0 0.0
    %2063 = vmatprep.subr.mxu0 0.0
    %2064 = vmatpush2.msra.mxu0 0.0
    %2065 = vmatprep.subr.mxu0 0.0
    %2066 = vmatpush2.msra.mxu0 0.0
    %2067 = vmatprep.subr.mxu0 0.0
    %2068 = vmatpush2.msra.mxu0 0.0
    %2069 = vmatprep.subr.mxu0 0.0
    %2070 = vmatpush2.msra.mxu0 0.0
    %2071 = vmatprep.subr.mxu0 0.0
    %2072 = vmatpush2.msra.mxu0 0.0
    %2073 = vmatprep.subr.mxu0 0.0
    %2074 = vmatpush2.msra.mxu0 0.0
    %2075 = vmatprep.subr.mxu0 0.0
    %2076 = vmatpush2.msra.mxu0 0.0
    %2077 = vmatprep.subr.mxu0 0.0
    %2078 = vmatpush2.msra.mxu0 0.0
    %2079 = vmatprep.subr.mxu0 0.0
    %2080 = vmatpush2.msra.mxu0 0.0
    %2081 = vmatprep.subr.mxu0 0.0
    %2082 = vmatpush2.msra.mxu0 0.0
    %2083 = vmatprep.subr.mxu0 0.0
    %2084 = vmatpush2.msra.mxu0 0.0
    %2085 = vmatprep.subr.mxu0 0.0
    %2086 = vmatpush2.msra.mxu0 0.0
    %2087 = vmatprep.subr.mxu0 0.0
    %2088 = vmatpush2.msra.mxu0 0.0
    %2089 = vmatprep.subr.mxu0 0.0
    %2090 = vmatpush2.msra.mxu0 0.0
    %2091 = vmatprep.mubr.f32.mxu0 0.0
    %2092 = vmatmul.mubr.f32.gmra.mxu0 %v2022
    %v2093 = vpop.f32.mrf.mxu0
    %v2094 = vadd.f32 %v2020, %v2093
    %v2095 = vpop.f32.mrf.mxu0
    %2096 = vmatprep.mubr.f32.mxu0 0.0
    %2097 = vmatmul.mubr.f32.gmra.mxu0 %v2025
    %v2098 = vpop.f32.mrf.mxu0
    %v2099 = vadd.f32 %v2020, %v2098
    %v2100 = vpop.f32.mrf.mxu0
    %2101 = vdwg.mxu0
    %v2102 = vmax.f32 %v2094, 0.0
    %v2103 = vmax.f32 %v2099, 0.0
    %v2104 = vld [vmem:[#allocation2 + $0x14b] sm:$0xff]
    %v2105 = vld [vmem:[#allocation2 + $0x153] sm:$0xff]
    %v2106 = vld [vmem:[#allocation2 + $0x15b] sm:$0xff]
    %v2107 = vld [vmem:[#allocation2 + $0x163] sm:$0xff]
    %v2108 = vld [vmem:[#allocation2 + $0x16b] sm:$0xff]
    %v2109 = vld [vmem:[#allocation2 + $0x173] sm:$0xff]
    %v2110 = vld [vmem:[#allocation2 + $0x17b] sm:$0xff]
    %v2111 = vld [vmem:[#allocation2 + $0x183] sm:$0xff]
    %v2112 = vld [vmem:[#allocation2 + $0x18b] sm:$0x1]
    %v2113 = vlaneseq
    %v2114 = vshrl.u32 %v2113, 7
    %v2115 = vsub.s32 0, %v2114
    %v2116 = vrot.slane %v2112, %v2115
    %v2118 = vsel %vm343, %v2102, 0
    %v2121 = vsel %vm343, %v2103, 0
    %2123 = vmatprep.subr.mxu0 0.0
    %2124 = vmatpush1.msra.mxu0 0.0
    %2125 = vmatprep.subr.mxu0 0.0
    %2126 = vmatpush1.msra.mxu0 0.0
    %2127 = vmatprep.subr.mxu0 0.0
    %2128 = vmatpush1.msra.mxu0 0.0
    %2129 = vmatprep.subr.mxu0 0.0
    %2130 = vmatpush1.msra.mxu0 0.0
    %2131 = vmatprep.subr.mxu0 0.0
    %2132 = vmatpush1.msra.mxu0 0.0
    %2133 = vmatprep.subr.mxu0 0.0
    %2134 = vmatpush1.msra.mxu0 0.0
    %2135 = vmatprep.subr.mxu0 0.0
    %2136 = vmatpush1.msra.mxu0 0.0
    %2137 = vmatprep.subr.mxu0 0.0
    %2138 = vmatpush1.msra.mxu0 0.0
    %2139 = vmatprep.subr.mxu0 0.0
    %2140 = vmatpush1.msra.mxu0 %v2111
    %2141 = vmatprep.subr.mxu0 0.0
    %2142 = vmatpush1.msra.mxu0 %v2110
    %2143 = vmatprep.subr.mxu0 0.0
    %2144 = vmatpush1.msra.mxu0 %v2109
    %2145 = vmatprep.subr.mxu0 0.0
    %2146 = vmatpush1.msra.mxu0 %v2108
    %2147 = vmatprep.subr.mxu0 0.0
    %2148 = vmatpush1.msra.mxu0 %v2107
    %2149 = vmatprep.subr.mxu0 0.0
    %2150 = vmatpush1.msra.mxu0 %v2106
    %2151 = vmatprep.subr.mxu0 0.0
    %2152 = vmatpush1.msra.mxu0 %v2105
    %2153 = vmatprep.subr.mxu0 0.0
    %2154 = vmatpush1.msra.mxu0 %v2104
    %2155 = vmatprep.subr.mxu0 0.0
    %2156 = vmatpush2.msra.mxu0 0.0
    %2157 = vmatprep.subr.mxu0 0.0
    %2158 = vmatpush2.msra.mxu0 0.0
    %2159 = vmatprep.subr.mxu0 0.0
    %2160 = vmatpush2.msra.mxu0 0.0
    %2161 = vmatprep.subr.mxu0 0.0
    %2162 = vmatpush2.msra.mxu0 0.0
    %2163 = vmatprep.subr.mxu0 0.0
    %2164 = vmatpush2.msra.mxu0 0.0
    %2165 = vmatprep.subr.mxu0 0.0
    %2166 = vmatpush2.msra.mxu0 0.0
    %2167 = vmatprep.subr.mxu0 0.0
    %2168 = vmatpush2.msra.mxu0 0.0
    %2169 = vmatprep.subr.mxu0 0.0
    %2170 = vmatpush2.msra.mxu0 0.0
    %2171 = vmatprep.subr.mxu0 0.0
    %2172 = vmatpush2.msra.mxu0 0.0
    %2173 = vmatprep.subr.mxu0 0.0
    %2174 = vmatpush2.msra.mxu0 0.0
    %2175 = vmatprep.subr.mxu0 0.0
    %2176 = vmatpush2.msra.mxu0 0.0
    %2177 = vmatprep.subr.mxu0 0.0
    %2178 = vmatpush2.msra.mxu0 0.0
    %2179 = vmatprep.subr.mxu0 0.0
    %2180 = vmatpush2.msra.mxu0 0.0
    %2181 = vmatprep.subr.mxu0 0.0
    %2182 = vmatpush2.msra.mxu0 0.0
    %2183 = vmatprep.subr.mxu0 0.0
    %2184 = vmatpush2.msra.mxu0 0.0
    %2185 = vmatprep.subr.mxu0 0.0
    %2186 = vmatpush2.msra.mxu0 0.0
    %2187 = vmatprep.mubr.f32.mxu0 0.0
    %2188 = vmatmul.mubr.f32.gmra.mxu0 %v2118
    %v2189 = vpop.f32.mrf.mxu0
    %v2190 = vadd.f32 %v2116, %v2189
    %v2191 = vpop.f32.mrf.mxu0
    %2192 = vmatprep.mubr.f32.mxu0 0.0
    %2193 = vmatmul.mubr.f32.gmra.mxu0 %v2121
    %v2194 = vpop.f32.mrf.mxu0
    %v2195 = vadd.f32 %v2116, %v2194
    %v2196 = vpop.f32.mrf.mxu0
    %2197 = vdwg.mxu0
    %v2198 = vadd.f32 %v2010, %v2190
    %v2199 = vadd.f32 %v2011, %v2195
    %v2200 = vld [vmem:[#allocation2 + $0x18e] sm:$0x1]
    %v2201 = vld [vmem:[#allocation2 + $0x18f] sm:$0x1]
    %v2202 = vsel %vm527, %v2198, 0.0
    %2203 = vadd.xlane.f32.xlu0 %v2202
    %v2204 = vpop.xlane.xlu0 %2203
    %v2205 = vsel %vm527, %v2199, 0.0
    %2206 = vadd.xlane.f32.xlu0 %v2205
    %v2207 = vpop.xlane.xlu0 %2206
    %v2208 = vmul.f32 %v2204, %v1129
    %v2209 = vmul.f32 %v2207, %v1129
    %v2210 = vsub.f32 %v2198, %v2208
    %v2211 = vsub.f32 %v2199, %v2209
    %v2212 = vmul.f32 %v2210, %v2210
    %v2213 = vmul.f32 %v2211, %v2211
    %v2214 = vsel %vm527, %v2212, 0.0
    %2215 = vadd.xlane.f32.xlu0 %v2214
    %v2216 = vpop.xlane.xlu0 %2215
    %v2217 = vsel %vm527, %v2213, 0.0
    %2218 = vadd.xlane.f32.xlu0 %v2217
    %v2219 = vpop.xlane.xlu0 %2218
    %v2220 = vmul.f32 %v2216, %v1129
    %v2221 = vmul.f32 %v2219, %v1129
    %v2222 = vadd.f32 %v2220, 1e-05
    %v2223 = vadd.f32 %v2221, 1e-05
    %v2224 = vrsqrt.pop %v2222
    %v2225 = vrsqrt.pop %v2223
    %v2226 = vmul.f32 %v2210, %v2224
    %v2227 = vmul.f32 %v2211, %v2225
    %v2228 = vlaneseq
    %v2229 = vshrl.u32 %v2228, 7
    %v2230 = vsub.s32 0, %v2229
    %v2231 = vrot.slane %v2200, %v2230
    %v2232 = vmul.f32 %v2226, %v2231
    %v2233 = vmul.f32 %v2227, %v2231
    %v2234 = vlaneseq
    %v2235 = vshrl.u32 %v2234, 7
    %v2236 = vsub.s32 0, %v2235
    %v2237 = vrot.slane %v2201, %v2236
    %v2238 = vadd.f32 %v2232, %v2237
    %v2239 = vadd.f32 %v2233, %v2237
    %v2240 = vld [vmem:[#allocation2 + $0x3aa] sm:$0x1]
    %v2241 = vld [vmem:[#allocation2 + $0x3ab] sm:$0x1]
    %v2242 = vsel %vm527, %v2238, 0.0
    %2243 = vadd.xlane.f32.xlu0 %v2242
    %v2244 = vpop.xlane.xlu0 %2243
    %v2245 = vsel %vm527, %v2239, 0.0
    %2246 = vadd.xlane.f32.xlu0 %v2245
    %v2247 = vpop.xlane.xlu0 %2246
    %v2248 = vmul.f32 %v2244, %v1129
    %v2249 = vmul.f32 %v2247, %v1129
    %v2250 = vsub.f32 %v2238, %v2248
    %v2251 = vsub.f32 %v2239, %v2249
    %v2252 = vmul.f32 %v2250, %v2250
    %v2253 = vmul.f32 %v2251, %v2251
    %v2254 = vsel %vm527, %v2252, 0.0
    %2255 = vadd.xlane.f32.xlu0 %v2254
    %v2256 = vpop.xlane.xlu0 %2255
    %v2257 = vsel %vm527, %v2253, 0.0
    %2258 = vadd.xlane.f32.xlu0 %v2257
    %v2259 = vpop.xlane.xlu0 %2258
    %v2260 = vmul.f32 %v2256, %v1129
    %v2261 = vmul.f32 %v2259, %v1129
    %v2262 = vadd.f32 %v2260, 1e-05
    %v2263 = vadd.f32 %v2261, 1e-05
    %v2264 = vrsqrt.pop %v2262
    %v2265 = vrsqrt.pop %v2263
    %v2266 = vmul.f32 %v2250, %v2264
    %v2267 = vmul.f32 %v2251, %v2265
    %v2268 = vlaneseq
    %v2269 = vshrl.u32 %v2268, 7
    %v2270 = vsub.s32 0, %v2269
    %v2271 = vrot.slane %v2240, %v2270
    %v2272 = vmul.f32 %v2266, %v2271
    %v2273 = vmul.f32 %v2267, %v2271
    %v2274 = vlaneseq
    %v2275 = vshrl.u32 %v2274, 7
    %v2276 = vsub.s32 0, %v2275
    %v2277 = vrot.slane %v2241, %v2276
    %v2278 = vadd.f32 %v2272, %v2277
    %v2279 = vadd.f32 %v2273, %v2277
    %v2280 = vld [vmem:[#allocation2 + $0x190] sm:$0xff]
    %v2281 = vld [vmem:[#allocation2 + $0x198] sm:$0xff]
    %v2282 = vld [vmem:[#allocation2 + $0x1a0] sm:$0xff]
    %v2283 = vld [vmem:[#allocation2 + $0x1a8] sm:$0xff]
    %v2284 = vld [vmem:[#allocation2 + $0x1b0] sm:$0x1]
    %v2285 = vlaneseq
    %v2286 = vshrl.u32 %v2285, 7
    %v2287 = vsub.s32 0, %v2286
    %v2288 = vrot.slane %v2284, %v2287
    %v2290 = vsel %vm527, %v510, 0
    %v2293 = vsel %vm527, %v515, 0
    %2295 = vmatprep.subr.mxu0 0.0
    %2296 = vmatpush1.msra.mxu0 0.0
    %2297 = vmatprep.subr.mxu0 0.0
    %2298 = vmatpush1.msra.mxu0 0.0
    %2299 = vmatprep.subr.mxu0 0.0
    %2300 = vmatpush1.msra.mxu0 0.0
    %2301 = vmatprep.subr.mxu0 0.0
    %2302 = vmatpush1.msra.mxu0 0.0
    %2303 = vmatprep.subr.mxu0 0.0
    %2304 = vmatpush1.msra.mxu0 0.0
    %2305 = vmatprep.subr.mxu0 0.0
    %2306 = vmatpush1.msra.mxu0 0.0
    %2307 = vmatprep.subr.mxu0 0.0
    %2308 = vmatpush1.msra.mxu0 0.0
    %2309 = vmatprep.subr.mxu0 0.0
    %2310 = vmatpush1.msra.mxu0 0.0
    %2311 = vmatprep.subr.mxu0 0.0
    %2312 = vmatpush1.msra.mxu0 0.0
    %2313 = vmatprep.subr.mxu0 0.0
    %2314 = vmatpush1.msra.mxu0 0.0
    %2315 = vmatprep.subr.mxu0 0.0
    %2316 = vmatpush1.msra.mxu0 0.0
    %2317 = vmatprep.subr.mxu0 0.0
    %2318 = vmatpush1.msra.mxu0 0.0
    %2319 = vmatprep.subr.mxu0 0.0
    %2320 = vmatpush1.msra.mxu0 %v2283
    %2321 = vmatprep.subr.mxu0 0.0
    %2322 = vmatpush1.msra.mxu0 %v2282
    %2323 = vmatprep.subr.mxu0 0.0
    %2324 = vmatpush1.msra.mxu0 %v2281
    %2325 = vmatprep.subr.mxu0 0.0
    %2326 = vmatpush1.msra.mxu0 %v2280
    %2327 = vmatprep.subr.mxu0 0.0
    %2328 = vmatpush2.msra.mxu0 0.0
    %2329 = vmatprep.subr.mxu0 0.0
    %2330 = vmatpush2.msra.mxu0 0.0
    %2331 = vmatprep.subr.mxu0 0.0
    %2332 = vmatpush2.msra.mxu0 0.0
    %2333 = vmatprep.subr.mxu0 0.0
    %2334 = vmatpush2.msra.mxu0 0.0
    %2335 = vmatprep.subr.mxu0 0.0
    %2336 = vmatpush2.msra.mxu0 0.0
    %2337 = vmatprep.subr.mxu0 0.0
    %2338 = vmatpush2.msra.mxu0 0.0
    %2339 = vmatprep.subr.mxu0 0.0
    %2340 = vmatpush2.msra.mxu0 0.0
    %2341 = vmatprep.subr.mxu0 0.0
    %2342 = vmatpush2.msra.mxu0 0.0
    %2343 = vmatprep.subr.mxu0 0.0
    %2344 = vmatpush2.msra.mxu0 0.0
    %2345 = vmatprep.subr.mxu0 0.0
    %2346 = vmatpush2.msra.mxu0 0.0
    %2347 = vmatprep.subr.mxu0 0.0
    %2348 = vmatpush2.msra.mxu0 0.0
    %2349 = vmatprep.subr.mxu0 0.0
    %2350 = vmatpush2.msra.mxu0 0.0
    %2351 = vmatprep.subr.mxu0 0.0
    %2352 = vmatpush2.msra.mxu0 0.0
    %2353 = vmatprep.subr.mxu0 0.0
    %2354 = vmatpush2.msra.mxu0 0.0
    %2355 = vmatprep.subr.mxu0 0.0
    %2356 = vmatpush2.msra.mxu0 0.0
    %2357 = vmatprep.subr.mxu0 0.0
    %2358 = vmatpush2.msra.mxu0 0.0
    %2359 = vmatprep.mubr.f32.mxu0 0.0
    %2360 = vmatmul.mubr.f32.gmra.mxu0 %v2290
    %v2361 = vpop.f32.mrf.mxu0
    %v2362 = vadd.f32 %v2288, %v2361
    %v2363 = vpop.f32.mrf.mxu0
    %2364 = vmatprep.mubr.f32.mxu0 0.0
    %2365 = vmatmul.mubr.f32.gmra.mxu0 %v2293
    %v2366 = vpop.f32.mrf.mxu0
    %v2367 = vadd.f32 %v2288, %v2366
    %v2368 = vpop.f32.mrf.mxu0
    %2369 = vdwg.mxu0
    %v2370 = vld [vmem:[#allocation2 + $0x1b1] sm:$0xff]
    %v2371 = vld [vmem:[#allocation2 + $0x1b9] sm:$0xff]
    %v2372 = vld [vmem:[#allocation2 + $0x1c1] sm:$0xff]
    %v2373 = vld [vmem:[#allocation2 + $0x1c9] sm:$0xff]
    %v2374 = vld [vmem:[#allocation2 + $0x1d1] sm:$0x1]
    %v2375 = vmul.f32 %v2362, %v617
    %v2376 = vmul.f32 %v2367, %v617
    %v2377 = vmul.f32 %v2362, %v621
    %v2378 = vmul.f32 %v2367, %v621
    %v2379 = vmul.f32 %v2362, %v625
    %v2380 = vmul.f32 %v2367, %v625
    %v2381 = vmul.f32 %v2362, %v629
    %v2382 = vmul.f32 %v2367, %v629
    %2385 = vrot.lane.b32.xlu0 %v2362, 96
    %v2386 = vpop.permute.xlu0 %2385
    %2387 = vrot.lane.b32.xlu0 %v2367, 96
    %v2388 = vpop.permute.xlu0 %2387
    %v2390 = vsel %vm527, %v2375, 0
    %v2393 = vsel %vm527, %v2376, 0
    %v2396 = vsel %vm527, %v2377, 0
    %v2399 = vsel %vm527, %v2378, 0
    %v2402 = vsel %vm527, %v2379, 0
    %v2405 = vsel %vm527, %v2380, 0
    %v2408 = vsel %vm527, %v2381, 0
    %v2411 = vsel %vm527, %v2382, 0
    %v2413 = vsel %vm527, %v2386, 0
    %v2415 = vsel %vm527, %v2388, 0
    %2417 = vmatprep.subr.mxu0 0.0
    %2418 = vmatpush1.xpose.msra.mxu0 0.0
    %2419 = vmatprep.subr.mxu0 0.0
    %2420 = vmatpush1.xpose.msra.mxu0 0.0
    %2421 = vmatprep.subr.mxu0 0.0
    %2422 = vmatpush1.xpose.msra.mxu0 0.0
    %2423 = vmatprep.subr.mxu0 0.0
    %2424 = vmatpush1.xpose.msra.mxu0 0.0
    %2425 = vmatprep.subr.mxu0 0.0
    %2426 = vmatpush1.xpose.msra.mxu0 0.0
    %2427 = vmatprep.subr.mxu0 0.0
    %2428 = vmatpush1.xpose.msra.mxu0 0.0
    %2429 = vmatprep.subr.mxu0 0.0
    %2430 = vmatpush1.xpose.msra.mxu0 0.0
    %2431 = vmatprep.subr.mxu0 0.0
    %2432 = vmatpush1.xpose.msra.mxu0 0.0
    %2433 = vmatprep.subr.mxu0 0.0
    %2434 = vmatpush1.xpose.msra.mxu0 0.0
    %2435 = vmatprep.subr.mxu0 0.0
    %2436 = vmatpush1.xpose.msra.mxu0 0.0
    %2437 = vmatprep.subr.mxu0 0.0
    %2438 = vmatpush1.xpose.msra.mxu0 0.0
    %2439 = vmatprep.subr.mxu0 0.0
    %2440 = vmatpush1.xpose.msra.mxu0 0.0
    %2441 = vmatprep.subr.mxu0 0.0
    %2442 = vmatpush1.xpose.msra.mxu0 0.0
    %2443 = vmatprep.subr.mxu0 0.0
    %2444 = vmatpush1.xpose.msra.mxu0 0.0
    %2445 = vmatprep.subr.mxu0 0.0
    %2446 = vmatpush1.xpose.msra.mxu0 %v2415
    %2447 = vmatprep.subr.mxu0 0.0
    %2448 = vmatpush1.xpose.msra.mxu0 %v2413
    %2449 = vmatprep.subr.mxu0 0.0
    %2450 = vmatpush2.xpose.msra.mxu0 0.0
    %2451 = vmatprep.subr.mxu0 0.0
    %2452 = vmatpush2.xpose.msra.mxu0 0.0
    %2453 = vmatprep.subr.mxu0 0.0
    %2454 = vmatpush2.xpose.msra.mxu0 0.0
    %2455 = vmatprep.subr.mxu0 0.0
    %2456 = vmatpush2.xpose.msra.mxu0 0.0
    %2457 = vmatprep.subr.mxu0 0.0
    %2458 = vmatpush2.xpose.msra.mxu0 0.0
    %2459 = vmatprep.subr.mxu0 0.0
    %2460 = vmatpush2.xpose.msra.mxu0 0.0
    %2461 = vmatprep.subr.mxu0 0.0
    %2462 = vmatpush2.xpose.msra.mxu0 0.0
    %2463 = vmatprep.subr.mxu0 0.0
    %2464 = vmatpush2.xpose.msra.mxu0 0.0
    %2465 = vmatprep.subr.mxu0 0.0
    %2466 = vmatpush2.xpose.msra.mxu0 0.0
    %2467 = vmatprep.subr.mxu0 0.0
    %2468 = vmatpush2.xpose.msra.mxu0 0.0
    %2469 = vmatprep.subr.mxu0 0.0
    %2470 = vmatpush2.xpose.msra.mxu0 0.0
    %2471 = vmatprep.subr.mxu0 0.0
    %2472 = vmatpush2.xpose.msra.mxu0 0.0
    %2473 = vmatprep.subr.mxu0 0.0
    %2474 = vmatpush2.xpose.msra.mxu0 0.0
    %2475 = vmatprep.subr.mxu0 0.0
    %2476 = vmatpush2.xpose.msra.mxu0 0.0
    %2477 = vmatprep.subr.mxu0 0.0
    %2478 = vmatpush2.xpose.msra.mxu0 0.0
    %2479 = vmatprep.subr.mxu0 0.0
    %2480 = vmatpush2.xpose.msra.mxu0 0.0
    %2481 = vmatprep.mubr.f32.mxu0 0.0
    %2482 = vmatmul.mubr.f32.gmra.mxu0 %v2390
    %v2483 = vpop.f32.mrf.mxu0
    %v2484 = vadd.f32 0.0, %v2483
    %v2485 = vpop.f32.mrf.mxu0
    %2486 = vmatprep.mubr.f32.mxu0 0.0
    %2487 = vmatmul.mubr.f32.gmra.mxu0 %v2393
    %v2488 = vpop.f32.mrf.mxu0
    %v2489 = vadd.f32 0.0, %v2488
    %v2490 = vpop.f32.mrf.mxu0
    %2491 = vmatprep.mubr.f32.mxu0 0.0
    %2492 = vmatmul.mubr.f32.gmra.mxu0 %v2396
    %v2493 = vpop.f32.mrf.mxu0
    %v2494 = vadd.f32 0.0, %v2493
    %v2495 = vpop.f32.mrf.mxu0
    %2496 = vmatprep.mubr.f32.mxu0 0.0
    %2497 = vmatmul.mubr.f32.gmra.mxu0 %v2399
    %v2498 = vpop.f32.mrf.mxu0
    %v2499 = vadd.f32 0.0, %v2498
    %v2500 = vpop.f32.mrf.mxu0
    %2501 = vmatprep.mubr.f32.mxu0 0.0
    %2502 = vmatmul.mubr.f32.gmra.mxu0 %v2402
    %v2503 = vpop.f32.mrf.mxu0
    %v2504 = vadd.f32 0.0, %v2503
    %v2505 = vpop.f32.mrf.mxu0
    %2506 = vmatprep.mubr.f32.mxu0 0.0
    %2507 = vmatmul.mubr.f32.gmra.mxu0 %v2405
    %v2508 = vpop.f32.mrf.mxu0
    %v2509 = vadd.f32 0.0, %v2508
    %v2510 = vpop.f32.mrf.mxu0
    %2511 = vmatprep.mubr.f32.mxu0 0.0
    %2512 = vmatmul.mubr.f32.gmra.mxu0 %v2408
    %v2513 = vpop.f32.mrf.mxu0
    %v2514 = vadd.f32 0.0, %v2513
    %v2515 = vpop.f32.mrf.mxu0
    %2516 = vmatprep.mubr.f32.mxu0 0.0
    %2517 = vmatmul.mubr.f32.gmra.mxu0 %v2411
    %v2518 = vpop.f32.mrf.mxu0
    %v2519 = vadd.f32 0.0, %v2518
    %v2520 = vpop.f32.mrf.mxu0
    %2521 = vdwg.mxu0
    %v2522 = vmul.f32 %v2484, 0.35355338
    %v2523 = vmul.f32 %v2489, 0.35355338
    %v2524 = vmul.f32 %v2494, 0.35355338
    %v2525 = vmul.f32 %v2499, 0.35355338
    %v2526 = vmul.f32 %v2504, 0.35355338
    %v2527 = vmul.f32 %v2509, 0.35355338
    %v2528 = vmul.f32 %v2514, 0.35355338
    %v2529 = vmul.f32 %v2519, 0.35355338
    %v2530 = vadd.f32 %v2522, %v287
    %v2531 = vadd.f32 %v2523, %v288
    %v2532 = vadd.f32 %v2524, %v287
    %v2533 = vadd.f32 %v2525, %v288
    %v2534 = vadd.f32 %v2526, %v287
    %v2535 = vadd.f32 %v2527, %v288
    %v2536 = vadd.f32 %v2528, %v287
    %v2537 = vadd.f32 %v2529, %v288
    %v2538 = vsel %vm93, %v2530, -inf
    %2539 = vmax.xlane.f32.xlu0 %v2538
    %v2540 = vpop.xlane.xlu0 %2539
    %v2541 = vsel %vm93, %v2531, -inf
    %2542 = vmax.xlane.f32.xlu0 %v2541
    %v2543 = vpop.xlane.xlu0 %2542
    %v2544 = vsel %vm93, %v2532, -inf
    %2545 = vmax.xlane.f32.xlu0 %v2544
    %v2546 = vpop.xlane.xlu0 %2545
    %v2547 = vsel %vm93, %v2533, -inf
    %2548 = vmax.xlane.f32.xlu0 %v2547
    %v2549 = vpop.xlane.xlu0 %2548
    %v2550 = vsel %vm93, %v2534, -inf
    %2551 = vmax.xlane.f32.xlu0 %v2550
    %v2552 = vpop.xlane.xlu0 %2551
    %v2553 = vsel %vm93, %v2535, -inf
    %2554 = vmax.xlane.f32.xlu0 %v2553
    %v2555 = vpop.xlane.xlu0 %2554
    %v2556 = vsel %vm93, %v2536, -inf
    %2557 = vmax.xlane.f32.xlu0 %v2556
    %v2558 = vpop.xlane.xlu0 %2557
    %v2559 = vsel %vm93, %v2537, -inf
    %2560 = vmax.xlane.f32.xlu0 %v2559
    %v2561 = vpop.xlane.xlu0 %2560
    %v2562 = vsub.f32 %v2530, %v2540
    %v2563 = vsub.f32 %v2531, %v2543
    %v2564 = vsub.f32 %v2532, %v2546
    %v2565 = vsub.f32 %v2533, %v2549
    %v2566 = vsub.f32 %v2534, %v2552
    %v2567 = vsub.f32 %v2535, %v2555
    %v2568 = vsub.f32 %v2536, %v2558
    %v2569 = vsub.f32 %v2537, %v2561
    %v2570 = vmul.f32 %v2562, 1.442695
    %v2571 = vpow.pop %v2570
    %v2572 = vmul.f32 %v2563, 1.442695
    %v2573 = vpow.pop %v2572
    %v2574 = vmul.f32 %v2564, 1.442695
    %v2575 = vpow.pop %v2574
    %v2576 = vmul.f32 %v2565, 1.442695
    %v2577 = vpow.pop %v2576
    %v2578 = vmul.f32 %v2566, 1.442695
    %v2579 = vpow.pop %v2578
    %v2580 = vmul.f32 %v2567, 1.442695
    %v2581 = vpow.pop %v2580
    %v2582 = vmul.f32 %v2568, 1.442695
    %v2583 = vpow.pop %v2582
    %v2584 = vmul.f32 %v2569, 1.442695
    %v2585 = vpow.pop %v2584
    %v2586 = vsel %vm93, %v2571, 0.0
    %2587 = vadd.xlane.f32.xlu0 %v2586
    %v2588 = vpop.xlane.xlu0 %2587
    %v2589 = vsel %vm93, %v2573, 0.0
    %2590 = vadd.xlane.f32.xlu0 %v2589
    %v2591 = vpop.xlane.xlu0 %2590
    %v2592 = vsel %vm93, %v2575, 0.0
    %2593 = vadd.xlane.f32.xlu0 %v2592
    %v2594 = vpop.xlane.xlu0 %2593
    %v2595 = vsel %vm93, %v2577, 0.0
    %2596 = vadd.xlane.f32.xlu0 %v2595
    %v2597 = vpop.xlane.xlu0 %2596
    %v2598 = vsel %vm93, %v2579, 0.0
    %2599 = vadd.xlane.f32.xlu0 %v2598
    %v2600 = vpop.xlane.xlu0 %2599
    %v2601 = vsel %vm93, %v2581, 0.0
    %2602 = vadd.xlane.f32.xlu0 %v2601
    %v2603 = vpop.xlane.xlu0 %2602
    %v2604 = vsel %vm93, %v2583, 0.0
    %2605 = vadd.xlane.f32.xlu0 %v2604
    %v2606 = vpop.xlane.xlu0 %2605
    %v2607 = vsel %vm93, %v2585, 0.0
    %2608 = vadd.xlane.f32.xlu0 %v2607
    %v2609 = vpop.xlane.xlu0 %2608
    %v2610 = vrcp.pop %v2588
    %v2611 = vrcp.pop %v2591
    %v2612 = vrcp.pop %v2594
    %v2613 = vrcp.pop %v2597
    %v2614 = vrcp.pop %v2600
    %v2615 = vrcp.pop %v2603
    %v2616 = vrcp.pop %v2606
    %v2617 = vrcp.pop %v2609
    %v2618 = vmul.f32 %v2571, %v2610
    %v2619 = vmul.f32 %v2573, %v2611
    %v2620 = vmul.f32 %v2575, %v2612
    %v2621 = vmul.f32 %v2577, %v2613
    %v2622 = vmul.f32 %v2579, %v2614
    %v2623 = vmul.f32 %v2581, %v2615
    %v2624 = vmul.f32 %v2583, %v2616
    %v2625 = vmul.f32 %v2585, %v2617
    %2626 = vrot.lane.b32.xlu0 %v2362, 64
    %v2627 = vpop.permute.xlu0 %2626
    %2628 = vrot.lane.b32.xlu0 %v2367, 64
    %v2629 = vpop.permute.xlu0 %2628
    %v2633 = vsel %vm93, %v2618, 0
    %v2636 = vsel %vm93, %v2619, 0
    %v2639 = vsel %vm93, %v2620, 0
    %v2642 = vsel %vm93, %v2621, 0
    %v2645 = vsel %vm93, %v2622, 0
    %v2648 = vsel %vm93, %v2623, 0
    %v2651 = vsel %vm93, %v2624, 0
    %v2654 = vsel %vm93, %v2625, 0
    %2656 = vmatprep.subr.mxu0 0.0
    %2657 = vmatpush1.msra.mxu0 0.0
    %2658 = vmatprep.subr.mxu0 0.0
    %2659 = vmatpush1.msra.mxu0 0.0
    %2660 = vmatprep.subr.mxu0 0.0
    %2661 = vmatpush1.msra.mxu0 0.0
    %2662 = vmatprep.subr.mxu0 0.0
    %2663 = vmatpush1.msra.mxu0 0.0
    %2664 = vmatprep.subr.mxu0 0.0
    %2665 = vmatpush1.msra.mxu0 0.0
    %2666 = vmatprep.subr.mxu0 0.0
    %2667 = vmatpush1.msra.mxu0 0.0
    %2668 = vmatprep.subr.mxu0 0.0
    %2669 = vmatpush1.msra.mxu0 0.0
    %2670 = vmatprep.subr.mxu0 0.0
    %2671 = vmatpush1.msra.mxu0 0.0
    %2672 = vmatprep.subr.mxu0 0.0
    %2673 = vmatpush1.msra.mxu0 0.0
    %2674 = vmatprep.subr.mxu0 0.0
    %2675 = vmatpush1.msra.mxu0 0.0
    %2676 = vmatprep.subr.mxu0 0.0
    %2677 = vmatpush1.msra.mxu0 0.0
    %2678 = vmatprep.subr.mxu0 0.0
    %2679 = vmatpush1.msra.mxu0 0.0
    %2680 = vmatprep.subr.mxu0 0.0
    %2681 = vmatpush1.msra.mxu0 0.0
    %2682 = vmatprep.subr.mxu0 0.0
    %2683 = vmatpush1.msra.mxu0 0.0
    %2684 = vmatprep.subr.mxu0 0.0
    %2685 = vmatpush1.msra.mxu0 %v2629
    %2686 = vmatprep.subr.mxu0 0.0
    %2687 = vmatpush1.msra.mxu0 %v2627
    %2688 = vmatprep.subr.mxu0 0.0
    %2689 = vmatpush2.msra.mxu0 0.0
    %2690 = vmatprep.subr.mxu0 0.0
    %2691 = vmatpush2.msra.mxu0 0.0
    %2692 = vmatprep.subr.mxu0 0.0
    %2693 = vmatpush2.msra.mxu0 0.0
    %2694 = vmatprep.subr.mxu0 0.0
    %2695 = vmatpush2.msra.mxu0 0.0
    %2696 = vmatprep.subr.mxu0 0.0
    %2697 = vmatpush2.msra.mxu0 0.0
    %2698 = vmatprep.subr.mxu0 0.0
    %2699 = vmatpush2.msra.mxu0 0.0
    %2700 = vmatprep.subr.mxu0 0.0
    %2701 = vmatpush2.msra.mxu0 0.0
    %2702 = vmatprep.subr.mxu0 0.0
    %2703 = vmatpush2.msra.mxu0 0.0
    %2704 = vmatprep.subr.mxu0 0.0
    %2705 = vmatpush2.msra.mxu0 0.0
    %2706 = vmatprep.subr.mxu0 0.0
    %2707 = vmatpush2.msra.mxu0 0.0
    %2708 = vmatprep.subr.mxu0 0.0
    %2709 = vmatpush2.msra.mxu0 0.0
    %2710 = vmatprep.subr.mxu0 0.0
    %2711 = vmatpush2.msra.mxu0 0.0
    %2712 = vmatprep.subr.mxu0 0.0
    %2713 = vmatpush2.msra.mxu0 0.0
    %2714 = vmatprep.subr.mxu0 0.0
    %2715 = vmatpush2.msra.mxu0 0.0
    %2716 = vmatprep.subr.mxu0 0.0
    %2717 = vmatpush2.msra.mxu0 0.0
    %2718 = vmatprep.subr.mxu0 0.0
    %2719 = vmatpush2.msra.mxu0 0.0
    %2720 = vmatprep.mubr.f32.mxu0 0.0
    %2721 = vmatmul.mubr.f32.gmra.mxu0 %v2633
    %v2722 = vpop.f32.mrf.mxu0
    %v2723 = vadd.f32 0.0, %v2722
    %v2724 = vpop.f32.mrf.mxu0
    %2725 = vmatprep.mubr.f32.mxu0 0.0
    %2726 = vmatmul.mubr.f32.gmra.mxu0 %v2636
    %v2727 = vpop.f32.mrf.mxu0
    %v2728 = vadd.f32 0.0, %v2727
    %v2729 = vpop.f32.mrf.mxu0
    %2730 = vmatprep.mubr.f32.mxu0 0.0
    %2731 = vmatmul.mubr.f32.gmra.mxu0 %v2639
    %v2732 = vpop.f32.mrf.mxu0
    %v2733 = vadd.f32 0.0, %v2732
    %v2734 = vpop.f32.mrf.mxu0
    %2735 = vmatprep.mubr.f32.mxu0 0.0
    %2736 = vmatmul.mubr.f32.gmra.mxu0 %v2642
    %v2737 = vpop.f32.mrf.mxu0
    %v2738 = vadd.f32 0.0, %v2737
    %v2739 = vpop.f32.mrf.mxu0
    %2740 = vmatprep.mubr.f32.mxu0 0.0
    %2741 = vmatmul.mubr.f32.gmra.mxu0 %v2645
    %v2742 = vpop.f32.mrf.mxu0
    %v2743 = vadd.f32 0.0, %v2742
    %v2744 = vpop.f32.mrf.mxu0
    %2745 = vmatprep.mubr.f32.mxu0 0.0
    %2746 = vmatmul.mubr.f32.gmra.mxu0 %v2648
    %v2747 = vpop.f32.mrf.mxu0
    %v2748 = vadd.f32 0.0, %v2747
    %v2749 = vpop.f32.mrf.mxu0
    %2750 = vmatprep.mubr.f32.mxu0 0.0
    %2751 = vmatmul.mubr.f32.gmra.mxu0 %v2651
    %v2752 = vpop.f32.mrf.mxu0
    %v2753 = vadd.f32 0.0, %v2752
    %v2754 = vpop.f32.mrf.mxu0
    %2755 = vmatprep.mubr.f32.mxu0 0.0
    %2756 = vmatmul.mubr.f32.gmra.mxu0 %v2654
    %v2757 = vpop.f32.mrf.mxu0
    %v2758 = vadd.f32 0.0, %v2757
    %v2759 = vpop.f32.mrf.mxu0
    %2760 = vdwg.mxu0
    %v2761 = vmul.f32 %v2723, %v617
    %v2762 = vmul.f32 %v2728, %v617
    %v2763 = vmul.f32 %v2733, %v621
    %v2764 = vmul.f32 %v2738, %v621
    %v2765 = vmul.f32 %v2743, %v625
    %v2766 = vmul.f32 %v2748, %v625
    %v2767 = vmul.f32 %v2753, %v629
    %v2768 = vmul.f32 %v2758, %v629
    %v2769 = vadd.f32 %v2761, %v2763
    %v2770 = vadd.f32 %v2762, %v2764
    %v2771 = vadd.f32 %v2769, %v2765
    %v2772 = vadd.f32 %v2770, %v2766
    %v2773 = vadd.f32 %v2771, %v2767
    %v2774 = vadd.f32 %v2772, %v2768
    %v2775 = vlaneseq
    %v2776 = vshrl.u32 %v2775, 7
    %v2777 = vsub.s32 0, %v2776
    %v2778 = vrot.slane %v2374, %v2777
    %v2780 = vsel %vm527, %v2773, 0
    %v2783 = vsel %vm527, %v2774, 0
    %2785 = vmatprep.subr.mxu0 0.0
    %2786 = vmatpush1.msra.mxu0 0.0
    %2787 = vmatprep.subr.mxu0 0.0
    %2788 = vmatpush1.msra.mxu0 0.0
    %2789 = vmatprep.subr.mxu0 0.0
    %2790 = vmatpush1.msra.mxu0 0.0
    %2791 = vmatprep.subr.mxu0 0.0
    %2792 = vmatpush1.msra.mxu0 0.0
    %2793 = vmatprep.subr.mxu0 0.0
    %2794 = vmatpush1.msra.mxu0 0.0
    %2795 = vmatprep.subr.mxu0 0.0
    %2796 = vmatpush1.msra.mxu0 0.0
    %2797 = vmatprep.subr.mxu0 0.0
    %2798 = vmatpush1.msra.mxu0 0.0
    %2799 = vmatprep.subr.mxu0 0.0
    %2800 = vmatpush1.msra.mxu0 0.0
    %2801 = vmatprep.subr.mxu0 0.0
    %2802 = vmatpush1.msra.mxu0 0.0
    %2803 = vmatprep.subr.mxu0 0.0
    %2804 = vmatpush1.msra.mxu0 0.0
    %2805 = vmatprep.subr.mxu0 0.0
    %2806 = vmatpush1.msra.mxu0 0.0
    %2807 = vmatprep.subr.mxu0 0.0
    %2808 = vmatpush1.msra.mxu0 0.0
    %2809 = vmatprep.subr.mxu0 0.0
    %2810 = vmatpush1.msra.mxu0 %v2373
    %2811 = vmatprep.subr.mxu0 0.0
    %2812 = vmatpush1.msra.mxu0 %v2372
    %2813 = vmatprep.subr.mxu0 0.0
    %2814 = vmatpush1.msra.mxu0 %v2371
    %2815 = vmatprep.subr.mxu0 0.0
    %2816 = vmatpush1.msra.mxu0 %v2370
    %2817 = vmatprep.subr.mxu0 0.0
    %2818 = vmatpush2.msra.mxu0 0.0
    %2819 = vmatprep.subr.mxu0 0.0
    %2820 = vmatpush2.msra.mxu0 0.0
    %2821 = vmatprep.subr.mxu0 0.0
    %2822 = vmatpush2.msra.mxu0 0.0
    %2823 = vmatprep.subr.mxu0 0.0
    %2824 = vmatpush2.msra.mxu0 0.0
    %2825 = vmatprep.subr.mxu0 0.0
    %2826 = vmatpush2.msra.mxu0 0.0
    %2827 = vmatprep.subr.mxu0 0.0
    %2828 = vmatpush2.msra.mxu0 0.0
    %2829 = vmatprep.subr.mxu0 0.0
    %2830 = vmatpush2.msra.mxu0 0.0
    %2831 = vmatprep.subr.mxu0 0.0
    %2832 = vmatpush2.msra.mxu0 0.0
    %2833 = vmatprep.subr.mxu0 0.0
    %2834 = vmatpush2.msra.mxu0 0.0
    %2835 = vmatprep.subr.mxu0 0.0
    %2836 = vmatpush2.msra.mxu0 0.0
    %2837 = vmatprep.subr.mxu0 0.0
    %2838 = vmatpush2.msra.mxu0 0.0
    %2839 = vmatprep.subr.mxu0 0.0
    %2840 = vmatpush2.msra.mxu0 0.0
    %2841 = vmatprep.subr.mxu0 0.0
    %2842 = vmatpush2.msra.mxu0 0.0
    %2843 = vmatprep.subr.mxu0 0.0
    %2844 = vmatpush2.msra.mxu0 0.0
    %2845 = vmatprep.subr.mxu0 0.0
    %2846 = vmatpush2.msra.mxu0 0.0
    %2847 = vmatprep.subr.mxu0 0.0
    %2848 = vmatpush2.msra.mxu0 0.0
    %2849 = vmatprep.mubr.f32.mxu0 0.0
    %2850 = vmatmul.mubr.f32.gmra.mxu0 %v2780
    %v2851 = vpop.f32.mrf.mxu0
    %v2852 = vadd.f32 %v2778, %v2851
    %v2853 = vpop.f32.mrf.mxu0
    %2854 = vmatprep.mubr.f32.mxu0 0.0
    %2855 = vmatmul.mubr.f32.gmra.mxu0 %v2783
    %v2856 = vpop.f32.mrf.mxu0
    %v2857 = vadd.f32 %v2778, %v2856
    %v2858 = vpop.f32.mrf.mxu0
    %2859 = vdwg.mxu0
    %v2860 = vadd.f32 %v510, %v2852
    %v2861 = vadd.f32 %v515, %v2857
    %v2862 = vld [vmem:[#allocation2 + $0x297] sm:$0x1]
    %v2863 = vld [vmem:[#allocation2 + $0x298] sm:$0x1]
    %v2864 = vsel %vm527, %v2860, 0.0
    %2865 = vadd.xlane.f32.xlu0 %v2864
    %v2866 = vpop.xlane.xlu0 %2865
    %v2867 = vsel %vm527, %v2861, 0.0
    %2868 = vadd.xlane.f32.xlu0 %v2867
    %v2869 = vpop.xlane.xlu0 %2868
    %v2870 = vmul.f32 %v2866, %v1129
    %v2871 = vmul.f32 %v2869, %v1129
    %v2872 = vsub.f32 %v2860, %v2870
    %v2873 = vsub.f32 %v2861, %v2871
    %v2874 = vmul.f32 %v2872, %v2872
    %v2875 = vmul.f32 %v2873, %v2873
    %v2876 = vsel %vm527, %v2874, 0.0
    %2877 = vadd.xlane.f32.xlu0 %v2876
    %v2878 = vpop.xlane.xlu0 %2877
    %v2879 = vsel %vm527, %v2875, 0.0
    %2880 = vadd.xlane.f32.xlu0 %v2879
    %v2881 = vpop.xlane.xlu0 %2880
    %v2882 = vmul.f32 %v2878, %v1129
    %v2883 = vmul.f32 %v2881, %v1129
    %v2884 = vadd.f32 %v2882, 1e-05
    %v2885 = vadd.f32 %v2883, 1e-05
    %v2886 = vrsqrt.pop %v2884
    %v2887 = vrsqrt.pop %v2885
    %v2888 = vmul.f32 %v2872, %v2886
    %v2889 = vmul.f32 %v2873, %v2887
    %v2890 = vlaneseq
    %v2891 = vshrl.u32 %v2890, 7
    %v2892 = vsub.s32 0, %v2891
    %v2893 = vrot.slane %v2862, %v2892
    %v2894 = vmul.f32 %v2888, %v2893
    %v2895 = vmul.f32 %v2889, %v2893
    %v2896 = vlaneseq
    %v2897 = vshrl.u32 %v2896, 7
    %v2898 = vsub.s32 0, %v2897
    %v2899 = vrot.slane %v2863, %v2898
    %v2900 = vadd.f32 %v2894, %v2899
    %v2901 = vadd.f32 %v2895, %v2899
    %v2902 = vld [vmem:[#allocation2 + $0x1d2] sm:$0xff]
    %v2903 = vld [vmem:[#allocation2 + $0x1da] sm:$0xff]
    %v2904 = vld [vmem:[#allocation2 + $0x1e2] sm:$0xff]
    %v2905 = vld [vmem:[#allocation2 + $0x1ea] sm:$0xff]
    %v2906 = vld [vmem:[#allocation2 + $0x1f2] sm:$0x1]
    %v2907 = vlaneseq
    %v2908 = vshrl.u32 %v2907, 7
    %v2909 = vsub.s32 0, %v2908
    %v2910 = vrot.slane %v2906, %v2909
    %v2912 = vsel %vm527, %v2900, 0
    %v2915 = vsel %vm527, %v2901, 0
    %2917 = vmatprep.subr.mxu0 0.0
    %2918 = vmatpush1.msra.mxu0 0.0
    %2919 = vmatprep.subr.mxu0 0.0
    %2920 = vmatpush1.msra.mxu0 0.0
    %2921 = vmatprep.subr.mxu0 0.0
    %2922 = vmatpush1.msra.mxu0 0.0
    %2923 = vmatprep.subr.mxu0 0.0
    %2924 = vmatpush1.msra.mxu0 0.0
    %2925 = vmatprep.subr.mxu0 0.0
    %2926 = vmatpush1.msra.mxu0 0.0
    %2927 = vmatprep.subr.mxu0 0.0
    %2928 = vmatpush1.msra.mxu0 0.0
    %2929 = vmatprep.subr.mxu0 0.0
    %2930 = vmatpush1.msra.mxu0 0.0
    %2931 = vmatprep.subr.mxu0 0.0
    %2932 = vmatpush1.msra.mxu0 0.0
    %2933 = vmatprep.subr.mxu0 0.0
    %2934 = vmatpush1.msra.mxu0 0.0
    %2935 = vmatprep.subr.mxu0 0.0
    %2936 = vmatpush1.msra.mxu0 0.0
    %2937 = vmatprep.subr.mxu0 0.0
    %2938 = vmatpush1.msra.mxu0 0.0
    %2939 = vmatprep.subr.mxu0 0.0
    %2940 = vmatpush1.msra.mxu0 0.0
    %2941 = vmatprep.subr.mxu0 0.0
    %2942 = vmatpush1.msra.mxu0 %v2905
    %2943 = vmatprep.subr.mxu0 0.0
    %2944 = vmatpush1.msra.mxu0 %v2904
    %2945 = vmatprep.subr.mxu0 0.0
    %2946 = vmatpush1.msra.mxu0 %v2903
    %2947 = vmatprep.subr.mxu0 0.0
    %2948 = vmatpush1.msra.mxu0 %v2902
    %2949 = vmatprep.subr.mxu0 0.0
    %2950 = vmatpush2.msra.mxu0 0.0
    %2951 = vmatprep.subr.mxu0 0.0
    %2952 = vmatpush2.msra.mxu0 0.0
    %2953 = vmatprep.subr.mxu0 0.0
    %2954 = vmatpush2.msra.mxu0 0.0
    %2955 = vmatprep.subr.mxu0 0.0
    %2956 = vmatpush2.msra.mxu0 0.0
    %2957 = vmatprep.subr.mxu0 0.0
    %2958 = vmatpush2.msra.mxu0 0.0
    %2959 = vmatprep.subr.mxu0 0.0
    %2960 = vmatpush2.msra.mxu0 0.0
    %2961 = vmatprep.subr.mxu0 0.0
    %2962 = vmatpush2.msra.mxu0 0.0
    %2963 = vmatprep.subr.mxu0 0.0
    %2964 = vmatpush2.msra.mxu0 0.0
    %2965 = vmatprep.subr.mxu0 0.0
    %2966 = vmatpush2.msra.mxu0 0.0
    %2967 = vmatprep.subr.mxu0 0.0
    %2968 = vmatpush2.msra.mxu0 0.0
    %2969 = vmatprep.subr.mxu0 0.0
    %2970 = vmatpush2.msra.mxu0 0.0
    %2971 = vmatprep.subr.mxu0 0.0
    %2972 = vmatpush2.msra.mxu0 0.0
    %2973 = vmatprep.subr.mxu0 0.0
    %2974 = vmatpush2.msra.mxu0 0.0
    %2975 = vmatprep.subr.mxu0 0.0
    %2976 = vmatpush2.msra.mxu0 0.0
    %2977 = vmatprep.subr.mxu0 0.0
    %2978 = vmatpush2.msra.mxu0 0.0
    %2979 = vmatprep.subr.mxu0 0.0
    %2980 = vmatpush2.msra.mxu0 0.0
    %2981 = vmatprep.mubr.f32.mxu0 0.0
    %2982 = vmatmul.mubr.f32.gmra.mxu0 %v2912
    %v2983 = vpop.f32.mrf.mxu0
    %v2984 = vadd.f32 %v2910, %v2983
    %v2985 = vpop.f32.mrf.mxu0
    %2986 = vmatprep.mubr.f32.mxu0 0.0
    %2987 = vmatmul.mubr.f32.gmra.mxu0 %v2915
    %v2988 = vpop.f32.mrf.mxu0
    %v2989 = vadd.f32 %v2910, %v2988
    %v2990 = vpop.f32.mrf.mxu0
    %2991 = vdwg.mxu0
    %v2992 = vld [vmem:[#allocation2 + $0x1f3] sm:$0xff]
    %v2993 = vld [vmem:[#allocation2 + $0x1fb] sm:$0xff]
    %v2994 = vld [vmem:[#allocation2 + $0x203] sm:$0xff]
    %v2995 = vld [vmem:[#allocation2 + $0x20b] sm:$0xff]
    %v2996 = vld [vmem:[#allocation2 + $0x213] sm:$0x1]
    %v2997 = vlaneseq
    %v2998 = vshrl.u32 %v2997, 7
    %v2999 = vsub.s32 0, %v2998
    %v3000 = vrot.slane %v2996, %v2999
    %v3002 = vsel %vm527, %v2278, 0
    %v3005 = vsel %vm527, %v2279, 0
    %3007 = vmatprep.subr.mxu0 0.0
    %3008 = vmatpush1.msra.mxu0 0.0
    %3009 = vmatprep.subr.mxu0 0.0
    %3010 = vmatpush1.msra.mxu0 0.0
    %3011 = vmatprep.subr.mxu0 0.0
    %3012 = vmatpush1.msra.mxu0 0.0
    %3013 = vmatprep.subr.mxu0 0.0
    %3014 = vmatpush1.msra.mxu0 0.0
    %3015 = vmatprep.subr.mxu0 0.0
    %3016 = vmatpush1.msra.mxu0 0.0
    %3017 = vmatprep.subr.mxu0 0.0
    %3018 = vmatpush1.msra.mxu0 0.0
    %3019 = vmatprep.subr.mxu0 0.0
    %3020 = vmatpush1.msra.mxu0 0.0
    %3021 = vmatprep.subr.mxu0 0.0
    %3022 = vmatpush1.msra.mxu0 0.0
    %3023 = vmatprep.subr.mxu0 0.0
    %3024 = vmatpush1.msra.mxu0 0.0
    %3025 = vmatprep.subr.mxu0 0.0
    %3026 = vmatpush1.msra.mxu0 0.0
    %3027 = vmatprep.subr.mxu0 0.0
    %3028 = vmatpush1.msra.mxu0 0.0
    %3029 = vmatprep.subr.mxu0 0.0
    %3030 = vmatpush1.msra.mxu0 0.0
    %3031 = vmatprep.subr.mxu0 0.0
    %3032 = vmatpush1.msra.mxu0 %v2995
    %3033 = vmatprep.subr.mxu0 0.0
    %3034 = vmatpush1.msra.mxu0 %v2994
    %3035 = vmatprep.subr.mxu0 0.0
    %3036 = vmatpush1.msra.mxu0 %v2993
    %3037 = vmatprep.subr.mxu0 0.0
    %3038 = vmatpush1.msra.mxu0 %v2992
    %3039 = vmatprep.subr.mxu0 0.0
    %3040 = vmatpush2.msra.mxu0 0.0
    %3041 = vmatprep.subr.mxu0 0.0
    %3042 = vmatpush2.msra.mxu0 0.0
    %3043 = vmatprep.subr.mxu0 0.0
    %3044 = vmatpush2.msra.mxu0 0.0
    %3045 = vmatprep.subr.mxu0 0.0
    %3046 = vmatpush2.msra.mxu0 0.0
    %3047 = vmatprep.subr.mxu0 0.0
    %3048 = vmatpush2.msra.mxu0 0.0
    %3049 = vmatprep.subr.mxu0 0.0
    %3050 = vmatpush2.msra.mxu0 0.0
    %3051 = vmatprep.subr.mxu0 0.0
    %3052 = vmatpush2.msra.mxu0 0.0
    %3053 = vmatprep.subr.mxu0 0.0
    %3054 = vmatpush2.msra.mxu0 0.0
    %3055 = vmatprep.subr.mxu0 0.0
    %3056 = vmatpush2.msra.mxu0 0.0
    %3057 = vmatprep.subr.mxu0 0.0
    %3058 = vmatpush2.msra.mxu0 0.0
    %3059 = vmatprep.subr.mxu0 0.0
    %3060 = vmatpush2.msra.mxu0 0.0
    %3061 = vmatprep.subr.mxu0 0.0
    %3062 = vmatpush2.msra.mxu0 0.0
    %3063 = vmatprep.subr.mxu0 0.0
    %3064 = vmatpush2.msra.mxu0 0.0
    %3065 = vmatprep.subr.mxu0 0.0
    %3066 = vmatpush2.msra.mxu0 0.0
    %3067 = vmatprep.subr.mxu0 0.0
    %3068 = vmatpush2.msra.mxu0 0.0
    %3069 = vmatprep.subr.mxu0 0.0
    %3070 = vmatpush2.msra.mxu0 0.0
    %3071 = vmatprep.mubr.f32.mxu0 0.0
    %3072 = vmatmul.mubr.f32.gmra.mxu0 %v3002
    %v3073 = vpop.f32.mrf.mxu0
    %v3074 = vadd.f32 %v3000, %v3073
    %v3075 = vpop.f32.mrf.mxu0
    %3076 = vmatprep.mubr.f32.mxu0 0.0
    %3077 = vmatmul.mubr.f32.gmra.mxu0 %v3005
    %v3078 = vpop.f32.mrf.mxu0
    %v3079 = vadd.f32 %v3000, %v3078
    %v3080 = vpop.f32.mrf.mxu0
    %3081 = vdwg.mxu0
    %v3082 = vld [vmem:[#allocation2 + $0x214] sm:$0xff]
    %v3083 = vld [vmem:[#allocation2 + $0x21c] sm:$0xff]
    %v3084 = vld [vmem:[#allocation2 + $0x224] sm:$0xff]
    %v3085 = vld [vmem:[#allocation2 + $0x22c] sm:$0xff]
    %v3086 = vld [vmem:[#allocation2 + $0x234] sm:$0x1]
    %v3087 = vmul.f32 %v2984, %v617
    %v3088 = vmul.f32 %v2989, %v617
    %v3089 = vmul.f32 %v2984, %v621
    %v3090 = vmul.f32 %v2989, %v621
    %v3091 = vmul.f32 %v2984, %v625
    %v3092 = vmul.f32 %v2989, %v625
    %v3093 = vmul.f32 %v2984, %v629
    %v3094 = vmul.f32 %v2989, %v629
    %v3096 = vsel %vm527, %v3087, 0
    %v3099 = vsel %vm527, %v3088, 0
    %v3102 = vsel %vm527, %v3089, 0
    %v3105 = vsel %vm527, %v3090, 0
    %v3108 = vsel %vm527, %v3091, 0
    %v3111 = vsel %vm527, %v3092, 0
    %v3114 = vsel %vm527, %v3093, 0
    %v3117 = vsel %vm527, %v3094, 0
    %v3120 = vsel %vm527, %v3074, 0
    %v3123 = vsel %vm527, %v3079, 0
    %3125 = vmatprep.subr.mxu0 0.0
    %3126 = vmatpush1.xpose.msra.mxu0 0.0
    %3127 = vmatprep.subr.mxu0 0.0
    %3128 = vmatpush1.xpose.msra.mxu0 0.0
    %3129 = vmatprep.subr.mxu0 0.0
    %3130 = vmatpush1.xpose.msra.mxu0 0.0
    %3131 = vmatprep.subr.mxu0 0.0
    %3132 = vmatpush1.xpose.msra.mxu0 0.0
    %3133 = vmatprep.subr.mxu0 0.0
    %3134 = vmatpush1.xpose.msra.mxu0 0.0
    %3135 = vmatprep.subr.mxu0 0.0
    %3136 = vmatpush1.xpose.msra.mxu0 0.0
    %3137 = vmatprep.subr.mxu0 0.0
    %3138 = vmatpush1.xpose.msra.mxu0 0.0
    %3139 = vmatprep.subr.mxu0 0.0
    %3140 = vmatpush1.xpose.msra.mxu0 0.0
    %3141 = vmatprep.subr.mxu0 0.0
    %3142 = vmatpush1.xpose.msra.mxu0 0.0
    %3143 = vmatprep.subr.mxu0 0.0
    %3144 = vmatpush1.xpose.msra.mxu0 0.0
    %3145 = vmatprep.subr.mxu0 0.0
    %3146 = vmatpush1.xpose.msra.mxu0 0.0
    %3147 = vmatprep.subr.mxu0 0.0
    %3148 = vmatpush1.xpose.msra.mxu0 0.0
    %3149 = vmatprep.subr.mxu0 0.0
    %3150 = vmatpush1.xpose.msra.mxu0 0.0
    %3151 = vmatprep.subr.mxu0 0.0
    %3152 = vmatpush1.xpose.msra.mxu0 0.0
    %3153 = vmatprep.subr.mxu0 0.0
    %3154 = vmatpush1.xpose.msra.mxu0 %v3123
    %3155 = vmatprep.subr.mxu0 0.0
    %3156 = vmatpush1.xpose.msra.mxu0 %v3120
    %3157 = vmatprep.subr.mxu0 0.0
    %3158 = vmatpush2.xpose.msra.mxu0 0.0
    %3159 = vmatprep.subr.mxu0 0.0
    %3160 = vmatpush2.xpose.msra.mxu0 0.0
    %3161 = vmatprep.subr.mxu0 0.0
    %3162 = vmatpush2.xpose.msra.mxu0 0.0
    %3163 = vmatprep.subr.mxu0 0.0
    %3164 = vmatpush2.xpose.msra.mxu0 0.0
    %3165 = vmatprep.subr.mxu0 0.0
    %3166 = vmatpush2.xpose.msra.mxu0 0.0
    %3167 = vmatprep.subr.mxu0 0.0
    %3168 = vmatpush2.xpose.msra.mxu0 0.0
    %3169 = vmatprep.subr.mxu0 0.0
    %3170 = vmatpush2.xpose.msra.mxu0 0.0
    %3171 = vmatprep.subr.mxu0 0.0
    %3172 = vmatpush2.xpose.msra.mxu0 0.0
    %3173 = vmatprep.subr.mxu0 0.0
    %3174 = vmatpush2.xpose.msra.mxu0 0.0
    %3175 = vmatprep.subr.mxu0 0.0
    %3176 = vmatpush2.xpose.msra.mxu0 0.0
    %3177 = vmatprep.subr.mxu0 0.0
    %3178 = vmatpush2.xpose.msra.mxu0 0.0
    %3179 = vmatprep.subr.mxu0 0.0
    %3180 = vmatpush2.xpose.msra.mxu0 0.0
    %3181 = vmatprep.subr.mxu0 0.0
    %3182 = vmatpush2.xpose.msra.mxu0 0.0
    %3183 = vmatprep.subr.mxu0 0.0
    %3184 = vmatpush2.xpose.msra.mxu0 0.0
    %3185 = vmatprep.subr.mxu0 0.0
    %3186 = vmatpush2.xpose.msra.mxu0 0.0
    %3187 = vmatprep.subr.mxu0 0.0
    %3188 = vmatpush2.xpose.msra.mxu0 0.0
    %3189 = vmatprep.mubr.f32.mxu0 0.0
    %3190 = vmatmul.mubr.f32.gmra.mxu0 %v3096
    %v3191 = vpop.f32.mrf.mxu0
    %v3192 = vadd.f32 0.0, %v3191
    %v3193 = vpop.f32.mrf.mxu0
    %3194 = vmatprep.mubr.f32.mxu0 0.0
    %3195 = vmatmul.mubr.f32.gmra.mxu0 %v3099
    %v3196 = vpop.f32.mrf.mxu0
    %v3197 = vadd.f32 0.0, %v3196
    %v3198 = vpop.f32.mrf.mxu0
    %3199 = vmatprep.mubr.f32.mxu0 0.0
    %3200 = vmatmul.mubr.f32.gmra.mxu0 %v3102
    %v3201 = vpop.f32.mrf.mxu0
    %v3202 = vadd.f32 0.0, %v3201
    %v3203 = vpop.f32.mrf.mxu0
    %3204 = vmatprep.mubr.f32.mxu0 0.0
    %3205 = vmatmul.mubr.f32.gmra.mxu0 %v3105
    %v3206 = vpop.f32.mrf.mxu0
    %v3207 = vadd.f32 0.0, %v3206
    %v3208 = vpop.f32.mrf.mxu0
    %3209 = vmatprep.mubr.f32.mxu0 0.0
    %3210 = vmatmul.mubr.f32.gmra.mxu0 %v3108
    %v3211 = vpop.f32.mrf.mxu0
    %v3212 = vadd.f32 0.0, %v3211
    %v3213 = vpop.f32.mrf.mxu0
    %3214 = vmatprep.mubr.f32.mxu0 0.0
    %3215 = vmatmul.mubr.f32.gmra.mxu0 %v3111
    %v3216 = vpop.f32.mrf.mxu0
    %v3217 = vadd.f32 0.0, %v3216
    %v3218 = vpop.f32.mrf.mxu0
    %3219 = vmatprep.mubr.f32.mxu0 0.0
    %3220 = vmatmul.mubr.f32.gmra.mxu0 %v3114
    %v3221 = vpop.f32.mrf.mxu0
    %v3222 = vadd.f32 0.0, %v3221
    %v3223 = vpop.f32.mrf.mxu0
    %3224 = vmatprep.mubr.f32.mxu0 0.0
    %3225 = vmatmul.mubr.f32.gmra.mxu0 %v3117
    %v3226 = vpop.f32.mrf.mxu0
    %v3227 = vadd.f32 0.0, %v3226
    %v3228 = vpop.f32.mrf.mxu0
    %3229 = vdwg.mxu0
    %v3230 = vmul.f32 %v3192, 0.35355338
    %v3231 = vmul.f32 %v3197, 0.35355338
    %v3232 = vmul.f32 %v3202, 0.35355338
    %v3233 = vmul.f32 %v3207, 0.35355338
    %v3234 = vmul.f32 %v3212, 0.35355338
    %v3235 = vmul.f32 %v3217, 0.35355338
    %v3236 = vmul.f32 %v3222, 0.35355338
    %v3237 = vmul.f32 %v3227, 0.35355338
    %v3238 = vadd.f32 %v3230, %v269
    %v3239 = vadd.f32 %v3231, %v270
    %v3240 = vadd.f32 %v3232, %v269
    %v3241 = vadd.f32 %v3233, %v270
    %v3242 = vadd.f32 %v3234, %v269
    %v3243 = vadd.f32 %v3235, %v270
    %v3244 = vadd.f32 %v3236, %v269
    %v3245 = vadd.f32 %v3237, %v270
    %v3246 = vsel %vm93, %v3238, -inf
    %3247 = vmax.xlane.f32.xlu0 %v3246
    %v3248 = vpop.xlane.xlu0 %3247
    %v3249 = vsel %vm93, %v3239, -inf
    %3250 = vmax.xlane.f32.xlu0 %v3249
    %v3251 = vpop.xlane.xlu0 %3250
    %v3252 = vsel %vm93, %v3240, -inf
    %3253 = vmax.xlane.f32.xlu0 %v3252
    %v3254 = vpop.xlane.xlu0 %3253
    %v3255 = vsel %vm93, %v3241, -inf
    %3256 = vmax.xlane.f32.xlu0 %v3255
    %v3257 = vpop.xlane.xlu0 %3256
    %v3258 = vsel %vm93, %v3242, -inf
    %3259 = vmax.xlane.f32.xlu0 %v3258
    %v3260 = vpop.xlane.xlu0 %3259
    %v3261 = vsel %vm93, %v3243, -inf
    %3262 = vmax.xlane.f32.xlu0 %v3261
    %v3263 = vpop.xlane.xlu0 %3262
    %v3264 = vsel %vm93, %v3244, -inf
    %3265 = vmax.xlane.f32.xlu0 %v3264
    %v3266 = vpop.xlane.xlu0 %3265
    %v3267 = vsel %vm93, %v3245, -inf
    %3268 = vmax.xlane.f32.xlu0 %v3267
    %v3269 = vpop.xlane.xlu0 %3268
    %v3270 = vsub.f32 %v3238, %v3248
    %v3271 = vsub.f32 %v3239, %v3251
    %v3272 = vsub.f32 %v3240, %v3254
    %v3273 = vsub.f32 %v3241, %v3257
    %v3274 = vsub.f32 %v3242, %v3260
    %v3275 = vsub.f32 %v3243, %v3263
    %v3276 = vsub.f32 %v3244, %v3266
    %v3277 = vsub.f32 %v3245, %v3269
    %v3278 = vmul.f32 %v3270, 1.442695
    %v3279 = vpow.pop %v3278
    %v3280 = vmul.f32 %v3271, 1.442695
    %v3281 = vpow.pop %v3280
    %v3282 = vmul.f32 %v3272, 1.442695
    %v3283 = vpow.pop %v3282
    %v3284 = vmul.f32 %v3273, 1.442695
    %v3285 = vpow.pop %v3284
    %v3286 = vmul.f32 %v3274, 1.442695
    %v3287 = vpow.pop %v3286
    %v3288 = vmul.f32 %v3275, 1.442695
    %v3289 = vpow.pop %v3288
    %v3290 = vmul.f32 %v3276, 1.442695
    %v3291 = vpow.pop %v3290
    %v3292 = vmul.f32 %v3277, 1.442695
    %v3293 = vpow.pop %v3292
    %v3294 = vsel %vm93, %v3279, 0.0
    %3295 = vadd.xlane.f32.xlu0 %v3294
    %v3296 = vpop.xlane.xlu0 %3295
    %v3297 = vsel %vm93, %v3281, 0.0
    %3298 = vadd.xlane.f32.xlu0 %v3297
    %v3299 = vpop.xlane.xlu0 %3298
    %v3300 = vsel %vm93, %v3283, 0.0
    %3301 = vadd.xlane.f32.xlu0 %v3300
    %v3302 = vpop.xlane.xlu0 %3301
    %v3303 = vsel %vm93, %v3285, 0.0
    %3304 = vadd.xlane.f32.xlu0 %v3303
    %v3305 = vpop.xlane.xlu0 %3304
    %v3306 = vsel %vm93, %v3287, 0.0
    %3307 = vadd.xlane.f32.xlu0 %v3306
    %v3308 = vpop.xlane.xlu0 %3307
    %v3309 = vsel %vm93, %v3289, 0.0
    %3310 = vadd.xlane.f32.xlu0 %v3309
    %v3311 = vpop.xlane.xlu0 %3310
    %v3312 = vsel %vm93, %v3291, 0.0
    %3313 = vadd.xlane.f32.xlu0 %v3312
    %v3314 = vpop.xlane.xlu0 %3313
    %v3315 = vsel %vm93, %v3293, 0.0
    %3316 = vadd.xlane.f32.xlu0 %v3315
    %v3317 = vpop.xlane.xlu0 %3316
    %v3318 = vrcp.pop %v3296
    %v3319 = vrcp.pop %v3299
    %v3320 = vrcp.pop %v3302
    %v3321 = vrcp.pop %v3305
    %v3322 = vrcp.pop %v3308
    %v3323 = vrcp.pop %v3311
    %v3324 = vrcp.pop %v3314
    %v3325 = vrcp.pop %v3317
    %v3326 = vmul.f32 %v3279, %v3318
    %v3327 = vmul.f32 %v3281, %v3319
    %v3328 = vmul.f32 %v3283, %v3320
    %v3329 = vmul.f32 %v3285, %v3321
    %v3330 = vmul.f32 %v3287, %v3322
    %v3331 = vmul.f32 %v3289, %v3323
    %v3332 = vmul.f32 %v3291, %v3324
    %v3333 = vmul.f32 %v3293, %v3325
    %3334 = vrot.lane.b32.xlu0 %v3074, 96
    %v3335 = vpop.permute.xlu0 %3334
    %3336 = vrot.lane.b32.xlu0 %v3079, 96
    %v3337 = vpop.permute.xlu0 %3336
    %v3341 = vsel %vm93, %v3326, 0
    %v3344 = vsel %vm93, %v3327, 0
    %v3347 = vsel %vm93, %v3328, 0
    %v3350 = vsel %vm93, %v3329, 0
    %v3353 = vsel %vm93, %v3330, 0
    %v3356 = vsel %vm93, %v3331, 0
    %v3359 = vsel %vm93, %v3332, 0
    %v3362 = vsel %vm93, %v3333, 0
    %3364 = vmatprep.subr.mxu0 0.0
    %3365 = vmatpush1.msra.mxu0 0.0
    %3366 = vmatprep.subr.mxu0 0.0
    %3367 = vmatpush1.msra.mxu0 0.0
    %3368 = vmatprep.subr.mxu0 0.0
    %3369 = vmatpush1.msra.mxu0 0.0
    %3370 = vmatprep.subr.mxu0 0.0
    %3371 = vmatpush1.msra.mxu0 0.0
    %3372 = vmatprep.subr.mxu0 0.0
    %3373 = vmatpush1.msra.mxu0 0.0
    %3374 = vmatprep.subr.mxu0 0.0
    %3375 = vmatpush1.msra.mxu0 0.0
    %3376 = vmatprep.subr.mxu0 0.0
    %3377 = vmatpush1.msra.mxu0 0.0
    %3378 = vmatprep.subr.mxu0 0.0
    %3379 = vmatpush1.msra.mxu0 0.0
    %3380 = vmatprep.subr.mxu0 0.0
    %3381 = vmatpush1.msra.mxu0 0.0
    %3382 = vmatprep.subr.mxu0 0.0
    %3383 = vmatpush1.msra.mxu0 0.0
    %3384 = vmatprep.subr.mxu0 0.0
    %3385 = vmatpush1.msra.mxu0 0.0
    %3386 = vmatprep.subr.mxu0 0.0
    %3387 = vmatpush1.msra.mxu0 0.0
    %3388 = vmatprep.subr.mxu0 0.0
    %3389 = vmatpush1.msra.mxu0 0.0
    %3390 = vmatprep.subr.mxu0 0.0
    %3391 = vmatpush1.msra.mxu0 0.0
    %3392 = vmatprep.subr.mxu0 0.0
    %3393 = vmatpush1.msra.mxu0 %v3337
    %3394 = vmatprep.subr.mxu0 0.0
    %3395 = vmatpush1.msra.mxu0 %v3335
    %3396 = vmatprep.subr.mxu0 0.0
    %3397 = vmatpush2.msra.mxu0 0.0
    %3398 = vmatprep.subr.mxu0 0.0
    %3399 = vmatpush2.msra.mxu0 0.0
    %3400 = vmatprep.subr.mxu0 0.0
    %3401 = vmatpush2.msra.mxu0 0.0
    %3402 = vmatprep.subr.mxu0 0.0
    %3403 = vmatpush2.msra.mxu0 0.0
    %3404 = vmatprep.subr.mxu0 0.0
    %3405 = vmatpush2.msra.mxu0 0.0
    %3406 = vmatprep.subr.mxu0 0.0
    %3407 = vmatpush2.msra.mxu0 0.0
    %3408 = vmatprep.subr.mxu0 0.0
    %3409 = vmatpush2.msra.mxu0 0.0
    %3410 = vmatprep.subr.mxu0 0.0
    %3411 = vmatpush2.msra.mxu0 0.0
    %3412 = vmatprep.subr.mxu0 0.0
    %3413 = vmatpush2.msra.mxu0 0.0
    %3414 = vmatprep.subr.mxu0 0.0
    %3415 = vmatpush2.msra.mxu0 0.0
    %3416 = vmatprep.subr.mxu0 0.0
    %3417 = vmatpush2.msra.mxu0 0.0
    %3418 = vmatprep.subr.mxu0 0.0
    %3419 = vmatpush2.msra.mxu0 0.0
    %3420 = vmatprep.subr.mxu0 0.0
    %3421 = vmatpush2.msra.mxu0 0.0
    %3422 = vmatprep.subr.mxu0 0.0
    %3423 = vmatpush2.msra.mxu0 0.0
    %3424 = vmatprep.subr.mxu0 0.0
    %3425 = vmatpush2.msra.mxu0 0.0
    %3426 = vmatprep.subr.mxu0 0.0
    %3427 = vmatpush2.msra.mxu0 0.0
    %3428 = vmatprep.mubr.f32.mxu0 0.0
    %3429 = vmatmul.mubr.f32.gmra.mxu0 %v3341
    %v3430 = vpop.f32.mrf.mxu0
    %v3431 = vadd.f32 0.0, %v3430
    %v3432 = vpop.f32.mrf.mxu0
    %3433 = vmatprep.mubr.f32.mxu0 0.0
    %3434 = vmatmul.mubr.f32.gmra.mxu0 %v3344
    %v3435 = vpop.f32.mrf.mxu0
    %v3436 = vadd.f32 0.0, %v3435
    %v3437 = vpop.f32.mrf.mxu0
    %3438 = vmatprep.mubr.f32.mxu0 0.0
    %3439 = vmatmul.mubr.f32.gmra.mxu0 %v3347
    %v3440 = vpop.f32.mrf.mxu0
    %v3441 = vadd.f32 0.0, %v3440
    %v3442 = vpop.f32.mrf.mxu0
    %3443 = vmatprep.mubr.f32.mxu0 0.0
    %3444 = vmatmul.mubr.f32.gmra.mxu0 %v3350
    %v3445 = vpop.f32.mrf.mxu0
    %v3446 = vadd.f32 0.0, %v3445
    %v3447 = vpop.f32.mrf.mxu0
    %3448 = vmatprep.mubr.f32.mxu0 0.0
    %3449 = vmatmul.mubr.f32.gmra.mxu0 %v3353
    %v3450 = vpop.f32.mrf.mxu0
    %v3451 = vadd.f32 0.0, %v3450
    %v3452 = vpop.f32.mrf.mxu0
    %3453 = vmatprep.mubr.f32.mxu0 0.0
    %3454 = vmatmul.mubr.f32.gmra.mxu0 %v3356
    %v3455 = vpop.f32.mrf.mxu0
    %v3456 = vadd.f32 0.0, %v3455
    %v3457 = vpop.f32.mrf.mxu0
    %3458 = vmatprep.mubr.f32.mxu0 0.0
    %3459 = vmatmul.mubr.f32.gmra.mxu0 %v3359
    %v3460 = vpop.f32.mrf.mxu0
    %v3461 = vadd.f32 0.0, %v3460
    %v3462 = vpop.f32.mrf.mxu0
    %3463 = vmatprep.mubr.f32.mxu0 0.0
    %3464 = vmatmul.mubr.f32.gmra.mxu0 %v3362
    %v3465 = vpop.f32.mrf.mxu0
    %v3466 = vadd.f32 0.0, %v3465
    %v3467 = vpop.f32.mrf.mxu0
    %3468 = vdwg.mxu0
    %v3469 = vmul.f32 %v3431, %v617
    %v3470 = vmul.f32 %v3436, %v617
    %v3471 = vmul.f32 %v3441, %v621
    %v3472 = vmul.f32 %v3446, %v621
    %v3473 = vmul.f32 %v3451, %v625
    %v3474 = vmul.f32 %v3456, %v625
    %v3475 = vmul.f32 %v3461, %v629
    %v3476 = vmul.f32 %v3466, %v629
    %v3477 = vadd.f32 %v3469, %v3471
    %v3478 = vadd.f32 %v3470, %v3472
    %v3479 = vadd.f32 %v3477, %v3473
    %v3480 = vadd.f32 %v3478, %v3474
    %v3481 = vadd.f32 %v3479, %v3475
    %v3482 = vadd.f32 %v3480, %v3476
    %v3483 = vlaneseq
    %v3484 = vshrl.u32 %v3483, 7
    %v3485 = vsub.s32 0, %v3484
    %v3486 = vrot.slane %v3086, %v3485
    %v3488 = vsel %vm527, %v3481, 0
    %v3491 = vsel %vm527, %v3482, 0
    %3493 = vmatprep.subr.mxu0 0.0
    %3494 = vmatpush1.msra.mxu0 0.0
    %3495 = vmatprep.subr.mxu0 0.0
    %3496 = vmatpush1.msra.mxu0 0.0
    %3497 = vmatprep.subr.mxu0 0.0
    %3498 = vmatpush1.msra.mxu0 0.0
    %3499 = vmatprep.subr.mxu0 0.0
    %3500 = vmatpush1.msra.mxu0 0.0
    %3501 = vmatprep.subr.mxu0 0.0
    %3502 = vmatpush1.msra.mxu0 0.0
    %3503 = vmatprep.subr.mxu0 0.0
    %3504 = vmatpush1.msra.mxu0 0.0
    %3505 = vmatprep.subr.mxu0 0.0
    %3506 = vmatpush1.msra.mxu0 0.0
    %3507 = vmatprep.subr.mxu0 0.0
    %3508 = vmatpush1.msra.mxu0 0.0
    %3509 = vmatprep.subr.mxu0 0.0
    %3510 = vmatpush1.msra.mxu0 0.0
    %3511 = vmatprep.subr.mxu0 0.0
    %3512 = vmatpush1.msra.mxu0 0.0
    %3513 = vmatprep.subr.mxu0 0.0
    %3514 = vmatpush1.msra.mxu0 0.0
    %3515 = vmatprep.subr.mxu0 0.0
    %3516 = vmatpush1.msra.mxu0 0.0
    %3517 = vmatprep.subr.mxu0 0.0
    %3518 = vmatpush1.msra.mxu0 %v3085
    %3519 = vmatprep.subr.mxu0 0.0
    %3520 = vmatpush1.msra.mxu0 %v3084
    %3521 = vmatprep.subr.mxu0 0.0
    %3522 = vmatpush1.msra.mxu0 %v3083
    %3523 = vmatprep.subr.mxu0 0.0
    %3524 = vmatpush1.msra.mxu0 %v3082
    %3525 = vmatprep.subr.mxu0 0.0
    %3526 = vmatpush2.msra.mxu0 0.0
    %3527 = vmatprep.subr.mxu0 0.0
    %3528 = vmatpush2.msra.mxu0 0.0
    %3529 = vmatprep.subr.mxu0 0.0
    %3530 = vmatpush2.msra.mxu0 0.0
    %3531 = vmatprep.subr.mxu0 0.0
    %3532 = vmatpush2.msra.mxu0 0.0
    %3533 = vmatprep.subr.mxu0 0.0
    %3534 = vmatpush2.msra.mxu0 0.0
    %3535 = vmatprep.subr.mxu0 0.0
    %3536 = vmatpush2.msra.mxu0 0.0
    %3537 = vmatprep.subr.mxu0 0.0
    %3538 = vmatpush2.msra.mxu0 0.0
    %3539 = vmatprep.subr.mxu0 0.0
    %3540 = vmatpush2.msra.mxu0 0.0
    %3541 = vmatprep.subr.mxu0 0.0
    %3542 = vmatpush2.msra.mxu0 0.0
    %3543 = vmatprep.subr.mxu0 0.0
    %3544 = vmatpush2.msra.mxu0 0.0
    %3545 = vmatprep.subr.mxu0 0.0
    %3546 = vmatpush2.msra.mxu0 0.0
    %3547 = vmatprep.subr.mxu0 0.0
    %3548 = vmatpush2.msra.mxu0 0.0
    %3549 = vmatprep.subr.mxu0 0.0
    %3550 = vmatpush2.msra.mxu0 0.0
    %3551 = vmatprep.subr.mxu0 0.0
    %3552 = vmatpush2.msra.mxu0 0.0
    %3553 = vmatprep.subr.mxu0 0.0
    %3554 = vmatpush2.msra.mxu0 0.0
    %3555 = vmatprep.subr.mxu0 0.0
    %3556 = vmatpush2.msra.mxu0 0.0
    %3557 = vmatprep.mubr.f32.mxu0 0.0
    %3558 = vmatmul.mubr.f32.gmra.mxu0 %v3488
    %v3559 = vpop.f32.mrf.mxu0
    %v3560 = vadd.f32 %v3486, %v3559
    %v3561 = vpop.f32.mrf.mxu0
    %3562 = vmatprep.mubr.f32.mxu0 0.0
    %3563 = vmatmul.mubr.f32.gmra.mxu0 %v3491
    %v3564 = vpop.f32.mrf.mxu0
    %v3565 = vadd.f32 %v3486, %v3564
    %v3566 = vpop.f32.mrf.mxu0
    %3567 = vdwg.mxu0
    %v3568 = vadd.f32 %v2900, %v3560
    %v3569 = vadd.f32 %v2901, %v3565
    %v3570 = vld [vmem:[#allocation2 + $0x299] sm:$0x1]
    %v3571 = vld [vmem:[#allocation2 + $0x29a] sm:$0x1]
    %v3572 = vsel %vm527, %v3568, 0.0
    %3573 = vadd.xlane.f32.xlu0 %v3572
    %v3574 = vpop.xlane.xlu0 %3573
    %v3575 = vsel %vm527, %v3569, 0.0
    %3576 = vadd.xlane.f32.xlu0 %v3575
    %v3577 = vpop.xlane.xlu0 %3576
    %v3578 = vmul.f32 %v3574, %v1129
    %v3579 = vmul.f32 %v3577, %v1129
    %v3580 = vsub.f32 %v3568, %v3578
    %v3581 = vsub.f32 %v3569, %v3579
    %v3582 = vmul.f32 %v3580, %v3580
    %v3583 = vmul.f32 %v3581, %v3581
    %v3584 = vsel %vm527, %v3582, 0.0
    %3585 = vadd.xlane.f32.xlu0 %v3584
    %v3586 = vpop.xlane.xlu0 %3585
    %v3587 = vsel %vm527, %v3583, 0.0
    %3588 = vadd.xlane.f32.xlu0 %v3587
    %v3589 = vpop.xlane.xlu0 %3588
    %v3590 = vmul.f32 %v3586, %v1129
    %v3591 = vmul.f32 %v3589, %v1129
    %v3592 = vadd.f32 %v3590, 1e-05
    %v3593 = vadd.f32 %v3591, 1e-05
    %v3594 = vrsqrt.pop %v3592
    %v3595 = vrsqrt.pop %v3593
    %v3596 = vmul.f32 %v3580, %v3594
    %v3597 = vmul.f32 %v3581, %v3595
    %v3598 = vlaneseq
    %v3599 = vshrl.u32 %v3598, 7
    %v3600 = vsub.s32 0, %v3599
    %v3601 = vrot.slane %v3570, %v3600
    %v3602 = vmul.f32 %v3596, %v3601
    %v3603 = vmul.f32 %v3597, %v3601
    %v3604 = vlaneseq
    %v3605 = vshrl.u32 %v3604, 7
    %v3606 = vsub.s32 0, %v3605
    %v3607 = vrot.slane %v3571, %v3606
    %v3608 = vadd.f32 %v3602, %v3607
    %v3609 = vadd.f32 %v3603, %v3607
    %v3610 = vld [vmem:[#allocation2 + $0x235] sm:$0xff]
    %v3611 = vld [vmem:[#allocation2 + $0x23d] sm:$0xff]
    %v3612 = vld [vmem:[#allocation2 + $0x245] sm:$0xff]
    %v3613 = vld [vmem:[#allocation2 + $0x24d] sm:$0xff]
    %v3614 = vld [vmem:[#allocation2 + $0x255] sm:$0x1]
    %v3615 = vlaneseq
    %v3616 = vshrl.u32 %v3615, 7
    %v3617 = vsub.s32 0, %v3616
    %v3618 = vrot.slane %v3614, %v3617
    %v3620 = vsel %vm527, %v3608, 0
    %v3623 = vsel %vm527, %v3609, 0
    %3625 = vmatprep.subr.mxu0 0.0
    %3626 = vmatpush1.msra.mxu0 0.0
    %3627 = vmatprep.subr.mxu0 0.0
    %3628 = vmatpush1.msra.mxu0 0.0
    %3629 = vmatprep.subr.mxu0 0.0
    %3630 = vmatpush1.msra.mxu0 0.0
    %3631 = vmatprep.subr.mxu0 0.0
    %3632 = vmatpush1.msra.mxu0 0.0
    %3633 = vmatprep.subr.mxu0 0.0
    %3634 = vmatpush1.msra.mxu0 0.0
    %3635 = vmatprep.subr.mxu0 0.0
    %3636 = vmatpush1.msra.mxu0 0.0
    %3637 = vmatprep.subr.mxu0 0.0
    %3638 = vmatpush1.msra.mxu0 0.0
    %3639 = vmatprep.subr.mxu0 0.0
    %3640 = vmatpush1.msra.mxu0 0.0
    %3641 = vmatprep.subr.mxu0 0.0
    %3642 = vmatpush1.msra.mxu0 0.0
    %3643 = vmatprep.subr.mxu0 0.0
    %3644 = vmatpush1.msra.mxu0 0.0
    %3645 = vmatprep.subr.mxu0 0.0
    %3646 = vmatpush1.msra.mxu0 0.0
    %3647 = vmatprep.subr.mxu0 0.0
    %3648 = vmatpush1.msra.mxu0 0.0
    %3649 = vmatprep.subr.mxu0 0.0
    %3650 = vmatpush1.msra.mxu0 %v3613
    %3651 = vmatprep.subr.mxu0 0.0
    %3652 = vmatpush1.msra.mxu0 %v3612
    %3653 = vmatprep.subr.mxu0 0.0
    %3654 = vmatpush1.msra.mxu0 %v3611
    %3655 = vmatprep.subr.mxu0 0.0
    %3656 = vmatpush1.msra.mxu0 %v3610
    %3657 = vmatprep.subr.mxu0 0.0
    %3658 = vmatpush2.msra.mxu0 0.0
    %3659 = vmatprep.subr.mxu0 0.0
    %3660 = vmatpush2.msra.mxu0 0.0
    %3661 = vmatprep.subr.mxu0 0.0
    %3662 = vmatpush2.msra.mxu0 0.0
    %3663 = vmatprep.subr.mxu0 0.0
    %3664 = vmatpush2.msra.mxu0 0.0
    %3665 = vmatprep.subr.mxu0 0.0
    %3666 = vmatpush2.msra.mxu0 0.0
    %3667 = vmatprep.subr.mxu0 0.0
    %3668 = vmatpush2.msra.mxu0 0.0
    %3669 = vmatprep.subr.mxu0 0.0
    %3670 = vmatpush2.msra.mxu0 0.0
    %3671 = vmatprep.subr.mxu0 0.0
    %3672 = vmatpush2.msra.mxu0 0.0
    %3673 = vmatprep.subr.mxu0 0.0
    %3674 = vmatpush2.msra.mxu0 0.0
    %3675 = vmatprep.subr.mxu0 0.0
    %3676 = vmatpush2.msra.mxu0 0.0
    %3677 = vmatprep.subr.mxu0 0.0
    %3678 = vmatpush2.msra.mxu0 0.0
    %3679 = vmatprep.subr.mxu0 0.0
    %3680 = vmatpush2.msra.mxu0 0.0
    %3681 = vmatprep.subr.mxu0 0.0
    %3682 = vmatpush2.msra.mxu0 0.0
    %3683 = vmatprep.subr.mxu0 0.0
    %3684 = vmatpush2.msra.mxu0 0.0
    %3685 = vmatprep.subr.mxu0 0.0
    %3686 = vmatpush2.msra.mxu0 0.0
    %3687 = vmatprep.subr.mxu0 0.0
    %3688 = vmatpush2.msra.mxu0 0.0
    %3689 = vmatprep.mubr.f32.mxu0 0.0
    %3690 = vmatmul.mubr.f32.gmra.mxu0 %v3620
    %v3691 = vpop.f32.mrf.mxu0
    %v3692 = vadd.f32 %v3618, %v3691
    %v3693 = vpop.f32.mrf.mxu0
    %3694 = vmatprep.mubr.f32.mxu0 0.0
    %3695 = vmatmul.mubr.f32.gmra.mxu0 %v3623
    %v3696 = vpop.f32.mrf.mxu0
    %v3697 = vadd.f32 %v3618, %v3696
    %v3698 = vpop.f32.mrf.mxu0
    %3699 = vdwg.mxu0
    %v3700 = vmax.f32 %v3692, 0.0
    %v3701 = vmax.f32 %v3697, 0.0
    %v3702 = vld [vmem:[#allocation2 + $0x256] sm:$0xff]
    %v3703 = vld [vmem:[#allocation2 + $0x25e] sm:$0xff]
    %v3704 = vld [vmem:[#allocation2 + $0x266] sm:$0xff]
    %v3705 = vld [vmem:[#allocation2 + $0x26e] sm:$0xff]
    %v3706 = vld [vmem:[#allocation2 + $0x276] sm:$0xff]
    %v3707 = vld [vmem:[#allocation2 + $0x27e] sm:$0xff]
    %v3708 = vld [vmem:[#allocation2 + $0x286] sm:$0xff]
    %v3709 = vld [vmem:[#allocation2 + $0x28e] sm:$0xff]
    %v3710 = vld [vmem:[#allocation2 + $0x296] sm:$0x1]
    %v3711 = vlaneseq
    %v3712 = vshrl.u32 %v3711, 7
    %v3713 = vsub.s32 0, %v3712
    %v3714 = vrot.slane %v3710, %v3713
    %v3716 = vsel %vm343, %v3700, 0
    %v3719 = vsel %vm343, %v3701, 0
    %3721 = vmatprep.subr.mxu0 0.0
    %3722 = vmatpush1.msra.mxu0 0.0
    %3723 = vmatprep.subr.mxu0 0.0
    %3724 = vmatpush1.msra.mxu0 0.0
    %3725 = vmatprep.subr.mxu0 0.0
    %3726 = vmatpush1.msra.mxu0 0.0
    %3727 = vmatprep.subr.mxu0 0.0
    %3728 = vmatpush1.msra.mxu0 0.0
    %3729 = vmatprep.subr.mxu0 0.0
    %3730 = vmatpush1.msra.mxu0 0.0
    %3731 = vmatprep.subr.mxu0 0.0
    %3732 = vmatpush1.msra.mxu0 0.0
    %3733 = vmatprep.subr.mxu0 0.0
    %3734 = vmatpush1.msra.mxu0 0.0
    %3735 = vmatprep.subr.mxu0 0.0
    %3736 = vmatpush1.msra.mxu0 0.0
    %3737 = vmatprep.subr.mxu0 0.0
    %3738 = vmatpush1.msra.mxu0 %v3709
    %3739 = vmatprep.subr.mxu0 0.0
    %3740 = vmatpush1.msra.mxu0 %v3708
    %3741 = vmatprep.subr.mxu0 0.0
    %3742 = vmatpush1.msra.mxu0 %v3707
    %3743 = vmatprep.subr.mxu0 0.0
    %3744 = vmatpush1.msra.mxu0 %v3706
    %3745 = vmatprep.subr.mxu0 0.0
    %3746 = vmatpush1.msra.mxu0 %v3705
    %3747 = vmatprep.subr.mxu0 0.0
    %3748 = vmatpush1.msra.mxu0 %v3704
    %3749 = vmatprep.subr.mxu0 0.0
    %3750 = vmatpush1.msra.mxu0 %v3703
    %3751 = vmatprep.subr.mxu0 0.0
    %3752 = vmatpush1.msra.mxu0 %v3702
    %3753 = vmatprep.subr.mxu0 0.0
    %3754 = vmatpush2.msra.mxu0 0.0
    %3755 = vmatprep.subr.mxu0 0.0
    %3756 = vmatpush2.msra.mxu0 0.0
    %3757 = vmatprep.subr.mxu0 0.0
    %3758 = vmatpush2.msra.mxu0 0.0
    %3759 = vmatprep.subr.mxu0 0.0
    %3760 = vmatpush2.msra.mxu0 0.0
    %3761 = vmatprep.subr.mxu0 0.0
    %3762 = vmatpush2.msra.mxu0 0.0
    %3763 = vmatprep.subr.mxu0 0.0
    %3764 = vmatpush2.msra.mxu0 0.0
    %3765 = vmatprep.subr.mxu0 0.0
    %3766 = vmatpush2.msra.mxu0 0.0
    %3767 = vmatprep.subr.mxu0 0.0
    %3768 = vmatpush2.msra.mxu0 0.0
    %3769 = vmatprep.subr.mxu0 0.0
    %3770 = vmatpush2.msra.mxu0 0.0
    %3771 = vmatprep.subr.mxu0 0.0
    %3772 = vmatpush2.msra.mxu0 0.0
    %3773 = vmatprep.subr.mxu0 0.0
    %3774 = vmatpush2.msra.mxu0 0.0
    %3775 = vmatprep.subr.mxu0 0.0
    %3776 = vmatpush2.msra.mxu0 0.0
    %3777 = vmatprep.subr.mxu0 0.0
    %3778 = vmatpush2.msra.mxu0 0.0
    %3779 = vmatprep.subr.mxu0 0.0
    %3780 = vmatpush2.msra.mxu0 0.0
    %3781 = vmatprep.subr.mxu0 0.0
    %3782 = vmatpush2.msra.mxu0 0.0
    %3783 = vmatprep.subr.mxu0 0.0
    %3784 = vmatpush2.msra.mxu0 0.0
    %3785 = vmatprep.mubr.f32.mxu0 0.0
    %3786 = vmatmul.mubr.f32.gmra.mxu0 %v3716
    %v3787 = vpop.f32.mrf.mxu0
    %v3788 = vadd.f32 %v3714, %v3787
    %v3789 = vpop.f32.mrf.mxu0
    %3790 = vmatprep.mubr.f32.mxu0 0.0
    %3791 = vmatmul.mubr.f32.gmra.mxu0 %v3719
    %v3792 = vpop.f32.mrf.mxu0
    %v3793 = vadd.f32 %v3714, %v3792
    %v3794 = vpop.f32.mrf.mxu0
    %3795 = vdwg.mxu0
    %v3796 = vadd.f32 %v3608, %v3788
    %v3797 = vadd.f32 %v3609, %v3793
    %v3798 = vld [vmem:[#allocation2 + $0x29b] sm:$0x1]
    %v3799 = vld [vmem:[#allocation2 + $0x29c] sm:$0x1]
    %v3800 = vsel %vm527, %v3796, 0.0
    %3801 = vadd.xlane.f32.xlu0 %v3800
    %v3802 = vpop.xlane.xlu0 %3801
    %v3803 = vsel %vm527, %v3797, 0.0
    %3804 = vadd.xlane.f32.xlu0 %v3803
    %v3805 = vpop.xlane.xlu0 %3804
    %v3806 = vmul.f32 %v3802, %v1129
    %v3807 = vmul.f32 %v3805, %v1129
    %v3808 = vsub.f32 %v3796, %v3806
    %v3809 = vsub.f32 %v3797, %v3807
    %v3810 = vmul.f32 %v3808, %v3808
    %v3811 = vmul.f32 %v3809, %v3809
    %v3812 = vsel %vm527, %v3810, 0.0
    %3813 = vadd.xlane.f32.xlu0 %v3812
    %v3814 = vpop.xlane.xlu0 %3813
    %v3815 = vsel %vm527, %v3811, 0.0
    %3816 = vadd.xlane.f32.xlu0 %v3815
    %v3817 = vpop.xlane.xlu0 %3816
    %v3818 = vmul.f32 %v3814, %v1129
    %v3819 = vmul.f32 %v3817, %v1129
    %v3820 = vadd.f32 %v3818, 1e-05
    %v3821 = vadd.f32 %v3819, 1e-05
    %v3822 = vrsqrt.pop %v3820
    %v3823 = vrsqrt.pop %v3821
    %v3824 = vmul.f32 %v3808, %v3822
    %v3825 = vmul.f32 %v3809, %v3823
    %v3826 = vlaneseq
    %v3827 = vshrl.u32 %v3826, 7
    %v3828 = vsub.s32 0, %v3827
    %v3829 = vrot.slane %v3798, %v3828
    %v3830 = vmul.f32 %v3824, %v3829
    %v3831 = vmul.f32 %v3825, %v3829
    %v3832 = vlaneseq
    %v3833 = vshrl.u32 %v3832, 7
    %v3834 = vsub.s32 0, %v3833
    %v3835 = vrot.slane %v3799, %v3834
    %v3836 = vadd.f32 %v3830, %v3835
    %v3837 = vadd.f32 %v3831, %v3835
    %v3838 = vld [vmem:[#allocation2 + $0x29d] sm:$0xff]
    %v3839 = vld [vmem:[#allocation2 + $0x2a5] sm:$0xff]
    %v3840 = vld [vmem:[#allocation2 + $0x2ad] sm:$0xff]
    %v3841 = vld [vmem:[#allocation2 + $0x2b5] sm:$0xff]
    %v3842 = vld [vmem:[#allocation2 + $0x2bd] sm:$0x1]
    %v3843 = vlaneseq
    %v3844 = vshrl.u32 %v3843, 7
    %v3845 = vsub.s32 0, %v3844
    %v3846 = vrot.slane %v3842, %v3845
    %v3848 = vsel %vm527, %v3836, 0
    %v3851 = vsel %vm527, %v3837, 0
    %3853 = vmatprep.subr.mxu0 0.0
    %3854 = vmatpush1.msra.mxu0 0.0
    %3855 = vmatprep.subr.mxu0 0.0
    %3856 = vmatpush1.msra.mxu0 0.0
    %3857 = vmatprep.subr.mxu0 0.0
    %3858 = vmatpush1.msra.mxu0 0.0
    %3859 = vmatprep.subr.mxu0 0.0
    %3860 = vmatpush1.msra.mxu0 0.0
    %3861 = vmatprep.subr.mxu0 0.0
    %3862 = vmatpush1.msra.mxu0 0.0
    %3863 = vmatprep.subr.mxu0 0.0
    %3864 = vmatpush1.msra.mxu0 0.0
    %3865 = vmatprep.subr.mxu0 0.0
    %3866 = vmatpush1.msra.mxu0 0.0
    %3867 = vmatprep.subr.mxu0 0.0
    %3868 = vmatpush1.msra.mxu0 0.0
    %3869 = vmatprep.subr.mxu0 0.0
    %3870 = vmatpush1.msra.mxu0 0.0
    %3871 = vmatprep.subr.mxu0 0.0
    %3872 = vmatpush1.msra.mxu0 0.0
    %3873 = vmatprep.subr.mxu0 0.0
    %3874 = vmatpush1.msra.mxu0 0.0
    %3875 = vmatprep.subr.mxu0 0.0
    %3876 = vmatpush1.msra.mxu0 0.0
    %3877 = vmatprep.subr.mxu0 0.0
    %3878 = vmatpush1.msra.mxu0 %v3841
    %3879 = vmatprep.subr.mxu0 0.0
    %3880 = vmatpush1.msra.mxu0 %v3840
    %3881 = vmatprep.subr.mxu0 0.0
    %3882 = vmatpush1.msra.mxu0 %v3839
    %3883 = vmatprep.subr.mxu0 0.0
    %3884 = vmatpush1.msra.mxu0 %v3838
    %3885 = vmatprep.subr.mxu0 0.0
    %3886 = vmatpush2.msra.mxu0 0.0
    %3887 = vmatprep.subr.mxu0 0.0
    %3888 = vmatpush2.msra.mxu0 0.0
    %3889 = vmatprep.subr.mxu0 0.0
    %3890 = vmatpush2.msra.mxu0 0.0
    %3891 = vmatprep.subr.mxu0 0.0
    %3892 = vmatpush2.msra.mxu0 0.0
    %3893 = vmatprep.subr.mxu0 0.0
    %3894 = vmatpush2.msra.mxu0 0.0
    %3895 = vmatprep.subr.mxu0 0.0
    %3896 = vmatpush2.msra.mxu0 0.0
    %3897 = vmatprep.subr.mxu0 0.0
    %3898 = vmatpush2.msra.mxu0 0.0
    %3899 = vmatprep.subr.mxu0 0.0
    %3900 = vmatpush2.msra.mxu0 0.0
    %3901 = vmatprep.subr.mxu0 0.0
    %3902 = vmatpush2.msra.mxu0 0.0
    %3903 = vmatprep.subr.mxu0 0.0
    %3904 = vmatpush2.msra.mxu0 0.0
    %3905 = vmatprep.subr.mxu0 0.0
    %3906 = vmatpush2.msra.mxu0 0.0
    %3907 = vmatprep.subr.mxu0 0.0
    %3908 = vmatpush2.msra.mxu0 0.0
    %3909 = vmatprep.subr.mxu0 0.0
    %3910 = vmatpush2.msra.mxu0 0.0
    %3911 = vmatprep.subr.mxu0 0.0
    %3912 = vmatpush2.msra.mxu0 0.0
    %3913 = vmatprep.subr.mxu0 0.0
    %3914 = vmatpush2.msra.mxu0 0.0
    %3915 = vmatprep.subr.mxu0 0.0
    %3916 = vmatpush2.msra.mxu0 0.0
    %3917 = vmatprep.mubr.f32.mxu0 0.0
    %3918 = vmatmul.mubr.f32.gmra.mxu0 %v3848
    %v3919 = vpop.f32.mrf.mxu0
    %v3920 = vadd.f32 %v3846, %v3919
    %v3921 = vpop.f32.mrf.mxu0
    %3922 = vmatprep.mubr.f32.mxu0 0.0
    %3923 = vmatmul.mubr.f32.gmra.mxu0 %v3851
    %v3924 = vpop.f32.mrf.mxu0
    %v3925 = vadd.f32 %v3846, %v3924
    %v3926 = vpop.f32.mrf.mxu0
    %3927 = vdwg.mxu0
    %v3928 = vld [vmem:[#allocation2 + $0x2be] sm:$0xff]
    %v3929 = vld [vmem:[#allocation2 + $0x2c6] sm:$0xff]
    %v3930 = vld [vmem:[#allocation2 + $0x2ce] sm:$0xff]
    %v3931 = vld [vmem:[#allocation2 + $0x2d6] sm:$0xff]
    %v3932 = vld [vmem:[#allocation2 + $0x2de] sm:$0x1]
    %v3933 = vmul.f32 %v3920, %v617
    %v3934 = vmul.f32 %v3925, %v617
    %v3935 = vmul.f32 %v3920, %v621
    %v3936 = vmul.f32 %v3925, %v621
    %v3937 = vmul.f32 %v3920, %v625
    %v3938 = vmul.f32 %v3925, %v625
    %v3939 = vmul.f32 %v3920, %v629
    %v3940 = vmul.f32 %v3925, %v629
    %3943 = vrot.lane.b32.xlu0 %v3920, 96
    %v3944 = vpop.permute.xlu0 %3943
    %3945 = vrot.lane.b32.xlu0 %v3925, 96
    %v3946 = vpop.permute.xlu0 %3945
    %v3948 = vsel %vm527, %v3933, 0
    %v3951 = vsel %vm527, %v3934, 0
    %v3954 = vsel %vm527, %v3935, 0
    %v3957 = vsel %vm527, %v3936, 0
    %v3960 = vsel %vm527, %v3937, 0
    %v3963 = vsel %vm527, %v3938, 0
    %v3966 = vsel %vm527, %v3939, 0
    %v3969 = vsel %vm527, %v3940, 0
    %v3971 = vsel %vm527, %v3944, 0
    %v3973 = vsel %vm527, %v3946, 0
    %3975 = vmatprep.subr.mxu0 0.0
    %3976 = vmatpush1.xpose.msra.mxu0 0.0
    %3977 = vmatprep.subr.mxu0 0.0
    %3978 = vmatpush1.xpose.msra.mxu0 0.0
    %3979 = vmatprep.subr.mxu0 0.0
    %3980 = vmatpush1.xpose.msra.mxu0 0.0
    %3981 = vmatprep.subr.mxu0 0.0
    %3982 = vmatpush1.xpose.msra.mxu0 0.0
    %3983 = vmatprep.subr.mxu0 0.0
    %3984 = vmatpush1.xpose.msra.mxu0 0.0
    %3985 = vmatprep.subr.mxu0 0.0
    %3986 = vmatpush1.xpose.msra.mxu0 0.0
    %3987 = vmatprep.subr.mxu0 0.0
    %3988 = vmatpush1.xpose.msra.mxu0 0.0
    %3989 = vmatprep.subr.mxu0 0.0
    %3990 = vmatpush1.xpose.msra.mxu0 0.0
    %3991 = vmatprep.subr.mxu0 0.0
    %3992 = vmatpush1.xpose.msra.mxu0 0.0
    %3993 = vmatprep.subr.mxu0 0.0
    %3994 = vmatpush1.xpose.msra.mxu0 0.0
    %3995 = vmatprep.subr.mxu0 0.0
    %3996 = vmatpush1.xpose.msra.mxu0 0.0
    %3997 = vmatprep.subr.mxu0 0.0
    %3998 = vmatpush1.xpose.msra.mxu0 0.0
    %3999 = vmatprep.subr.mxu0 0.0
    %4000 = vmatpush1.xpose.msra.mxu0 0.0
    %4001 = vmatprep.subr.mxu0 0.0
    %4002 = vmatpush1.xpose.msra.mxu0 0.0
    %4003 = vmatprep.subr.mxu0 0.0
    %4004 = vmatpush1.xpose.msra.mxu0 %v3973
    %4005 = vmatprep.subr.mxu0 0.0
    %4006 = vmatpush1.xpose.msra.mxu0 %v3971
    %4007 = vmatprep.subr.mxu0 0.0
    %4008 = vmatpush2.xpose.msra.mxu0 0.0
    %4009 = vmatprep.subr.mxu0 0.0
    %4010 = vmatpush2.xpose.msra.mxu0 0.0
    %4011 = vmatprep.subr.mxu0 0.0
    %4012 = vmatpush2.xpose.msra.mxu0 0.0
    %4013 = vmatprep.subr.mxu0 0.0
    %4014 = vmatpush2.xpose.msra.mxu0 0.0
    %4015 = vmatprep.subr.mxu0 0.0
    %4016 = vmatpush2.xpose.msra.mxu0 0.0
    %4017 = vmatprep.subr.mxu0 0.0
    %4018 = vmatpush2.xpose.msra.mxu0 0.0
    %4019 = vmatprep.subr.mxu0 0.0
    %4020 = vmatpush2.xpose.msra.mxu0 0.0
    %4021 = vmatprep.subr.mxu0 0.0
    %4022 = vmatpush2.xpose.msra.mxu0 0.0
    %4023 = vmatprep.subr.mxu0 0.0
    %4024 = vmatpush2.xpose.msra.mxu0 0.0
    %4025 = vmatprep.subr.mxu0 0.0
    %4026 = vmatpush2.xpose.msra.mxu0 0.0
    %4027 = vmatprep.subr.mxu0 0.0
    %4028 = vmatpush2.xpose.msra.mxu0 0.0
    %4029 = vmatprep.subr.mxu0 0.0
    %4030 = vmatpush2.xpose.msra.mxu0 0.0
    %4031 = vmatprep.subr.mxu0 0.0
    %4032 = vmatpush2.xpose.msra.mxu0 0.0
    %4033 = vmatprep.subr.mxu0 0.0
    %4034 = vmatpush2.xpose.msra.mxu0 0.0
    %4035 = vmatprep.subr.mxu0 0.0
    %4036 = vmatpush2.xpose.msra.mxu0 0.0
    %4037 = vmatprep.subr.mxu0 0.0
    %4038 = vmatpush2.xpose.msra.mxu0 0.0
    %4039 = vmatprep.mubr.f32.mxu0 0.0
    %4040 = vmatmul.mubr.f32.gmra.mxu0 %v3948
    %v4041 = vpop.f32.mrf.mxu0
    %v4042 = vadd.f32 0.0, %v4041
    %v4043 = vpop.f32.mrf.mxu0
    %4044 = vmatprep.mubr.f32.mxu0 0.0
    %4045 = vmatmul.mubr.f32.gmra.mxu0 %v3951
    %v4046 = vpop.f32.mrf.mxu0
    %v4047 = vadd.f32 0.0, %v4046
    %v4048 = vpop.f32.mrf.mxu0
    %4049 = vmatprep.mubr.f32.mxu0 0.0
    %4050 = vmatmul.mubr.f32.gmra.mxu0 %v3954
    %v4051 = vpop.f32.mrf.mxu0
    %v4052 = vadd.f32 0.0, %v4051
    %v4053 = vpop.f32.mrf.mxu0
    %4054 = vmatprep.mubr.f32.mxu0 0.0
    %4055 = vmatmul.mubr.f32.gmra.mxu0 %v3957
    %v4056 = vpop.f32.mrf.mxu0
    %v4057 = vadd.f32 0.0, %v4056
    %v4058 = vpop.f32.mrf.mxu0
    %4059 = vmatprep.mubr.f32.mxu0 0.0
    %4060 = vmatmul.mubr.f32.gmra.mxu0 %v3960
    %v4061 = vpop.f32.mrf.mxu0
    %v4062 = vadd.f32 0.0, %v4061
    %v4063 = vpop.f32.mrf.mxu0
    %4064 = vmatprep.mubr.f32.mxu0 0.0
    %4065 = vmatmul.mubr.f32.gmra.mxu0 %v3963
    %v4066 = vpop.f32.mrf.mxu0
    %v4067 = vadd.f32 0.0, %v4066
    %v4068 = vpop.f32.mrf.mxu0
    %4069 = vmatprep.mubr.f32.mxu0 0.0
    %4070 = vmatmul.mubr.f32.gmra.mxu0 %v3966
    %v4071 = vpop.f32.mrf.mxu0
    %v4072 = vadd.f32 0.0, %v4071
    %v4073 = vpop.f32.mrf.mxu0
    %4074 = vmatprep.mubr.f32.mxu0 0.0
    %4075 = vmatmul.mubr.f32.gmra.mxu0 %v3969
    %v4076 = vpop.f32.mrf.mxu0
    %v4077 = vadd.f32 0.0, %v4076
    %v4078 = vpop.f32.mrf.mxu0
    %4079 = vdwg.mxu0
    %v4080 = vmul.f32 %v4042, 0.35355338
    %v4081 = vmul.f32 %v4047, 0.35355338
    %v4082 = vmul.f32 %v4052, 0.35355338
    %v4083 = vmul.f32 %v4057, 0.35355338
    %v4084 = vmul.f32 %v4062, 0.35355338
    %v4085 = vmul.f32 %v4067, 0.35355338
    %v4086 = vmul.f32 %v4072, 0.35355338
    %v4087 = vmul.f32 %v4077, 0.35355338
    %v4088 = vadd.f32 %v4080, %v287
    %v4089 = vadd.f32 %v4081, %v288
    %v4090 = vadd.f32 %v4082, %v287
    %v4091 = vadd.f32 %v4083, %v288
    %v4092 = vadd.f32 %v4084, %v287
    %v4093 = vadd.f32 %v4085, %v288
    %v4094 = vadd.f32 %v4086, %v287
    %v4095 = vadd.f32 %v4087, %v288
    %v4096 = vsel %vm93, %v4088, -inf
    %4097 = vmax.xlane.f32.xlu0 %v4096
    %v4098 = vpop.xlane.xlu0 %4097
    %v4099 = vsel %vm93, %v4089, -inf
    %4100 = vmax.xlane.f32.xlu0 %v4099
    %v4101 = vpop.xlane.xlu0 %4100
    %v4102 = vsel %vm93, %v4090, -inf
    %4103 = vmax.xlane.f32.xlu0 %v4102
    %v4104 = vpop.xlane.xlu0 %4103
    %v4105 = vsel %vm93, %v4091, -inf
    %4106 = vmax.xlane.f32.xlu0 %v4105
    %v4107 = vpop.xlane.xlu0 %4106
    %v4108 = vsel %vm93, %v4092, -inf
    %4109 = vmax.xlane.f32.xlu0 %v4108
    %v4110 = vpop.xlane.xlu0 %4109
    %v4111 = vsel %vm93, %v4093, -inf
    %4112 = vmax.xlane.f32.xlu0 %v4111
    %v4113 = vpop.xlane.xlu0 %4112
    %v4114 = vsel %vm93, %v4094, -inf
    %4115 = vmax.xlane.f32.xlu0 %v4114
    %v4116 = vpop.xlane.xlu0 %4115
    %v4117 = vsel %vm93, %v4095, -inf
    %4118 = vmax.xlane.f32.xlu0 %v4117
    %v4119 = vpop.xlane.xlu0 %4118
    %v4120 = vsub.f32 %v4088, %v4098
    %v4121 = vsub.f32 %v4089, %v4101
    %v4122 = vsub.f32 %v4090, %v4104
    %v4123 = vsub.f32 %v4091, %v4107
    %v4124 = vsub.f32 %v4092, %v4110
    %v4125 = vsub.f32 %v4093, %v4113
    %v4126 = vsub.f32 %v4094, %v4116
    %v4127 = vsub.f32 %v4095, %v4119
    %v4128 = vmul.f32 %v4120, 1.442695
    %v4129 = vpow.pop %v4128
    %v4130 = vmul.f32 %v4121, 1.442695
    %v4131 = vpow.pop %v4130
    %v4132 = vmul.f32 %v4122, 1.442695
    %v4133 = vpow.pop %v4132
    %v4134 = vmul.f32 %v4123, 1.442695
    %v4135 = vpow.pop %v4134
    %v4136 = vmul.f32 %v4124, 1.442695
    %v4137 = vpow.pop %v4136
    %v4138 = vmul.f32 %v4125, 1.442695
    %v4139 = vpow.pop %v4138
    %v4140 = vmul.f32 %v4126, 1.442695
    %v4141 = vpow.pop %v4140
    %v4142 = vmul.f32 %v4127, 1.442695
    %v4143 = vpow.pop %v4142
    %v4144 = vsel %vm93, %v4129, 0.0
    %4145 = vadd.xlane.f32.xlu0 %v4144
    %v4146 = vpop.xlane.xlu0 %4145
    %v4147 = vsel %vm93, %v4131, 0.0
    %4148 = vadd.xlane.f32.xlu0 %v4147
    %v4149 = vpop.xlane.xlu0 %4148
    %v4150 = vsel %vm93, %v4133, 0.0
    %4151 = vadd.xlane.f32.xlu0 %v4150
    %v4152 = vpop.xlane.xlu0 %4151
    %v4153 = vsel %vm93, %v4135, 0.0
    %4154 = vadd.xlane.f32.xlu0 %v4153
    %v4155 = vpop.xlane.xlu0 %4154
    %v4156 = vsel %vm93, %v4137, 0.0
    %4157 = vadd.xlane.f32.xlu0 %v4156
    %v4158 = vpop.xlane.xlu0 %4157
    %v4159 = vsel %vm93, %v4139, 0.0
    %4160 = vadd.xlane.f32.xlu0 %v4159
    %v4161 = vpop.xlane.xlu0 %4160
    %v4162 = vsel %vm93, %v4141, 0.0
    %4163 = vadd.xlane.f32.xlu0 %v4162
    %v4164 = vpop.xlane.xlu0 %4163
    %v4165 = vsel %vm93, %v4143, 0.0
    %4166 = vadd.xlane.f32.xlu0 %v4165
    %v4167 = vpop.xlane.xlu0 %4166
    %v4168 = vrcp.pop %v4146
    %v4169 = vrcp.pop %v4149
    %v4170 = vrcp.pop %v4152
    %v4171 = vrcp.pop %v4155
    %v4172 = vrcp.pop %v4158
    %v4173 = vrcp.pop %v4161
    %v4174 = vrcp.pop %v4164
    %v4175 = vrcp.pop %v4167
    %v4176 = vmul.f32 %v4129, %v4168
    %v4177 = vmul.f32 %v4131, %v4169
    %v4178 = vmul.f32 %v4133, %v4170
    %v4179 = vmul.f32 %v4135, %v4171
    %v4180 = vmul.f32 %v4137, %v4172
    %v4181 = vmul.f32 %v4139, %v4173
    %v4182 = vmul.f32 %v4141, %v4174
    %v4183 = vmul.f32 %v4143, %v4175
    %4184 = vrot.lane.b32.xlu0 %v3920, 64
    %v4185 = vpop.permute.xlu0 %4184
    %4186 = vrot.lane.b32.xlu0 %v3925, 64
    %v4187 = vpop.permute.xlu0 %4186
    %v4191 = vsel %vm93, %v4176, 0
    %v4194 = vsel %vm93, %v4177, 0
    %v4197 = vsel %vm93, %v4178, 0
    %v4200 = vsel %vm93, %v4179, 0
    %v4203 = vsel %vm93, %v4180, 0
    %v4206 = vsel %vm93, %v4181, 0
    %v4209 = vsel %vm93, %v4182, 0
    %v4212 = vsel %vm93, %v4183, 0
    %4214 = vmatprep.subr.mxu0 0.0
    %4215 = vmatpush1.msra.mxu0 0.0
    %4216 = vmatprep.subr.mxu0 0.0
    %4217 = vmatpush1.msra.mxu0 0.0
    %4218 = vmatprep.subr.mxu0 0.0
    %4219 = vmatpush1.msra.mxu0 0.0
    %4220 = vmatprep.subr.mxu0 0.0
    %4221 = vmatpush1.msra.mxu0 0.0
    %4222 = vmatprep.subr.mxu0 0.0
    %4223 = vmatpush1.msra.mxu0 0.0
    %4224 = vmatprep.subr.mxu0 0.0
    %4225 = vmatpush1.msra.mxu0 0.0
    %4226 = vmatprep.subr.mxu0 0.0
    %4227 = vmatpush1.msra.mxu0 0.0
    %4228 = vmatprep.subr.mxu0 0.0
    %4229 = vmatpush1.msra.mxu0 0.0
    %4230 = vmatprep.subr.mxu0 0.0
    %4231 = vmatpush1.msra.mxu0 0.0
    %4232 = vmatprep.subr.mxu0 0.0
    %4233 = vmatpush1.msra.mxu0 0.0
    %4234 = vmatprep.subr.mxu0 0.0
    %4235 = vmatpush1.msra.mxu0 0.0
    %4236 = vmatprep.subr.mxu0 0.0
    %4237 = vmatpush1.msra.mxu0 0.0
    %4238 = vmatprep.subr.mxu0 0.0
    %4239 = vmatpush1.msra.mxu0 0.0
    %4240 = vmatprep.subr.mxu0 0.0
    %4241 = vmatpush1.msra.mxu0 0.0
    %4242 = vmatprep.subr.mxu0 0.0
    %4243 = vmatpush1.msra.mxu0 %v4187
    %4244 = vmatprep.subr.mxu0 0.0
    %4245 = vmatpush1.msra.mxu0 %v4185
    %4246 = vmatprep.subr.mxu0 0.0
    %4247 = vmatpush2.msra.mxu0 0.0
    %4248 = vmatprep.subr.mxu0 0.0
    %4249 = vmatpush2.msra.mxu0 0.0
    %4250 = vmatprep.subr.mxu0 0.0
    %4251 = vmatpush2.msra.mxu0 0.0
    %4252 = vmatprep.subr.mxu0 0.0
    %4253 = vmatpush2.msra.mxu0 0.0
    %4254 = vmatprep.subr.mxu0 0.0
    %4255 = vmatpush2.msra.mxu0 0.0
    %4256 = vmatprep.subr.mxu0 0.0
    %4257 = vmatpush2.msra.mxu0 0.0
    %4258 = vmatprep.subr.mxu0 0.0
    %4259 = vmatpush2.msra.mxu0 0.0
    %4260 = vmatprep.subr.mxu0 0.0
    %4261 = vmatpush2.msra.mxu0 0.0
    %4262 = vmatprep.subr.mxu0 0.0
    %4263 = vmatpush2.msra.mxu0 0.0
    %4264 = vmatprep.subr.mxu0 0.0
    %4265 = vmatpush2.msra.mxu0 0.0
    %4266 = vmatprep.subr.mxu0 0.0
    %4267 = vmatpush2.msra.mxu0 0.0
    %4268 = vmatprep.subr.mxu0 0.0
    %4269 = vmatpush2.msra.mxu0 0.0
    %4270 = vmatprep.subr.mxu0 0.0
    %4271 = vmatpush2.msra.mxu0 0.0
    %4272 = vmatprep.subr.mxu0 0.0
    %4273 = vmatpush2.msra.mxu0 0.0
    %4274 = vmatprep.subr.mxu0 0.0
    %4275 = vmatpush2.msra.mxu0 0.0
    %4276 = vmatprep.subr.mxu0 0.0
    %4277 = vmatpush2.msra.mxu0 0.0
    %4278 = vmatprep.mubr.f32.mxu0 0.0
    %4279 = vmatmul.mubr.f32.gmra.mxu0 %v4191
    %v4280 = vpop.f32.mrf.mxu0
    %v4281 = vadd.f32 0.0, %v4280
    %v4282 = vpop.f32.mrf.mxu0
    %4283 = vmatprep.mubr.f32.mxu0 0.0
    %4284 = vmatmul.mubr.f32.gmra.mxu0 %v4194
    %v4285 = vpop.f32.mrf.mxu0
    %v4286 = vadd.f32 0.0, %v4285
    %v4287 = vpop.f32.mrf.mxu0
    %4288 = vmatprep.mubr.f32.mxu0 0.0
    %4289 = vmatmul.mubr.f32.gmra.mxu0 %v4197
    %v4290 = vpop.f32.mrf.mxu0
    %v4291 = vadd.f32 0.0, %v4290
    %v4292 = vpop.f32.mrf.mxu0
    %4293 = vmatprep.mubr.f32.mxu0 0.0
    %4294 = vmatmul.mubr.f32.gmra.mxu0 %v4200
    %v4295 = vpop.f32.mrf.mxu0
    %v4296 = vadd.f32 0.0, %v4295
    %v4297 = vpop.f32.mrf.mxu0
    %4298 = vmatprep.mubr.f32.mxu0 0.0
    %4299 = vmatmul.mubr.f32.gmra.mxu0 %v4203
    %v4300 = vpop.f32.mrf.mxu0
    %v4301 = vadd.f32 0.0, %v4300
    %v4302 = vpop.f32.mrf.mxu0
    %4303 = vmatprep.mubr.f32.mxu0 0.0
    %4304 = vmatmul.mubr.f32.gmra.mxu0 %v4206
    %v4305 = vpop.f32.mrf.mxu0
    %v4306 = vadd.f32 0.0, %v4305
    %v4307 = vpop.f32.mrf.mxu0
    %4308 = vmatprep.mubr.f32.mxu0 0.0
    %4309 = vmatmul.mubr.f32.gmra.mxu0 %v4209
    %v4310 = vpop.f32.mrf.mxu0
    %v4311 = vadd.f32 0.0, %v4310
    %v4312 = vpop.f32.mrf.mxu0
    %4313 = vmatprep.mubr.f32.mxu0 0.0
    %4314 = vmatmul.mubr.f32.gmra.mxu0 %v4212
    %v4315 = vpop.f32.mrf.mxu0
    %v4316 = vadd.f32 0.0, %v4315
    %v4317 = vpop.f32.mrf.mxu0
    %4318 = vdwg.mxu0
    %v4319 = vmul.f32 %v4281, %v617
    %v4320 = vmul.f32 %v4286, %v617
    %v4321 = vmul.f32 %v4291, %v621
    %v4322 = vmul.f32 %v4296, %v621
    %v4323 = vmul.f32 %v4301, %v625
    %v4324 = vmul.f32 %v4306, %v625
    %v4325 = vmul.f32 %v4311, %v629
    %v4326 = vmul.f32 %v4316, %v629
    %v4327 = vadd.f32 %v4319, %v4321
    %v4328 = vadd.f32 %v4320, %v4322
    %v4329 = vadd.f32 %v4327, %v4323
    %v4330 = vadd.f32 %v4328, %v4324
    %v4331 = vadd.f32 %v4329, %v4325
    %v4332 = vadd.f32 %v4330, %v4326
    %v4333 = vlaneseq
    %v4334 = vshrl.u32 %v4333, 7
    %v4335 = vsub.s32 0, %v4334
    %v4336 = vrot.slane %v3932, %v4335
    %v4338 = vsel %vm527, %v4331, 0
    %v4341 = vsel %vm527, %v4332, 0
    %4343 = vmatprep.subr.mxu0 0.0
    %4344 = vmatpush1.msra.mxu0 0.0
    %4345 = vmatprep.subr.mxu0 0.0
    %4346 = vmatpush1.msra.mxu0 0.0
    %4347 = vmatprep.subr.mxu0 0.0
    %4348 = vmatpush1.msra.mxu0 0.0
    %4349 = vmatprep.subr.mxu0 0.0
    %4350 = vmatpush1.msra.mxu0 0.0
    %4351 = vmatprep.subr.mxu0 0.0
    %4352 = vmatpush1.msra.mxu0 0.0
    %4353 = vmatprep.subr.mxu0 0.0
    %4354 = vmatpush1.msra.mxu0 0.0
    %4355 = vmatprep.subr.mxu0 0.0
    %4356 = vmatpush1.msra.mxu0 0.0
    %4357 = vmatprep.subr.mxu0 0.0
    %4358 = vmatpush1.msra.mxu0 0.0
    %4359 = vmatprep.subr.mxu0 0.0
    %4360 = vmatpush1.msra.mxu0 0.0
    %4361 = vmatprep.subr.mxu0 0.0
    %4362 = vmatpush1.msra.mxu0 0.0
    %4363 = vmatprep.subr.mxu0 0.0
    %4364 = vmatpush1.msra.mxu0 0.0
    %4365 = vmatprep.subr.mxu0 0.0
    %4366 = vmatpush1.msra.mxu0 0.0
    %4367 = vmatprep.subr.mxu0 0.0
    %4368 = vmatpush1.msra.mxu0 %v3931
    %4369 = vmatprep.subr.mxu0 0.0
    %4370 = vmatpush1.msra.mxu0 %v3930
    %4371 = vmatprep.subr.mxu0 0.0
    %4372 = vmatpush1.msra.mxu0 %v3929
    %4373 = vmatprep.subr.mxu0 0.0
    %4374 = vmatpush1.msra.mxu0 %v3928
    %4375 = vmatprep.subr.mxu0 0.0
    %4376 = vmatpush2.msra.mxu0 0.0
    %4377 = vmatprep.subr.mxu0 0.0
    %4378 = vmatpush2.msra.mxu0 0.0
    %4379 = vmatprep.subr.mxu0 0.0
    %4380 = vmatpush2.msra.mxu0 0.0
    %4381 = vmatprep.subr.mxu0 0.0
    %4382 = vmatpush2.msra.mxu0 0.0
    %4383 = vmatprep.subr.mxu0 0.0
    %4384 = vmatpush2.msra.mxu0 0.0
    %4385 = vmatprep.subr.mxu0 0.0
    %4386 = vmatpush2.msra.mxu0 0.0
    %4387 = vmatprep.subr.mxu0 0.0
    %4388 = vmatpush2.msra.mxu0 0.0
    %4389 = vmatprep.subr.mxu0 0.0
    %4390 = vmatpush2.msra.mxu0 0.0
    %4391 = vmatprep.subr.mxu0 0.0
    %4392 = vmatpush2.msra.mxu0 0.0
    %4393 = vmatprep.subr.mxu0 0.0
    %4394 = vmatpush2.msra.mxu0 0.0
    %4395 = vmatprep.subr.mxu0 0.0
    %4396 = vmatpush2.msra.mxu0 0.0
    %4397 = vmatprep.subr.mxu0 0.0
    %4398 = vmatpush2.msra.mxu0 0.0
    %4399 = vmatprep.subr.mxu0 0.0
    %4400 = vmatpush2.msra.mxu0 0.0
    %4401 = vmatprep.subr.mxu0 0.0
    %4402 = vmatpush2.msra.mxu0 0.0
    %4403 = vmatprep.subr.mxu0 0.0
    %4404 = vmatpush2.msra.mxu0 0.0
    %4405 = vmatprep.subr.mxu0 0.0
    %4406 = vmatpush2.msra.mxu0 0.0
    %4407 = vmatprep.mubr.f32.mxu0 0.0
    %4408 = vmatmul.mubr.f32.gmra.mxu0 %v4338
    %v4409 = vpop.f32.mrf.mxu0
    %v4410 = vadd.f32 %v4336, %v4409
    %v4411 = vpop.f32.mrf.mxu0
    %4412 = vmatprep.mubr.f32.mxu0 0.0
    %4413 = vmatmul.mubr.f32.gmra.mxu0 %v4341
    %v4414 = vpop.f32.mrf.mxu0
    %v4415 = vadd.f32 %v4336, %v4414
    %v4416 = vpop.f32.mrf.mxu0
    %4417 = vdwg.mxu0
    %v4418 = vadd.f32 %v3836, %v4410
    %v4419 = vadd.f32 %v3837, %v4415
    %v4420 = vld [vmem:[#allocation2 + $0x3a4] sm:$0x1]
    %v4421 = vld [vmem:[#allocation2 + $0x3a5] sm:$0x1]
    %v4422 = vsel %vm527, %v4418, 0.0
    %4423 = vadd.xlane.f32.xlu0 %v4422
    %v4424 = vpop.xlane.xlu0 %4423
    %v4425 = vsel %vm527, %v4419, 0.0
    %4426 = vadd.xlane.f32.xlu0 %v4425
    %v4427 = vpop.xlane.xlu0 %4426
    %v4428 = vmul.f32 %v4424, %v1129
    %v4429 = vmul.f32 %v4427, %v1129
    %v4430 = vsub.f32 %v4418, %v4428
    %v4431 = vsub.f32 %v4419, %v4429
    %v4432 = vmul.f32 %v4430, %v4430
    %v4433 = vmul.f32 %v4431, %v4431
    %v4434 = vsel %vm527, %v4432, 0.0
    %4435 = vadd.xlane.f32.xlu0 %v4434
    %v4436 = vpop.xlane.xlu0 %4435
    %v4437 = vsel %vm527, %v4433, 0.0
    %4438 = vadd.xlane.f32.xlu0 %v4437
    %v4439 = vpop.xlane.xlu0 %4438
    %v4440 = vmul.f32 %v4436, %v1129
    %v4441 = vmul.f32 %v4439, %v1129
    %v4442 = vadd.f32 %v4440, 1e-05
    %v4443 = vadd.f32 %v4441, 1e-05
    %v4444 = vrsqrt.pop %v4442
    %v4445 = vrsqrt.pop %v4443
    %v4446 = vmul.f32 %v4430, %v4444
    %v4447 = vmul.f32 %v4431, %v4445
    %v4448 = vlaneseq
    %v4449 = vshrl.u32 %v4448, 7
    %v4450 = vsub.s32 0, %v4449
    %v4451 = vrot.slane %v4420, %v4450
    %v4452 = vmul.f32 %v4446, %v4451
    %v4453 = vmul.f32 %v4447, %v4451
    %v4454 = vlaneseq
    %v4455 = vshrl.u32 %v4454, 7
    %v4456 = vsub.s32 0, %v4455
    %v4457 = vrot.slane %v4421, %v4456
    %v4458 = vadd.f32 %v4452, %v4457
    %v4459 = vadd.f32 %v4453, %v4457
    %v4460 = vld [vmem:[#allocation2 + $0x2df] sm:$0xff]
    %v4461 = vld [vmem:[#allocation2 + $0x2e7] sm:$0xff]
    %v4462 = vld [vmem:[#allocation2 + $0x2ef] sm:$0xff]
    %v4463 = vld [vmem:[#allocation2 + $0x2f7] sm:$0xff]
    %v4464 = vld [vmem:[#allocation2 + $0x2ff] sm:$0x1]
    %v4465 = vlaneseq
    %v4466 = vshrl.u32 %v4465, 7
    %v4467 = vsub.s32 0, %v4466
    %v4468 = vrot.slane %v4464, %v4467
    %v4470 = vsel %vm527, %v4458, 0
    %v4473 = vsel %vm527, %v4459, 0
    %4475 = vmatprep.subr.mxu0 0.0
    %4476 = vmatpush1.msra.mxu0 0.0
    %4477 = vmatprep.subr.mxu0 0.0
    %4478 = vmatpush1.msra.mxu0 0.0
    %4479 = vmatprep.subr.mxu0 0.0
    %4480 = vmatpush1.msra.mxu0 0.0
    %4481 = vmatprep.subr.mxu0 0.0
    %4482 = vmatpush1.msra.mxu0 0.0
    %4483 = vmatprep.subr.mxu0 0.0
    %4484 = vmatpush1.msra.mxu0 0.0
    %4485 = vmatprep.subr.mxu0 0.0
    %4486 = vmatpush1.msra.mxu0 0.0
    %4487 = vmatprep.subr.mxu0 0.0
    %4488 = vmatpush1.msra.mxu0 0.0
    %4489 = vmatprep.subr.mxu0 0.0
    %4490 = vmatpush1.msra.mxu0 0.0
    %4491 = vmatprep.subr.mxu0 0.0
    %4492 = vmatpush1.msra.mxu0 0.0
    %4493 = vmatprep.subr.mxu0 0.0
    %4494 = vmatpush1.msra.mxu0 0.0
    %4495 = vmatprep.subr.mxu0 0.0
    %4496 = vmatpush1.msra.mxu0 0.0
    %4497 = vmatprep.subr.mxu0 0.0
    %4498 = vmatpush1.msra.mxu0 0.0
    %4499 = vmatprep.subr.mxu0 0.0
    %4500 = vmatpush1.msra.mxu0 %v4463
    %4501 = vmatprep.subr.mxu0 0.0
    %4502 = vmatpush1.msra.mxu0 %v4462
    %4503 = vmatprep.subr.mxu0 0.0
    %4504 = vmatpush1.msra.mxu0 %v4461
    %4505 = vmatprep.subr.mxu0 0.0
    %4506 = vmatpush1.msra.mxu0 %v4460
    %4507 = vmatprep.subr.mxu0 0.0
    %4508 = vmatpush2.msra.mxu0 0.0
    %4509 = vmatprep.subr.mxu0 0.0
    %4510 = vmatpush2.msra.mxu0 0.0
    %4511 = vmatprep.subr.mxu0 0.0
    %4512 = vmatpush2.msra.mxu0 0.0
    %4513 = vmatprep.subr.mxu0 0.0
    %4514 = vmatpush2.msra.mxu0 0.0
    %4515 = vmatprep.subr.mxu0 0.0
    %4516 = vmatpush2.msra.mxu0 0.0
    %4517 = vmatprep.subr.mxu0 0.0
    %4518 = vmatpush2.msra.mxu0 0.0
    %4519 = vmatprep.subr.mxu0 0.0
    %4520 = vmatpush2.msra.mxu0 0.0
    %4521 = vmatprep.subr.mxu0 0.0
    %4522 = vmatpush2.msra.mxu0 0.0
    %4523 = vmatprep.subr.mxu0 0.0
    %4524 = vmatpush2.msra.mxu0 0.0
    %4525 = vmatprep.subr.mxu0 0.0
    %4526 = vmatpush2.msra.mxu0 0.0
    %4527 = vmatprep.subr.mxu0 0.0
    %4528 = vmatpush2.msra.mxu0 0.0
    %4529 = vmatprep.subr.mxu0 0.0
    %4530 = vmatpush2.msra.mxu0 0.0
    %4531 = vmatprep.subr.mxu0 0.0
    %4532 = vmatpush2.msra.mxu0 0.0
    %4533 = vmatprep.subr.mxu0 0.0
    %4534 = vmatpush2.msra.mxu0 0.0
    %4535 = vmatprep.subr.mxu0 0.0
    %4536 = vmatpush2.msra.mxu0 0.0
    %4537 = vmatprep.subr.mxu0 0.0
    %4538 = vmatpush2.msra.mxu0 0.0
    %4539 = vmatprep.mubr.f32.mxu0 0.0
    %4540 = vmatmul.mubr.f32.gmra.mxu0 %v4470
    %v4541 = vpop.f32.mrf.mxu0
    %v4542 = vadd.f32 %v4468, %v4541
    %v4543 = vpop.f32.mrf.mxu0
    %4544 = vmatprep.mubr.f32.mxu0 0.0
    %4545 = vmatmul.mubr.f32.gmra.mxu0 %v4473
    %v4546 = vpop.f32.mrf.mxu0
    %v4547 = vadd.f32 %v4468, %v4546
    %v4548 = vpop.f32.mrf.mxu0
    %4549 = vdwg.mxu0
    %v4550 = vld [vmem:[#allocation2 + $0x300] sm:$0xff]
    %v4551 = vld [vmem:[#allocation2 + $0x308] sm:$0xff]
    %v4552 = vld [vmem:[#allocation2 + $0x310] sm:$0xff]
    %v4553 = vld [vmem:[#allocation2 + $0x318] sm:$0xff]
    %v4554 = vld [vmem:[#allocation2 + $0x320] sm:$0x1]
    %v4555 = vlaneseq
    %v4556 = vshrl.u32 %v4555, 7
    %v4557 = vsub.s32 0, %v4556
    %v4558 = vrot.slane %v4554, %v4557
    %4559 = vmatprep.subr.mxu0 0.0
    %4560 = vmatpush1.msra.mxu0 0.0
    %4561 = vmatprep.subr.mxu0 0.0
    %4562 = vmatpush1.msra.mxu0 0.0
    %4563 = vmatprep.subr.mxu0 0.0
    %4564 = vmatpush1.msra.mxu0 0.0
    %4565 = vmatprep.subr.mxu0 0.0
    %4566 = vmatpush1.msra.mxu0 0.0
    %4567 = vmatprep.subr.mxu0 0.0
    %4568 = vmatpush1.msra.mxu0 0.0
    %4569 = vmatprep.subr.mxu0 0.0
    %4570 = vmatpush1.msra.mxu0 0.0
    %4571 = vmatprep.subr.mxu0 0.0
    %4572 = vmatpush1.msra.mxu0 0.0
    %4573 = vmatprep.subr.mxu0 0.0
    %4574 = vmatpush1.msra.mxu0 0.0
    %4575 = vmatprep.subr.mxu0 0.0
    %4576 = vmatpush1.msra.mxu0 0.0
    %4577 = vmatprep.subr.mxu0 0.0
    %4578 = vmatpush1.msra.mxu0 0.0
    %4579 = vmatprep.subr.mxu0 0.0
    %4580 = vmatpush1.msra.mxu0 0.0
    %4581 = vmatprep.subr.mxu0 0.0
    %4582 = vmatpush1.msra.mxu0 0.0
    %4583 = vmatprep.subr.mxu0 0.0
    %4584 = vmatpush1.msra.mxu0 %v4553
    %4585 = vmatprep.subr.mxu0 0.0
    %4586 = vmatpush1.msra.mxu0 %v4552
    %4587 = vmatprep.subr.mxu0 0.0
    %4588 = vmatpush1.msra.mxu0 %v4551
    %4589 = vmatprep.subr.mxu0 0.0
    %4590 = vmatpush1.msra.mxu0 %v4550
    %4591 = vmatprep.subr.mxu0 0.0
    %4592 = vmatpush2.msra.mxu0 0.0
    %4593 = vmatprep.subr.mxu0 0.0
    %4594 = vmatpush2.msra.mxu0 0.0
    %4595 = vmatprep.subr.mxu0 0.0
    %4596 = vmatpush2.msra.mxu0 0.0
    %4597 = vmatprep.subr.mxu0 0.0
    %4598 = vmatpush2.msra.mxu0 0.0
    %4599 = vmatprep.subr.mxu0 0.0
    %4600 = vmatpush2.msra.mxu0 0.0
    %4601 = vmatprep.subr.mxu0 0.0
    %4602 = vmatpush2.msra.mxu0 0.0
    %4603 = vmatprep.subr.mxu0 0.0
    %4604 = vmatpush2.msra.mxu0 0.0
    %4605 = vmatprep.subr.mxu0 0.0
    %4606 = vmatpush2.msra.mxu0 0.0
    %4607 = vmatprep.subr.mxu0 0.0
    %4608 = vmatpush2.msra.mxu0 0.0
    %4609 = vmatprep.subr.mxu0 0.0
    %4610 = vmatpush2.msra.mxu0 0.0
    %4611 = vmatprep.subr.mxu0 0.0
    %4612 = vmatpush2.msra.mxu0 0.0
    %4613 = vmatprep.subr.mxu0 0.0
    %4614 = vmatpush2.msra.mxu0 0.0
    %4615 = vmatprep.subr.mxu0 0.0
    %4616 = vmatpush2.msra.mxu0 0.0
    %4617 = vmatprep.subr.mxu0 0.0
    %4618 = vmatpush2.msra.mxu0 0.0
    %4619 = vmatprep.subr.mxu0 0.0
    %4620 = vmatpush2.msra.mxu0 0.0
    %4621 = vmatprep.subr.mxu0 0.0
    %4622 = vmatpush2.msra.mxu0 0.0
    %4623 = vmatprep.mubr.f32.mxu0 0.0
    %4624 = vmatmul.mubr.f32.gmra.mxu0 %v3002
    %v4625 = vpop.f32.mrf.mxu0
    %v4626 = vadd.f32 %v4558, %v4625
    %v4627 = vpop.f32.mrf.mxu0
    %4628 = vmatprep.mubr.f32.mxu0 0.0
    %4629 = vmatmul.mubr.f32.gmra.mxu0 %v3005
    %v4630 = vpop.f32.mrf.mxu0
    %v4631 = vadd.f32 %v4558, %v4630
    %v4632 = vpop.f32.mrf.mxu0
    %4633 = vdwg.mxu0
    %v4634 = vld [vmem:[#allocation2 + $0x321] sm:$0xff]
    %v4635 = vld [vmem:[#allocation2 + $0x329] sm:$0xff]
    %v4636 = vld [vmem:[#allocation2 + $0x331] sm:$0xff]
    %v4637 = vld [vmem:[#allocation2 + $0x339] sm:$0xff]
    %v4638 = vld [vmem:[#allocation2 + $0x341] sm:$0x1]
    %v4639 = vmul.f32 %v4542, %v617
    %v4640 = vmul.f32 %v4547, %v617
    %v4641 = vmul.f32 %v4542, %v621
    %v4642 = vmul.f32 %v4547, %v621
    %v4643 = vmul.f32 %v4542, %v625
    %v4644 = vmul.f32 %v4547, %v625
    %v4645 = vmul.f32 %v4542, %v629
    %v4646 = vmul.f32 %v4547, %v629
    %v4648 = vsel %vm527, %v4639, 0
    %v4651 = vsel %vm527, %v4640, 0
    %v4654 = vsel %vm527, %v4641, 0
    %v4657 = vsel %vm527, %v4642, 0
    %v4660 = vsel %vm527, %v4643, 0
    %v4663 = vsel %vm527, %v4644, 0
    %v4666 = vsel %vm527, %v4645, 0
    %v4669 = vsel %vm527, %v4646, 0
    %v4672 = vsel %vm527, %v4626, 0
    %v4675 = vsel %vm527, %v4631, 0
    %4677 = vmatprep.subr.mxu0 0.0
    %4678 = vmatpush1.xpose.msra.mxu0 0.0
    %4679 = vmatprep.subr.mxu0 0.0
    %4680 = vmatpush1.xpose.msra.mxu0 0.0
    %4681 = vmatprep.subr.mxu0 0.0
    %4682 = vmatpush1.xpose.msra.mxu0 0.0
    %4683 = vmatprep.subr.mxu0 0.0
    %4684 = vmatpush1.xpose.msra.mxu0 0.0
    %4685 = vmatprep.subr.mxu0 0.0
    %4686 = vmatpush1.xpose.msra.mxu0 0.0
    %4687 = vmatprep.subr.mxu0 0.0
    %4688 = vmatpush1.xpose.msra.mxu0 0.0
    %4689 = vmatprep.subr.mxu0 0.0
    %4690 = vmatpush1.xpose.msra.mxu0 0.0
    %4691 = vmatprep.subr.mxu0 0.0
    %4692 = vmatpush1.xpose.msra.mxu0 0.0
    %4693 = vmatprep.subr.mxu0 0.0
    %4694 = vmatpush1.xpose.msra.mxu0 0.0
    %4695 = vmatprep.subr.mxu0 0.0
    %4696 = vmatpush1.xpose.msra.mxu0 0.0
    %4697 = vmatprep.subr.mxu0 0.0
    %4698 = vmatpush1.xpose.msra.mxu0 0.0
    %4699 = vmatprep.subr.mxu0 0.0
    %4700 = vmatpush1.xpose.msra.mxu0 0.0
    %4701 = vmatprep.subr.mxu0 0.0
    %4702 = vmatpush1.xpose.msra.mxu0 0.0
    %4703 = vmatprep.subr.mxu0 0.0
    %4704 = vmatpush1.xpose.msra.mxu0 0.0
    %4705 = vmatprep.subr.mxu0 0.0
    %4706 = vmatpush1.xpose.msra.mxu0 %v4675
    %4707 = vmatprep.subr.mxu0 0.0
    %4708 = vmatpush1.xpose.msra.mxu0 %v4672
    %4709 = vmatprep.subr.mxu0 0.0
    %4710 = vmatpush2.xpose.msra.mxu0 0.0
    %4711 = vmatprep.subr.mxu0 0.0
    %4712 = vmatpush2.xpose.msra.mxu0 0.0
    %4713 = vmatprep.subr.mxu0 0.0
    %4714 = vmatpush2.xpose.msra.mxu0 0.0
    %4715 = vmatprep.subr.mxu0 0.0
    %4716 = vmatpush2.xpose.msra.mxu0 0.0
    %4717 = vmatprep.subr.mxu0 0.0
    %4718 = vmatpush2.xpose.msra.mxu0 0.0
    %4719 = vmatprep.subr.mxu0 0.0
    %4720 = vmatpush2.xpose.msra.mxu0 0.0
    %4721 = vmatprep.subr.mxu0 0.0
    %4722 = vmatpush2.xpose.msra.mxu0 0.0
    %4723 = vmatprep.subr.mxu0 0.0
    %4724 = vmatpush2.xpose.msra.mxu0 0.0
    %4725 = vmatprep.subr.mxu0 0.0
    %4726 = vmatpush2.xpose.msra.mxu0 0.0
    %4727 = vmatprep.subr.mxu0 0.0
    %4728 = vmatpush2.xpose.msra.mxu0 0.0
    %4729 = vmatprep.subr.mxu0 0.0
    %4730 = vmatpush2.xpose.msra.mxu0 0.0
    %4731 = vmatprep.subr.mxu0 0.0
    %4732 = vmatpush2.xpose.msra.mxu0 0.0
    %4733 = vmatprep.subr.mxu0 0.0
    %4734 = vmatpush2.xpose.msra.mxu0 0.0
    %4735 = vmatprep.subr.mxu0 0.0
    %4736 = vmatpush2.xpose.msra.mxu0 0.0
    %4737 = vmatprep.subr.mxu0 0.0
    %4738 = vmatpush2.xpose.msra.mxu0 0.0
    %4739 = vmatprep.subr.mxu0 0.0
    %4740 = vmatpush2.xpose.msra.mxu0 0.0
    %4741 = vmatprep.mubr.f32.mxu0 0.0
    %4742 = vmatmul.mubr.f32.gmra.mxu0 %v4648
    %v4743 = vpop.f32.mrf.mxu0
    %v4744 = vadd.f32 0.0, %v4743
    %v4745 = vpop.f32.mrf.mxu0
    %4746 = vmatprep.mubr.f32.mxu0 0.0
    %4747 = vmatmul.mubr.f32.gmra.mxu0 %v4651
    %v4748 = vpop.f32.mrf.mxu0
    %v4749 = vadd.f32 0.0, %v4748
    %v4750 = vpop.f32.mrf.mxu0
    %4751 = vmatprep.mubr.f32.mxu0 0.0
    %4752 = vmatmul.mubr.f32.gmra.mxu0 %v4654
    %v4753 = vpop.f32.mrf.mxu0
    %v4754 = vadd.f32 0.0, %v4753
    %v4755 = vpop.f32.mrf.mxu0
    %4756 = vmatprep.mubr.f32.mxu0 0.0
    %4757 = vmatmul.mubr.f32.gmra.mxu0 %v4657
    %v4758 = vpop.f32.mrf.mxu0
    %v4759 = vadd.f32 0.0, %v4758
    %v4760 = vpop.f32.mrf.mxu0
    %4761 = vmatprep.mubr.f32.mxu0 0.0
    %4762 = vmatmul.mubr.f32.gmra.mxu0 %v4660
    %v4763 = vpop.f32.mrf.mxu0
    %v4764 = vadd.f32 0.0, %v4763
    %v4765 = vpop.f32.mrf.mxu0
    %4766 = vmatprep.mubr.f32.mxu0 0.0
    %4767 = vmatmul.mubr.f32.gmra.mxu0 %v4663
    %v4768 = vpop.f32.mrf.mxu0
    %v4769 = vadd.f32 0.0, %v4768
    %v4770 = vpop.f32.mrf.mxu0
    %4771 = vmatprep.mubr.f32.mxu0 0.0
    %4772 = vmatmul.mubr.f32.gmra.mxu0 %v4666
    %v4773 = vpop.f32.mrf.mxu0
    %v4774 = vadd.f32 0.0, %v4773
    %v4775 = vpop.f32.mrf.mxu0
    %4776 = vmatprep.mubr.f32.mxu0 0.0
    %4777 = vmatmul.mubr.f32.gmra.mxu0 %v4669
    %v4778 = vpop.f32.mrf.mxu0
    %v4779 = vadd.f32 0.0, %v4778
    %v4780 = vpop.f32.mrf.mxu0
    %4781 = vdwg.mxu0
    %v4782 = vmul.f32 %v4744, 0.35355338
    %v4783 = vmul.f32 %v4749, 0.35355338
    %v4784 = vmul.f32 %v4754, 0.35355338
    %v4785 = vmul.f32 %v4759, 0.35355338
    %v4786 = vmul.f32 %v4764, 0.35355338
    %v4787 = vmul.f32 %v4769, 0.35355338
    %v4788 = vmul.f32 %v4774, 0.35355338
    %v4789 = vmul.f32 %v4779, 0.35355338
    %v4790 = vadd.f32 %v4782, %v269
    %v4791 = vadd.f32 %v4783, %v270
    %v4792 = vadd.f32 %v4784, %v269
    %v4793 = vadd.f32 %v4785, %v270
    %v4794 = vadd.f32 %v4786, %v269
    %v4795 = vadd.f32 %v4787, %v270
    %v4796 = vadd.f32 %v4788, %v269
    %v4797 = vadd.f32 %v4789, %v270
    %v4798 = vsel %vm93, %v4790, -inf
    %4799 = vmax.xlane.f32.xlu0 %v4798
    %v4800 = vpop.xlane.xlu0 %4799
    %v4801 = vsel %vm93, %v4791, -inf
    %4802 = vmax.xlane.f32.xlu0 %v4801
    %v4803 = vpop.xlane.xlu0 %4802
    %v4804 = vsel %vm93, %v4792, -inf
    %4805 = vmax.xlane.f32.xlu0 %v4804
    %v4806 = vpop.xlane.xlu0 %4805
    %v4807 = vsel %vm93, %v4793, -inf
    %4808 = vmax.xlane.f32.xlu0 %v4807
    %v4809 = vpop.xlane.xlu0 %4808
    %v4810 = vsel %vm93, %v4794, -inf
    %4811 = vmax.xlane.f32.xlu0 %v4810
    %v4812 = vpop.xlane.xlu0 %4811
    %v4813 = vsel %vm93, %v4795, -inf
    %4814 = vmax.xlane.f32.xlu0 %v4813
    %v4815 = vpop.xlane.xlu0 %4814
    %v4816 = vsel %vm93, %v4796, -inf
    %4817 = vmax.xlane.f32.xlu0 %v4816
    %v4818 = vpop.xlane.xlu0 %4817
    %v4819 = vsel %vm93, %v4797, -inf
    %4820 = vmax.xlane.f32.xlu0 %v4819
    %v4821 = vpop.xlane.xlu0 %4820
    %v4822 = vsub.f32 %v4790, %v4800
    %v4823 = vsub.f32 %v4791, %v4803
    %v4824 = vsub.f32 %v4792, %v4806
    %v4825 = vsub.f32 %v4793, %v4809
    %v4826 = vsub.f32 %v4794, %v4812
    %v4827 = vsub.f32 %v4795, %v4815
    %v4828 = vsub.f32 %v4796, %v4818
    %v4829 = vsub.f32 %v4797, %v4821
    %v4830 = vmul.f32 %v4822, 1.442695
    %v4831 = vpow.pop %v4830
    %v4832 = vmul.f32 %v4823, 1.442695
    %v4833 = vpow.pop %v4832
    %v4834 = vmul.f32 %v4824, 1.442695
    %v4835 = vpow.pop %v4834
    %v4836 = vmul.f32 %v4825, 1.442695
    %v4837 = vpow.pop %v4836
    %v4838 = vmul.f32 %v4826, 1.442695
    %v4839 = vpow.pop %v4838
    %v4840 = vmul.f32 %v4827, 1.442695
    %v4841 = vpow.pop %v4840
    %v4842 = vmul.f32 %v4828, 1.442695
    %v4843 = vpow.pop %v4842
    %v4844 = vmul.f32 %v4829, 1.442695
    %v4845 = vpow.pop %v4844
    %v4846 = vsel %vm93, %v4831, 0.0
    %4847 = vadd.xlane.f32.xlu0 %v4846
    %v4848 = vpop.xlane.xlu0 %4847
    %v4849 = vsel %vm93, %v4833, 0.0
    %4850 = vadd.xlane.f32.xlu0 %v4849
    %v4851 = vpop.xlane.xlu0 %4850
    %v4852 = vsel %vm93, %v4835, 0.0
    %4853 = vadd.xlane.f32.xlu0 %v4852
    %v4854 = vpop.xlane.xlu0 %4853
    %v4855 = vsel %vm93, %v4837, 0.0
    %4856 = vadd.xlane.f32.xlu0 %v4855
    %v4857 = vpop.xlane.xlu0 %4856
    %v4858 = vsel %vm93, %v4839, 0.0
    %4859 = vadd.xlane.f32.xlu0 %v4858
    %v4860 = vpop.xlane.xlu0 %4859
    %v4861 = vsel %vm93, %v4841, 0.0
    %4862 = vadd.xlane.f32.xlu0 %v4861
    %v4863 = vpop.xlane.xlu0 %4862
    %v4864 = vsel %vm93, %v4843, 0.0
    %4865 = vadd.xlane.f32.xlu0 %v4864
    %v4866 = vpop.xlane.xlu0 %4865
    %v4867 = vsel %vm93, %v4845, 0.0
    %4868 = vadd.xlane.f32.xlu0 %v4867
    %v4869 = vpop.xlane.xlu0 %4868
    %v4870 = vrcp.pop %v4848
    %v4871 = vrcp.pop %v4851
    %v4872 = vrcp.pop %v4854
    %v4873 = vrcp.pop %v4857
    %v4874 = vrcp.pop %v4860
    %v4875 = vrcp.pop %v4863
    %v4876 = vrcp.pop %v4866
    %v4877 = vrcp.pop %v4869
    %v4878 = vmul.f32 %v4831, %v4870
    %v4879 = vmul.f32 %v4833, %v4871
    %v4880 = vmul.f32 %v4835, %v4872
    %v4881 = vmul.f32 %v4837, %v4873
    %v4882 = vmul.f32 %v4839, %v4874
    %v4883 = vmul.f32 %v4841, %v4875
    %v4884 = vmul.f32 %v4843, %v4876
    %v4885 = vmul.f32 %v4845, %v4877
    %4886 = vrot.lane.b32.xlu0 %v4626, 96
    %v4887 = vpop.permute.xlu0 %4886
    %4888 = vrot.lane.b32.xlu0 %v4631, 96
    %v4889 = vpop.permute.xlu0 %4888
    %v4893 = vsel %vm93, %v4878, 0
    %v4896 = vsel %vm93, %v4879, 0
    %v4899 = vsel %vm93, %v4880, 0
    %v4902 = vsel %vm93, %v4881, 0
    %v4905 = vsel %vm93, %v4882, 0
    %v4908 = vsel %vm93, %v4883, 0
    %v4911 = vsel %vm93, %v4884, 0
    %v4914 = vsel %vm93, %v4885, 0
    %4916 = vmatprep.subr.mxu0 0.0
    %4917 = vmatpush1.msra.mxu0 0.0
    %4918 = vmatprep.subr.mxu0 0.0
    %4919 = vmatpush1.msra.mxu0 0.0
    %4920 = vmatprep.subr.mxu0 0.0
    %4921 = vmatpush1.msra.mxu0 0.0
    %4922 = vmatprep.subr.mxu0 0.0
    %4923 = vmatpush1.msra.mxu0 0.0
    %4924 = vmatprep.subr.mxu0 0.0
    %4925 = vmatpush1.msra.mxu0 0.0
    %4926 = vmatprep.subr.mxu0 0.0
    %4927 = vmatpush1.msra.mxu0 0.0
    %4928 = vmatprep.subr.mxu0 0.0
    %4929 = vmatpush1.msra.mxu0 0.0
    %4930 = vmatprep.subr.mxu0 0.0
    %4931 = vmatpush1.msra.mxu0 0.0
    %4932 = vmatprep.subr.mxu0 0.0
    %4933 = vmatpush1.msra.mxu0 0.0
    %4934 = vmatprep.subr.mxu0 0.0
    %4935 = vmatpush1.msra.mxu0 0.0
    %4936 = vmatprep.subr.mxu0 0.0
    %4937 = vmatpush1.msra.mxu0 0.0
    %4938 = vmatprep.subr.mxu0 0.0
    %4939 = vmatpush1.msra.mxu0 0.0
    %4940 = vmatprep.subr.mxu0 0.0
    %4941 = vmatpush1.msra.mxu0 0.0
    %4942 = vmatprep.subr.mxu0 0.0
    %4943 = vmatpush1.msra.mxu0 0.0
    %4944 = vmatprep.subr.mxu0 0.0
    %4945 = vmatpush1.msra.mxu0 %v4889
    %4946 = vmatprep.subr.mxu0 0.0
    %4947 = vmatpush1.msra.mxu0 %v4887
    %4948 = vmatprep.subr.mxu0 0.0
    %4949 = vmatpush2.msra.mxu0 0.0
    %4950 = vmatprep.subr.mxu0 0.0
    %4951 = vmatpush2.msra.mxu0 0.0
    %4952 = vmatprep.subr.mxu0 0.0
    %4953 = vmatpush2.msra.mxu0 0.0
    %4954 = vmatprep.subr.mxu0 0.0
    %4955 = vmatpush2.msra.mxu0 0.0
    %4956 = vmatprep.subr.mxu0 0.0
    %4957 = vmatpush2.msra.mxu0 0.0
    %4958 = vmatprep.subr.mxu0 0.0
    %4959 = vmatpush2.msra.mxu0 0.0
    %4960 = vmatprep.subr.mxu0 0.0
    %4961 = vmatpush2.msra.mxu0 0.0
    %4962 = vmatprep.subr.mxu0 0.0
    %4963 = vmatpush2.msra.mxu0 0.0
    %4964 = vmatprep.subr.mxu0 0.0
    %4965 = vmatpush2.msra.mxu0 0.0
    %4966 = vmatprep.subr.mxu0 0.0
    %4967 = vmatpush2.msra.mxu0 0.0
    %4968 = vmatprep.subr.mxu0 0.0
    %4969 = vmatpush2.msra.mxu0 0.0
    %4970 = vmatprep.subr.mxu0 0.0
    %4971 = vmatpush2.msra.mxu0 0.0
    %4972 = vmatprep.subr.mxu0 0.0
    %4973 = vmatpush2.msra.mxu0 0.0
    %4974 = vmatprep.subr.mxu0 0.0
    %4975 = vmatpush2.msra.mxu0 0.0
    %4976 = vmatprep.subr.mxu0 0.0
    %4977 = vmatpush2.msra.mxu0 0.0
    %4978 = vmatprep.subr.mxu0 0.0
    %4979 = vmatpush2.msra.mxu0 0.0
    %4980 = vmatprep.mubr.f32.mxu0 0.0
    %4981 = vmatmul.mubr.f32.gmra.mxu0 %v4893
    %v4982 = vpop.f32.mrf.mxu0
    %v4983 = vadd.f32 0.0, %v4982
    %v4984 = vpop.f32.mrf.mxu0
    %4985 = vmatprep.mubr.f32.mxu0 0.0
    %4986 = vmatmul.mubr.f32.gmra.mxu0 %v4896
    %v4987 = vpop.f32.mrf.mxu0
    %v4988 = vadd.f32 0.0, %v4987
    %v4989 = vpop.f32.mrf.mxu0
    %4990 = vmatprep.mubr.f32.mxu0 0.0
    %4991 = vmatmul.mubr.f32.gmra.mxu0 %v4899
    %v4992 = vpop.f32.mrf.mxu0
    %v4993 = vadd.f32 0.0, %v4992
    %v4994 = vpop.f32.mrf.mxu0
    %4995 = vmatprep.mubr.f32.mxu0 0.0
    %4996 = vmatmul.mubr.f32.gmra.mxu0 %v4902
    %v4997 = vpop.f32.mrf.mxu0
    %v4998 = vadd.f32 0.0, %v4997
    %v4999 = vpop.f32.mrf.mxu0
    %5000 = vmatprep.mubr.f32.mxu0 0.0
    %5001 = vmatmul.mubr.f32.gmra.mxu0 %v4905
    %v5002 = vpop.f32.mrf.mxu0
    %v5003 = vadd.f32 0.0, %v5002
    %v5004 = vpop.f32.mrf.mxu0
    %5005 = vmatprep.mubr.f32.mxu0 0.0
    %5006 = vmatmul.mubr.f32.gmra.mxu0 %v4908
    %v5007 = vpop.f32.mrf.mxu0
    %v5008 = vadd.f32 0.0, %v5007
    %v5009 = vpop.f32.mrf.mxu0
    %5010 = vmatprep.mubr.f32.mxu0 0.0
    %5011 = vmatmul.mubr.f32.gmra.mxu0 %v4911
    %v5012 = vpop.f32.mrf.mxu0
    %v5013 = vadd.f32 0.0, %v5012
    %v5014 = vpop.f32.mrf.mxu0
    %5015 = vmatprep.mubr.f32.mxu0 0.0
    %5016 = vmatmul.mubr.f32.gmra.mxu0 %v4914
    %v5017 = vpop.f32.mrf.mxu0
    %v5018 = vadd.f32 0.0, %v5017
    %v5019 = vpop.f32.mrf.mxu0
    %5020 = vdwg.mxu0
    %v5021 = vmul.f32 %v4983, %v617
    %v5022 = vmul.f32 %v4988, %v617
    %v5023 = vmul.f32 %v4993, %v621
    %v5024 = vmul.f32 %v4998, %v621
    %v5025 = vmul.f32 %v5003, %v625
    %v5026 = vmul.f32 %v5008, %v625
    %v5027 = vmul.f32 %v5013, %v629
    %v5028 = vmul.f32 %v5018, %v629
    %v5029 = vadd.f32 %v5021, %v5023
    %v5030 = vadd.f32 %v5022, %v5024
    %v5031 = vadd.f32 %v5029, %v5025
    %v5032 = vadd.f32 %v5030, %v5026
    %v5033 = vadd.f32 %v5031, %v5027
    %v5034 = vadd.f32 %v5032, %v5028
    %v5035 = vlaneseq
    %v5036 = vshrl.u32 %v5035, 7
    %v5037 = vsub.s32 0, %v5036
    %v5038 = vrot.slane %v4638, %v5037
    %v5040 = vsel %vm527, %v5033, 0
    %v5043 = vsel %vm527, %v5034, 0
    %5045 = vmatprep.subr.mxu0 0.0
    %5046 = vmatpush1.msra.mxu0 0.0
    %5047 = vmatprep.subr.mxu0 0.0
    %5048 = vmatpush1.msra.mxu0 0.0
    %5049 = vmatprep.subr.mxu0 0.0
    %5050 = vmatpush1.msra.mxu0 0.0
    %5051 = vmatprep.subr.mxu0 0.0
    %5052 = vmatpush1.msra.mxu0 0.0
    %5053 = vmatprep.subr.mxu0 0.0
    %5054 = vmatpush1.msra.mxu0 0.0
    %5055 = vmatprep.subr.mxu0 0.0
    %5056 = vmatpush1.msra.mxu0 0.0
    %5057 = vmatprep.subr.mxu0 0.0
    %5058 = vmatpush1.msra.mxu0 0.0
    %5059 = vmatprep.subr.mxu0 0.0
    %5060 = vmatpush1.msra.mxu0 0.0
    %5061 = vmatprep.subr.mxu0 0.0
    %5062 = vmatpush1.msra.mxu0 0.0
    %5063 = vmatprep.subr.mxu0 0.0
    %5064 = vmatpush1.msra.mxu0 0.0
    %5065 = vmatprep.subr.mxu0 0.0
    %5066 = vmatpush1.msra.mxu0 0.0
    %5067 = vmatprep.subr.mxu0 0.0
    %5068 = vmatpush1.msra.mxu0 0.0
    %5069 = vmatprep.subr.mxu0 0.0
    %5070 = vmatpush1.msra.mxu0 %v4637
    %5071 = vmatprep.subr.mxu0 0.0
    %5072 = vmatpush1.msra.mxu0 %v4636
    %5073 = vmatprep.subr.mxu0 0.0
    %5074 = vmatpush1.msra.mxu0 %v4635
    %5075 = vmatprep.subr.mxu0 0.0
    %5076 = vmatpush1.msra.mxu0 %v4634
    %5077 = vmatprep.subr.mxu0 0.0
    %5078 = vmatpush2.msra.mxu0 0.0
    %5079 = vmatprep.subr.mxu0 0.0
    %5080 = vmatpush2.msra.mxu0 0.0
    %5081 = vmatprep.subr.mxu0 0.0
    %5082 = vmatpush2.msra.mxu0 0.0
    %5083 = vmatprep.subr.mxu0 0.0
    %5084 = vmatpush2.msra.mxu0 0.0
    %5085 = vmatprep.subr.mxu0 0.0
    %5086 = vmatpush2.msra.mxu0 0.0
    %5087 = vmatprep.subr.mxu0 0.0
    %5088 = vmatpush2.msra.mxu0 0.0
    %5089 = vmatprep.subr.mxu0 0.0
    %5090 = vmatpush2.msra.mxu0 0.0
    %5091 = vmatprep.subr.mxu0 0.0
    %5092 = vmatpush2.msra.mxu0 0.0
    %5093 = vmatprep.subr.mxu0 0.0
    %5094 = vmatpush2.msra.mxu0 0.0
    %5095 = vmatprep.subr.mxu0 0.0
    %5096 = vmatpush2.msra.mxu0 0.0
    %5097 = vmatprep.subr.mxu0 0.0
    %5098 = vmatpush2.msra.mxu0 0.0
    %5099 = vmatprep.subr.mxu0 0.0
    %5100 = vmatpush2.msra.mxu0 0.0
    %5101 = vmatprep.subr.mxu0 0.0
    %5102 = vmatpush2.msra.mxu0 0.0
    %5103 = vmatprep.subr.mxu0 0.0
    %5104 = vmatpush2.msra.mxu0 0.0
    %5105 = vmatprep.subr.mxu0 0.0
    %5106 = vmatpush2.msra.mxu0 0.0
    %5107 = vmatprep.subr.mxu0 0.0
    %5108 = vmatpush2.msra.mxu0 0.0
    %5109 = vmatprep.mubr.f32.mxu0 0.0
    %5110 = vmatmul.mubr.f32.gmra.mxu0 %v5040
    %v5111 = vpop.f32.mrf.mxu0
    %v5112 = vadd.f32 %v5038, %v5111
    %v5113 = vpop.f32.mrf.mxu0
    %5114 = vmatprep.mubr.f32.mxu0 0.0
    %5115 = vmatmul.mubr.f32.gmra.mxu0 %v5043
    %v5116 = vpop.f32.mrf.mxu0
    %v5117 = vadd.f32 %v5038, %v5116
    %v5118 = vpop.f32.mrf.mxu0
    %5119 = vdwg.mxu0
    %v5120 = vadd.f32 %v4458, %v5112
    %v5121 = vadd.f32 %v4459, %v5117
    %v5122 = vld [vmem:[#allocation2 + $0x3a6] sm:$0x1]
    %v5123 = vld [vmem:[#allocation2 + $0x3a7] sm:$0x1]
    %v5124 = vsel %vm527, %v5120, 0.0
    %5125 = vadd.xlane.f32.xlu0 %v5124
    %v5126 = vpop.xlane.xlu0 %5125
    %v5127 = vsel %vm527, %v5121, 0.0
    %5128 = vadd.xlane.f32.xlu0 %v5127
    %v5129 = vpop.xlane.xlu0 %5128
    %v5130 = vmul.f32 %v5126, %v1129
    %v5131 = vmul.f32 %v5129, %v1129
    %v5132 = vsub.f32 %v5120, %v5130
    %v5133 = vsub.f32 %v5121, %v5131
    %v5134 = vmul.f32 %v5132, %v5132
    %v5135 = vmul.f32 %v5133, %v5133
    %v5136 = vsel %vm527, %v5134, 0.0
    %5137 = vadd.xlane.f32.xlu0 %v5136
    %v5138 = vpop.xlane.xlu0 %5137
    %v5139 = vsel %vm527, %v5135, 0.0
    %5140 = vadd.xlane.f32.xlu0 %v5139
    %v5141 = vpop.xlane.xlu0 %5140
    %v5142 = vmul.f32 %v5138, %v1129
    %v5143 = vmul.f32 %v5141, %v1129
    %v5144 = vadd.f32 %v5142, 1e-05
    %v5145 = vadd.f32 %v5143, 1e-05
    %v5146 = vrsqrt.pop %v5144
    %v5147 = vrsqrt.pop %v5145
    %v5148 = vmul.f32 %v5132, %v5146
    %v5149 = vmul.f32 %v5133, %v5147
    %v5150 = vlaneseq
    %v5151 = vshrl.u32 %v5150, 7
    %v5152 = vsub.s32 0, %v5151
    %v5153 = vrot.slane %v5122, %v5152
    %v5154 = vmul.f32 %v5148, %v5153
    %v5155 = vmul.f32 %v5149, %v5153
    %v5156 = vlaneseq
    %v5157 = vshrl.u32 %v5156, 7
    %v5158 = vsub.s32 0, %v5157
    %v5159 = vrot.slane %v5123, %v5158
    %v5160 = vadd.f32 %v5154, %v5159
    %v5161 = vadd.f32 %v5155, %v5159
    %v5162 = vld [vmem:[#allocation2 + $0x342] sm:$0xff]
    %v5163 = vld [vmem:[#allocation2 + $0x34a] sm:$0xff]
    %v5164 = vld [vmem:[#allocation2 + $0x352] sm:$0xff]
    %v5165 = vld [vmem:[#allocation2 + $0x35a] sm:$0xff]
    %v5166 = vld [vmem:[#allocation2 + $0x362] sm:$0x1]
    %v5167 = vlaneseq
    %v5168 = vshrl.u32 %v5167, 7
    %v5169 = vsub.s32 0, %v5168
    %v5170 = vrot.slane %v5166, %v5169
    %v5172 = vsel %vm527, %v5160, 0
    %v5175 = vsel %vm527, %v5161, 0
    %5177 = vmatprep.subr.mxu0 0.0
    %5178 = vmatpush1.msra.mxu0 0.0
    %5179 = vmatprep.subr.mxu0 0.0
    %5180 = vmatpush1.msra.mxu0 0.0
    %5181 = vmatprep.subr.mxu0 0.0
    %5182 = vmatpush1.msra.mxu0 0.0
    %5183 = vmatprep.subr.mxu0 0.0
    %5184 = vmatpush1.msra.mxu0 0.0
    %5185 = vmatprep.subr.mxu0 0.0
    %5186 = vmatpush1.msra.mxu0 0.0
    %5187 = vmatprep.subr.mxu0 0.0
    %5188 = vmatpush1.msra.mxu0 0.0
    %5189 = vmatprep.subr.mxu0 0.0
    %5190 = vmatpush1.msra.mxu0 0.0
    %5191 = vmatprep.subr.mxu0 0.0
    %5192 = vmatpush1.msra.mxu0 0.0
    %5193 = vmatprep.subr.mxu0 0.0
    %5194 = vmatpush1.msra.mxu0 0.0
    %5195 = vmatprep.subr.mxu0 0.0
    %5196 = vmatpush1.msra.mxu0 0.0
    %5197 = vmatprep.subr.mxu0 0.0
    %5198 = vmatpush1.msra.mxu0 0.0
    %5199 = vmatprep.subr.mxu0 0.0
    %5200 = vmatpush1.msra.mxu0 0.0
    %5201 = vmatprep.subr.mxu0 0.0
    %5202 = vmatpush1.msra.mxu0 %v5165
    %5203 = vmatprep.subr.mxu0 0.0
    %5204 = vmatpush1.msra.mxu0 %v5164
    %5205 = vmatprep.subr.mxu0 0.0
    %5206 = vmatpush1.msra.mxu0 %v5163
    %5207 = vmatprep.subr.mxu0 0.0
    %5208 = vmatpush1.msra.mxu0 %v5162
    %5209 = vmatprep.subr.mxu0 0.0
    %5210 = vmatpush2.msra.mxu0 0.0
    %5211 = vmatprep.subr.mxu0 0.0
    %5212 = vmatpush2.msra.mxu0 0.0
    %5213 = vmatprep.subr.mxu0 0.0
    %5214 = vmatpush2.msra.mxu0 0.0
    %5215 = vmatprep.subr.mxu0 0.0
    %5216 = vmatpush2.msra.mxu0 0.0
    %5217 = vmatprep.subr.mxu0 0.0
    %5218 = vmatpush2.msra.mxu0 0.0
    %5219 = vmatprep.subr.mxu0 0.0
    %5220 = vmatpush2.msra.mxu0 0.0
    %5221 = vmatprep.subr.mxu0 0.0
    %5222 = vmatpush2.msra.mxu0 0.0
    %5223 = vmatprep.subr.mxu0 0.0
    %5224 = vmatpush2.msra.mxu0 0.0
    %5225 = vmatprep.subr.mxu0 0.0
    %5226 = vmatpush2.msra.mxu0 0.0
    %5227 = vmatprep.subr.mxu0 0.0
    %5228 = vmatpush2.msra.mxu0 0.0
    %5229 = vmatprep.subr.mxu0 0.0
    %5230 = vmatpush2.msra.mxu0 0.0
    %5231 = vmatprep.subr.mxu0 0.0
    %5232 = vmatpush2.msra.mxu0 0.0
    %5233 = vmatprep.subr.mxu0 0.0
    %5234 = vmatpush2.msra.mxu0 0.0
    %5235 = vmatprep.subr.mxu0 0.0
    %5236 = vmatpush2.msra.mxu0 0.0
    %5237 = vmatprep.subr.mxu0 0.0
    %5238 = vmatpush2.msra.mxu0 0.0
    %5239 = vmatprep.subr.mxu0 0.0
    %5240 = vmatpush2.msra.mxu0 0.0
    %5241 = vmatprep.mubr.f32.mxu0 0.0
    %5242 = vmatmul.mubr.f32.gmra.mxu0 %v5172
    %v5243 = vpop.f32.mrf.mxu0
    %v5244 = vadd.f32 %v5170, %v5243
    %v5245 = vpop.f32.mrf.mxu0
    %5246 = vmatprep.mubr.f32.mxu0 0.0
    %5247 = vmatmul.mubr.f32.gmra.mxu0 %v5175
    %v5248 = vpop.f32.mrf.mxu0
    %v5249 = vadd.f32 %v5170, %v5248
    %v5250 = vpop.f32.mrf.mxu0
    %5251 = vdwg.mxu0
    %v5252 = vmax.f32 %v5244, 0.0
    %v5253 = vmax.f32 %v5249, 0.0
    %v5254 = vld [vmem:[#allocation2 + $0x363] sm:$0xff]
    %v5255 = vld [vmem:[#allocation2 + $0x36b] sm:$0xff]
    %v5256 = vld [vmem:[#allocation2 + $0x373] sm:$0xff]
    %v5257 = vld [vmem:[#allocation2 + $0x37b] sm:$0xff]
    %v5258 = vld [vmem:[#allocation2 + $0x383] sm:$0xff]
    %v5259 = vld [vmem:[#allocation2 + $0x38b] sm:$0xff]
    %v5260 = vld [vmem:[#allocation2 + $0x393] sm:$0xff]
    %v5261 = vld [vmem:[#allocation2 + $0x39b] sm:$0xff]
    %v5262 = vld [vmem:[#allocation2 + $0x3a3] sm:$0x1]
    %v5263 = vlaneseq
    %v5264 = vshrl.u32 %v5263, 7
    %v5265 = vsub.s32 0, %v5264
    %v5266 = vrot.slane %v5262, %v5265
    %v5268 = vsel %vm343, %v5252, 0
    %v5271 = vsel %vm343, %v5253, 0
    %5273 = vmatprep.subr.mxu0 0.0
    %5274 = vmatpush1.msra.mxu0 0.0
    %5275 = vmatprep.subr.mxu0 0.0
    %5276 = vmatpush1.msra.mxu0 0.0
    %5277 = vmatprep.subr.mxu0 0.0
    %5278 = vmatpush1.msra.mxu0 0.0
    %5279 = vmatprep.subr.mxu0 0.0
    %5280 = vmatpush1.msra.mxu0 0.0
    %5281 = vmatprep.subr.mxu0 0.0
    %5282 = vmatpush1.msra.mxu0 0.0
    %5283 = vmatprep.subr.mxu0 0.0
    %5284 = vmatpush1.msra.mxu0 0.0
    %5285 = vmatprep.subr.mxu0 0.0
    %5286 = vmatpush1.msra.mxu0 0.0
    %5287 = vmatprep.subr.mxu0 0.0
    %5288 = vmatpush1.msra.mxu0 0.0
    %5289 = vmatprep.subr.mxu0 0.0
    %5290 = vmatpush1.msra.mxu0 %v5261
    %5291 = vmatprep.subr.mxu0 0.0
    %5292 = vmatpush1.msra.mxu0 %v5260
    %5293 = vmatprep.subr.mxu0 0.0
    %5294 = vmatpush1.msra.mxu0 %v5259
    %5295 = vmatprep.subr.mxu0 0.0
    %5296 = vmatpush1.msra.mxu0 %v5258
    %5297 = vmatprep.subr.mxu0 0.0
    %5298 = vmatpush1.msra.mxu0 %v5257
    %5299 = vmatprep.subr.mxu0 0.0
    %5300 = vmatpush1.msra.mxu0 %v5256
    %5301 = vmatprep.subr.mxu0 0.0
    %5302 = vmatpush1.msra.mxu0 %v5255
    %5303 = vmatprep.subr.mxu0 0.0
    %5304 = vmatpush1.msra.mxu0 %v5254
    %5305 = vmatprep.subr.mxu0 0.0
    %5306 = vmatpush2.msra.mxu0 0.0
    %5307 = vmatprep.subr.mxu0 0.0
    %5308 = vmatpush2.msra.mxu0 0.0
    %5309 = vmatprep.subr.mxu0 0.0
    %5310 = vmatpush2.msra.mxu0 0.0
    %5311 = vmatprep.subr.mxu0 0.0
    %5312 = vmatpush2.msra.mxu0 0.0
    %5313 = vmatprep.subr.mxu0 0.0
    %5314 = vmatpush2.msra.mxu0 0.0
    %5315 = vmatprep.subr.mxu0 0.0
    %5316 = vmatpush2.msra.mxu0 0.0
    %5317 = vmatprep.subr.mxu0 0.0
    %5318 = vmatpush2.msra.mxu0 0.0
    %5319 = vmatprep.subr.mxu0 0.0
    %5320 = vmatpush2.msra.mxu0 0.0
    %5321 = vmatprep.subr.mxu0 0.0
    %5322 = vmatpush2.msra.mxu0 0.0
    %5323 = vmatprep.subr.mxu0 0.0
    %5324 = vmatpush2.msra.mxu0 0.0
    %5325 = vmatprep.subr.mxu0 0.0
    %5326 = vmatpush2.msra.mxu0 0.0
    %5327 = vmatprep.subr.mxu0 0.0
    %5328 = vmatpush2.msra.mxu0 0.0
    %5329 = vmatprep.subr.mxu0 0.0
    %5330 = vmatpush2.msra.mxu0 0.0
    %5331 = vmatprep.subr.mxu0 0.0
    %5332 = vmatpush2.msra.mxu0 0.0
    %5333 = vmatprep.subr.mxu0 0.0
    %5334 = vmatpush2.msra.mxu0 0.0
    %5335 = vmatprep.subr.mxu0 0.0
    %5336 = vmatpush2.msra.mxu0 0.0
    %5337 = vmatprep.mubr.f32.mxu0 0.0
    %5338 = vmatmul.mubr.f32.gmra.mxu0 %v5268
    %v5339 = vpop.f32.mrf.mxu0
    %v5340 = vadd.f32 %v5266, %v5339
    %v5341 = vpop.f32.mrf.mxu0
    %5342 = vmatprep.mubr.f32.mxu0 0.0
    %5343 = vmatmul.mubr.f32.gmra.mxu0 %v5271
    %v5344 = vpop.f32.mrf.mxu0
    %v5345 = vadd.f32 %v5266, %v5344
    %v5346 = vpop.f32.mrf.mxu0
    %5347 = vdwg.mxu0
    %v5348 = vadd.f32 %v5160, %v5340
    %v5349 = vadd.f32 %v5161, %v5345
    %v5350 = vld [vmem:[#allocation2 + $0x3a8] sm:$0x1]
    %v5351 = vld [vmem:[#allocation2 + $0x3a9] sm:$0x1]
    %v5352 = vsel %vm527, %v5348, 0.0
    %5353 = vadd.xlane.f32.xlu0 %v5352
    %v5354 = vpop.xlane.xlu0 %5353
    %v5355 = vsel %vm527, %v5349, 0.0
    %5356 = vadd.xlane.f32.xlu0 %v5355
    %v5357 = vpop.xlane.xlu0 %5356
    %v5358 = vmul.f32 %v5354, %v1129
    %v5359 = vmul.f32 %v5357, %v1129
    %v5360 = vsub.f32 %v5348, %v5358
    %v5361 = vsub.f32 %v5349, %v5359
    %v5362 = vmul.f32 %v5360, %v5360
    %v5363 = vmul.f32 %v5361, %v5361
    %v5364 = vsel %vm527, %v5362, 0.0
    %5365 = vadd.xlane.f32.xlu0 %v5364
    %v5366 = vpop.xlane.xlu0 %5365
    %v5367 = vsel %vm527, %v5363, 0.0
    %5368 = vadd.xlane.f32.xlu0 %v5367
    %v5369 = vpop.xlane.xlu0 %5368
    %v5370 = vmul.f32 %v5366, %v1129
    %v5371 = vmul.f32 %v5369, %v1129
    %v5372 = vadd.f32 %v5370, 1e-05
    %v5373 = vadd.f32 %v5371, 1e-05
    %v5374 = vrsqrt.pop %v5372
    %v5375 = vrsqrt.pop %v5373
    %v5376 = vmul.f32 %v5360, %v5374
    %v5377 = vmul.f32 %v5361, %v5375
    %v5378 = vlaneseq
    %v5379 = vshrl.u32 %v5378, 7
    %v5380 = vsub.s32 0, %v5379
    %v5381 = vrot.slane %v5350, %v5380
    %v5382 = vmul.f32 %v5376, %v5381
    %v5383 = vmul.f32 %v5377, %v5381
    %v5384 = vlaneseq
    %v5385 = vshrl.u32 %v5384, 7
    %v5386 = vsub.s32 0, %v5385
    %v5387 = vrot.slane %v5351, %v5386
    %v5388 = vadd.f32 %v5382, %v5387
    %v5389 = vadd.f32 %v5383, %v5387
    %v5390 = vld [vmem:[#allocation2 + $0x3ac] sm:$0x1]
    %v5391 = vld [vmem:[#allocation2 + $0x3ad] sm:$0x1]
    %v5392 = vsel %vm527, %v5388, 0.0
    %5393 = vadd.xlane.f32.xlu0 %v5392
    %v5394 = vpop.xlane.xlu0 %5393
    %v5395 = vsel %vm527, %v5389, 0.0
    %5396 = vadd.xlane.f32.xlu0 %v5395
    %v5397 = vpop.xlane.xlu0 %5396
    %v5398 = vmul.f32 %v5394, %v1129
    %v5399 = vmul.f32 %v5397, %v1129
    %v5400 = vsub.f32 %v5388, %v5398
    %v5401 = vsub.f32 %v5389, %v5399
    %v5402 = vmul.f32 %v5400, %v5400
    %v5403 = vmul.f32 %v5401, %v5401
    %v5404 = vsel %vm527, %v5402, 0.0
    %5405 = vadd.xlane.f32.xlu0 %v5404
    %v5406 = vpop.xlane.xlu0 %5405
    %v5407 = vsel %vm527, %v5403, 0.0
    %5408 = vadd.xlane.f32.xlu0 %v5407
    %v5409 = vpop.xlane.xlu0 %5408
    %v5410 = vmul.f32 %v5406, %v1129
    %v5411 = vmul.f32 %v5409, %v1129
    %v5412 = vadd.f32 %v5410, 1e-05
    %v5413 = vadd.f32 %v5411, 1e-05
    %v5414 = vrsqrt.pop %v5412
    %v5415 = vrsqrt.pop %v5413
    %v5416 = vmul.f32 %v5400, %v5414
    %v5417 = vmul.f32 %v5401, %v5415
    %v5418 = vlaneseq
    %v5419 = vshrl.u32 %v5418, 7
    %v5420 = vsub.s32 0, %v5419
    %v5421 = vrot.slane %v5390, %v5420
    %v5422 = vmul.f32 %v5416, %v5421
    %v5423 = vmul.f32 %v5417, %v5421
    %v5424 = vlaneseq
    %v5425 = vshrl.u32 %v5424, 7
    %v5426 = vsub.s32 0, %v5425
    %v5427 = vrot.slane %v5391, %v5426
    %v5428 = vadd.f32 %v5422, %v5427
    %v5429 = vadd.f32 %v5423, %v5427
    %v5430 = vld [vmem:[#allocation2 + $0x3ae] sm:$0xff]
    %v5431 = vld [vmem:[#allocation2 + $0x3b6] sm:$0xff]
    %v5432 = vld [vmem:[#allocation2 + $0x3be] sm:$0xff]
    %v5433 = vld [vmem:[#allocation2 + $0x3c6] sm:$0xff]
    %v5434 = vld [vmem:[#allocation2 + $0x3ce] sm:$0x1]
    %v5435 = vlaneseq
    %v5436 = vshrl.u32 %v5435, 7
    %v5437 = vsub.s32 0, %v5436
    %v5438 = vrot.slane %v5434, %v5437
    %v5440 = vsel %vm527, %v5428, 0
    %v5443 = vsel %vm527, %v5429, 0
    %5445 = vmatprep.subr.mxu0 0.0
    %5446 = vmatpush1.msra.mxu0 0.0
    %5447 = vmatprep.subr.mxu0 0.0
    %5448 = vmatpush1.msra.mxu0 0.0
    %5449 = vmatprep.subr.mxu0 0.0
    %5450 = vmatpush1.msra.mxu0 0.0
    %5451 = vmatprep.subr.mxu0 0.0
    %5452 = vmatpush1.msra.mxu0 0.0
    %5453 = vmatprep.subr.mxu0 0.0
    %5454 = vmatpush1.msra.mxu0 0.0
    %5455 = vmatprep.subr.mxu0 0.0
    %5456 = vmatpush1.msra.mxu0 0.0
    %5457 = vmatprep.subr.mxu0 0.0
    %5458 = vmatpush1.msra.mxu0 0.0
    %5459 = vmatprep.subr.mxu0 0.0
    %5460 = vmatpush1.msra.mxu0 0.0
    %5461 = vmatprep.subr.mxu0 0.0
    %5462 = vmatpush1.msra.mxu0 0.0
    %5463 = vmatprep.subr.mxu0 0.0
    %5464 = vmatpush1.msra.mxu0 0.0
    %5465 = vmatprep.subr.mxu0 0.0
    %5466 = vmatpush1.msra.mxu0 0.0
    %5467 = vmatprep.subr.mxu0 0.0
    %5468 = vmatpush1.msra.mxu0 0.0
    %5469 = vmatprep.subr.mxu0 0.0
    %5470 = vmatpush1.msra.mxu0 %v5433
    %5471 = vmatprep.subr.mxu0 0.0
    %5472 = vmatpush1.msra.mxu0 %v5432
    %5473 = vmatprep.subr.mxu0 0.0
    %5474 = vmatpush1.msra.mxu0 %v5431
    %5475 = vmatprep.subr.mxu0 0.0
    %5476 = vmatpush1.msra.mxu0 %v5430
    %5477 = vmatprep.subr.mxu0 0.0
    %5478 = vmatpush2.msra.mxu0 0.0
    %5479 = vmatprep.subr.mxu0 0.0
    %5480 = vmatpush2.msra.mxu0 0.0
    %5481 = vmatprep.subr.mxu0 0.0
    %5482 = vmatpush2.msra.mxu0 0.0
    %5483 = vmatprep.subr.mxu0 0.0
    %5484 = vmatpush2.msra.mxu0 0.0
    %5485 = vmatprep.subr.mxu0 0.0
    %5486 = vmatpush2.msra.mxu0 0.0
    %5487 = vmatprep.subr.mxu0 0.0
    %5488 = vmatpush2.msra.mxu0 0.0
    %5489 = vmatprep.subr.mxu0 0.0
    %5490 = vmatpush2.msra.mxu0 0.0
    %5491 = vmatprep.subr.mxu0 0.0
    %5492 = vmatpush2.msra.mxu0 0.0
    %5493 = vmatprep.subr.mxu0 0.0
    %5494 = vmatpush2.msra.mxu0 0.0
    %5495 = vmatprep.subr.mxu0 0.0
    %5496 = vmatpush2.msra.mxu0 0.0
    %5497 = vmatprep.subr.mxu0 0.0
    %5498 = vmatpush2.msra.mxu0 0.0
    %5499 = vmatprep.subr.mxu0 0.0
    %5500 = vmatpush2.msra.mxu0 0.0
    %5501 = vmatprep.subr.mxu0 0.0
    %5502 = vmatpush2.msra.mxu0 0.0
    %5503 = vmatprep.subr.mxu0 0.0
    %5504 = vmatpush2.msra.mxu0 0.0
    %5505 = vmatprep.subr.mxu0 0.0
    %5506 = vmatpush2.msra.mxu0 0.0
    %5507 = vmatprep.subr.mxu0 0.0
    %5508 = vmatpush2.msra.mxu0 0.0
    %5509 = vmatprep.mubr.f32.mxu0 0.0
    %5510 = vmatmul.mubr.f32.gmra.mxu0 %v5440
    %v5511 = vpop.f32.mrf.mxu0
    %v5512 = vadd.f32 %v5438, %v5511
    %v5513 = vpop.f32.mrf.mxu0
    %5514 = vmatprep.mubr.f32.mxu0 0.0
    %5515 = vmatmul.mubr.f32.gmra.mxu0 %v5443
    %v5516 = vpop.f32.mrf.mxu0
    %v5517 = vadd.f32 %v5438, %v5516
    %v5518 = vpop.f32.mrf.mxu0
    %5519 = vdwg.mxu0
    %5520 = vst [vmem:[%s3] sm:$0xff] %v5512
    %5521 = vst [vmem:[%s3 + $0x8] sm:$0xff] %v5517
    // Predicated region
    $region18: #{transformer_forward.1} parent=1 // pred_check
      _
    $region19: #{transformer_forward.1} parent=1 // pred_check_branch
      %5523 = sbr.rel (0) target = $region21
    $region20: #{transformer_forward.1} parent=1 // pred_region
      _
    $region21: #{transformer_forward.1} parent=1 // pred_fallthru
      _
    // Predicated region
    $region22: #{transformer_forward.1} parent=1 // pred_check
      _
    $region23: #{transformer_forward.1} parent=1 // pred_check_branch
      %5525 = sbr.rel (0) target = $region25
    $region24: #{transformer_forward.1} parent=1 // pred_region
      _
    $region25: #{transformer_forward.1} parent=1 // pred_fallthru
      _
    %5526 = vsyncpa [#allocation3], 1

</llo_original>
